<compile_context>
chip_gen: v5e
topology: v5e:2x2
jax: 0.10.0
libtpu: 0.0.40
codegen_flags: <defaults>
</compile_context>

<pallas_src>
import jax
import jax.numpy as jnp
from jax.experimental import pallas as pl
from jax.experimental.pallas import tpu as pltpu

BN_EPS = 1e-5
N_CLASS = 4
N_PAD = 128  # lane-dense padded output width


def _round_up(x, m):
    return ((x + m - 1) // m) * m


# ---------------------------------------------------------------------------
# Fused forward kernel: BT samples per grid step, everything stays in VMEM
# ---------------------------------------------------------------------------
def _fused_forward_kernel(x_ref, w1t_ref, b1t_ref, w2_ref, b2_ref,
                          wfc_ref, bfc_ref, out_ref,
                          xrep_s, p1_s, lhs_s, c2_s):
    f32 = jnp.float32
    BT = out_ref.shape[0]

    # ---- replicate each padded input column across the 32 conv1 channels ----
    # x_ref[0]: (12*BT, 12)  row = hpad*BT + b, col = wpad (zero-padded image)
    # xrep_s:   (12*BT, 384) lane = wpad*32 + c  (value independent of c)
    x2 = x_ref[0]
    xrep_s[...] = jnp.concatenate(
        [jnp.broadcast_to(x2[:, w:w + 1], (12 * BT, 32)) for w in range(12)],
        axis=1)

    # ---- conv1 (VPU, lane-dense FMAs) + ReLU fused with 2x2 maxpool ---------
    # p1_s: (7*BT, 224) row = hp_pad*BT + b, lane = wp_pad*32 + c.
    # The zero border (hp_pad/wp_pad in {0,6}) provides conv2's padding=1.
    p1_s[...] = jnp.zeros(p1_s.shape, p1_s.dtype)
    b1t = b1t_ref[...]                                       # (1, 320)

    def conv1_row(h):
        acc = jnp.broadcast_to(b1t, (BT, 320))
        for t in range(9):
            dy, dx = divmod(t, 3)
            xs = xrep_s[(h + dy) * BT:(h + dy + 1) * BT, dx * 32:dx * 32 + 320]
            acc = acc + xs * w1t_ref[t:t + 1, :]             # (BT,320) VPU FMA
        return jnp.maximum(acc, 0.0)

    for hp in range(5):
        r = jnp.maximum(conv1_row(2 * hp), conv1_row(2 * hp + 1))      # (BT, 320)
        even = jnp.concatenate(
            [r[:, (2 * wp) * 32:(2 * wp + 1) * 32] for wp in range(5)], axis=1)
        odd = jnp.concatenate(
            [r[:, (2 * wp + 1) * 32:(2 * wp + 2) * 32] for wp in range(5)], axis=1)
        p1_s[(hp + 1) * BT:(hp + 2) * BT, 32:192] = jnp.maximum(even, odd)

    # ---- conv2 im2col gather -------------------------------------------------
    # lhs_s: (25*BT, 288) row = (h*5 + w)*BT + b, lane = (dy*3+dx)*32 + cin
    for t in range(9):
        dy, dx = divmod(t, 3)
        for h in range(5):
            src_r = (h + dy) * BT
            for w in range(5):
                dst_r = (h * 5 + w) * BT
                lhs_s[dst_r:dst_r + BT, t * 32:(t + 1) * 32] = \
                    p1_s[src_r:src_r + BT, (w + dx) * 32:(w + dx + 1) * 32]

    # ---- conv2: ONE (25*BT, 288) @ (288, 128) MXU matmul + bias + ReLU ------
    c2 = jnp.dot(lhs_s[...], w2_ref[...], preferred_element_type=f32)
    c2_s[...] = jnp.maximum(c2 + b2_ref[...], 0.0)

    # ---- 2x2 maxpool (5x5 -> 2x2) + BN(eval)-folded Linear as ONE matmul ----
    def c2_block(h, w):
        r = (h * 5 + w) * BT
        return c2_s[r:r + BT, :]

    pieces = []
    for ho in range(2):
        for wo in range(2):
            pooled = jnp.maximum(
                jnp.maximum(c2_block(2 * ho, 2 * wo), c2_block(2 * ho, 2 * wo + 1)),
                jnp.maximum(c2_block(2 * ho + 1, 2 * wo), c2_block(2 * ho + 1, 2 * wo + 1)))
            pieces.append(pooled)                            # (BT, 128) each
    feats = jnp.concatenate(pieces, axis=1)                  # (BT, 512) lane = pos*128 + c
    out_ref[...] = (jnp.dot(feats, wfc_ref[...], preferred_element_type=f32)
                    + bfc_ref[...])


# ---------------------------------------------------------------------------
# Wrapper: parameter folding / regrouping (trace-time, tiny) + pallas_call
# ---------------------------------------------------------------------------
def nn_model_forward(x_nchw, params, *, block_batch=128):
    B = x_nchw.shape[0]
    BT = int(min(block_batch, _round_up(B, 8)))
    Bp = _round_up(B, BT)
    nb = Bp // BT

    # NCHW (B,1,10,10) -> (B,10,10); pad batch to a BT multiple and zero-pad 10->12.
    x = x_nchw.reshape(B, 10, 10).astype(jnp.float32)
    if Bp != B:
        x = jnp.pad(x, ((0, Bp - B), (0, 0), (0, 0)))
    xpad = jnp.pad(x, ((0, 0), (1, 1), (1, 1)))                       # (Bp, 12, 12)
    # rows inside one batch tile are hpad*BT + b
    x_arr = xpad.reshape(nb, BT, 12, 12).transpose(0, 2, 1, 3).reshape(nb, 12 * BT, 12)

    # conv1 weights (Cout,Cin,kh,kw) -> per-tap (9, 32), tiled across 10 output cols
    w1_taps = jnp.transpose(params["w1"].astype(jnp.float32), (2, 3, 1, 0)).reshape(9, 32)
    w1_tiled = jnp.tile(w1_taps, (1, 10))                              # (9, 320)
    b1_tiled = jnp.tile(params["b1"].astype(jnp.float32).reshape(1, 32), (1, 10))

    # conv2 weights (Cout,Cin,kh,kw) -> row = (dy*3+dx)*32 + cin  -> (288, 128)
    w2_t = jnp.transpose(params["w2"].astype(jnp.float32), (2, 3, 1, 0)).reshape(288, 128)
    b2 = params["b2"].astype(jnp.float32).reshape(1, 128)

    # Fold BatchNorm1d (eval) into the Linear (exact), regroup rows from PyTorch's
    # NCHW flatten order (k = c*4 + h*2 + w) to kernel order (pos*128 + c), pad N->128.
    hi = jax.lax.Precision.HIGHEST
    scale = params["bn_gamma"] * jax.lax.rsqrt(params["bn_var"] + BN_EPS)   # (512,)
    shift = params["bn_beta"] - params["bn_mean"] * scale
    w_lin = params["wfc"].astype(jnp.float32).T                             # (512, 4)
    w_eff = w_lin * scale[:, None]
    b_eff = params["bfc"].astype(jnp.float32) + jnp.dot(shift, w_lin, precision=hi)
    wfc_k = jnp.transpose(w_eff.reshape(128, 4, N_CLASS), (1, 0, 2)).reshape(512, N_CLASS)
    wfc_k = jnp.pad(wfc_k, ((0, 0), (0, N_PAD - N_CLASS)))                  # (512, 128)
    bfc_k = jnp.pad(b_eff, (0, N_PAD - N_CLASS)).reshape(1, N_PAD)

    out = pl.pallas_call(
        _fused_forward_kernel,
        out_shape=jax.ShapeDtypeStruct((Bp, N_PAD), jnp.float32),
        grid_spec=pltpu.PrefetchScalarGridSpec(
            num_scalar_prefetch=0,
            grid=(nb,),
            in_specs=[
                pl.BlockSpec((1, 12 * BT, 12), lambda i: (i, 0, 0)),   # per-tile input
                pl.BlockSpec((9, 320), lambda i: (0, 0)),              # weights: resident
                pl.BlockSpec((1, 320), lambda i: (0, 0)),
                pl.BlockSpec((288, 128), lambda i: (0, 0)),
                pl.BlockSpec((1, 128), lambda i: (0, 0)),
                pl.BlockSpec((512, 128), lambda i: (0, 0)),
                pl.BlockSpec((1, 128), lambda i: (0, 0)),
            ],
            out_specs=pl.BlockSpec((BT, N_PAD), lambda i: (i, 0)),
            scratch_shapes=[
                pltpu.VMEM((12 * BT, 384), jnp.float32),   # channel-replicated input
                pltpu.VMEM((7 * BT, 224), jnp.float32),    # pool1 (+ conv2 zero border)
                pltpu.VMEM((25 * BT, 288), jnp.float32),   # conv2 im2col LHS
                pltpu.VMEM((25 * BT, 128), jnp.float32),   # conv2 + ReLU output
            ],
        ),
        compiler_params=pltpu.CompilerParams(
            dimension_semantics=("parallel",),   # batch tiles fully independent
        ),
    )(x_arr, w1_tiled, b1_tiled, w2_t, b2, wfc_k, bfc_k)

    av = out[:B, :N_CLASS]
    return av, av  # forward returns the logits twice, mirroring the PyTorch module


# ---------------------------------------------------------------------------
# Parameters (PyTorch layouts: Conv2d (Cout,Cin,kh,kw), Linear (out,in))
# ---------------------------------------------------------------------------
def make_params(key):
    ks = jax.random.split(key, 10)
    return {
        "w1": jax.random.normal(ks[0], (32, 1, 3, 3), jnp.float32) * 0.1,
        "b1": jax.random.normal(ks[1], (32,), jnp.float32) * 0.1,
        "w2": jax.random.normal(ks[2], (128, 32, 3, 3), jnp.float32) * 0.05,
        "b2": jax.random.normal(ks[3], (128,), jnp.float32) * 0.05,
        "bn_gamma": jax.random.uniform(ks[4], (512,), jnp.float32, 0.5, 1.5),
        "bn_beta": jax.random.normal(ks[5], (512,), jnp.float32) * 0.1,
        "bn_mean": jax.random.normal(ks[6], (512,), jnp.float32) * 0.1,
        "bn_var": jax.random.uniform(ks[7], (512,), jnp.float32, 0.5, 1.5),
        "wfc": jax.random.normal(ks[8], (4, 512), jnp.float32) * 0.05,
        "bfc": jax.random.normal(ks[9], (4,), jnp.float32) * 0.05,
    }


# ---------------------------------------------------------------------------
# Pure-JAX reference (same math, XLA ops) for a numerical sanity check
# ---------------------------------------------------------------------------
def _reference_forward(x_nchw, params):
    hi = jax.lax.Precision.HIGHEST
    B = x_nchw.shape[0]
    a = x_nchw.reshape(B, 10, 10, 1).astype(jnp.float32)

    def conv3x3_relu(h, w_oihw, b):
        w = jnp.transpose(w_oihw, (2, 3, 1, 0))                 # (kh, kw, cin, cout)
        Bc, H, W, Ci = h.shape
        hp = jnp.pad(h, ((0, 0), (1, 1), (1, 1), (0, 0)))
        taps = [hp[:, dy:dy + H, dx:dx + W, :] for dy in range(3) for dx in range(3)]
        p = jnp.concatenate(taps, axis=-1)                      # k = (dy*3+dx)*Ci + ci
        out = jnp.einsum('bhwk,ko->bhwo', p, w.reshape(9 * Ci, -1), precision=hi) + b
        return jnp.maximum(out, 0.0)

    def pool2x2(h):
        Bc, H, W, C = h.shape
        Ho, Wo = H // 2, W // 2
        h = h[:, :Ho * 2, :Wo * 2, :].reshape(Bc, Ho, 2, Wo, 2, C)
        return h.max(axis=(2, 4))

    a = pool2x2(conv3x3_relu(a, params["w1"], params["b1"]))    # (B, 5, 5, 32)
    a = pool2x2(conv3x3_relu(a, params["w2"], params["b2"]))    # (B, 2, 2, 128)
    feats = jnp.transpose(a, (0, 3, 1, 2)).reshape(B, -1)       # NCHW flatten
    scale = params["bn_gamma"] * jax.lax.rsqrt(params["bn_var"] + BN_EPS)
    xn = (feats - params["bn_mean"]) * scale + params["bn_beta"]
    return jnp.dot(xn, params["wfc"].T, precision=hi) + params["bfc"]


if __name__ == "__main__":
    key = jax.random.PRNGKey(0)
    pkey, xkey, xkey2 = jax.random.split(key, 3)
    params = make_params(pkey)
    fwd = jax.jit(nn_model_forward)

    # small batch consistent with the module: (batch, 1 channel, 10, 10)
    x = jax.random.normal(xkey, (2, 1, 10, 10), jnp.float32)
    av, av2 = fwd(x, params)
    jax.block_until_ready((av, av2))
    ref = _reference_forward(x, params)
    assert av.shape == (2, N_CLASS) and av2.shape == (2, N_CLASS)
    assert bool(jnp.all(av == av2))
    assert bool(jnp.all(jnp.isfinite(av)))
    assert bool(jnp.allclose(av, ref, rtol=2e-2, atol=2e-2)), "small-batch mismatch"

    # larger batch: exercises multi-step grid, batch padding and the parallel axis
    xb = jax.random.normal(xkey2, (200, 1, 10, 10), jnp.float32)
    avb, _ = fwd(xb, params)
    jax.block_until_ready(avb)
    refb = _reference_forward(xb, params)
    assert avb.shape == (200, N_CLASS)
    assert bool(jnp.all(jnp.isfinite(avb)))
    assert bool(jnp.allclose(avb, refb, rtol=2e-2, atol=2e-2)), "big-batch mismatch"

    print("KERNEL_OK")
</pallas_src>

<mosaic_0001>
module attributes {stable_mosaic.version = 11 : i64} {
  func.func @_fused_forward_kernel(%arg0: i32, %arg1: memref<1x96x12xf32, #tpu.memory_space<vmem>>, %arg2: memref<9x320xf32, #tpu.memory_space<vmem>>, %arg3: memref<1x320xf32, #tpu.memory_space<vmem>>, %arg4: memref<288x128xf32, #tpu.memory_space<vmem>>, %arg5: memref<1x128xf32, #tpu.memory_space<vmem>>, %arg6: memref<512x128xf32, #tpu.memory_space<vmem>>, %arg7: memref<1x128xf32, #tpu.memory_space<vmem>>, %arg8: memref<8x128xf32, #tpu.memory_space<vmem>>, %arg9: memref<96x384xf32, #tpu.memory_space<vmem>>, %arg10: memref<56x224xf32, #tpu.memory_space<vmem>>, %arg11: memref<200x288xf32, #tpu.memory_space<vmem>>, %arg12: memref<200x128xf32, #tpu.memory_space<vmem>>) attributes {dimension_semantics = [#tpu.dimension_semantics<parallel>], iteration_bounds = array<i64: 1>, scalar_prefetch = 0 : i64, scratch_operands = 4 : i64, tpu.core_type = #tpu.core_type<tc>, window_params = [{transform_indices = @transform_0, window_bounds = array<i64: 1, 96, 12>}, {pipeline_mode = #tpu.pipeline_mode<synchronous>, transform_indices = @transform_1, window_bounds = array<i64: 9, 320>}, {pipeline_mode = #tpu.pipeline_mode<synchronous>, transform_indices = @transform_2, window_bounds = array<i64: 1, 320>}, {pipeline_mode = #tpu.pipeline_mode<synchronous>, transform_indices = @transform_3, window_bounds = array<i64: 288, 128>}, {pipeline_mode = #tpu.pipeline_mode<synchronous>, transform_indices = @transform_4, window_bounds = array<i64: 1, 128>}, {pipeline_mode = #tpu.pipeline_mode<synchronous>, transform_indices = @transform_5, window_bounds = array<i64: 512, 128>}, {pipeline_mode = #tpu.pipeline_mode<synchronous>, transform_indices = @transform_6, window_bounds = array<i64: 1, 128>}, {transform_indices = @transform_7, window_bounds = array<i64: 8, 128>}]} {
    %c0 = arith.constant 0 : index
    %c0_0 = arith.constant 0 : index
    %c0_1 = arith.constant 0 : index
    %0 = vector.load %arg1[%c0, %c0_0, %c0_1] : memref<1x96x12xf32, #tpu.memory_space<vmem>>, vector<1x96x12xf32>
    %1 = vector.shape_cast %0 : vector<1x96x12xf32> to vector<96x12xf32>
    %2 = vector.extract_strided_slice %1 {offsets = [0, 0], sizes = [96, 1], strides = [1, 1]} : vector<96x12xf32> to vector<96x1xf32>
    %3 = vector.shape_cast %2 : vector<96x1xf32> to vector<96x1xf32>
    %4 = vector.broadcast %3 : vector<96x1xf32> to vector<96x32xf32>
    %5 = vector.extract_strided_slice %1 {offsets = [0, 1], sizes = [96, 1], strides = [1, 1]} : vector<96x12xf32> to vector<96x1xf32>
    %6 = vector.shape_cast %5 : vector<96x1xf32> to vector<96x1xf32>
    %7 = vector.broadcast %6 : vector<96x1xf32> to vector<96x32xf32>
    %8 = vector.extract_strided_slice %1 {offsets = [0, 2], sizes = [96, 1], strides = [1, 1]} : vector<96x12xf32> to vector<96x1xf32>
    %9 = vector.shape_cast %8 : vector<96x1xf32> to vector<96x1xf32>
    %10 = vector.broadcast %9 : vector<96x1xf32> to vector<96x32xf32>
    %11 = vector.extract_strided_slice %1 {offsets = [0, 3], sizes = [96, 1], strides = [1, 1]} : vector<96x12xf32> to vector<96x1xf32>
    %12 = vector.shape_cast %11 : vector<96x1xf32> to vector<96x1xf32>
    %13 = vector.broadcast %12 : vector<96x1xf32> to vector<96x32xf32>
    %14 = vector.extract_strided_slice %1 {offsets = [0, 4], sizes = [96, 1], strides = [1, 1]} : vector<96x12xf32> to vector<96x1xf32>
    %15 = vector.shape_cast %14 : vector<96x1xf32> to vector<96x1xf32>
    %16 = vector.broadcast %15 : vector<96x1xf32> to vector<96x32xf32>
    %17 = vector.extract_strided_slice %1 {offsets = [0, 5], sizes = [96, 1], strides = [1, 1]} : vector<96x12xf32> to vector<96x1xf32>
    %18 = vector.shape_cast %17 : vector<96x1xf32> to vector<96x1xf32>
    %19 = vector.broadcast %18 : vector<96x1xf32> to vector<96x32xf32>
    %20 = vector.extract_strided_slice %1 {offsets = [0, 6], sizes = [96, 1], strides = [1, 1]} : vector<96x12xf32> to vector<96x1xf32>
    %21 = vector.shape_cast %20 : vector<96x1xf32> to vector<96x1xf32>
    %22 = vector.broadcast %21 : vector<96x1xf32> to vector<96x32xf32>
    %23 = vector.extract_strided_slice %1 {offsets = [0, 7], sizes = [96, 1], strides = [1, 1]} : vector<96x12xf32> to vector<96x1xf32>
    %24 = vector.shape_cast %23 : vector<96x1xf32> to vector<96x1xf32>
    %25 = vector.broadcast %24 : vector<96x1xf32> to vector<96x32xf32>
    %26 = vector.extract_strided_slice %1 {offsets = [0, 8], sizes = [96, 1], strides = [1, 1]} : vector<96x12xf32> to vector<96x1xf32>
    %27 = vector.shape_cast %26 : vector<96x1xf32> to vector<96x1xf32>
    %28 = vector.broadcast %27 : vector<96x1xf32> to vector<96x32xf32>
    %29 = vector.extract_strided_slice %1 {offsets = [0, 9], sizes = [96, 1], strides = [1, 1]} : vector<96x12xf32> to vector<96x1xf32>
    %30 = vector.shape_cast %29 : vector<96x1xf32> to vector<96x1xf32>
    %31 = vector.broadcast %30 : vector<96x1xf32> to vector<96x32xf32>
    %32 = vector.extract_strided_slice %1 {offsets = [0, 10], sizes = [96, 1], strides = [1, 1]} : vector<96x12xf32> to vector<96x1xf32>
    %33 = vector.shape_cast %32 : vector<96x1xf32> to vector<96x1xf32>
    %34 = vector.broadcast %33 : vector<96x1xf32> to vector<96x32xf32>
    %35 = vector.extract_strided_slice %1 {offsets = [0, 11], sizes = [96, 1], strides = [1, 1]} : vector<96x12xf32> to vector<96x1xf32>
    %36 = vector.shape_cast %35 : vector<96x1xf32> to vector<96x1xf32>
    %37 = vector.broadcast %36 : vector<96x1xf32> to vector<96x32xf32>
    %38 = tpu.concatenate %4, %7, %10, %13, %16, %19, %22, %25, %28, %31, %34, %37 in 1 : vector<96x32xf32>, vector<96x32xf32>, vector<96x32xf32>, vector<96x32xf32>, vector<96x32xf32>, vector<96x32xf32>, vector<96x32xf32>, vector<96x32xf32>, vector<96x32xf32>, vector<96x32xf32>, vector<96x32xf32>, vector<96x32xf32> -> vector<96x384xf32>
    %c0_2 = arith.constant 0 : index
    %c0_3 = arith.constant 0 : index
    %39 = vector.load %arg9[%c0_2, %c0_3] : memref<96x384xf32, #tpu.memory_space<vmem>>, vector<96x384xf32>
    tpu.vector_store %arg9[%c0_2, %c0_3], %38 {strides = array<i32>} : memref<96x384xf32, #tpu.memory_space<vmem>>, vector<96x384xf32>,
    %cst = arith.constant 0.000000e+00 : f32
    %40 = vector.broadcast %cst : f32 to vector<56x224xf32>
    %c0_4 = arith.constant 0 : index
    %c0_5 = arith.constant 0 : index
    %41 = vector.load %arg10[%c0_4, %c0_5] : memref<56x224xf32, #tpu.memory_space<vmem>>, vector<56x224xf32>
    tpu.vector_store %arg10[%c0_4, %c0_5], %40 {strides = array<i32>} : memref<56x224xf32, #tpu.memory_space<vmem>>, vector<56x224xf32>,
    %c0_6 = arith.constant 0 : index
    %c0_7 = arith.constant 0 : index
    %42 = vector.load %arg3[%c0_6, %c0_7] : memref<1x320xf32, #tpu.memory_space<vmem>>, vector<1x320xf32>
    %43 = vector.shape_cast %42 : vector<1x320xf32> to vector<1x320xf32>
    %44 = vector.broadcast %43 : vector<1x320xf32> to vector<8x320xf32>
    %c0_8 = arith.constant 0 : index
    %c0_9 = arith.constant 0 : index
    %45 = vector.load %arg9[%c0_8, %c0_9] : memref<96x384xf32, #tpu.memory_space<vmem>>, vector<8x320xf32>
    %c0_10 = arith.constant 0 : index
    %c0_11 = arith.constant 0 : index
    %46 = vector.load %arg2[%c0_10, %c0_11] : memref<9x320xf32, #tpu.memory_space<vmem>>, vector<1x320xf32>
    %47 = vector.broadcast %46 : vector<1x320xf32> to vector<8x320xf32>
    %48 = arith.mulf %45, %47 : vector<8x320xf32>
    %49 = arith.addf %44, %48 : vector<8x320xf32>
    %c0_12 = arith.constant 0 : index
    %c32 = arith.constant 32 : index
    %50 = vector.load %arg9[%c0_12, %c32] : memref<96x384xf32, #tpu.memory_space<vmem>>, vector<8x320xf32>
    %c1 = arith.constant 1 : index
    %c0_13 = arith.constant 0 : index
    %51 = vector.load %arg2[%c1, %c0_13] : memref<9x320xf32, #tpu.memory_space<vmem>>, vector<1x320xf32>
    %52 = vector.broadcast %51 : vector<1x320xf32> to vector<8x320xf32>
    %53 = arith.mulf %50, %52 : vector<8x320xf32>
    %54 = arith.addf %49, %53 : vector<8x320xf32>
    %c0_14 = arith.constant 0 : index
    %c64 = arith.constant 64 : index
    %55 = vector.load %arg9[%c0_14, %c64] : memref<96x384xf32, #tpu.memory_space<vmem>>, vector<8x320xf32>
    %c2 = arith.constant 2 : index
    %c0_15 = arith.constant 0 : index
    %56 = vector.load %arg2[%c2, %c0_15] : memref<9x320xf32, #tpu.memory_space<vmem>>, vector<1x320xf32>
    %57 = vector.broadcast %56 : vector<1x320xf32> to vector<8x320xf32>
    %58 = arith.mulf %55, %57 : vector<8x320xf32>
    %59 = arith.addf %54, %58 : vector<8x320xf32>
    %c8 = arith.constant 8 : index
    %c0_16 = arith.constant 0 : index
    %60 = vector.load %arg9[%c8, %c0_16] : memref<96x384xf32, #tpu.memory_space<vmem>>, vector<8x320xf32>
    %c3 = arith.constant 3 : index
    %c0_17 = arith.constant 0 : index
    %61 = vector.load %arg2[%c3, %c0_17] : memref<9x320xf32, #tpu.memory_space<vmem>>, vector<1x320xf32>
    %62 = vector.broadcast %61 : vector<1x320xf32> to vector<8x320xf32>
    %63 = arith.mulf %60, %62 : vector<8x320xf32>
    %64 = arith.addf %59, %63 : vector<8x320xf32>
    %c8_18 = arith.constant 8 : index
    %c32_19 = arith.constant 32 : index
    %65 = vector.load %arg9[%c8_18, %c32_19] : memref<96x384xf32, #tpu.memory_space<vmem>>, vector<8x320xf32>
    %c4 = arith.constant 4 : index
    %c0_20 = arith.constant 0 : index
    %66 = vector.load %arg2[%c4, %c0_20] : memref<9x320xf32, #tpu.memory_space<vmem>>, vector<1x320xf32>
    %67 = vector.broadcast %66 : vector<1x320xf32> to vector<8x320xf32>
    %68 = arith.mulf %65, %67 : vector<8x320xf32>
    %69 = arith.addf %64, %68 : vector<8x320xf32>
    %c8_21 = arith.constant 8 : index
    %c64_22 = arith.constant 64 : index
    %70 = vector.load %arg9[%c8_21, %c64_22] : memref<96x384xf32, #tpu.memory_space<vmem>>, vector<8x320xf32>
    %c5 = arith.constant 5 : index
    %c0_23 = arith.constant 0 : index
    %71 = vector.load %arg2[%c5, %c0_23] : memref<9x320xf32, #tpu.memory_space<vmem>>, vector<1x320xf32>
    %72 = vector.broadcast %71 : vector<1x320xf32> to vector<8x320xf32>
    %73 = arith.mulf %70, %72 : vector<8x320xf32>
    %74 = arith.addf %69, %73 : vector<8x320xf32>
    %c16 = arith.constant 16 : index
    %c0_24 = arith.constant 0 : index
    %75 = vector.load %arg9[%c16, %c0_24] : memref<96x384xf32, #tpu.memory_space<vmem>>, vector<8x320xf32>
    %c6 = arith.constant 6 : index
    %c0_25 = arith.constant 0 : index
    %76 = vector.load %arg2[%c6, %c0_25] : memref<9x320xf32, #tpu.memory_space<vmem>>, vector<1x320xf32>
    %77 = vector.broadcast %76 : vector<1x320xf32> to vector<8x320xf32>
    %78 = arith.mulf %75, %77 : vector<8x320xf32>
    %79 = arith.addf %74, %78 : vector<8x320xf32>
    %c16_26 = arith.constant 16 : index
    %c32_27 = arith.constant 32 : index
    %80 = vector.load %arg9[%c16_26, %c32_27] : memref<96x384xf32, #tpu.memory_space<vmem>>, vector<8x320xf32>
    %c7 = arith.constant 7 : index
    %c0_28 = arith.constant 0 : index
    %81 = vector.load %arg2[%c7, %c0_28] : memref<9x320xf32, #tpu.memory_space<vmem>>, vector<1x320xf32>
    %82 = vector.broadcast %81 : vector<1x320xf32> to vector<8x320xf32>
    %83 = arith.mulf %80, %82 : vector<8x320xf32>
    %84 = arith.addf %79, %83 : vector<8x320xf32>
    %c16_29 = arith.constant 16 : index
    %c64_30 = arith.constant 64 : index
    %85 = vector.load %arg9[%c16_29, %c64_30] : memref<96x384xf32, #tpu.memory_space<vmem>>, vector<8x320xf32>
    %c8_31 = arith.constant 8 : index
    %c0_32 = arith.constant 0 : index
    %86 = vector.load %arg2[%c8_31, %c0_32] : memref<9x320xf32, #tpu.memory_space<vmem>>, vector<1x320xf32>
    %87 = vector.broadcast %86 : vector<1x320xf32> to vector<8x320xf32>
    %88 = arith.mulf %85, %87 : vector<8x320xf32>
    %89 = arith.addf %84, %88 : vector<8x320xf32>
    %cst_33 = arith.constant 0.000000e+00 : f32
    %90 = vector.broadcast %cst_33 : f32 to vector<8x320xf32>
    %91 = arith.maximumf %89, %90 : vector<8x320xf32>
    %92 = vector.shape_cast %42 : vector<1x320xf32> to vector<1x320xf32>
    %93 = vector.broadcast %92 : vector<1x320xf32> to vector<8x320xf32>
    %c8_34 = arith.constant 8 : index
    %c0_35 = arith.constant 0 : index
    %94 = vector.load %arg9[%c8_34, %c0_35] : memref<96x384xf32, #tpu.memory_space<vmem>>, vector<8x320xf32>
    %c0_36 = arith.constant 0 : index
    %c0_37 = arith.constant 0 : index
    %95 = vector.load %arg2[%c0_36, %c0_37] : memref<9x320xf32, #tpu.memory_space<vmem>>, vector<1x320xf32>
    %96 = vector.broadcast %95 : vector<1x320xf32> to vector<8x320xf32>
    %97 = arith.mulf %94, %96 : vector<8x320xf32>
    %98 = arith.addf %93, %97 : vector<8x320xf32>
    %c8_38 = arith.constant 8 : index
    %c32_39 = arith.constant 32 : index
    %99 = vector.load %arg9[%c8_38, %c32_39] : memref<96x384xf32, #tpu.memory_space<vmem>>, vector<8x320xf32>
    %c1_40 = arith.constant 1 : index
    %c0_41 = arith.constant 0 : index
    %100 = vector.load %arg2[%c1_40, %c0_41] : memref<9x320xf32, #tpu.memory_space<vmem>>, vector<1x320xf32>
    %101 = vector.broadcast %100 : vector<1x320xf32> to vector<8x320xf32>
    %102 = arith.mulf %99, %101 : vector<8x320xf32>
    %103 = arith.addf %98, %102 : vector<8x320xf32>
    %c8_42 = arith.constant 8 : index
    %c64_43 = arith.constant 64 : index
    %104 = vector.load %arg9[%c8_42, %c64_43] : memref<96x384xf32, #tpu.memory_space<vmem>>, vector<8x320xf32>
    %c2_44 = arith.constant 2 : index
    %c0_45 = arith.constant 0 : index
    %105 = vector.load %arg2[%c2_44, %c0_45] : memref<9x320xf32, #tpu.memory_space<vmem>>, vector<1x320xf32>
    %106 = vector.broadcast %105 : vector<1x320xf32> to vector<8x320xf32>
    %107 = arith.mulf %104, %106 : vector<8x320xf32>
    %108 = arith.addf %103, %107 : vector<8x320xf32>
    %c16_46 = arith.constant 16 : index
    %c0_47 = arith.constant 0 : index
    %109 = vector.load %arg9[%c16_46, %c0_47] : memref<96x384xf32, #tpu.memory_space<vmem>>, vector<8x320xf32>
    %c3_48 = arith.constant 3 : index
    %c0_49 = arith.constant 0 : index
    %110 = vector.load %arg2[%c3_48, %c0_49] : memref<9x320xf32, #tpu.memory_space<vmem>>, vector<1x320xf32>
    %111 = vector.broadcast %110 : vector<1x320xf32> to vector<8x320xf32>
    %112 = arith.mulf %109, %111 : vector<8x320xf32>
    %113 = arith.addf %108, %112 : vector<8x320xf32>
    %c16_50 = arith.constant 16 : index
    %c32_51 = arith.constant 32 : index
    %114 = vector.load %arg9[%c16_50, %c32_51] : memref<96x384xf32, #tpu.memory_space<vmem>>, vector<8x320xf32>
    %c4_52 = arith.constant 4 : index
    %c0_53 = arith.constant 0 : index
    %115 = vector.load %arg2[%c4_52, %c0_53] : memref<9x320xf32, #tpu.memory_space<vmem>>, vector<1x320xf32>
    %116 = vector.broadcast %115 : vector<1x320xf32> to vector<8x320xf32>
    %117 = arith.mulf %114, %116 : vector<8x320xf32>
    %118 = arith.addf %113, %117 : vector<8x320xf32>
    %c16_54 = arith.constant 16 : index
    %c64_55 = arith.constant 64 : index
    %119 = vector.load %arg9[%c16_54, %c64_55] : memref<96x384xf32, #tpu.memory_space<vmem>>, vector<8x320xf32>
    %c5_56 = arith.constant 5 : index
    %c0_57 = arith.constant 0 : index
    %120 = vector.load %arg2[%c5_56, %c0_57] : memref<9x320xf32, #tpu.memory_space<vmem>>, vector<1x320xf32>
    %121 = vector.broadcast %120 : vector<1x320xf32> to vector<8x320xf32>
    %122 = arith.mulf %119, %121 : vector<8x320xf32>
    %123 = arith.addf %118, %122 : vector<8x320xf32>
    %c24 = arith.constant 24 : index
    %c0_58 = arith.constant 0 : index
    %124 = vector.load %arg9[%c24, %c0_58] : memref<96x384xf32, #tpu.memory_space<vmem>>, vector<8x320xf32>
    %c6_59 = arith.constant 6 : index
    %c0_60 = arith.constant 0 : index
    %125 = vector.load %arg2[%c6_59, %c0_60] : memref<9x320xf32, #tpu.memory_space<vmem>>, vector<1x320xf32>
    %126 = vector.broadcast %125 : vector<1x320xf32> to vector<8x320xf32>
    %127 = arith.mulf %124, %126 : vector<8x320xf32>
    %128 = arith.addf %123, %127 : vector<8x320xf32>
    %c24_61 = arith.constant 24 : index
    %c32_62 = arith.constant 32 : index
    %129 = vector.load %arg9[%c24_61, %c32_62] : memref<96x384xf32, #tpu.memory_space<vmem>>, vector<8x320xf32>
    %c7_63 = arith.constant 7 : index
    %c0_64 = arith.constant 0 : index
    %130 = vector.load %arg2[%c7_63, %c0_64] : memref<9x320xf32, #tpu.memory_space<vmem>>, vector<1x320xf32>
    %131 = vector.broadcast %130 : vector<1x320xf32> to vector<8x320xf32>
    %132 = arith.mulf %129, %131 : vector<8x320xf32>
    %133 = arith.addf %128, %132 : vector<8x320xf32>
    %c24_65 = arith.constant 24 : index
    %c64_66 = arith.constant 64 : index
    %134 = vector.load %arg9[%c24_65, %c64_66] : memref<96x384xf32, #tpu.memory_space<vmem>>, vector<8x320xf32>
    %c8_67 = arith.constant 8 : index
    %c0_68 = arith.constant 0 : index
    %135 = vector.load %arg2[%c8_67, %c0_68] : memref<9x320xf32, #tpu.memory_space<vmem>>, vector<1x320xf32>
    %136 = vector.broadcast %135 : vector<1x320xf32> to vector<8x320xf32>
    %137 = arith.mulf %134, %136 : vector<8x320xf32>
    %138 = arith.addf %133, %137 : vector<8x320xf32>
    %cst_69 = arith.constant 0.000000e+00 : f32
    %139 = vector.broadcast %cst_69 : f32 to vector<8x320xf32>
    %140 = arith.maximumf %138, %139 : vector<8x320xf32>
    %141 = arith.maximumf %91, %140 : vector<8x320xf32>
    %142 = vector.extract_strided_slice %141 {offsets = [0, 0], sizes = [8, 32], strides = [1, 1]} : vector<8x320xf32> to vector<8x32xf32>
    %143 = vector.extract_strided_slice %141 {offsets = [0, 64], sizes = [8, 32], strides = [1, 1]} : vector<8x320xf32> to vector<8x32xf32>
    %144 = vector.extract_strided_slice %141 {offsets = [0, 128], sizes = [8, 32], strides = [1, 1]} : vector<8x320xf32> to vector<8x32xf32>
    %145 = vector.extract_strided_slice %141 {offsets = [0, 192], sizes = [8, 32], strides = [1, 1]} : vector<8x320xf32> to vector<8x32xf32>
    %146 = vector.extract_strided_slice %141 {offsets = [0, 256], sizes = [8, 32], strides = [1, 1]} : vector<8x320xf32> to vector<8x32xf32>
    %147 = tpu.concatenate %142, %143, %144, %145, %146 in 1 : vector<8x32xf32>, vector<8x32xf32>, vector<8x32xf32>, vector<8x32xf32>, vector<8x32xf32> -> vector<8x160xf32>
    %148 = vector.extract_strided_slice %141 {offsets = [0, 32], sizes = [8, 32], strides = [1, 1]} : vector<8x320xf32> to vector<8x32xf32>
    %149 = vector.extract_strided_slice %141 {offsets = [0, 96], sizes = [8, 32], strides = [1, 1]} : vector<8x320xf32> to vector<8x32xf32>
    %150 = vector.extract_strided_slice %141 {offsets = [0, 160], sizes = [8, 32], strides = [1, 1]} : vector<8x320xf32> to vector<8x32xf32>
    %151 = vector.extract_strided_slice %141 {offsets = [0, 224], sizes = [8, 32], strides = [1, 1]} : vector<8x320xf32> to vector<8x32xf32>
    %152 = vector.extract_strided_slice %141 {offsets = [0, 288], sizes = [8, 32], strides = [1, 1]} : vector<8x320xf32> to vector<8x32xf32>
    %153 = tpu.concatenate %148, %149, %150, %151, %152 in 1 : vector<8x32xf32>, vector<8x32xf32>, vector<8x32xf32>, vector<8x32xf32>, vector<8x32xf32> -> vector<8x160xf32>
    %154 = arith.maximumf %147, %153 : vector<8x160xf32>
    %c8_70 = arith.constant 8 : index
    %c32_71 = arith.constant 32 : index
    %155 = vector.load %arg10[%c8_70, %c32_71] : memref<56x224xf32, #tpu.memory_space<vmem>>, vector<8x160xf32>
    tpu.vector_store %arg10[%c8_70, %c32_71], %154 {strides = array<i32>} : memref<56x224xf32, #tpu.memory_space<vmem>>, vector<8x160xf32>,
    %156 = vector.shape_cast %42 : vector<1x320xf32> to vector<1x320xf32>
    %157 = vector.broadcast %156 : vector<1x320xf32> to vector<8x320xf32>
    %c16_72 = arith.constant 16 : index
    %c0_73 = arith.constant 0 : index
    %158 = vector.load %arg9[%c16_72, %c0_73] : memref<96x384xf32, #tpu.memory_space<vmem>>, vector<8x320xf32>
    %c0_74 = arith.constant 0 : index
    %c0_75 = arith.constant 0 : index
    %159 = vector.load %arg2[%c0_74, %c0_75] : memref<9x320xf32, #tpu.memory_space<vmem>>, vector<1x320xf32>
    %160 = vector.broadcast %159 : vector<1x320xf32> to vector<8x320xf32>
    %161 = arith.mulf %158, %160 : vector<8x320xf32>
    %162 = arith.addf %157, %161 : vector<8x320xf32>
    %c16_76 = arith.constant 16 : index
    %c32_77 = arith.constant 32 : index
    %163 = vector.load %arg9[%c16_76, %c32_77] : memref<96x384xf32, #tpu.memory_space<vmem>>, vector<8x320xf32>
    %c1_78 = arith.constant 1 : index
    %c0_79 = arith.constant 0 : index
    %164 = vector.load %arg2[%c1_78, %c0_79] : memref<9x320xf32, #tpu.memory_space<vmem>>, vector<1x320xf32>
    %165 = vector.broadcast %164 : vector<1x320xf32> to vector<8x320xf32>
    %166 = arith.mulf %163, %165 : vector<8x320xf32>
    %167 = arith.addf %162, %166 : vector<8x320xf32>
    %c16_80 = arith.constant 16 : index
    %c64_81 = arith.constant 64 : index
    %168 = vector.load %arg9[%c16_80, %c64_81] : memref<96x384xf32, #tpu.memory_space<vmem>>, vector<8x320xf32>
    %c2_82 = arith.constant 2 : index
    %c0_83 = arith.constant 0 : index
    %169 = vector.load %arg2[%c2_82, %c0_83] : memref<9x320xf32, #tpu.memory_space<vmem>>, vector<1x320xf32>
    %170 = vector.broadcast %169 : vector<1x320xf32> to vector<8x320xf32>
    %171 = arith.mulf %168, %170 : vector<8x320xf32>
    %172 = arith.addf %167, %171 : vector<8x320xf32>
    %c24_84 = arith.constant 24 : index
    %c0_85 = arith.constant 0 : index
    %173 = vector.load %arg9[%c24_84, %c0_85] : memref<96x384xf32, #tpu.memory_space<vmem>>, vector<8x320xf32>
    %c3_86 = arith.constant 3 : index
    %c0_87 = arith.constant 0 : index
    %174 = vector.load %arg2[%c3_86, %c0_87] : memref<9x320xf32, #tpu.memory_space<vmem>>, vector<1x320xf32>
    %175 = vector.broadcast %174 : vector<1x320xf32> to vector<8x320xf32>
    %176 = arith.mulf %173, %175 : vector<8x320xf32>
    %177 = arith.addf %172, %176 : vector<8x320xf32>
    %c24_88 = arith.constant 24 : index
    %c32_89 = arith.constant 32 : index
    %178 = vector.load %arg9[%c24_88, %c32_89] : memref<96x384xf32, #tpu.memory_space<vmem>>, vector<8x320xf32>
    %c4_90 = arith.constant 4 : index
    %c0_91 = arith.constant 0 : index
    %179 = vector.load %arg2[%c4_90, %c0_91] : memref<9x320xf32, #tpu.memory_space<vmem>>, vector<1x320xf32>
    %180 = vector.broadcast %179 : vector<1x320xf32> to vector<8x320xf32>
    %181 = arith.mulf %178, %180 : vector<8x320xf32>
    %182 = arith.addf %177, %181 : vector<8x320xf32>
    %c24_92 = arith.constant 24 : index
    %c64_93 = arith.constant 64 : index
    %183 = vector.load %arg9[%c24_92, %c64_93] : memref<96x384xf32, #tpu.memory_space<vmem>>, vector<8x320xf32>
    %c5_94 = arith.constant 5 : index
    %c0_95 = arith.constant 0 : index
    %184 = vector.load %arg2[%c5_94, %c0_95] : memref<9x320xf32, #tpu.memory_space<vmem>>, vector<1x320xf32>
    %185 = vector.broadcast %184 : vector<1x320xf32> to vector<8x320xf32>
    %186 = arith.mulf %183, %185 : vector<8x320xf32>
    %187 = arith.addf %182, %186 : vector<8x320xf32>
    %c32_96 = arith.constant 32 : index
    %c0_97 = arith.constant 0 : index
    %188 = vector.load %arg9[%c32_96, %c0_97] : memref<96x384xf32, #tpu.memory_space<vmem>>, vector<8x320xf32>
    %c6_98 = arith.constant 6 : index
    %c0_99 = arith.constant 0 : index
    %189 = vector.load %arg2[%c6_98, %c0_99] : memref<9x320xf32, #tpu.memory_space<vmem>>, vector<1x320xf32>
    %190 = vector.broadcast %189 : vector<1x320xf32> to vector<8x320xf32>
    %191 = arith.mulf %188, %190 : vector<8x320xf32>
    %192 = arith.addf %187, %191 : vector<8x320xf32>
    %c32_100 = arith.constant 32 : index
    %c32_101 = arith.constant 32 : index
    %193 = vector.load %arg9[%c32_100, %c32_101] : memref<96x384xf32, #tpu.memory_space<vmem>>, vector<8x320xf32>
    %c7_102 = arith.constant 7 : index
    %c0_103 = arith.constant 0 : index
    %194 = vector.load %arg2[%c7_102, %c0_103] : memref<9x320xf32, #tpu.memory_space<vmem>>, vector<1x320xf32>
    %195 = vector.broadcast %194 : vector<1x320xf32> to vector<8x320xf32>
    %196 = arith.mulf %193, %195 : vector<8x320xf32>
    %197 = arith.addf %192, %196 : vector<8x320xf32>
    %c32_104 = arith.constant 32 : index
    %c64_105 = arith.constant 64 : index
    %198 = vector.load %arg9[%c32_104, %c64_105] : memref<96x384xf32, #tpu.memory_space<vmem>>, vector<8x320xf32>
    %c8_106 = arith.constant 8 : index
    %c0_107 = arith.constant 0 : index
    %199 = vector.load %arg2[%c8_106, %c0_107] : memref<9x320xf32, #tpu.memory_space<vmem>>, vector<1x320xf32>
    %200 = vector.broadcast %199 : vector<1x320xf32> to vector<8x320xf32>
    %201 = arith.mulf %198, %200 : vector<8x320xf32>
    %202 = arith.addf %197, %201 : vector<8x320xf32>
    %cst_108 = arith.constant 0.000000e+00 : f32
    %203 = vector.broadcast %cst_108 : f32 to vector<8x320xf32>
    %204 = arith.maximumf %202, %203 : vector<8x320xf32>
    %205 = vector.shape_cast %42 : vector<1x320xf32> to vector<1x320xf32>
    %206 = vector.broadcast %205 : vector<1x320xf32> to vector<8x320xf32>
    %c24_109 = arith.constant 24 : index
    %c0_110 = arith.constant 0 : index
    %207 = vector.load %arg9[%c24_109, %c0_110] : memref<96x384xf32, #tpu.memory_space<vmem>>, vector<8x320xf32>
    %c0_111 = arith.constant 0 : index
    %c0_112 = arith.constant 0 : index
    %208 = vector.load %arg2[%c0_111, %c0_112] : memref<9x320xf32, #tpu.memory_space<vmem>>, vector<1x320xf32>
    %209 = vector.broadcast %208 : vector<1x320xf32> to vector<8x320xf32>
    %210 = arith.mulf %207, %209 : vector<8x320xf32>
    %211 = arith.addf %206, %210 : vector<8x320xf32>
    %c24_113 = arith.constant 24 : index
    %c32_114 = arith.constant 32 : index
    %212 = vector.load %arg9[%c24_113, %c32_114] : memref<96x384xf32, #tpu.memory_space<vmem>>, vector<8x320xf32>
    %c1_115 = arith.constant 1 : index
    %c0_116 = arith.constant 0 : index
    %213 = vector.load %arg2[%c1_115, %c0_116] : memref<9x320xf32, #tpu.memory_space<vmem>>, vector<1x320xf32>
    %214 = vector.broadcast %213 : vector<1x320xf32> to vector<8x320xf32>
    %215 = arith.mulf %212, %214 : vector<8x320xf32>
    %216 = arith.addf %211, %215 : vector<8x320xf32>
    %c24_117 = arith.constant 24 : index
    %c64_118 = arith.constant 64 : index
    %217 = vector.load %arg9[%c24_117, %c64_118] : memref<96x384xf32, #tpu.memory_space<vmem>>, vector<8x320xf32>
    %c2_119 = arith.constant 2 : index
    %c0_120 = arith.constant 0 : index
    %218 = vector.load %arg2[%c2_119, %c0_120] : memref<9x320xf32, #tpu.memory_space<vmem>>, vector<1x320xf32>
    %219 = vector.broadcast %218 : vector<1x320xf32> to vector<8x320xf32>
    %220 = arith.mulf %217, %219 : vector<8x320xf32>
    %221 = arith.addf %216, %220 : vector<8x320xf32>
    %c32_121 = arith.constant 32 : index
    %c0_122 = arith.constant 0 : index
    %222 = vector.load %arg9[%c32_121, %c0_122] : memref<96x384xf32, #tpu.memory_space<vmem>>, vector<8x320xf32>
    %c3_123 = arith.constant 3 : index
    %c0_124 = arith.constant 0 : index
    %223 = vector.load %arg2[%c3_123, %c0_124] : memref<9x320xf32, #tpu.memory_space<vmem>>, vector<1x320xf32>
    %224 = vector.broadcast %223 : vector<1x320xf32> to vector<8x320xf32>
    %225 = arith.mulf %222, %224 : vector<8x320xf32>
    %226 = arith.addf %221, %225 : vector<8x320xf32>
    %c32_125 = arith.constant 32 : index
    %c32_126 = arith.constant 32 : index
    %227 = vector.load %arg9[%c32_125, %c32_126] : memref<96x384xf32, #tpu.memory_space<vmem>>, vector<8x320xf32>
    %c4_127 = arith.constant 4 : index
    %c0_128 = arith.constant 0 : index
    %228 = vector.load %arg2[%c4_127, %c0_128] : memref<9x320xf32, #tpu.memory_space<vmem>>, vector<1x320xf32>
    %229 = vector.broadcast %228 : vector<1x320xf32> to vector<8x320xf32>
    %230 = arith.mulf %227, %229 : vector<8x320xf32>
    %231 = arith.addf %226, %230 : vector<8x320xf32>
    %c32_129 = arith.constant 32 : index
    %c64_130 = arith.constant 64 : index
    %232 = vector.load %arg9[%c32_129, %c64_130] : memref<96x384xf32, #tpu.memory_space<vmem>>, vector<8x320xf32>
    %c5_131 = arith.constant 5 : index
    %c0_132 = arith.constant 0 : index
    %233 = vector.load %arg2[%c5_131, %c0_132] : memref<9x320xf32, #tpu.memory_space<vmem>>, vector<1x320xf32>
    %234 = vector.broadcast %233 : vector<1x320xf32> to vector<8x320xf32>
    %235 = arith.mulf %232, %234 : vector<8x320xf32>
    %236 = arith.addf %231, %235 : vector<8x320xf32>
    %c40 = arith.constant 40 : index
    %c0_133 = arith.constant 0 : index
    %237 = vector.load %arg9[%c40, %c0_133] : memref<96x384xf32, #tpu.memory_space<vmem>>, vector<8x320xf32>
    %c6_134 = arith.constant 6 : index
    %c0_135 = arith.constant 0 : index
    %238 = vector.load %arg2[%c6_134, %c0_135] : memref<9x320xf32, #tpu.memory_space<vmem>>, vector<1x320xf32>
    %239 = vector.broadcast %238 : vector<1x320xf32> to vector<8x320xf32>
    %240 = arith.mulf %237, %239 : vector<8x320xf32>
    %241 = arith.addf %236, %240 : vector<8x320xf32>
    %c40_136 = arith.constant 40 : index
    %c32_137 = arith.constant 32 : index
    %242 = vector.load %arg9[%c40_136, %c32_137] : memref<96x384xf32, #tpu.memory_space<vmem>>, vector<8x320xf32>
    %c7_138 = arith.constant 7 : index
    %c0_139 = arith.constant 0 : index
    %243 = vector.load %arg2[%c7_138, %c0_139] : memref<9x320xf32, #tpu.memory_space<vmem>>, vector<1x320xf32>
    %244 = vector.broadcast %243 : vector<1x320xf32> to vector<8x320xf32>
    %245 = arith.mulf %242, %244 : vector<8x320xf32>
    %246 = arith.addf %241, %245 : vector<8x320xf32>
    %c40_140 = arith.constant 40 : index
    %c64_141 = arith.constant 64 : index
    %247 = vector.load %arg9[%c40_140, %c64_141] : memref<96x384xf32, #tpu.memory_space<vmem>>, vector<8x320xf32>
    %c8_142 = arith.constant 8 : index
    %c0_143 = arith.constant 0 : index
    %248 = vector.load %arg2[%c8_142, %c0_143] : memref<9x320xf32, #tpu.memory_space<vmem>>, vector<1x320xf32>
    %249 = vector.broadcast %248 : vector<1x320xf32> to vector<8x320xf32>
    %250 = arith.mulf %247, %249 : vector<8x320xf32>
    %251 = arith.addf %246, %250 : vector<8x320xf32>
    %cst_144 = arith.constant 0.000000e+00 : f32
    %252 = vector.broadcast %cst_144 : f32 to vector<8x320xf32>
    %253 = arith.maximumf %251, %252 : vector<8x320xf32>
    %254 = arith.maximumf %204, %253 : vector<8x320xf32>
    %255 = vector.extract_strided_slice %254 {offsets = [0, 0], sizes = [8, 32], strides = [1, 1]} : vector<8x320xf32> to vector<8x32xf32>
    %256 = vector.extract_strided_slice %254 {offsets = [0, 64], sizes = [8, 32], strides = [1, 1]} : vector<8x320xf32> to vector<8x32xf32>
    %257 = vector.extract_strided_slice %254 {offsets = [0, 128], sizes = [8, 32], strides = [1, 1]} : vector<8x320xf32> to vector<8x32xf32>
    %258 = vector.extract_strided_slice %254 {offsets = [0, 192], sizes = [8, 32], strides = [1, 1]} : vector<8x320xf32> to vector<8x32xf32>
    %259 = vector.extract_strided_slice %254 {offsets = [0, 256], sizes = [8, 32], strides = [1, 1]} : vector<8x320xf32> to vector<8x32xf32>
    %260 = tpu.concatenate %255, %256, %257, %258, %259 in 1 : vector<8x32xf32>, vector<8x32xf32>, vector<8x32xf32>, vector<8x32xf32>, vector<8x32xf32> -> vector<8x160xf32>
    %261 = vector.extract_strided_slice %254 {offsets = [0, 32], sizes = [8, 32], strides = [1, 1]} : vector<8x320xf32> to vector<8x32xf32>
    %262 = vector.extract_strided_slice %254 {offsets = [0, 96], sizes = [8, 32], strides = [1, 1]} : vector<8x320xf32> to vector<8x32xf32>
    %263 = vector.extract_strided_slice %254 {offsets = [0, 160], sizes = [8, 32], strides = [1, 1]} : vector<8x320xf32> to vector<8x32xf32>
    %264 = vector.extract_strided_slice %254 {offsets = [0, 224], sizes = [8, 32], strides = [1, 1]} : vector<8x320xf32> to vector<8x32xf32>
    %265 = vector.extract_strided_slice %254 {offsets = [0, 288], sizes = [8, 32], strides = [1, 1]} : vector<8x320xf32> to vector<8x32xf32>
    %266 = tpu.concatenate %261, %262, %263, %264, %265 in 1 : vector<8x32xf32>, vector<8x32xf32>, vector<8x32xf32>, vector<8x32xf32>, vector<8x32xf32> -> vector<8x160xf32>
    %267 = arith.maximumf %260, %266 : vector<8x160xf32>
    %c16_145 = arith.constant 16 : index
    %c32_146 = arith.constant 32 : index
    %268 = vector.load %arg10[%c16_145, %c32_146] : memref<56x224xf32, #tpu.memory_space<vmem>>, vector<8x160xf32>
    tpu.vector_store %arg10[%c16_145, %c32_146], %267 {strides = array<i32>} : memref<56x224xf32, #tpu.memory_space<vmem>>, vector<8x160xf32>,
    %269 = vector.shape_cast %42 : vector<1x320xf32> to vector<1x320xf32>
    %270 = vector.broadcast %269 : vector<1x320xf32> to vector<8x320xf32>
    %c32_147 = arith.constant 32 : index
    %c0_148 = arith.constant 0 : index
    %271 = vector.load %arg9[%c32_147, %c0_148] : memref<96x384xf32, #tpu.memory_space<vmem>>, vector<8x320xf32>
    %c0_149 = arith.constant 0 : index
    %c0_150 = arith.constant 0 : index
    %272 = vector.load %arg2[%c0_149, %c0_150] : memref<9x320xf32, #tpu.memory_space<vmem>>, vector<1x320xf32>
    %273 = vector.broadcast %272 : vector<1x320xf32> to vector<8x320xf32>
    %274 = arith.mulf %271, %273 : vector<8x320xf32>
    %275 = arith.addf %270, %274 : vector<8x320xf32>
    %c32_151 = arith.constant 32 : index
    %c32_152 = arith.constant 32 : index
    %276 = vector.load %arg9[%c32_151, %c32_152] : memref<96x384xf32, #tpu.memory_space<vmem>>, vector<8x320xf32>
    %c1_153 = arith.constant 1 : index
    %c0_154 = arith.constant 0 : index
    %277 = vector.load %arg2[%c1_153, %c0_154] : memref<9x320xf32, #tpu.memory_space<vmem>>, vector<1x320xf32>
    %278 = vector.broadcast %277 : vector<1x320xf32> to vector<8x320xf32>
    %279 = arith.mulf %276, %278 : vector<8x320xf32>
    %280 = arith.addf %275, %279 : vector<8x320xf32>
    %c32_155 = arith.constant 32 : index
    %c64_156 = arith.constant 64 : index
    %281 = vector.load %arg9[%c32_155, %c64_156] : memref<96x384xf32, #tpu.memory_space<vmem>>, vector<8x320xf32>
    %c2_157 = arith.constant 2 : index
    %c0_158 = arith.constant 0 : index
    %282 = vector.load %arg2[%c2_157, %c0_158] : memref<9x320xf32, #tpu.memory_space<vmem>>, vector<1x320xf32>
    %283 = vector.broadcast %282 : vector<1x320xf32> to vector<8x320xf32>
    %284 = arith.mulf %281, %283 : vector<8x320xf32>
    %285 = arith.addf %280, %284 : vector<8x320xf32>
    %c40_159 = arith.constant 40 : index
    %c0_160 = arith.constant 0 : index
    %286 = vector.load %arg9[%c40_159, %c0_160] : memref<96x384xf32, #tpu.memory_space<vmem>>, vector<8x320xf32>
    %c3_161 = arith.constant 3 : index
    %c0_162 = arith.constant 0 : index
    %287 = vector.load %arg2[%c3_161, %c0_162] : memref<9x320xf32, #tpu.memory_space<vmem>>, vector<1x320xf32>
    %288 = vector.broadcast %287 : vector<1x320xf32> to vector<8x320xf32>
    %289 = arith.mulf %286, %288 : vector<8x320xf32>
    %290 = arith.addf %285, %289 : vector<8x320xf32>
    %c40_163 = arith.constant 40 : index
    %c32_164 = arith.constant 32 : index
    %291 = vector.load %arg9[%c40_163, %c32_164] : memref<96x384xf32, #tpu.memory_space<vmem>>, vector<8x320xf32>
    %c4_165 = arith.constant 4 : index
    %c0_166 = arith.constant 0 : index
    %292 = vector.load %arg2[%c4_165, %c0_166] : memref<9x320xf32, #tpu.memory_space<vmem>>, vector<1x320xf32>
    %293 = vector.broadcast %292 : vector<1x320xf32> to vector<8x320xf32>
    %294 = arith.mulf %291, %293 : vector<8x320xf32>
    %295 = arith.addf %290, %294 : vector<8x320xf32>
    %c40_167 = arith.constant 40 : index
    %c64_168 = arith.constant 64 : index
    %296 = vector.load %arg9[%c40_167, %c64_168] : memref<96x384xf32, #tpu.memory_space<vmem>>, vector<8x320xf32>
    %c5_169 = arith.constant 5 : index
    %c0_170 = arith.constant 0 : index
    %297 = vector.load %arg2[%c5_169, %c0_170] : memref<9x320xf32, #tpu.memory_space<vmem>>, vector<1x320xf32>
    %298 = vector.broadcast %297 : vector<1x320xf32> to vector<8x320xf32>
    %299 = arith.mulf %296, %298 : vector<8x320xf32>
    %300 = arith.addf %295, %299 : vector<8x320xf32>
    %c48 = arith.constant 48 : index
    %c0_171 = arith.constant 0 : index
    %301 = vector.load %arg9[%c48, %c0_171] : memref<96x384xf32, #tpu.memory_space<vmem>>, vector<8x320xf32>
    %c6_172 = arith.constant 6 : index
    %c0_173 = arith.constant 0 : index
    %302 = vector.load %arg2[%c6_172, %c0_173] : memref<9x320xf32, #tpu.memory_space<vmem>>, vector<1x320xf32>
    %303 = vector.broadcast %302 : vector<1x320xf32> to vector<8x320xf32>
    %304 = arith.mulf %301, %303 : vector<8x320xf32>
    %305 = arith.addf %300, %304 : vector<8x320xf32>
    %c48_174 = arith.constant 48 : index
    %c32_175 = arith.constant 32 : index
    %306 = vector.load %arg9[%c48_174, %c32_175] : memref<96x384xf32, #tpu.memory_space<vmem>>, vector<8x320xf32>
    %c7_176 = arith.constant 7 : index
    %c0_177 = arith.constant 0 : index
    %307 = vector.load %arg2[%c7_176, %c0_177] : memref<9x320xf32, #tpu.memory_space<vmem>>, vector<1x320xf32>
    %308 = vector.broadcast %307 : vector<1x320xf32> to vector<8x320xf32>
    %309 = arith.mulf %306, %308 : vector<8x320xf32>
    %310 = arith.addf %305, %309 : vector<8x320xf32>
    %c48_178 = arith.constant 48 : index
    %c64_179 = arith.constant 64 : index
    %311 = vector.load %arg9[%c48_178, %c64_179] : memref<96x384xf32, #tpu.memory_space<vmem>>, vector<8x320xf32>
    %c8_180 = arith.constant 8 : index
    %c0_181 = arith.constant 0 : index
    %312 = vector.load %arg2[%c8_180, %c0_181] : memref<9x320xf32, #tpu.memory_space<vmem>>, vector<1x320xf32>
    %313 = vector.broadcast %312 : vector<1x320xf32> to vector<8x320xf32>
    %314 = arith.mulf %311, %313 : vector<8x320xf32>
    %315 = arith.addf %310, %314 : vector<8x320xf32>
    %cst_182 = arith.constant 0.000000e+00 : f32
    %316 = vector.broadcast %cst_182 : f32 to vector<8x320xf32>
    %317 = arith.maximumf %315, %316 : vector<8x320xf32>
    %318 = vector.shape_cast %42 : vector<1x320xf32> to vector<1x320xf32>
    %319 = vector.broadcast %318 : vector<1x320xf32> to vector<8x320xf32>
    %c40_183 = arith.constant 40 : index
    %c0_184 = arith.constant 0 : index
    %320 = vector.load %arg9[%c40_183, %c0_184] : memref<96x384xf32, #tpu.memory_space<vmem>>, vector<8x320xf32>
    %c0_185 = arith.constant 0 : index
    %c0_186 = arith.constant 0 : index
    %321 = vector.load %arg2[%c0_185, %c0_186] : memref<9x320xf32, #tpu.memory_space<vmem>>, vector<1x320xf32>
    %322 = vector.broadcast %321 : vector<1x320xf32> to vector<8x320xf32>
    %323 = arith.mulf %320, %322 : vector<8x320xf32>
    %324 = arith.addf %319, %323 : vector<8x320xf32>
    %c40_187 = arith.constant 40 : index
    %c32_188 = arith.constant 32 : index
    %325 = vector.load %arg9[%c40_187, %c32_188] : memref<96x384xf32, #tpu.memory_space<vmem>>, vector<8x320xf32>
    %c1_189 = arith.constant 1 : index
    %c0_190 = arith.constant 0 : index
    %326 = vector.load %arg2[%c1_189, %c0_190] : memref<9x320xf32, #tpu.memory_space<vmem>>, vector<1x320xf32>
    %327 = vector.broadcast %326 : vector<1x320xf32> to vector<8x320xf32>
    %328 = arith.mulf %325, %327 : vector<8x320xf32>
    %329 = arith.addf %324, %328 : vector<8x320xf32>
    %c40_191 = arith.constant 40 : index
    %c64_192 = arith.constant 64 : index
    %330 = vector.load %arg9[%c40_191, %c64_192] : memref<96x384xf32, #tpu.memory_space<vmem>>, vector<8x320xf32>
    %c2_193 = arith.constant 2 : index
    %c0_194 = arith.constant 0 : index
    %331 = vector.load %arg2[%c2_193, %c0_194] : memref<9x320xf32, #tpu.memory_space<vmem>>, vector<1x320xf32>
    %332 = vector.broadcast %331 : vector<1x320xf32> to vector<8x320xf32>
    %333 = arith.mulf %330, %332 : vector<8x320xf32>
    %334 = arith.addf %329, %333 : vector<8x320xf32>
    %c48_195 = arith.constant 48 : index
    %c0_196 = arith.constant 0 : index
    %335 = vector.load %arg9[%c48_195, %c0_196] : memref<96x384xf32, #tpu.memory_space<vmem>>, vector<8x320xf32>
    %c3_197 = arith.constant 3 : index
    %c0_198 = arith.constant 0 : index
    %336 = vector.load %arg2[%c3_197, %c0_198] : memref<9x320xf32, #tpu.memory_space<vmem>>, vector<1x320xf32>
    %337 = vector.broadcast %336 : vector<1x320xf32> to vector<8x320xf32>
    %338 = arith.mulf %335, %337 : vector<8x320xf32>
    %339 = arith.addf %334, %338 : vector<8x320xf32>
    %c48_199 = arith.constant 48 : index
    %c32_200 = arith.constant 32 : index
    %340 = vector.load %arg9[%c48_199, %c32_200] : memref<96x384xf32, #tpu.memory_space<vmem>>, vector<8x320xf32>
    %c4_201 = arith.constant 4 : index
    %c0_202 = arith.constant 0 : index
    %341 = vector.load %arg2[%c4_201, %c0_202] : memref<9x320xf32, #tpu.memory_space<vmem>>, vector<1x320xf32>
    %342 = vector.broadcast %341 : vector<1x320xf32> to vector<8x320xf32>
    %343 = arith.mulf %340, %342 : vector<8x320xf32>
    %344 = arith.addf %339, %343 : vector<8x320xf32>
    %c48_203 = arith.constant 48 : index
    %c64_204 = arith.constant 64 : index
    %345 = vector.load %arg9[%c48_203, %c64_204] : memref<96x384xf32, #tpu.memory_space<vmem>>, vector<8x320xf32>
    %c5_205 = arith.constant 5 : index
    %c0_206 = arith.constant 0 : index
    %346 = vector.load %arg2[%c5_205, %c0_206] : memref<9x320xf32, #tpu.memory_space<vmem>>, vector<1x320xf32>
    %347 = vector.broadcast %346 : vector<1x320xf32> to vector<8x320xf32>
    %348 = arith.mulf %345, %347 : vector<8x320xf32>
    %349 = arith.addf %344, %348 : vector<8x320xf32>
    %c56 = arith.constant 56 : index
    %c0_207 = arith.constant 0 : index
    %350 = vector.load %arg9[%c56, %c0_207] : memref<96x384xf32, #tpu.memory_space<vmem>>, vector<8x320xf32>
    %c6_208 = arith.constant 6 : index
    %c0_209 = arith.constant 0 : index
    %351 = vector.load %arg2[%c6_208, %c0_209] : memref<9x320xf32, #tpu.memory_space<vmem>>, vector<1x320xf32>
    %352 = vector.broadcast %351 : vector<1x320xf32> to vector<8x320xf32>
    %353 = arith.mulf %350, %352 : vector<8x320xf32>
    %354 = arith.addf %349, %353 : vector<8x320xf32>
    %c56_210 = arith.constant 56 : index
    %c32_211 = arith.constant 32 : index
    %355 = vector.load %arg9[%c56_210, %c32_211] : memref<96x384xf32, #tpu.memory_space<vmem>>, vector<8x320xf32>
    %c7_212 = arith.constant 7 : index
    %c0_213 = arith.constant 0 : index
    %356 = vector.load %arg2[%c7_212, %c0_213] : memref<9x320xf32, #tpu.memory_space<vmem>>, vector<1x320xf32>
    %357 = vector.broadcast %356 : vector<1x320xf32> to vector<8x320xf32>
    %358 = arith.mulf %355, %357 : vector<8x320xf32>
    %359 = arith.addf %354, %358 : vector<8x320xf32>
    %c56_214 = arith.constant 56 : index
    %c64_215 = arith.constant 64 : index
    %360 = vector.load %arg9[%c56_214, %c64_215] : memref<96x384xf32, #tpu.memory_space<vmem>>, vector<8x320xf32>
    %c8_216 = arith.constant 8 : index
    %c0_217 = arith.constant 0 : index
    %361 = vector.load %arg2[%c8_216, %c0_217] : memref<9x320xf32, #tpu.memory_space<vmem>>, vector<1x320xf32>
    %362 = vector.broadcast %361 : vector<1x320xf32> to vector<8x320xf32>
    %363 = arith.mulf %360, %362 : vector<8x320xf32>
    %364 = arith.addf %359, %363 : vector<8x320xf32>
    %cst_218 = arith.constant 0.000000e+00 : f32
    %365 = vector.broadcast %cst_218 : f32 to vector<8x320xf32>
    %366 = arith.maximumf %364, %365 : vector<8x320xf32>
    %367 = arith.maximumf %317, %366 : vector<8x320xf32>
    %368 = vector.extract_strided_slice %367 {offsets = [0, 0], sizes = [8, 32], strides = [1, 1]} : vector<8x320xf32> to vector<8x32xf32>
    %369 = vector.extract_strided_slice %367 {offsets = [0, 64], sizes = [8, 32], strides = [1, 1]} : vector<8x320xf32> to vector<8x32xf32>
    %370 = vector.extract_strided_slice %367 {offsets = [0, 128], sizes = [8, 32], strides = [1, 1]} : vector<8x320xf32> to vector<8x32xf32>
    %371 = vector.extract_strided_slice %367 {offsets = [0, 192], sizes = [8, 32], strides = [1, 1]} : vector<8x320xf32> to vector<8x32xf32>
    %372 = vector.extract_strided_slice %367 {offsets = [0, 256], sizes = [8, 32], strides = [1, 1]} : vector<8x320xf32> to vector<8x32xf32>
    %373 = tpu.concatenate %368, %369, %370, %371, %372 in 1 : vector<8x32xf32>, vector<8x32xf32>, vector<8x32xf32>, vector<8x32xf32>, vector<8x32xf32> -> vector<8x160xf32>
    %374 = vector.extract_strided_slice %367 {offsets = [0, 32], sizes = [8, 32], strides = [1, 1]} : vector<8x320xf32> to vector<8x32xf32>
    %375 = vector.extract_strided_slice %367 {offsets = [0, 96], sizes = [8, 32], strides = [1, 1]} : vector<8x320xf32> to vector<8x32xf32>
    %376 = vector.extract_strided_slice %367 {offsets = [0, 160], sizes = [8, 32], strides = [1, 1]} : vector<8x320xf32> to vector<8x32xf32>
    %377 = vector.extract_strided_slice %367 {offsets = [0, 224], sizes = [8, 32], strides = [1, 1]} : vector<8x320xf32> to vector<8x32xf32>
    %378 = vector.extract_strided_slice %367 {offsets = [0, 288], sizes = [8, 32], strides = [1, 1]} : vector<8x320xf32> to vector<8x32xf32>
    %379 = tpu.concatenate %374, %375, %376, %377, %378 in 1 : vector<8x32xf32>, vector<8x32xf32>, vector<8x32xf32>, vector<8x32xf32>, vector<8x32xf32> -> vector<8x160xf32>
    %380 = arith.maximumf %373, %379 : vector<8x160xf32>
    %c24_219 = arith.constant 24 : index
    %c32_220 = arith.constant 32 : index
    %381 = vector.load %arg10[%c24_219, %c32_220] : memref<56x224xf32, #tpu.memory_space<vmem>>, vector<8x160xf32>
    tpu.vector_store %arg10[%c24_219, %c32_220], %380 {strides = array<i32>} : memref<56x224xf32, #tpu.memory_space<vmem>>, vector<8x160xf32>,
    %382 = vector.shape_cast %42 : vector<1x320xf32> to vector<1x320xf32>
    %383 = vector.broadcast %382 : vector<1x320xf32> to vector<8x320xf32>
    %c48_221 = arith.constant 48 : index
    %c0_222 = arith.constant 0 : index
    %384 = vector.load %arg9[%c48_221, %c0_222] : memref<96x384xf32, #tpu.memory_space<vmem>>, vector<8x320xf32>
    %c0_223 = arith.constant 0 : index
    %c0_224 = arith.constant 0 : index
    %385 = vector.load %arg2[%c0_223, %c0_224] : memref<9x320xf32, #tpu.memory_space<vmem>>, vector<1x320xf32>
    %386 = vector.broadcast %385 : vector<1x320xf32> to vector<8x320xf32>
    %387 = arith.mulf %384, %386 : vector<8x320xf32>
    %388 = arith.addf %383, %387 : vector<8x320xf32>
    %c48_225 = arith.constant 48 : index
    %c32_226 = arith.constant 32 : index
    %389 = vector.load %arg9[%c48_225, %c32_226] : memref<96x384xf32, #tpu.memory_space<vmem>>, vector<8x320xf32>
    %c1_227 = arith.constant 1 : index
    %c0_228 = arith.constant 0 : index
    %390 = vector.load %arg2[%c1_227, %c0_228] : memref<9x320xf32, #tpu.memory_space<vmem>>, vector<1x320xf32>
    %391 = vector.broadcast %390 : vector<1x320xf32> to vector<8x320xf32>
    %392 = arith.mulf %389, %391 : vector<8x320xf32>
    %393 = arith.addf %388, %392 : vector<8x320xf32>
    %c48_229 = arith.constant 48 : index
    %c64_230 = arith.constant 64 : index
    %394 = vector.load %arg9[%c48_229, %c64_230] : memref<96x384xf32, #tpu.memory_space<vmem>>, vector<8x320xf32>
    %c2_231 = arith.constant 2 : index
    %c0_232 = arith.constant 0 : index
    %395 = vector.load %arg2[%c2_231, %c0_232] : memref<9x320xf32, #tpu.memory_space<vmem>>, vector<1x320xf32>
    %396 = vector.broadcast %395 : vector<1x320xf32> to vector<8x320xf32>
    %397 = arith.mulf %394, %396 : vector<8x320xf32>
    %398 = arith.addf %393, %397 : vector<8x320xf32>
    %c56_233 = arith.constant 56 : index
    %c0_234 = arith.constant 0 : index
    %399 = vector.load %arg9[%c56_233, %c0_234] : memref<96x384xf32, #tpu.memory_space<vmem>>, vector<8x320xf32>
    %c3_235 = arith.constant 3 : index
    %c0_236 = arith.constant 0 : index
    %400 = vector.load %arg2[%c3_235, %c0_236] : memref<9x320xf32, #tpu.memory_space<vmem>>, vector<1x320xf32>
    %401 = vector.broadcast %400 : vector<1x320xf32> to vector<8x320xf32>
    %402 = arith.mulf %399, %401 : vector<8x320xf32>
    %403 = arith.addf %398, %402 : vector<8x320xf32>
    %c56_237 = arith.constant 56 : index
    %c32_238 = arith.constant 32 : index
    %404 = vector.load %arg9[%c56_237, %c32_238] : memref<96x384xf32, #tpu.memory_space<vmem>>, vector<8x320xf32>
    %c4_239 = arith.constant 4 : index
    %c0_240 = arith.constant 0 : index
    %405 = vector.load %arg2[%c4_239, %c0_240] : memref<9x320xf32, #tpu.memory_space<vmem>>, vector<1x320xf32>
    %406 = vector.broadcast %405 : vector<1x320xf32> to vector<8x320xf32>
    %407 = arith.mulf %404, %406 : vector<8x320xf32>
    %408 = arith.addf %403, %407 : vector<8x320xf32>
    %c56_241 = arith.constant 56 : index
    %c64_242 = arith.constant 64 : index
    %409 = vector.load %arg9[%c56_241, %c64_242] : memref<96x384xf32, #tpu.memory_space<vmem>>, vector<8x320xf32>
    %c5_243 = arith.constant 5 : index
    %c0_244 = arith.constant 0 : index
    %410 = vector.load %arg2[%c5_243, %c0_244] : memref<9x320xf32, #tpu.memory_space<vmem>>, vector<1x320xf32>
    %411 = vector.broadcast %410 : vector<1x320xf32> to vector<8x320xf32>
    %412 = arith.mulf %409, %411 : vector<8x320xf32>
    %413 = arith.addf %408, %412 : vector<8x320xf32>
    %c64_245 = arith.constant 64 : index
    %c0_246 = arith.constant 0 : index
    %414 = vector.load %arg9[%c64_245, %c0_246] : memref<96x384xf32, #tpu.memory_space<vmem>>, vector<8x320xf32>
    %c6_247 = arith.constant 6 : index
    %c0_248 = arith.constant 0 : index
    %415 = vector.load %arg2[%c6_247, %c0_248] : memref<9x320xf32, #tpu.memory_space<vmem>>, vector<1x320xf32>
    %416 = vector.broadcast %415 : vector<1x320xf32> to vector<8x320xf32>
    %417 = arith.mulf %414, %416 : vector<8x320xf32>
    %418 = arith.addf %413, %417 : vector<8x320xf32>
    %c64_249 = arith.constant 64 : index
    %c32_250 = arith.constant 32 : index
    %419 = vector.load %arg9[%c64_249, %c32_250] : memref<96x384xf32, #tpu.memory_space<vmem>>, vector<8x320xf32>
    %c7_251 = arith.constant 7 : index
    %c0_252 = arith.constant 0 : index
    %420 = vector.load %arg2[%c7_251, %c0_252] : memref<9x320xf32, #tpu.memory_space<vmem>>, vector<1x320xf32>
    %421 = vector.broadcast %420 : vector<1x320xf32> to vector<8x320xf32>
    %422 = arith.mulf %419, %421 : vector<8x320xf32>
    %423 = arith.addf %418, %422 : vector<8x320xf32>
    %c64_253 = arith.constant 64 : index
    %c64_254 = arith.constant 64 : index
    %424 = vector.load %arg9[%c64_253, %c64_254] : memref<96x384xf32, #tpu.memory_space<vmem>>, vector<8x320xf32>
    %c8_255 = arith.constant 8 : index
    %c0_256 = arith.constant 0 : index
    %425 = vector.load %arg2[%c8_255, %c0_256] : memref<9x320xf32, #tpu.memory_space<vmem>>, vector<1x320xf32>
    %426 = vector.broadcast %425 : vector<1x320xf32> to vector<8x320xf32>
    %427 = arith.mulf %424, %426 : vector<8x320xf32>
    %428 = arith.addf %423, %427 : vector<8x320xf32>
    %cst_257 = arith.constant 0.000000e+00 : f32
    %429 = vector.broadcast %cst_257 : f32 to vector<8x320xf32>
    %430 = arith.maximumf %428, %429 : vector<8x320xf32>
    %431 = vector.shape_cast %42 : vector<1x320xf32> to vector<1x320xf32>
    %432 = vector.broadcast %431 : vector<1x320xf32> to vector<8x320xf32>
    %c56_258 = arith.constant 56 : index
    %c0_259 = arith.constant 0 : index
    %433 = vector.load %arg9[%c56_258, %c0_259] : memref<96x384xf32, #tpu.memory_space<vmem>>, vector<8x320xf32>
    %c0_260 = arith.constant 0 : index
    %c0_261 = arith.constant 0 : index
    %434 = vector.load %arg2[%c0_260, %c0_261] : memref<9x320xf32, #tpu.memory_space<vmem>>, vector<1x320xf32>
    %435 = vector.broadcast %434 : vector<1x320xf32> to vector<8x320xf32>
    %436 = arith.mulf %433, %435 : vector<8x320xf32>
    %437 = arith.addf %432, %436 : vector<8x320xf32>
    %c56_262 = arith.constant 56 : index
    %c32_263 = arith.constant 32 : index
    %438 = vector.load %arg9[%c56_262, %c32_263] : memref<96x384xf32, #tpu.memory_space<vmem>>, vector<8x320xf32>
    %c1_264 = arith.constant 1 : index
    %c0_265 = arith.constant 0 : index
    %439 = vector.load %arg2[%c1_264, %c0_265] : memref<9x320xf32, #tpu.memory_space<vmem>>, vector<1x320xf32>
    %440 = vector.broadcast %439 : vector<1x320xf32> to vector<8x320xf32>
    %441 = arith.mulf %438, %440 : vector<8x320xf32>
    %442 = arith.addf %437, %441 : vector<8x320xf32>
    %c56_266 = arith.constant 56 : index
    %c64_267 = arith.constant 64 : index
    %443 = vector.load %arg9[%c56_266, %c64_267] : memref<96x384xf32, #tpu.memory_space<vmem>>, vector<8x320xf32>
    %c2_268 = arith.constant 2 : index
    %c0_269 = arith.constant 0 : index
    %444 = vector.load %arg2[%c2_268, %c0_269] : memref<9x320xf32, #tpu.memory_space<vmem>>, vector<1x320xf32>
    %445 = vector.broadcast %444 : vector<1x320xf32> to vector<8x320xf32>
    %446 = arith.mulf %443, %445 : vector<8x320xf32>
    %447 = arith.addf %442, %446 : vector<8x320xf32>
    %c64_270 = arith.constant 64 : index
    %c0_271 = arith.constant 0 : index
    %448 = vector.load %arg9[%c64_270, %c0_271] : memref<96x384xf32, #tpu.memory_space<vmem>>, vector<8x320xf32>
    %c3_272 = arith.constant 3 : index
    %c0_273 = arith.constant 0 : index
    %449 = vector.load %arg2[%c3_272, %c0_273] : memref<9x320xf32, #tpu.memory_space<vmem>>, vector<1x320xf32>
    %450 = vector.broadcast %449 : vector<1x320xf32> to vector<8x320xf32>
    %451 = arith.mulf %448, %450 : vector<8x320xf32>
    %452 = arith.addf %447, %451 : vector<8x320xf32>
    %c64_274 = arith.constant 64 : index
    %c32_275 = arith.constant 32 : index
    %453 = vector.load %arg9[%c64_274, %c32_275] : memref<96x384xf32, #tpu.memory_space<vmem>>, vector<8x320xf32>
    %c4_276 = arith.constant 4 : index
    %c0_277 = arith.constant 0 : index
    %454 = vector.load %arg2[%c4_276, %c0_277] : memref<9x320xf32, #tpu.memory_space<vmem>>, vector<1x320xf32>
    %455 = vector.broadcast %454 : vector<1x320xf32> to vector<8x320xf32>
    %456 = arith.mulf %453, %455 : vector<8x320xf32>
    %457 = arith.addf %452, %456 : vector<8x320xf32>
    %c64_278 = arith.constant 64 : index
    %c64_279 = arith.constant 64 : index
    %458 = vector.load %arg9[%c64_278, %c64_279] : memref<96x384xf32, #tpu.memory_space<vmem>>, vector<8x320xf32>
    %c5_280 = arith.constant 5 : index
    %c0_281 = arith.constant 0 : index
    %459 = vector.load %arg2[%c5_280, %c0_281] : memref<9x320xf32, #tpu.memory_space<vmem>>, vector<1x320xf32>
    %460 = vector.broadcast %459 : vector<1x320xf32> to vector<8x320xf32>
    %461 = arith.mulf %458, %460 : vector<8x320xf32>
    %462 = arith.addf %457, %461 : vector<8x320xf32>
    %c72 = arith.constant 72 : index
    %c0_282 = arith.constant 0 : index
    %463 = vector.load %arg9[%c72, %c0_282] : memref<96x384xf32, #tpu.memory_space<vmem>>, vector<8x320xf32>
    %c6_283 = arith.constant 6 : index
    %c0_284 = arith.constant 0 : index
    %464 = vector.load %arg2[%c6_283, %c0_284] : memref<9x320xf32, #tpu.memory_space<vmem>>, vector<1x320xf32>
    %465 = vector.broadcast %464 : vector<1x320xf32> to vector<8x320xf32>
    %466 = arith.mulf %463, %465 : vector<8x320xf32>
    %467 = arith.addf %462, %466 : vector<8x320xf32>
    %c72_285 = arith.constant 72 : index
    %c32_286 = arith.constant 32 : index
    %468 = vector.load %arg9[%c72_285, %c32_286] : memref<96x384xf32, #tpu.memory_space<vmem>>, vector<8x320xf32>
    %c7_287 = arith.constant 7 : index
    %c0_288 = arith.constant 0 : index
    %469 = vector.load %arg2[%c7_287, %c0_288] : memref<9x320xf32, #tpu.memory_space<vmem>>, vector<1x320xf32>
    %470 = vector.broadcast %469 : vector<1x320xf32> to vector<8x320xf32>
    %471 = arith.mulf %468, %470 : vector<8x320xf32>
    %472 = arith.addf %467, %471 : vector<8x320xf32>
    %c72_289 = arith.constant 72 : index
    %c64_290 = arith.constant 64 : index
    %473 = vector.load %arg9[%c72_289, %c64_290] : memref<96x384xf32, #tpu.memory_space<vmem>>, vector<8x320xf32>
    %c8_291 = arith.constant 8 : index
    %c0_292 = arith.constant 0 : index
    %474 = vector.load %arg2[%c8_291, %c0_292] : memref<9x320xf32, #tpu.memory_space<vmem>>, vector<1x320xf32>
    %475 = vector.broadcast %474 : vector<1x320xf32> to vector<8x320xf32>
    %476 = arith.mulf %473, %475 : vector<8x320xf32>
    %477 = arith.addf %472, %476 : vector<8x320xf32>
    %cst_293 = arith.constant 0.000000e+00 : f32
    %478 = vector.broadcast %cst_293 : f32 to vector<8x320xf32>
    %479 = arith.maximumf %477, %478 : vector<8x320xf32>
    %480 = arith.maximumf %430, %479 : vector<8x320xf32>
    %481 = vector.extract_strided_slice %480 {offsets = [0, 0], sizes = [8, 32], strides = [1, 1]} : vector<8x320xf32> to vector<8x32xf32>
    %482 = vector.extract_strided_slice %480 {offsets = [0, 64], sizes = [8, 32], strides = [1, 1]} : vector<8x320xf32> to vector<8x32xf32>
    %483 = vector.extract_strided_slice %480 {offsets = [0, 128], sizes = [8, 32], strides = [1, 1]} : vector<8x320xf32> to vector<8x32xf32>
    %484 = vector.extract_strided_slice %480 {offsets = [0, 192], sizes = [8, 32], strides = [1, 1]} : vector<8x320xf32> to vector<8x32xf32>
    %485 = vector.extract_strided_slice %480 {offsets = [0, 256], sizes = [8, 32], strides = [1, 1]} : vector<8x320xf32> to vector<8x32xf32>
    %486 = tpu.concatenate %481, %482, %483, %484, %485 in 1 : vector<8x32xf32>, vector<8x32xf32>, vector<8x32xf32>, vector<8x32xf32>, vector<8x32xf32> -> vector<8x160xf32>
    %487 = vector.extract_strided_slice %480 {offsets = [0, 32], sizes = [8, 32], strides = [1, 1]} : vector<8x320xf32> to vector<8x32xf32>
    %488 = vector.extract_strided_slice %480 {offsets = [0, 96], sizes = [8, 32], strides = [1, 1]} : vector<8x320xf32> to vector<8x32xf32>
    %489 = vector.extract_strided_slice %480 {offsets = [0, 160], sizes = [8, 32], strides = [1, 1]} : vector<8x320xf32> to vector<8x32xf32>
    %490 = vector.extract_strided_slice %480 {offsets = [0, 224], sizes = [8, 32], strides = [1, 1]} : vector<8x320xf32> to vector<8x32xf32>
    %491 = vector.extract_strided_slice %480 {offsets = [0, 288], sizes = [8, 32], strides = [1, 1]} : vector<8x320xf32> to vector<8x32xf32>
    %492 = tpu.concatenate %487, %488, %489, %490, %491 in 1 : vector<8x32xf32>, vector<8x32xf32>, vector<8x32xf32>, vector<8x32xf32>, vector<8x32xf32> -> vector<8x160xf32>
    %493 = arith.maximumf %486, %492 : vector<8x160xf32>
    %c32_294 = arith.constant 32 : index
    %c32_295 = arith.constant 32 : index
    %494 = vector.load %arg10[%c32_294, %c32_295] : memref<56x224xf32, #tpu.memory_space<vmem>>, vector<8x160xf32>
    tpu.vector_store %arg10[%c32_294, %c32_295], %493 {strides = array<i32>} : memref<56x224xf32, #tpu.memory_space<vmem>>, vector<8x160xf32>,
    %495 = vector.shape_cast %42 : vector<1x320xf32> to vector<1x320xf32>
    %496 = vector.broadcast %495 : vector<1x320xf32> to vector<8x320xf32>
    %c64_296 = arith.constant 64 : index
    %c0_297 = arith.constant 0 : index
    %497 = vector.load %arg9[%c64_296, %c0_297] : memref<96x384xf32, #tpu.memory_space<vmem>>, vector<8x320xf32>
    %c0_298 = arith.constant 0 : index
    %c0_299 = arith.constant 0 : index
    %498 = vector.load %arg2[%c0_298, %c0_299] : memref<9x320xf32, #tpu.memory_space<vmem>>, vector<1x320xf32>
    %499 = vector.broadcast %498 : vector<1x320xf32> to vector<8x320xf32>
    %500 = arith.mulf %497, %499 : vector<8x320xf32>
    %501 = arith.addf %496, %500 : vector<8x320xf32>
    %c64_300 = arith.constant 64 : index
    %c32_301 = arith.constant 32 : index
    %502 = vector.load %arg9[%c64_300, %c32_301] : memref<96x384xf32, #tpu.memory_space<vmem>>, vector<8x320xf32>
    %c1_302 = arith.constant 1 : index
    %c0_303 = arith.constant 0 : index
    %503 = vector.load %arg2[%c1_302, %c0_303] : memref<9x320xf32, #tpu.memory_space<vmem>>, vector<1x320xf32>
    %504 = vector.broadcast %503 : vector<1x320xf32> to vector<8x320xf32>
    %505 = arith.mulf %502, %504 : vector<8x320xf32>
    %506 = arith.addf %501, %505 : vector<8x320xf32>
    %c64_304 = arith.constant 64 : index
    %c64_305 = arith.constant 64 : index
    %507 = vector.load %arg9[%c64_304, %c64_305] : memref<96x384xf32, #tpu.memory_space<vmem>>, vector<8x320xf32>
    %c2_306 = arith.constant 2 : index
    %c0_307 = arith.constant 0 : index
    %508 = vector.load %arg2[%c2_306, %c0_307] : memref<9x320xf32, #tpu.memory_space<vmem>>, vector<1x320xf32>
    %509 = vector.broadcast %508 : vector<1x320xf32> to vector<8x320xf32>
    %510 = arith.mulf %507, %509 : vector<8x320xf32>
    %511 = arith.addf %506, %510 : vector<8x320xf32>
    %c72_308 = arith.constant 72 : index
    %c0_309 = arith.constant 0 : index
    %512 = vector.load %arg9[%c72_308, %c0_309] : memref<96x384xf32, #tpu.memory_space<vmem>>, vector<8x320xf32>
    %c3_310 = arith.constant 3 : index
    %c0_311 = arith.constant 0 : index
    %513 = vector.load %arg2[%c3_310, %c0_311] : memref<9x320xf32, #tpu.memory_space<vmem>>, vector<1x320xf32>
    %514 = vector.broadcast %513 : vector<1x320xf32> to vector<8x320xf32>
    %515 = arith.mulf %512, %514 : vector<8x320xf32>
    %516 = arith.addf %511, %515 : vector<8x320xf32>
    %c72_312 = arith.constant 72 : index
    %c32_313 = arith.constant 32 : index
    %517 = vector.load %arg9[%c72_312, %c32_313] : memref<96x384xf32, #tpu.memory_space<vmem>>, vector<8x320xf32>
    %c4_314 = arith.constant 4 : index
    %c0_315 = arith.constant 0 : index
    %518 = vector.load %arg2[%c4_314, %c0_315] : memref<9x320xf32, #tpu.memory_space<vmem>>, vector<1x320xf32>
    %519 = vector.broadcast %518 : vector<1x320xf32> to vector<8x320xf32>
    %520 = arith.mulf %517, %519 : vector<8x320xf32>
    %521 = arith.addf %516, %520 : vector<8x320xf32>
    %c72_316 = arith.constant 72 : index
    %c64_317 = arith.constant 64 : index
    %522 = vector.load %arg9[%c72_316, %c64_317] : memref<96x384xf32, #tpu.memory_space<vmem>>, vector<8x320xf32>
    %c5_318 = arith.constant 5 : index
    %c0_319 = arith.constant 0 : index
    %523 = vector.load %arg2[%c5_318, %c0_319] : memref<9x320xf32, #tpu.memory_space<vmem>>, vector<1x320xf32>
    %524 = vector.broadcast %523 : vector<1x320xf32> to vector<8x320xf32>
    %525 = arith.mulf %522, %524 : vector<8x320xf32>
    %526 = arith.addf %521, %525 : vector<8x320xf32>
    %c80 = arith.constant 80 : index
    %c0_320 = arith.constant 0 : index
    %527 = vector.load %arg9[%c80, %c0_320] : memref<96x384xf32, #tpu.memory_space<vmem>>, vector<8x320xf32>
    %c6_321 = arith.constant 6 : index
    %c0_322 = arith.constant 0 : index
    %528 = vector.load %arg2[%c6_321, %c0_322] : memref<9x320xf32, #tpu.memory_space<vmem>>, vector<1x320xf32>
    %529 = vector.broadcast %528 : vector<1x320xf32> to vector<8x320xf32>
    %530 = arith.mulf %527, %529 : vector<8x320xf32>
    %531 = arith.addf %526, %530 : vector<8x320xf32>
    %c80_323 = arith.constant 80 : index
    %c32_324 = arith.constant 32 : index
    %532 = vector.load %arg9[%c80_323, %c32_324] : memref<96x384xf32, #tpu.memory_space<vmem>>, vector<8x320xf32>
    %c7_325 = arith.constant 7 : index
    %c0_326 = arith.constant 0 : index
    %533 = vector.load %arg2[%c7_325, %c0_326] : memref<9x320xf32, #tpu.memory_space<vmem>>, vector<1x320xf32>
    %534 = vector.broadcast %533 : vector<1x320xf32> to vector<8x320xf32>
    %535 = arith.mulf %532, %534 : vector<8x320xf32>
    %536 = arith.addf %531, %535 : vector<8x320xf32>
    %c80_327 = arith.constant 80 : index
    %c64_328 = arith.constant 64 : index
    %537 = vector.load %arg9[%c80_327, %c64_328] : memref<96x384xf32, #tpu.memory_space<vmem>>, vector<8x320xf32>
    %c8_329 = arith.constant 8 : index
    %c0_330 = arith.constant 0 : index
    %538 = vector.load %arg2[%c8_329, %c0_330] : memref<9x320xf32, #tpu.memory_space<vmem>>, vector<1x320xf32>
    %539 = vector.broadcast %538 : vector<1x320xf32> to vector<8x320xf32>
    %540 = arith.mulf %537, %539 : vector<8x320xf32>
    %541 = arith.addf %536, %540 : vector<8x320xf32>
    %cst_331 = arith.constant 0.000000e+00 : f32
    %542 = vector.broadcast %cst_331 : f32 to vector<8x320xf32>
    %543 = arith.maximumf %541, %542 : vector<8x320xf32>
    %544 = vector.shape_cast %42 : vector<1x320xf32> to vector<1x320xf32>
    %545 = vector.broadcast %544 : vector<1x320xf32> to vector<8x320xf32>
    %c72_332 = arith.constant 72 : index
    %c0_333 = arith.constant 0 : index
    %546 = vector.load %arg9[%c72_332, %c0_333] : memref<96x384xf32, #tpu.memory_space<vmem>>, vector<8x320xf32>
    %c0_334 = arith.constant 0 : index
    %c0_335 = arith.constant 0 : index
    %547 = vector.load %arg2[%c0_334, %c0_335] : memref<9x320xf32, #tpu.memory_space<vmem>>, vector<1x320xf32>
    %548 = vector.broadcast %547 : vector<1x320xf32> to vector<8x320xf32>
    %549 = arith.mulf %546, %548 : vector<8x320xf32>
    %550 = arith.addf %545, %549 : vector<8x320xf32>
    %c72_336 = arith.constant 72 : index
    %c32_337 = arith.constant 32 : index
    %551 = vector.load %arg9[%c72_336, %c32_337] : memref<96x384xf32, #tpu.memory_space<vmem>>, vector<8x320xf32>
    %c1_338 = arith.constant 1 : index
    %c0_339 = arith.constant 0 : index
    %552 = vector.load %arg2[%c1_338, %c0_339] : memref<9x320xf32, #tpu.memory_space<vmem>>, vector<1x320xf32>
    %553 = vector.broadcast %552 : vector<1x320xf32> to vector<8x320xf32>
    %554 = arith.mulf %551, %553 : vector<8x320xf32>
    %555 = arith.addf %550, %554 : vector<8x320xf32>
    %c72_340 = arith.constant 72 : index
    %c64_341 = arith.constant 64 : index
    %556 = vector.load %arg9[%c72_340, %c64_341] : memref<96x384xf32, #tpu.memory_space<vmem>>, vector<8x320xf32>
    %c2_342 = arith.constant 2 : index
    %c0_343 = arith.constant 0 : index
    %557 = vector.load %arg2[%c2_342, %c0_343] : memref<9x320xf32, #tpu.memory_space<vmem>>, vector<1x320xf32>
    %558 = vector.broadcast %557 : vector<1x320xf32> to vector<8x320xf32>
    %559 = arith.mulf %556, %558 : vector<8x320xf32>
    %560 = arith.addf %555, %559 : vector<8x320xf32>
    %c80_344 = arith.constant 80 : index
    %c0_345 = arith.constant 0 : index
    %561 = vector.load %arg9[%c80_344, %c0_345] : memref<96x384xf32, #tpu.memory_space<vmem>>, vector<8x320xf32>
    %c3_346 = arith.constant 3 : index
    %c0_347 = arith.constant 0 : index
    %562 = vector.load %arg2[%c3_346, %c0_347] : memref<9x320xf32, #tpu.memory_space<vmem>>, vector<1x320xf32>
    %563 = vector.broadcast %562 : vector<1x320xf32> to vector<8x320xf32>
    %564 = arith.mulf %561, %563 : vector<8x320xf32>
    %565 = arith.addf %560, %564 : vector<8x320xf32>
    %c80_348 = arith.constant 80 : index
    %c32_349 = arith.constant 32 : index
    %566 = vector.load %arg9[%c80_348, %c32_349] : memref<96x384xf32, #tpu.memory_space<vmem>>, vector<8x320xf32>
    %c4_350 = arith.constant 4 : index
    %c0_351 = arith.constant 0 : index
    %567 = vector.load %arg2[%c4_350, %c0_351] : memref<9x320xf32, #tpu.memory_space<vmem>>, vector<1x320xf32>
    %568 = vector.broadcast %567 : vector<1x320xf32> to vector<8x320xf32>
    %569 = arith.mulf %566, %568 : vector<8x320xf32>
    %570 = arith.addf %565, %569 : vector<8x320xf32>
    %c80_352 = arith.constant 80 : index
    %c64_353 = arith.constant 64 : index
    %571 = vector.load %arg9[%c80_352, %c64_353] : memref<96x384xf32, #tpu.memory_space<vmem>>, vector<8x320xf32>
    %c5_354 = arith.constant 5 : index
    %c0_355 = arith.constant 0 : index
    %572 = vector.load %arg2[%c5_354, %c0_355] : memref<9x320xf32, #tpu.memory_space<vmem>>, vector<1x320xf32>
    %573 = vector.broadcast %572 : vector<1x320xf32> to vector<8x320xf32>
    %574 = arith.mulf %571, %573 : vector<8x320xf32>
    %575 = arith.addf %570, %574 : vector<8x320xf32>
    %c88 = arith.constant 88 : index
    %c0_356 = arith.constant 0 : index
    %576 = vector.load %arg9[%c88, %c0_356] : memref<96x384xf32, #tpu.memory_space<vmem>>, vector<8x320xf32>
    %c6_357 = arith.constant 6 : index
    %c0_358 = arith.constant 0 : index
    %577 = vector.load %arg2[%c6_357, %c0_358] : memref<9x320xf32, #tpu.memory_space<vmem>>, vector<1x320xf32>
    %578 = vector.broadcast %577 : vector<1x320xf32> to vector<8x320xf32>
    %579 = arith.mulf %576, %578 : vector<8x320xf32>
    %580 = arith.addf %575, %579 : vector<8x320xf32>
    %c88_359 = arith.constant 88 : index
    %c32_360 = arith.constant 32 : index
    %581 = vector.load %arg9[%c88_359, %c32_360] : memref<96x384xf32, #tpu.memory_space<vmem>>, vector<8x320xf32>
    %c7_361 = arith.constant 7 : index
    %c0_362 = arith.constant 0 : index
    %582 = vector.load %arg2[%c7_361, %c0_362] : memref<9x320xf32, #tpu.memory_space<vmem>>, vector<1x320xf32>
    %583 = vector.broadcast %582 : vector<1x320xf32> to vector<8x320xf32>
    %584 = arith.mulf %581, %583 : vector<8x320xf32>
    %585 = arith.addf %580, %584 : vector<8x320xf32>
    %c88_363 = arith.constant 88 : index
    %c64_364 = arith.constant 64 : index
    %586 = vector.load %arg9[%c88_363, %c64_364] : memref<96x384xf32, #tpu.memory_space<vmem>>, vector<8x320xf32>
    %c8_365 = arith.constant 8 : index
    %c0_366 = arith.constant 0 : index
    %587 = vector.load %arg2[%c8_365, %c0_366] : memref<9x320xf32, #tpu.memory_space<vmem>>, vector<1x320xf32>
    %588 = vector.broadcast %587 : vector<1x320xf32> to vector<8x320xf32>
    %589 = arith.mulf %586, %588 : vector<8x320xf32>
    %590 = arith.addf %585, %589 : vector<8x320xf32>
    %cst_367 = arith.constant 0.000000e+00 : f32
    %591 = vector.broadcast %cst_367 : f32 to vector<8x320xf32>
    %592 = arith.maximumf %590, %591 : vector<8x320xf32>
    %593 = arith.maximumf %543, %592 : vector<8x320xf32>
    %594 = vector.extract_strided_slice %593 {offsets = [0, 0], sizes = [8, 32], strides = [1, 1]} : vector<8x320xf32> to vector<8x32xf32>
    %595 = vector.extract_strided_slice %593 {offsets = [0, 64], sizes = [8, 32], strides = [1, 1]} : vector<8x320xf32> to vector<8x32xf32>
    %596 = vector.extract_strided_slice %593 {offsets = [0, 128], sizes = [8, 32], strides = [1, 1]} : vector<8x320xf32> to vector<8x32xf32>
    %597 = vector.extract_strided_slice %593 {offsets = [0, 192], sizes = [8, 32], strides = [1, 1]} : vector<8x320xf32> to vector<8x32xf32>
    %598 = vector.extract_strided_slice %593 {offsets = [0, 256], sizes = [8, 32], strides = [1, 1]} : vector<8x320xf32> to vector<8x32xf32>
    %599 = tpu.concatenate %594, %595, %596, %597, %598 in 1 : vector<8x32xf32>, vector<8x32xf32>, vector<8x32xf32>, vector<8x32xf32>, vector<8x32xf32> -> vector<8x160xf32>
    %600 = vector.extract_strided_slice %593 {offsets = [0, 32], sizes = [8, 32], strides = [1, 1]} : vector<8x320xf32> to vector<8x32xf32>
    %601 = vector.extract_strided_slice %593 {offsets = [0, 96], sizes = [8, 32], strides = [1, 1]} : vector<8x320xf32> to vector<8x32xf32>
    %602 = vector.extract_strided_slice %593 {offsets = [0, 160], sizes = [8, 32], strides = [1, 1]} : vector<8x320xf32> to vector<8x32xf32>
    %603 = vector.extract_strided_slice %593 {offsets = [0, 224], sizes = [8, 32], strides = [1, 1]} : vector<8x320xf32> to vector<8x32xf32>
    %604 = vector.extract_strided_slice %593 {offsets = [0, 288], sizes = [8, 32], strides = [1, 1]} : vector<8x320xf32> to vector<8x32xf32>
    %605 = tpu.concatenate %600, %601, %602, %603, %604 in 1 : vector<8x32xf32>, vector<8x32xf32>, vector<8x32xf32>, vector<8x32xf32>, vector<8x32xf32> -> vector<8x160xf32>
    %606 = arith.maximumf %599, %605 : vector<8x160xf32>
    %c40_368 = arith.constant 40 : index
    %c32_369 = arith.constant 32 : index
    %607 = vector.load %arg10[%c40_368, %c32_369] : memref<56x224xf32, #tpu.memory_space<vmem>>, vector<8x160xf32>
    tpu.vector_store %arg10[%c40_368, %c32_369], %606 {strides = array<i32>} : memref<56x224xf32, #tpu.memory_space<vmem>>, vector<8x160xf32>,
    %c0_370 = arith.constant 0 : index
    %c0_371 = arith.constant 0 : index
    %608 = vector.load %arg10[%c0_370, %c0_371] : memref<56x224xf32, #tpu.memory_space<vmem>>, vector<8x32xf32>
    %c0_372 = arith.constant 0 : index
    %c0_373 = arith.constant 0 : index
    %609 = vector.load %arg11[%c0_372, %c0_373] : memref<200x288xf32, #tpu.memory_space<vmem>>, vector<8x32xf32>
    tpu.vector_store %arg11[%c0_372, %c0_373], %608 {strides = array<i32>} : memref<200x288xf32, #tpu.memory_space<vmem>>, vector<8x32xf32>,
    %c0_374 = arith.constant 0 : index
    %c32_375 = arith.constant 32 : index
    %610 = vector.load %arg10[%c0_374, %c32_375] : memref<56x224xf32, #tpu.memory_space<vmem>>, vector<8x32xf32>
    %c8_376 = arith.constant 8 : index
    %c0_377 = arith.constant 0 : index
    %611 = vector.load %arg11[%c8_376, %c0_377] : memref<200x288xf32, #tpu.memory_space<vmem>>, vector<8x32xf32>
    tpu.vector_store %arg11[%c8_376, %c0_377], %610 {strides = array<i32>} : memref<200x288xf32, #tpu.memory_space<vmem>>, vector<8x32xf32>,
    %c0_378 = arith.constant 0 : index
    %c64_379 = arith.constant 64 : index
    %612 = vector.load %arg10[%c0_378, %c64_379] : memref<56x224xf32, #tpu.memory_space<vmem>>, vector<8x32xf32>
    %c16_380 = arith.constant 16 : index
    %c0_381 = arith.constant 0 : index
    %613 = vector.load %arg11[%c16_380, %c0_381] : memref<200x288xf32, #tpu.memory_space<vmem>>, vector<8x32xf32>
    tpu.vector_store %arg11[%c16_380, %c0_381], %612 {strides = array<i32>} : memref<200x288xf32, #tpu.memory_space<vmem>>, vector<8x32xf32>,
    %c0_382 = arith.constant 0 : index
    %c96 = arith.constant 96 : index
    %614 = vector.load %arg10[%c0_382, %c96] : memref<56x224xf32, #tpu.memory_space<vmem>>, vector<8x32xf32>
    %c24_383 = arith.constant 24 : index
    %c0_384 = arith.constant 0 : index
    %615 = vector.load %arg11[%c24_383, %c0_384] : memref<200x288xf32, #tpu.memory_space<vmem>>, vector<8x32xf32>
    tpu.vector_store %arg11[%c24_383, %c0_384], %614 {strides = array<i32>} : memref<200x288xf32, #tpu.memory_space<vmem>>, vector<8x32xf32>,
    %c0_385 = arith.constant 0 : index
    %c128 = arith.constant 128 : index
    %616 = vector.load %arg10[%c0_385, %c128] : memref<56x224xf32, #tpu.memory_space<vmem>>, vector<8x32xf32>
    %c32_386 = arith.constant 32 : index
    %c0_387 = arith.constant 0 : index
    %617 = vector.load %arg11[%c32_386, %c0_387] : memref<200x288xf32, #tpu.memory_space<vmem>>, vector<8x32xf32>
    tpu.vector_store %arg11[%c32_386, %c0_387], %616 {strides = array<i32>} : memref<200x288xf32, #tpu.memory_space<vmem>>, vector<8x32xf32>,
    %c8_388 = arith.constant 8 : index
    %c0_389 = arith.constant 0 : index
    %618 = vector.load %arg10[%c8_388, %c0_389] : memref<56x224xf32, #tpu.memory_space<vmem>>, vector<8x32xf32>
    %c40_390 = arith.constant 40 : index
    %c0_391 = arith.constant 0 : index
    %619 = vector.load %arg11[%c40_390, %c0_391] : memref<200x288xf32, #tpu.memory_space<vmem>>, vector<8x32xf32>
    tpu.vector_store %arg11[%c40_390, %c0_391], %618 {strides = array<i32>} : memref<200x288xf32, #tpu.memory_space<vmem>>, vector<8x32xf32>,
    %c8_392 = arith.constant 8 : index
    %c32_393 = arith.constant 32 : index
    %620 = vector.load %arg10[%c8_392, %c32_393] : memref<56x224xf32, #tpu.memory_space<vmem>>, vector<8x32xf32>
    %c48_394 = arith.constant 48 : index
    %c0_395 = arith.constant 0 : index
    %621 = vector.load %arg11[%c48_394, %c0_395] : memref<200x288xf32, #tpu.memory_space<vmem>>, vector<8x32xf32>
    tpu.vector_store %arg11[%c48_394, %c0_395], %620 {strides = array<i32>} : memref<200x288xf32, #tpu.memory_space<vmem>>, vector<8x32xf32>,
    %c8_396 = arith.constant 8 : index
    %c64_397 = arith.constant 64 : index
    %622 = vector.load %arg10[%c8_396, %c64_397] : memref<56x224xf32, #tpu.memory_space<vmem>>, vector<8x32xf32>
    %c56_398 = arith.constant 56 : index
    %c0_399 = arith.constant 0 : index
    %623 = vector.load %arg11[%c56_398, %c0_399] : memref<200x288xf32, #tpu.memory_space<vmem>>, vector<8x32xf32>
    tpu.vector_store %arg11[%c56_398, %c0_399], %622 {strides = array<i32>} : memref<200x288xf32, #tpu.memory_space<vmem>>, vector<8x32xf32>,
    %c8_400 = arith.constant 8 : index
    %c96_401 = arith.constant 96 : index
    %624 = vector.load %arg10[%c8_400, %c96_401] : memref<56x224xf32, #tpu.memory_space<vmem>>, vector<8x32xf32>
    %c64_402 = arith.constant 64 : index
    %c0_403 = arith.constant 0 : index
    %625 = vector.load %arg11[%c64_402, %c0_403] : memref<200x288xf32, #tpu.memory_space<vmem>>, vector<8x32xf32>
    tpu.vector_store %arg11[%c64_402, %c0_403], %624 {strides = array<i32>} : memref<200x288xf32, #tpu.memory_space<vmem>>, vector<8x32xf32>,
    %c8_404 = arith.constant 8 : index
    %c128_405 = arith.constant 128 : index
    %626 = vector.load %arg10[%c8_404, %c128_405] : memref<56x224xf32, #tpu.memory_space<vmem>>, vector<8x32xf32>
    %c72_406 = arith.constant 72 : index
    %c0_407 = arith.constant 0 : index
    %627 = vector.load %arg11[%c72_406, %c0_407] : memref<200x288xf32, #tpu.memory_space<vmem>>, vector<8x32xf32>
    tpu.vector_store %arg11[%c72_406, %c0_407], %626 {strides = array<i32>} : memref<200x288xf32, #tpu.memory_space<vmem>>, vector<8x32xf32>,
    %c16_408 = arith.constant 16 : index
    %c0_409 = arith.constant 0 : index
    %628 = vector.load %arg10[%c16_408, %c0_409] : memref<56x224xf32, #tpu.memory_space<vmem>>, vector<8x32xf32>
    %c80_410 = arith.constant 80 : index
    %c0_411 = arith.constant 0 : index
    %629 = vector.load %arg11[%c80_410, %c0_411] : memref<200x288xf32, #tpu.memory_space<vmem>>, vector<8x32xf32>
    tpu.vector_store %arg11[%c80_410, %c0_411], %628 {strides = array<i32>} : memref<200x288xf32, #tpu.memory_space<vmem>>, vector<8x32xf32>,
    %c16_412 = arith.constant 16 : index
    %c32_413 = arith.constant 32 : index
    %630 = vector.load %arg10[%c16_412, %c32_413] : memref<56x224xf32, #tpu.memory_space<vmem>>, vector<8x32xf32>
    %c88_414 = arith.constant 88 : index
    %c0_415 = arith.constant 0 : index
    %631 = vector.load %arg11[%c88_414, %c0_415] : memref<200x288xf32, #tpu.memory_space<vmem>>, vector<8x32xf32>
    tpu.vector_store %arg11[%c88_414, %c0_415], %630 {strides = array<i32>} : memref<200x288xf32, #tpu.memory_space<vmem>>, vector<8x32xf32>,
    %c16_416 = arith.constant 16 : index
    %c64_417 = arith.constant 64 : index
    %632 = vector.load %arg10[%c16_416, %c64_417] : memref<56x224xf32, #tpu.memory_space<vmem>>, vector<8x32xf32>
    %c96_418 = arith.constant 96 : index
    %c0_419 = arith.constant 0 : index
    %633 = vector.load %arg11[%c96_418, %c0_419] : memref<200x288xf32, #tpu.memory_space<vmem>>, vector<8x32xf32>
    tpu.vector_store %arg11[%c96_418, %c0_419], %632 {strides = array<i32>} : memref<200x288xf32, #tpu.memory_space<vmem>>, vector<8x32xf32>,
    %c16_420 = arith.constant 16 : index
    %c96_421 = arith.constant 96 : index
    %634 = vector.load %arg10[%c16_420, %c96_421] : memref<56x224xf32, #tpu.memory_space<vmem>>, vector<8x32xf32>
    %c104 = arith.constant 104 : index
    %c0_422 = arith.constant 0 : index
    %635 = vector.load %arg11[%c104, %c0_422] : memref<200x288xf32, #tpu.memory_space<vmem>>, vector<8x32xf32>
    tpu.vector_store %arg11[%c104, %c0_422], %634 {strides = array<i32>} : memref<200x288xf32, #tpu.memory_space<vmem>>, vector<8x32xf32>,
    %c16_423 = arith.constant 16 : index
    %c128_424 = arith.constant 128 : index
    %636 = vector.load %arg10[%c16_423, %c128_424] : memref<56x224xf32, #tpu.memory_space<vmem>>, vector<8x32xf32>
    %c112 = arith.constant 112 : index
    %c0_425 = arith.constant 0 : index
    %637 = vector.load %arg11[%c112, %c0_425] : memref<200x288xf32, #tpu.memory_space<vmem>>, vector<8x32xf32>
    tpu.vector_store %arg11[%c112, %c0_425], %636 {strides = array<i32>} : memref<200x288xf32, #tpu.memory_space<vmem>>, vector<8x32xf32>,
    %c24_426 = arith.constant 24 : index
    %c0_427 = arith.constant 0 : index
    %638 = vector.load %arg10[%c24_426, %c0_427] : memref<56x224xf32, #tpu.memory_space<vmem>>, vector<8x32xf32>
    %c120 = arith.constant 120 : index
    %c0_428 = arith.constant 0 : index
    %639 = vector.load %arg11[%c120, %c0_428] : memref<200x288xf32, #tpu.memory_space<vmem>>, vector<8x32xf32>
    tpu.vector_store %arg11[%c120, %c0_428], %638 {strides = array<i32>} : memref<200x288xf32, #tpu.memory_space<vmem>>, vector<8x32xf32>,
    %c24_429 = arith.constant 24 : index
    %c32_430 = arith.constant 32 : index
    %640 = vector.load %arg10[%c24_429, %c32_430] : memref<56x224xf32, #tpu.memory_space<vmem>>, vector<8x32xf32>
    %c128_431 = arith.constant 128 : index
    %c0_432 = arith.constant 0 : index
    %641 = vector.load %arg11[%c128_431, %c0_432] : memref<200x288xf32, #tpu.memory_space<vmem>>, vector<8x32xf32>
    tpu.vector_store %arg11[%c128_431, %c0_432], %640 {strides = array<i32>} : memref<200x288xf32, #tpu.memory_space<vmem>>, vector<8x32xf32>,
    %c24_433 = arith.constant 24 : index
    %c64_434 = arith.constant 64 : index
    %642 = vector.load %arg10[%c24_433, %c64_434] : memref<56x224xf32, #tpu.memory_space<vmem>>, vector<8x32xf32>
    %c136 = arith.constant 136 : index
    %c0_435 = arith.constant 0 : index
    %643 = vector.load %arg11[%c136, %c0_435] : memref<200x288xf32, #tpu.memory_space<vmem>>, vector<8x32xf32>
    tpu.vector_store %arg11[%c136, %c0_435], %642 {strides = array<i32>} : memref<200x288xf32, #tpu.memory_space<vmem>>, vector<8x32xf32>,
    %c24_436 = arith.constant 24 : index
    %c96_437 = arith.constant 96 : index
    %644 = vector.load %arg10[%c24_436, %c96_437] : memref<56x224xf32, #tpu.memory_space<vmem>>, vector<8x32xf32>
    %c144 = arith.constant 144 : index
    %c0_438 = arith.constant 0 : index
    %645 = vector.load %arg11[%c144, %c0_438] : memref<200x288xf32, #tpu.memory_space<vmem>>, vector<8x32xf32>
    tpu.vector_store %arg11[%c144, %c0_438], %644 {strides = array<i32>} : memref<200x288xf32, #tpu.memory_space<vmem>>, vector<8x32xf32>,
    %c24_439 = arith.constant 24 : index
    %c128_440 = arith.constant 128 : index
    %646 = vector.load %arg10[%c24_439, %c128_440] : memref<56x224xf32, #tpu.memory_space<vmem>>, vector<8x32xf32>
    %c152 = arith.constant 152 : index
    %c0_441 = arith.constant 0 : index
    %647 = vector.load %arg11[%c152, %c0_441] : memref<200x288xf32, #tpu.memory_space<vmem>>, vector<8x32xf32>
    tpu.vector_store %arg11[%c152, %c0_441], %646 {strides = array<i32>} : memref<200x288xf32, #tpu.memory_space<vmem>>, vector<8x32xf32>,
    %c32_442 = arith.constant 32 : index
    %c0_443 = arith.constant 0 : index
    %648 = vector.load %arg10[%c32_442, %c0_443] : memref<56x224xf32, #tpu.memory_space<vmem>>, vector<8x32xf32>
    %c160 = arith.constant 160 : index
    %c0_444 = arith.constant 0 : index
    %649 = vector.load %arg11[%c160, %c0_444] : memref<200x288xf32, #tpu.memory_space<vmem>>, vector<8x32xf32>
    tpu.vector_store %arg11[%c160, %c0_444], %648 {strides = array<i32>} : memref<200x288xf32, #tpu.memory_space<vmem>>, vector<8x32xf32>,
    %c32_445 = arith.constant 32 : index
    %c32_446 = arith.constant 32 : index
    %650 = vector.load %arg10[%c32_445, %c32_446] : memref<56x224xf32, #tpu.memory_space<vmem>>, vector<8x32xf32>
    %c168 = arith.constant 168 : index
    %c0_447 = arith.constant 0 : index
    %651 = vector.load %arg11[%c168, %c0_447] : memref<200x288xf32, #tpu.memory_space<vmem>>, vector<8x32xf32>
    tpu.vector_store %arg11[%c168, %c0_447], %650 {strides = array<i32>} : memref<200x288xf32, #tpu.memory_space<vmem>>, vector<8x32xf32>,
    %c32_448 = arith.constant 32 : index
    %c64_449 = arith.constant 64 : index
    %652 = vector.load %arg10[%c32_448, %c64_449] : memref<56x224xf32, #tpu.memory_space<vmem>>, vector<8x32xf32>
    %c176 = arith.constant 176 : index
    %c0_450 = arith.constant 0 : index
    %653 = vector.load %arg11[%c176, %c0_450] : memref<200x288xf32, #tpu.memory_space<vmem>>, vector<8x32xf32>
    tpu.vector_store %arg11[%c176, %c0_450], %652 {strides = array<i32>} : memref<200x288xf32, #tpu.memory_space<vmem>>, vector<8x32xf32>,
    %c32_451 = arith.constant 32 : index
    %c96_452 = arith.constant 96 : index
    %654 = vector.load %arg10[%c32_451, %c96_452] : memref<56x224xf32, #tpu.memory_space<vmem>>, vector<8x32xf32>
    %c184 = arith.constant 184 : index
    %c0_453 = arith.constant 0 : index
    %655 = vector.load %arg11[%c184, %c0_453] : memref<200x288xf32, #tpu.memory_space<vmem>>, vector<8x32xf32>
    tpu.vector_store %arg11[%c184, %c0_453], %654 {strides = array<i32>} : memref<200x288xf32, #tpu.memory_space<vmem>>, vector<8x32xf32>,
    %c32_454 = arith.constant 32 : index
    %c128_455 = arith.constant 128 : index
    %656 = vector.load %arg10[%c32_454, %c128_455] : memref<56x224xf32, #tpu.memory_space<vmem>>, vector<8x32xf32>
    %c192 = arith.constant 192 : index
    %c0_456 = arith.constant 0 : index
    %657 = vector.load %arg11[%c192, %c0_456] : memref<200x288xf32, #tpu.memory_space<vmem>>, vector<8x32xf32>
    tpu.vector_store %arg11[%c192, %c0_456], %656 {strides = array<i32>} : memref<200x288xf32, #tpu.memory_space<vmem>>, vector<8x32xf32>,
    %c0_457 = arith.constant 0 : index
    %c32_458 = arith.constant 32 : index
    %658 = vector.load %arg10[%c0_457, %c32_458] : memref<56x224xf32, #tpu.memory_space<vmem>>, vector<8x32xf32>
    %c0_459 = arith.constant 0 : index
    %c32_460 = arith.constant 32 : index
    %659 = vector.load %arg11[%c0_459, %c32_460] : memref<200x288xf32, #tpu.memory_space<vmem>>, vector<8x32xf32>
    tpu.vector_store %arg11[%c0_459, %c32_460], %658 {strides = array<i32>} : memref<200x288xf32, #tpu.memory_space<vmem>>, vector<8x32xf32>,
    %c0_461 = arith.constant 0 : index
    %c64_462 = arith.constant 64 : index
    %660 = vector.load %arg10[%c0_461, %c64_462] : memref<56x224xf32, #tpu.memory_space<vmem>>, vector<8x32xf32>
    %c8_463 = arith.constant 8 : index
    %c32_464 = arith.constant 32 : index
    %661 = vector.load %arg11[%c8_463, %c32_464] : memref<200x288xf32, #tpu.memory_space<vmem>>, vector<8x32xf32>
    tpu.vector_store %arg11[%c8_463, %c32_464], %660 {strides = array<i32>} : memref<200x288xf32, #tpu.memory_space<vmem>>, vector<8x32xf32>,
    %c0_465 = arith.constant 0 : index
    %c96_466 = arith.constant 96 : index
    %662 = vector.load %arg10[%c0_465, %c96_466] : memref<56x224xf32, #tpu.memory_space<vmem>>, vector<8x32xf32>
    %c16_467 = arith.constant 16 : index
    %c32_468 = arith.constant 32 : index
    %663 = vector.load %arg11[%c16_467, %c32_468] : memref<200x288xf32, #tpu.memory_space<vmem>>, vector<8x32xf32>
    tpu.vector_store %arg11[%c16_467, %c32_468], %662 {strides = array<i32>} : memref<200x288xf32, #tpu.memory_space<vmem>>, vector<8x32xf32>,
    %c0_469 = arith.constant 0 : index
    %c128_470 = arith.constant 128 : index
    %664 = vector.load %arg10[%c0_469, %c128_470] : memref<56x224xf32, #tpu.memory_space<vmem>>, vector<8x32xf32>
    %c24_471 = arith.constant 24 : index
    %c32_472 = arith.constant 32 : index
    %665 = vector.load %arg11[%c24_471, %c32_472] : memref<200x288xf32, #tpu.memory_space<vmem>>, vector<8x32xf32>
    tpu.vector_store %arg11[%c24_471, %c32_472], %664 {strides = array<i32>} : memref<200x288xf32, #tpu.memory_space<vmem>>, vector<8x32xf32>,
    %c0_473 = arith.constant 0 : index
    %c160_474 = arith.constant 160 : index
    %666 = vector.load %arg10[%c0_473, %c160_474] : memref<56x224xf32, #tpu.memory_space<vmem>>, vector<8x32xf32>
    %c32_475 = arith.constant 32 : index
    %c32_476 = arith.constant 32 : index
    %667 = vector.load %arg11[%c32_475, %c32_476] : memref<200x288xf32, #tpu.memory_space<vmem>>, vector<8x32xf32>
    tpu.vector_store %arg11[%c32_475, %c32_476], %666 {strides = array<i32>} : memref<200x288xf32, #tpu.memory_space<vmem>>, vector<8x32xf32>,
    %c8_477 = arith.constant 8 : index
    %c32_478 = arith.constant 32 : index
    %668 = vector.load %arg10[%c8_477, %c32_478] : memref<56x224xf32, #tpu.memory_space<vmem>>, vector<8x32xf32>
    %c40_479 = arith.constant 40 : index
    %c32_480 = arith.constant 32 : index
    %669 = vector.load %arg11[%c40_479, %c32_480] : memref<200x288xf32, #tpu.memory_space<vmem>>, vector<8x32xf32>
    tpu.vector_store %arg11[%c40_479, %c32_480], %668 {strides = array<i32>} : memref<200x288xf32, #tpu.memory_space<vmem>>, vector<8x32xf32>,
    %c8_481 = arith.constant 8 : index
    %c64_482 = arith.constant 64 : index
    %670 = vector.load %arg10[%c8_481, %c64_482] : memref<56x224xf32, #tpu.memory_space<vmem>>, vector<8x32xf32>
    %c48_483 = arith.constant 48 : index
    %c32_484 = arith.constant 32 : index
    %671 = vector.load %arg11[%c48_483, %c32_484] : memref<200x288xf32, #tpu.memory_space<vmem>>, vector<8x32xf32>
    tpu.vector_store %arg11[%c48_483, %c32_484], %670 {strides = array<i32>} : memref<200x288xf32, #tpu.memory_space<vmem>>, vector<8x32xf32>,
    %c8_485 = arith.constant 8 : index
    %c96_486 = arith.constant 96 : index
    %672 = vector.load %arg10[%c8_485, %c96_486] : memref<56x224xf32, #tpu.memory_space<vmem>>, vector<8x32xf32>
    %c56_487 = arith.constant 56 : index
    %c32_488 = arith.constant 32 : index
    %673 = vector.load %arg11[%c56_487, %c32_488] : memref<200x288xf32, #tpu.memory_space<vmem>>, vector<8x32xf32>
    tpu.vector_store %arg11[%c56_487, %c32_488], %672 {strides = array<i32>} : memref<200x288xf32, #tpu.memory_space<vmem>>, vector<8x32xf32>,
    %c8_489 = arith.constant 8 : index
    %c128_490 = arith.constant 128 : index
    %674 = vector.load %arg10[%c8_489, %c128_490] : memref<56x224xf32, #tpu.memory_space<vmem>>, vector<8x32xf32>
    %c64_491 = arith.constant 64 : index
    %c32_492 = arith.constant 32 : index
    %675 = vector.load %arg11[%c64_491, %c32_492] : memref<200x288xf32, #tpu.memory_space<vmem>>, vector<8x32xf32>
    tpu.vector_store %arg11[%c64_491, %c32_492], %674 {strides = array<i32>} : memref<200x288xf32, #tpu.memory_space<vmem>>, vector<8x32xf32>,
    %c8_493 = arith.constant 8 : index
    %c160_494 = arith.constant 160 : index
    %676 = vector.load %arg10[%c8_493, %c160_494] : memref<56x224xf32, #tpu.memory_space<vmem>>, vector<8x32xf32>
    %c72_495 = arith.constant 72 : index
    %c32_496 = arith.constant 32 : index
    %677 = vector.load %arg11[%c72_495, %c32_496] : memref<200x288xf32, #tpu.memory_space<vmem>>, vector<8x32xf32>
    tpu.vector_store %arg11[%c72_495, %c32_496], %676 {strides = array<i32>} : memref<200x288xf32, #tpu.memory_space<vmem>>, vector<8x32xf32>,
    %c16_497 = arith.constant 16 : index
    %c32_498 = arith.constant 32 : index
    %678 = vector.load %arg10[%c16_497, %c32_498] : memref<56x224xf32, #tpu.memory_space<vmem>>, vector<8x32xf32>
    %c80_499 = arith.constant 80 : index
    %c32_500 = arith.constant 32 : index
    %679 = vector.load %arg11[%c80_499, %c32_500] : memref<200x288xf32, #tpu.memory_space<vmem>>, vector<8x32xf32>
    tpu.vector_store %arg11[%c80_499, %c32_500], %678 {strides = array<i32>} : memref<200x288xf32, #tpu.memory_space<vmem>>, vector<8x32xf32>,
    %c16_501 = arith.constant 16 : index
    %c64_502 = arith.constant 64 : index
    %680 = vector.load %arg10[%c16_501, %c64_502] : memref<56x224xf32, #tpu.memory_space<vmem>>, vector<8x32xf32>
    %c88_503 = arith.constant 88 : index
    %c32_504 = arith.constant 32 : index
    %681 = vector.load %arg11[%c88_503, %c32_504] : memref<200x288xf32, #tpu.memory_space<vmem>>, vector<8x32xf32>
    tpu.vector_store %arg11[%c88_503, %c32_504], %680 {strides = array<i32>} : memref<200x288xf32, #tpu.memory_space<vmem>>, vector<8x32xf32>,
    %c16_505 = arith.constant 16 : index
    %c96_506 = arith.constant 96 : index
    %682 = vector.load %arg10[%c16_505, %c96_506] : memref<56x224xf32, #tpu.memory_space<vmem>>, vector<8x32xf32>
    %c96_507 = arith.constant 96 : index
    %c32_508 = arith.constant 32 : index
    %683 = vector.load %arg11[%c96_507, %c32_508] : memref<200x288xf32, #tpu.memory_space<vmem>>, vector<8x32xf32>
    tpu.vector_store %arg11[%c96_507, %c32_508], %682 {strides = array<i32>} : memref<200x288xf32, #tpu.memory_space<vmem>>, vector<8x32xf32>,
    %c16_509 = arith.constant 16 : index
    %c128_510 = arith.constant 128 : index
    %684 = vector.load %arg10[%c16_509, %c128_510] : memref<56x224xf32, #tpu.memory_space<vmem>>, vector<8x32xf32>
    %c104_511 = arith.constant 104 : index
    %c32_512 = arith.constant 32 : index
    %685 = vector.load %arg11[%c104_511, %c32_512] : memref<200x288xf32, #tpu.memory_space<vmem>>, vector<8x32xf32>
    tpu.vector_store %arg11[%c104_511, %c32_512], %684 {strides = array<i32>} : memref<200x288xf32, #tpu.memory_space<vmem>>, vector<8x32xf32>,
    %c16_513 = arith.constant 16 : index
    %c160_514 = arith.constant 160 : index
    %686 = vector.load %arg10[%c16_513, %c160_514] : memref<56x224xf32, #tpu.memory_space<vmem>>, vector<8x32xf32>
    %c112_515 = arith.constant 112 : index
    %c32_516 = arith.constant 32 : index
    %687 = vector.load %arg11[%c112_515, %c32_516] : memref<200x288xf32, #tpu.memory_space<vmem>>, vector<8x32xf32>
    tpu.vector_store %arg11[%c112_515, %c32_516], %686 {strides = array<i32>} : memref<200x288xf32, #tpu.memory_space<vmem>>, vector<8x32xf32>,
    %c24_517 = arith.constant 24 : index
    %c32_518 = arith.constant 32 : index
    %688 = vector.load %arg10[%c24_517, %c32_518] : memref<56x224xf32, #tpu.memory_space<vmem>>, vector<8x32xf32>
    %c120_519 = arith.constant 120 : index
    %c32_520 = arith.constant 32 : index
    %689 = vector.load %arg11[%c120_519, %c32_520] : memref<200x288xf32, #tpu.memory_space<vmem>>, vector<8x32xf32>
    tpu.vector_store %arg11[%c120_519, %c32_520], %688 {strides = array<i32>} : memref<200x288xf32, #tpu.memory_space<vmem>>, vector<8x32xf32>,
    %c24_521 = arith.constant 24 : index
    %c64_522 = arith.constant 64 : index
    %690 = vector.load %arg10[%c24_521, %c64_522] : memref<56x224xf32, #tpu.memory_space<vmem>>, vector<8x32xf32>
    %c128_523 = arith.constant 128 : index
    %c32_524 = arith.constant 32 : index
    %691 = vector.load %arg11[%c128_523, %c32_524] : memref<200x288xf32, #tpu.memory_space<vmem>>, vector<8x32xf32>
    tpu.vector_store %arg11[%c128_523, %c32_524], %690 {strides = array<i32>} : memref<200x288xf32, #tpu.memory_space<vmem>>, vector<8x32xf32>,
    %c24_525 = arith.constant 24 : index
    %c96_526 = arith.constant 96 : index
    %692 = vector.load %arg10[%c24_525, %c96_526] : memref<56x224xf32, #tpu.memory_space<vmem>>, vector<8x32xf32>
    %c136_527 = arith.constant 136 : index
    %c32_528 = arith.constant 32 : index
    %693 = vector.load %arg11[%c136_527, %c32_528] : memref<200x288xf32, #tpu.memory_space<vmem>>, vector<8x32xf32>
    tpu.vector_store %arg11[%c136_527, %c32_528], %692 {strides = array<i32>} : memref<200x288xf32, #tpu.memory_space<vmem>>, vector<8x32xf32>,
    %c24_529 = arith.constant 24 : index
    %c128_530 = arith.constant 128 : index
    %694 = vector.load %arg10[%c24_529, %c128_530] : memref<56x224xf32, #tpu.memory_space<vmem>>, vector<8x32xf32>
    %c144_531 = arith.constant 144 : index
    %c32_532 = arith.constant 32 : index
    %695 = vector.load %arg11[%c144_531, %c32_532] : memref<200x288xf32, #tpu.memory_space<vmem>>, vector<8x32xf32>
    tpu.vector_store %arg11[%c144_531, %c32_532], %694 {strides = array<i32>} : memref<200x288xf32, #tpu.memory_space<vmem>>, vector<8x32xf32>,
    %c24_533 = arith.constant 24 : index
    %c160_534 = arith.constant 160 : index
    %696 = vector.load %arg10[%c24_533, %c160_534] : memref<56x224xf32, #tpu.memory_space<vmem>>, vector<8x32xf32>
    %c152_535 = arith.constant 152 : index
    %c32_536 = arith.constant 32 : index
    %697 = vector.load %arg11[%c152_535, %c32_536] : memref<200x288xf32, #tpu.memory_space<vmem>>, vector<8x32xf32>
    tpu.vector_store %arg11[%c152_535, %c32_536], %696 {strides = array<i32>} : memref<200x288xf32, #tpu.memory_space<vmem>>, vector<8x32xf32>,
    %c32_537 = arith.constant 32 : index
    %c32_538 = arith.constant 32 : index
    %698 = vector.load %arg10[%c32_537, %c32_538] : memref<56x224xf32, #tpu.memory_space<vmem>>, vector<8x32xf32>
    %c160_539 = arith.constant 160 : index
    %c32_540 = arith.constant 32 : index
    %699 = vector.load %arg11[%c160_539, %c32_540] : memref<200x288xf32, #tpu.memory_space<vmem>>, vector<8x32xf32>
    tpu.vector_store %arg11[%c160_539, %c32_540], %698 {strides = array<i32>} : memref<200x288xf32, #tpu.memory_space<vmem>>, vector<8x32xf32>,
    %c32_541 = arith.constant 32 : index
    %c64_542 = arith.constant 64 : index
    %700 = vector.load %arg10[%c32_541, %c64_542] : memref<56x224xf32, #tpu.memory_space<vmem>>, vector<8x32xf32>
    %c168_543 = arith.constant 168 : index
    %c32_544 = arith.constant 32 : index
    %701 = vector.load %arg11[%c168_543, %c32_544] : memref<200x288xf32, #tpu.memory_space<vmem>>, vector<8x32xf32>
    tpu.vector_store %arg11[%c168_543, %c32_544], %700 {strides = array<i32>} : memref<200x288xf32, #tpu.memory_space<vmem>>, vector<8x32xf32>,
    %c32_545 = arith.constant 32 : index
    %c96_546 = arith.constant 96 : index
    %702 = vector.load %arg10[%c32_545, %c96_546] : memref<56x224xf32, #tpu.memory_space<vmem>>, vector<8x32xf32>
    %c176_547 = arith.constant 176 : index
    %c32_548 = arith.constant 32 : index
    %703 = vector.load %arg11[%c176_547, %c32_548] : memref<200x288xf32, #tpu.memory_space<vmem>>, vector<8x32xf32>
    tpu.vector_store %arg11[%c176_547, %c32_548], %702 {strides = array<i32>} : memref<200x288xf32, #tpu.memory_space<vmem>>, vector<8x32xf32>,
    %c32_549 = arith.constant 32 : index
    %c128_550 = arith.constant 128 : index
    %704 = vector.load %arg10[%c32_549, %c128_550] : memref<56x224xf32, #tpu.memory_space<vmem>>, vector<8x32xf32>
    %c184_551 = arith.constant 184 : index
    %c32_552 = arith.constant 32 : index
    %705 = vector.load %arg11[%c184_551, %c32_552] : memref<200x288xf32, #tpu.memory_space<vmem>>, vector<8x32xf32>
    tpu.vector_store %arg11[%c184_551, %c32_552], %704 {strides = array<i32>} : memref<200x288xf32, #tpu.memory_space<vmem>>, vector<8x32xf32>,
    %c32_553 = arith.constant 32 : index
    %c160_554 = arith.constant 160 : index
    %706 = vector.load %arg10[%c32_553, %c160_554] : memref<56x224xf32, #tpu.memory_space<vmem>>, vector<8x32xf32>
    %c192_555 = arith.constant 192 : index
    %c32_556 = arith.constant 32 : index
    %707 = vector.load %arg11[%c192_555, %c32_556] : memref<200x288xf32, #tpu.memory_space<vmem>>, vector<8x32xf32>
    tpu.vector_store %arg11[%c192_555, %c32_556], %706 {strides = array<i32>} : memref<200x288xf32, #tpu.memory_space<vmem>>, vector<8x32xf32>,
    %c0_557 = arith.constant 0 : index
    %c64_558 = arith.constant 64 : index
    %708 = vector.load %arg10[%c0_557, %c64_558] : memref<56x224xf32, #tpu.memory_space<vmem>>, vector<8x32xf32>
    %c0_559 = arith.constant 0 : index
    %c64_560 = arith.constant 64 : index
    %709 = vector.load %arg11[%c0_559, %c64_560] : memref<200x288xf32, #tpu.memory_space<vmem>>, vector<8x32xf32>
    tpu.vector_store %arg11[%c0_559, %c64_560], %708 {strides = array<i32>} : memref<200x288xf32, #tpu.memory_space<vmem>>, vector<8x32xf32>,
    %c0_561 = arith.constant 0 : index
    %c96_562 = arith.constant 96 : index
    %710 = vector.load %arg10[%c0_561, %c96_562] : memref<56x224xf32, #tpu.memory_space<vmem>>, vector<8x32xf32>
    %c8_563 = arith.constant 8 : index
    %c64_564 = arith.constant 64 : index
    %711 = vector.load %arg11[%c8_563, %c64_564] : memref<200x288xf32, #tpu.memory_space<vmem>>, vector<8x32xf32>
    tpu.vector_store %arg11[%c8_563, %c64_564], %710 {strides = array<i32>} : memref<200x288xf32, #tpu.memory_space<vmem>>, vector<8x32xf32>,
    %c0_565 = arith.constant 0 : index
    %c128_566 = arith.constant 128 : index
    %712 = vector.load %arg10[%c0_565, %c128_566] : memref<56x224xf32, #tpu.memory_space<vmem>>, vector<8x32xf32>
    %c16_567 = arith.constant 16 : index
    %c64_568 = arith.constant 64 : index
    %713 = vector.load %arg11[%c16_567, %c64_568] : memref<200x288xf32, #tpu.memory_space<vmem>>, vector<8x32xf32>
    tpu.vector_store %arg11[%c16_567, %c64_568], %712 {strides = array<i32>} : memref<200x288xf32, #tpu.memory_space<vmem>>, vector<8x32xf32>,
    %c0_569 = arith.constant 0 : index
    %c160_570 = arith.constant 160 : index
    %714 = vector.load %arg10[%c0_569, %c160_570] : memref<56x224xf32, #tpu.memory_space<vmem>>, vector<8x32xf32>
    %c24_571 = arith.constant 24 : index
    %c64_572 = arith.constant 64 : index
    %715 = vector.load %arg11[%c24_571, %c64_572] : memref<200x288xf32, #tpu.memory_space<vmem>>, vector<8x32xf32>
    tpu.vector_store %arg11[%c24_571, %c64_572], %714 {strides = array<i32>} : memref<200x288xf32, #tpu.memory_space<vmem>>, vector<8x32xf32>,
    %c0_573 = arith.constant 0 : index
    %c192_574 = arith.constant 192 : index
    %716 = vector.load %arg10[%c0_573, %c192_574] : memref<56x224xf32, #tpu.memory_space<vmem>>, vector<8x32xf32>
    %c32_575 = arith.constant 32 : index
    %c64_576 = arith.constant 64 : index
    %717 = vector.load %arg11[%c32_575, %c64_576] : memref<200x288xf32, #tpu.memory_space<vmem>>, vector<8x32xf32>
    tpu.vector_store %arg11[%c32_575, %c64_576], %716 {strides = array<i32>} : memref<200x288xf32, #tpu.memory_space<vmem>>, vector<8x32xf32>,
    %c8_577 = arith.constant 8 : index
    %c64_578 = arith.constant 64 : index
    %718 = vector.load %arg10[%c8_577, %c64_578] : memref<56x224xf32, #tpu.memory_space<vmem>>, vector<8x32xf32>
    %c40_579 = arith.constant 40 : index
    %c64_580 = arith.constant 64 : index
    %719 = vector.load %arg11[%c40_579, %c64_580] : memref<200x288xf32, #tpu.memory_space<vmem>>, vector<8x32xf32>
    tpu.vector_store %arg11[%c40_579, %c64_580], %718 {strides = array<i32>} : memref<200x288xf32, #tpu.memory_space<vmem>>, vector<8x32xf32>,
    %c8_581 = arith.constant 8 : index
    %c96_582 = arith.constant 96 : index
    %720 = vector.load %arg10[%c8_581, %c96_582] : memref<56x224xf32, #tpu.memory_space<vmem>>, vector<8x32xf32>
    %c48_583 = arith.constant 48 : index
    %c64_584 = arith.constant 64 : index
    %721 = vector.load %arg11[%c48_583, %c64_584] : memref<200x288xf32, #tpu.memory_space<vmem>>, vector<8x32xf32>
    tpu.vector_store %arg11[%c48_583, %c64_584], %720 {strides = array<i32>} : memref<200x288xf32, #tpu.memory_space<vmem>>, vector<8x32xf32>,
    %c8_585 = arith.constant 8 : index
    %c128_586 = arith.constant 128 : index
    %722 = vector.load %arg10[%c8_585, %c128_586] : memref<56x224xf32, #tpu.memory_space<vmem>>, vector<8x32xf32>
    %c56_587 = arith.constant 56 : index
    %c64_588 = arith.constant 64 : index
    %723 = vector.load %arg11[%c56_587, %c64_588] : memref<200x288xf32, #tpu.memory_space<vmem>>, vector<8x32xf32>
    tpu.vector_store %arg11[%c56_587, %c64_588], %722 {strides = array<i32>} : memref<200x288xf32, #tpu.memory_space<vmem>>, vector<8x32xf32>,
    %c8_589 = arith.constant 8 : index
    %c160_590 = arith.constant 160 : index
    %724 = vector.load %arg10[%c8_589, %c160_590] : memref<56x224xf32, #tpu.memory_space<vmem>>, vector<8x32xf32>
    %c64_591 = arith.constant 64 : index
    %c64_592 = arith.constant 64 : index
    %725 = vector.load %arg11[%c64_591, %c64_592] : memref<200x288xf32, #tpu.memory_space<vmem>>, vector<8x32xf32>
    tpu.vector_store %arg11[%c64_591, %c64_592], %724 {strides = array<i32>} : memref<200x288xf32, #tpu.memory_space<vmem>>, vector<8x32xf32>,
    %c8_593 = arith.constant 8 : index
    %c192_594 = arith.constant 192 : index
    %726 = vector.load %arg10[%c8_593, %c192_594] : memref<56x224xf32, #tpu.memory_space<vmem>>, vector<8x32xf32>
    %c72_595 = arith.constant 72 : index
    %c64_596 = arith.constant 64 : index
    %727 = vector.load %arg11[%c72_595, %c64_596] : memref<200x288xf32, #tpu.memory_space<vmem>>, vector<8x32xf32>
    tpu.vector_store %arg11[%c72_595, %c64_596], %726 {strides = array<i32>} : memref<200x288xf32, #tpu.memory_space<vmem>>, vector<8x32xf32>,
    %c16_597 = arith.constant 16 : index
    %c64_598 = arith.constant 64 : index
    %728 = vector.load %arg10[%c16_597, %c64_598] : memref<56x224xf32, #tpu.memory_space<vmem>>, vector<8x32xf32>
    %c80_599 = arith.constant 80 : index
    %c64_600 = arith.constant 64 : index
    %729 = vector.load %arg11[%c80_599, %c64_600] : memref<200x288xf32, #tpu.memory_space<vmem>>, vector<8x32xf32>
    tpu.vector_store %arg11[%c80_599, %c64_600], %728 {strides = array<i32>} : memref<200x288xf32, #tpu.memory_space<vmem>>, vector<8x32xf32>,
    %c16_601 = arith.constant 16 : index
    %c96_602 = arith.constant 96 : index
    %730 = vector.load %arg10[%c16_601, %c96_602] : memref<56x224xf32, #tpu.memory_space<vmem>>, vector<8x32xf32>
    %c88_603 = arith.constant 88 : index
    %c64_604 = arith.constant 64 : index
    %731 = vector.load %arg11[%c88_603, %c64_604] : memref<200x288xf32, #tpu.memory_space<vmem>>, vector<8x32xf32>
    tpu.vector_store %arg11[%c88_603, %c64_604], %730 {strides = array<i32>} : memref<200x288xf32, #tpu.memory_space<vmem>>, vector<8x32xf32>,
    %c16_605 = arith.constant 16 : index
    %c128_606 = arith.constant 128 : index
    %732 = vector.load %arg10[%c16_605, %c128_606] : memref<56x224xf32, #tpu.memory_space<vmem>>, vector<8x32xf32>
    %c96_607 = arith.constant 96 : index
    %c64_608 = arith.constant 64 : index
    %733 = vector.load %arg11[%c96_607, %c64_608] : memref<200x288xf32, #tpu.memory_space<vmem>>, vector<8x32xf32>
    tpu.vector_store %arg11[%c96_607, %c64_608], %732 {strides = array<i32>} : memref<200x288xf32, #tpu.memory_space<vmem>>, vector<8x32xf32>,
    %c16_609 = arith.constant 16 : index
    %c160_610 = arith.constant 160 : index
    %734 = vector.load %arg10[%c16_609, %c160_610] : memref<56x224xf32, #tpu.memory_space<vmem>>, vector<8x32xf32>
    %c104_611 = arith.constant 104 : index
    %c64_612 = arith.constant 64 : index
    %735 = vector.load %arg11[%c104_611, %c64_612] : memref<200x288xf32, #tpu.memory_space<vmem>>, vector<8x32xf32>
    tpu.vector_store %arg11[%c104_611, %c64_612], %734 {strides = array<i32>} : memref<200x288xf32, #tpu.memory_space<vmem>>, vector<8x32xf32>,
    %c16_613 = arith.constant 16 : index
    %c192_614 = arith.constant 192 : index
    %736 = vector.load %arg10[%c16_613, %c192_614] : memref<56x224xf32, #tpu.memory_space<vmem>>, vector<8x32xf32>
    %c112_615 = arith.constant 112 : index
    %c64_616 = arith.constant 64 : index
    %737 = vector.load %arg11[%c112_615, %c64_616] : memref<200x288xf32, #tpu.memory_space<vmem>>, vector<8x32xf32>
    tpu.vector_store %arg11[%c112_615, %c64_616], %736 {strides = array<i32>} : memref<200x288xf32, #tpu.memory_space<vmem>>, vector<8x32xf32>,
    %c24_617 = arith.constant 24 : index
    %c64_618 = arith.constant 64 : index
    %738 = vector.load %arg10[%c24_617, %c64_618] : memref<56x224xf32, #tpu.memory_space<vmem>>, vector<8x32xf32>
    %c120_619 = arith.constant 120 : index
    %c64_620 = arith.constant 64 : index
    %739 = vector.load %arg11[%c120_619, %c64_620] : memref<200x288xf32, #tpu.memory_space<vmem>>, vector<8x32xf32>
    tpu.vector_store %arg11[%c120_619, %c64_620], %738 {strides = array<i32>} : memref<200x288xf32, #tpu.memory_space<vmem>>, vector<8x32xf32>,
    %c24_621 = arith.constant 24 : index
    %c96_622 = arith.constant 96 : index
    %740 = vector.load %arg10[%c24_621, %c96_622] : memref<56x224xf32, #tpu.memory_space<vmem>>, vector<8x32xf32>
    %c128_623 = arith.constant 128 : index
    %c64_624 = arith.constant 64 : index
    %741 = vector.load %arg11[%c128_623, %c64_624] : memref<200x288xf32, #tpu.memory_space<vmem>>, vector<8x32xf32>
    tpu.vector_store %arg11[%c128_623, %c64_624], %740 {strides = array<i32>} : memref<200x288xf32, #tpu.memory_space<vmem>>, vector<8x32xf32>,
    %c24_625 = arith.constant 24 : index
    %c128_626 = arith.constant 128 : index
    %742 = vector.load %arg10[%c24_625, %c128_626] : memref<56x224xf32, #tpu.memory_space<vmem>>, vector<8x32xf32>
    %c136_627 = arith.constant 136 : index
    %c64_628 = arith.constant 64 : index
    %743 = vector.load %arg11[%c136_627, %c64_628] : memref<200x288xf32, #tpu.memory_space<vmem>>, vector<8x32xf32>
    tpu.vector_store %arg11[%c136_627, %c64_628], %742 {strides = array<i32>} : memref<200x288xf32, #tpu.memory_space<vmem>>, vector<8x32xf32>,
    %c24_629 = arith.constant 24 : index
    %c160_630 = arith.constant 160 : index
    %744 = vector.load %arg10[%c24_629, %c160_630] : memref<56x224xf32, #tpu.memory_space<vmem>>, vector<8x32xf32>
    %c144_631 = arith.constant 144 : index
    %c64_632 = arith.constant 64 : index
    %745 = vector.load %arg11[%c144_631, %c64_632] : memref<200x288xf32, #tpu.memory_space<vmem>>, vector<8x32xf32>
    tpu.vector_store %arg11[%c144_631, %c64_632], %744 {strides = array<i32>} : memref<200x288xf32, #tpu.memory_space<vmem>>, vector<8x32xf32>,
    %c24_633 = arith.constant 24 : index
    %c192_634 = arith.constant 192 : index
    %746 = vector.load %arg10[%c24_633, %c192_634] : memref<56x224xf32, #tpu.memory_space<vmem>>, vector<8x32xf32>
    %c152_635 = arith.constant 152 : index
    %c64_636 = arith.constant 64 : index
    %747 = vector.load %arg11[%c152_635, %c64_636] : memref<200x288xf32, #tpu.memory_space<vmem>>, vector<8x32xf32>
    tpu.vector_store %arg11[%c152_635, %c64_636], %746 {strides = array<i32>} : memref<200x288xf32, #tpu.memory_space<vmem>>, vector<8x32xf32>,
    %c32_637 = arith.constant 32 : index
    %c64_638 = arith.constant 64 : index
    %748 = vector.load %arg10[%c32_637, %c64_638] : memref<56x224xf32, #tpu.memory_space<vmem>>, vector<8x32xf32>
    %c160_639 = arith.constant 160 : index
    %c64_640 = arith.constant 64 : index
    %749 = vector.load %arg11[%c160_639, %c64_640] : memref<200x288xf32, #tpu.memory_space<vmem>>, vector<8x32xf32>
    tpu.vector_store %arg11[%c160_639, %c64_640], %748 {strides = array<i32>} : memref<200x288xf32, #tpu.memory_space<vmem>>, vector<8x32xf32>,
    %c32_641 = arith.constant 32 : index
    %c96_642 = arith.constant 96 : index
    %750 = vector.load %arg10[%c32_641, %c96_642] : memref<56x224xf32, #tpu.memory_space<vmem>>, vector<8x32xf32>
    %c168_643 = arith.constant 168 : index
    %c64_644 = arith.constant 64 : index
    %751 = vector.load %arg11[%c168_643, %c64_644] : memref<200x288xf32, #tpu.memory_space<vmem>>, vector<8x32xf32>
    tpu.vector_store %arg11[%c168_643, %c64_644], %750 {strides = array<i32>} : memref<200x288xf32, #tpu.memory_space<vmem>>, vector<8x32xf32>,
    %c32_645 = arith.constant 32 : index
    %c128_646 = arith.constant 128 : index
    %752 = vector.load %arg10[%c32_645, %c128_646] : memref<56x224xf32, #tpu.memory_space<vmem>>, vector<8x32xf32>
    %c176_647 = arith.constant 176 : index
    %c64_648 = arith.constant 64 : index
    %753 = vector.load %arg11[%c176_647, %c64_648] : memref<200x288xf32, #tpu.memory_space<vmem>>, vector<8x32xf32>
    tpu.vector_store %arg11[%c176_647, %c64_648], %752 {strides = array<i32>} : memref<200x288xf32, #tpu.memory_space<vmem>>, vector<8x32xf32>,
    %c32_649 = arith.constant 32 : index
    %c160_650 = arith.constant 160 : index
    %754 = vector.load %arg10[%c32_649, %c160_650] : memref<56x224xf32, #tpu.memory_space<vmem>>, vector<8x32xf32>
    %c184_651 = arith.constant 184 : index
    %c64_652 = arith.constant 64 : index
    %755 = vector.load %arg11[%c184_651, %c64_652] : memref<200x288xf32, #tpu.memory_space<vmem>>, vector<8x32xf32>
    tpu.vector_store %arg11[%c184_651, %c64_652], %754 {strides = array<i32>} : memref<200x288xf32, #tpu.memory_space<vmem>>, vector<8x32xf32>,
    %c32_653 = arith.constant 32 : index
    %c192_654 = arith.constant 192 : index
    %756 = vector.load %arg10[%c32_653, %c192_654] : memref<56x224xf32, #tpu.memory_space<vmem>>, vector<8x32xf32>
    %c192_655 = arith.constant 192 : index
    %c64_656 = arith.constant 64 : index
    %757 = vector.load %arg11[%c192_655, %c64_656] : memref<200x288xf32, #tpu.memory_space<vmem>>, vector<8x32xf32>
    tpu.vector_store %arg11[%c192_655, %c64_656], %756 {strides = array<i32>} : memref<200x288xf32, #tpu.memory_space<vmem>>, vector<8x32xf32>,
    %c8_657 = arith.constant 8 : index
    %c0_658 = arith.constant 0 : index
    %758 = vector.load %arg10[%c8_657, %c0_658] : memref<56x224xf32, #tpu.memory_space<vmem>>, vector<8x32xf32>
    %c0_659 = arith.constant 0 : index
    %c96_660 = arith.constant 96 : index
    %759 = vector.load %arg11[%c0_659, %c96_660] : memref<200x288xf32, #tpu.memory_space<vmem>>, vector<8x32xf32>
    tpu.vector_store %arg11[%c0_659, %c96_660], %758 {strides = array<i32>} : memref<200x288xf32, #tpu.memory_space<vmem>>, vector<8x32xf32>,
    %c8_661 = arith.constant 8 : index
    %c32_662 = arith.constant 32 : index
    %760 = vector.load %arg10[%c8_661, %c32_662] : memref<56x224xf32, #tpu.memory_space<vmem>>, vector<8x32xf32>
    %c8_663 = arith.constant 8 : index
    %c96_664 = arith.constant 96 : index
    %761 = vector.load %arg11[%c8_663, %c96_664] : memref<200x288xf32, #tpu.memory_space<vmem>>, vector<8x32xf32>
    tpu.vector_store %arg11[%c8_663, %c96_664], %760 {strides = array<i32>} : memref<200x288xf32, #tpu.memory_space<vmem>>, vector<8x32xf32>,
    %c8_665 = arith.constant 8 : index
    %c64_666 = arith.constant 64 : index
    %762 = vector.load %arg10[%c8_665, %c64_666] : memref<56x224xf32, #tpu.memory_space<vmem>>, vector<8x32xf32>
    %c16_667 = arith.constant 16 : index
    %c96_668 = arith.constant 96 : index
    %763 = vector.load %arg11[%c16_667, %c96_668] : memref<200x288xf32, #tpu.memory_space<vmem>>, vector<8x32xf32>
    tpu.vector_store %arg11[%c16_667, %c96_668], %762 {strides = array<i32>} : memref<200x288xf32, #tpu.memory_space<vmem>>, vector<8x32xf32>,
    %c8_669 = arith.constant 8 : index
    %c96_670 = arith.constant 96 : index
    %764 = vector.load %arg10[%c8_669, %c96_670] : memref<56x224xf32, #tpu.memory_space<vmem>>, vector<8x32xf32>
    %c24_671 = arith.constant 24 : index
    %c96_672 = arith.constant 96 : index
    %765 = vector.load %arg11[%c24_671, %c96_672] : memref<200x288xf32, #tpu.memory_space<vmem>>, vector<8x32xf32>
    tpu.vector_store %arg11[%c24_671, %c96_672], %764 {strides = array<i32>} : memref<200x288xf32, #tpu.memory_space<vmem>>, vector<8x32xf32>,
    %c8_673 = arith.constant 8 : index
    %c128_674 = arith.constant 128 : index
    %766 = vector.load %arg10[%c8_673, %c128_674] : memref<56x224xf32, #tpu.memory_space<vmem>>, vector<8x32xf32>
    %c32_675 = arith.constant 32 : index
    %c96_676 = arith.constant 96 : index
    %767 = vector.load %arg11[%c32_675, %c96_676] : memref<200x288xf32, #tpu.memory_space<vmem>>, vector<8x32xf32>
    tpu.vector_store %arg11[%c32_675, %c96_676], %766 {strides = array<i32>} : memref<200x288xf32, #tpu.memory_space<vmem>>, vector<8x32xf32>,
    %c16_677 = arith.constant 16 : index
    %c0_678 = arith.constant 0 : index
    %768 = vector.load %arg10[%c16_677, %c0_678] : memref<56x224xf32, #tpu.memory_space<vmem>>, vector<8x32xf32>
    %c40_679 = arith.constant 40 : index
    %c96_680 = arith.constant 96 : index
    %769 = vector.load %arg11[%c40_679, %c96_680] : memref<200x288xf32, #tpu.memory_space<vmem>>, vector<8x32xf32>
    tpu.vector_store %arg11[%c40_679, %c96_680], %768 {strides = array<i32>} : memref<200x288xf32, #tpu.memory_space<vmem>>, vector<8x32xf32>,
    %c16_681 = arith.constant 16 : index
    %c32_682 = arith.constant 32 : index
    %770 = vector.load %arg10[%c16_681, %c32_682] : memref<56x224xf32, #tpu.memory_space<vmem>>, vector<8x32xf32>
    %c48_683 = arith.constant 48 : index
    %c96_684 = arith.constant 96 : index
    %771 = vector.load %arg11[%c48_683, %c96_684] : memref<200x288xf32, #tpu.memory_space<vmem>>, vector<8x32xf32>
    tpu.vector_store %arg11[%c48_683, %c96_684], %770 {strides = array<i32>} : memref<200x288xf32, #tpu.memory_space<vmem>>, vector<8x32xf32>,
    %c16_685 = arith.constant 16 : index
    %c64_686 = arith.constant 64 : index
    %772 = vector.load %arg10[%c16_685, %c64_686] : memref<56x224xf32, #tpu.memory_space<vmem>>, vector<8x32xf32>
    %c56_687 = arith.constant 56 : index
    %c96_688 = arith.constant 96 : index
    %773 = vector.load %arg11[%c56_687, %c96_688] : memref<200x288xf32, #tpu.memory_space<vmem>>, vector<8x32xf32>
    tpu.vector_store %arg11[%c56_687, %c96_688], %772 {strides = array<i32>} : memref<200x288xf32, #tpu.memory_space<vmem>>, vector<8x32xf32>,
    %c16_689 = arith.constant 16 : index
    %c96_690 = arith.constant 96 : index
    %774 = vector.load %arg10[%c16_689, %c96_690] : memref<56x224xf32, #tpu.memory_space<vmem>>, vector<8x32xf32>
    %c64_691 = arith.constant 64 : index
    %c96_692 = arith.constant 96 : index
    %775 = vector.load %arg11[%c64_691, %c96_692] : memref<200x288xf32, #tpu.memory_space<vmem>>, vector<8x32xf32>
    tpu.vector_store %arg11[%c64_691, %c96_692], %774 {strides = array<i32>} : memref<200x288xf32, #tpu.memory_space<vmem>>, vector<8x32xf32>,
    %c16_693 = arith.constant 16 : index
    %c128_694 = arith.constant 128 : index
    %776 = vector.load %arg10[%c16_693, %c128_694] : memref<56x224xf32, #tpu.memory_space<vmem>>, vector<8x32xf32>
    %c72_695 = arith.constant 72 : index
    %c96_696 = arith.constant 96 : index
    %777 = vector.load %arg11[%c72_695, %c96_696] : memref<200x288xf32, #tpu.memory_space<vmem>>, vector<8x32xf32>
    tpu.vector_store %arg11[%c72_695, %c96_696], %776 {strides = array<i32>} : memref<200x288xf32, #tpu.memory_space<vmem>>, vector<8x32xf32>,
    %c24_697 = arith.constant 24 : index
    %c0_698 = arith.constant 0 : index
    %778 = vector.load %arg10[%c24_697, %c0_698] : memref<56x224xf32, #tpu.memory_space<vmem>>, vector<8x32xf32>
    %c80_699 = arith.constant 80 : index
    %c96_700 = arith.constant 96 : index
    %779 = vector.load %arg11[%c80_699, %c96_700] : memref<200x288xf32, #tpu.memory_space<vmem>>, vector<8x32xf32>
    tpu.vector_store %arg11[%c80_699, %c96_700], %778 {strides = array<i32>} : memref<200x288xf32, #tpu.memory_space<vmem>>, vector<8x32xf32>,
    %c24_701 = arith.constant 24 : index
    %c32_702 = arith.constant 32 : index
    %780 = vector.load %arg10[%c24_701, %c32_702] : memref<56x224xf32, #tpu.memory_space<vmem>>, vector<8x32xf32>
    %c88_703 = arith.constant 88 : index
    %c96_704 = arith.constant 96 : index
    %781 = vector.load %arg11[%c88_703, %c96_704] : memref<200x288xf32, #tpu.memory_space<vmem>>, vector<8x32xf32>
    tpu.vector_store %arg11[%c88_703, %c96_704], %780 {strides = array<i32>} : memref<200x288xf32, #tpu.memory_space<vmem>>, vector<8x32xf32>,
    %c24_705 = arith.constant 24 : index
    %c64_706 = arith.constant 64 : index
    %782 = vector.load %arg10[%c24_705, %c64_706] : memref<56x224xf32, #tpu.memory_space<vmem>>, vector<8x32xf32>
    %c96_707 = arith.constant 96 : index
    %c96_708 = arith.constant 96 : index
    %783 = vector.load %arg11[%c96_707, %c96_708] : memref<200x288xf32, #tpu.memory_space<vmem>>, vector<8x32xf32>
    tpu.vector_store %arg11[%c96_707, %c96_708], %782 {strides = array<i32>} : memref<200x288xf32, #tpu.memory_space<vmem>>, vector<8x32xf32>,
    %c24_709 = arith.constant 24 : index
    %c96_710 = arith.constant 96 : index
    %784 = vector.load %arg10[%c24_709, %c96_710] : memref<56x224xf32, #tpu.memory_space<vmem>>, vector<8x32xf32>
    %c104_711 = arith.constant 104 : index
    %c96_712 = arith.constant 96 : index
    %785 = vector.load %arg11[%c104_711, %c96_712] : memref<200x288xf32, #tpu.memory_space<vmem>>, vector<8x32xf32>
    tpu.vector_store %arg11[%c104_711, %c96_712], %784 {strides = array<i32>} : memref<200x288xf32, #tpu.memory_space<vmem>>, vector<8x32xf32>,
    %c24_713 = arith.constant 24 : index
    %c128_714 = arith.constant 128 : index
    %786 = vector.load %arg10[%c24_713, %c128_714] : memref<56x224xf32, #tpu.memory_space<vmem>>, vector<8x32xf32>
    %c112_715 = arith.constant 112 : index
    %c96_716 = arith.constant 96 : index
    %787 = vector.load %arg11[%c112_715, %c96_716] : memref<200x288xf32, #tpu.memory_space<vmem>>, vector<8x32xf32>
    tpu.vector_store %arg11[%c112_715, %c96_716], %786 {strides = array<i32>} : memref<200x288xf32, #tpu.memory_space<vmem>>, vector<8x32xf32>,
    %c32_717 = arith.constant 32 : index
    %c0_718 = arith.constant 0 : index
    %788 = vector.load %arg10[%c32_717, %c0_718] : memref<56x224xf32, #tpu.memory_space<vmem>>, vector<8x32xf32>
    %c120_719 = arith.constant 120 : index
    %c96_720 = arith.constant 96 : index
    %789 = vector.load %arg11[%c120_719, %c96_720] : memref<200x288xf32, #tpu.memory_space<vmem>>, vector<8x32xf32>
    tpu.vector_store %arg11[%c120_719, %c96_720], %788 {strides = array<i32>} : memref<200x288xf32, #tpu.memory_space<vmem>>, vector<8x32xf32>,
    %c32_721 = arith.constant 32 : index
    %c32_722 = arith.constant 32 : index
    %790 = vector.load %arg10[%c32_721, %c32_722] : memref<56x224xf32, #tpu.memory_space<vmem>>, vector<8x32xf32>
    %c128_723 = arith.constant 128 : index
    %c96_724 = arith.constant 96 : index
    %791 = vector.load %arg11[%c128_723, %c96_724] : memref<200x288xf32, #tpu.memory_space<vmem>>, vector<8x32xf32>
    tpu.vector_store %arg11[%c128_723, %c96_724], %790 {strides = array<i32>} : memref<200x288xf32, #tpu.memory_space<vmem>>, vector<8x32xf32>,
    %c32_725 = arith.constant 32 : index
    %c64_726 = arith.constant 64 : index
    %792 = vector.load %arg10[%c32_725, %c64_726] : memref<56x224xf32, #tpu.memory_space<vmem>>, vector<8x32xf32>
    %c136_727 = arith.constant 136 : index
    %c96_728 = arith.constant 96 : index
    %793 = vector.load %arg11[%c136_727, %c96_728] : memref<200x288xf32, #tpu.memory_space<vmem>>, vector<8x32xf32>
    tpu.vector_store %arg11[%c136_727, %c96_728], %792 {strides = array<i32>} : memref<200x288xf32, #tpu.memory_space<vmem>>, vector<8x32xf32>,
    %c32_729 = arith.constant 32 : index
    %c96_730 = arith.constant 96 : index
    %794 = vector.load %arg10[%c32_729, %c96_730] : memref<56x224xf32, #tpu.memory_space<vmem>>, vector<8x32xf32>
    %c144_731 = arith.constant 144 : index
    %c96_732 = arith.constant 96 : index
    %795 = vector.load %arg11[%c144_731, %c96_732] : memref<200x288xf32, #tpu.memory_space<vmem>>, vector<8x32xf32>
    tpu.vector_store %arg11[%c144_731, %c96_732], %794 {strides = array<i32>} : memref<200x288xf32, #tpu.memory_space<vmem>>, vector<8x32xf32>,
    %c32_733 = arith.constant 32 : index
    %c128_734 = arith.constant 128 : index
    %796 = vector.load %arg10[%c32_733, %c128_734] : memref<56x224xf32, #tpu.memory_space<vmem>>, vector<8x32xf32>
    %c152_735 = arith.constant 152 : index
    %c96_736 = arith.constant 96 : index
    %797 = vector.load %arg11[%c152_735, %c96_736] : memref<200x288xf32, #tpu.memory_space<vmem>>, vector<8x32xf32>
    tpu.vector_store %arg11[%c152_735, %c96_736], %796 {strides = array<i32>} : memref<200x288xf32, #tpu.memory_space<vmem>>, vector<8x32xf32>,
    %c40_737 = arith.constant 40 : index
    %c0_738 = arith.constant 0 : index
    %798 = vector.load %arg10[%c40_737, %c0_738] : memref<56x224xf32, #tpu.memory_space<vmem>>, vector<8x32xf32>
    %c160_739 = arith.constant 160 : index
    %c96_740 = arith.constant 96 : index
    %799 = vector.load %arg11[%c160_739, %c96_740] : memref<200x288xf32, #tpu.memory_space<vmem>>, vector<8x32xf32>
    tpu.vector_store %arg11[%c160_739, %c96_740], %798 {strides = array<i32>} : memref<200x288xf32, #tpu.memory_space<vmem>>, vector<8x32xf32>,
    %c40_741 = arith.constant 40 : index
    %c32_742 = arith.constant 32 : index
    %800 = vector.load %arg10[%c40_741, %c32_742] : memref<56x224xf32, #tpu.memory_space<vmem>>, vector<8x32xf32>
    %c168_743 = arith.constant 168 : index
    %c96_744 = arith.constant 96 : index
    %801 = vector.load %arg11[%c168_743, %c96_744] : memref<200x288xf32, #tpu.memory_space<vmem>>, vector<8x32xf32>
    tpu.vector_store %arg11[%c168_743, %c96_744], %800 {strides = array<i32>} : memref<200x288xf32, #tpu.memory_space<vmem>>, vector<8x32xf32>,
    %c40_745 = arith.constant 40 : index
    %c64_746 = arith.constant 64 : index
    %802 = vector.load %arg10[%c40_745, %c64_746] : memref<56x224xf32, #tpu.memory_space<vmem>>, vector<8x32xf32>
    %c176_747 = arith.constant 176 : index
    %c96_748 = arith.constant 96 : index
    %803 = vector.load %arg11[%c176_747, %c96_748] : memref<200x288xf32, #tpu.memory_space<vmem>>, vector<8x32xf32>
    tpu.vector_store %arg11[%c176_747, %c96_748], %802 {strides = array<i32>} : memref<200x288xf32, #tpu.memory_space<vmem>>, vector<8x32xf32>,
    %c40_749 = arith.constant 40 : index
    %c96_750 = arith.constant 96 : index
    %804 = vector.load %arg10[%c40_749, %c96_750] : memref<56x224xf32, #tpu.memory_space<vmem>>, vector<8x32xf32>
    %c184_751 = arith.constant 184 : index
    %c96_752 = arith.constant 96 : index
    %805 = vector.load %arg11[%c184_751, %c96_752] : memref<200x288xf32, #tpu.memory_space<vmem>>, vector<8x32xf32>
    tpu.vector_store %arg11[%c184_751, %c96_752], %804 {strides = array<i32>} : memref<200x288xf32, #tpu.memory_space<vmem>>, vector<8x32xf32>,
    %c40_753 = arith.constant 40 : index
    %c128_754 = arith.constant 128 : index
    %806 = vector.load %arg10[%c40_753, %c128_754] : memref<56x224xf32, #tpu.memory_space<vmem>>, vector<8x32xf32>
    %c192_755 = arith.constant 192 : index
    %c96_756 = arith.constant 96 : index
    %807 = vector.load %arg11[%c192_755, %c96_756] : memref<200x288xf32, #tpu.memory_space<vmem>>, vector<8x32xf32>
    tpu.vector_store %arg11[%c192_755, %c96_756], %806 {strides = array<i32>} : memref<200x288xf32, #tpu.memory_space<vmem>>, vector<8x32xf32>,
    %c8_757 = arith.constant 8 : index
    %c32_758 = arith.constant 32 : index
    %808 = vector.load %arg10[%c8_757, %c32_758] : memref<56x224xf32, #tpu.memory_space<vmem>>, vector<8x32xf32>
    %c0_759 = arith.constant 0 : index
    %c128_760 = arith.constant 128 : index
    %809 = vector.load %arg11[%c0_759, %c128_760] : memref<200x288xf32, #tpu.memory_space<vmem>>, vector<8x32xf32>
    tpu.vector_store %arg11[%c0_759, %c128_760], %808 {strides = array<i32>} : memref<200x288xf32, #tpu.memory_space<vmem>>, vector<8x32xf32>,
    %c8_761 = arith.constant 8 : index
    %c64_762 = arith.constant 64 : index
    %810 = vector.load %arg10[%c8_761, %c64_762] : memref<56x224xf32, #tpu.memory_space<vmem>>, vector<8x32xf32>
    %c8_763 = arith.constant 8 : index
    %c128_764 = arith.constant 128 : index
    %811 = vector.load %arg11[%c8_763, %c128_764] : memref<200x288xf32, #tpu.memory_space<vmem>>, vector<8x32xf32>
    tpu.vector_store %arg11[%c8_763, %c128_764], %810 {strides = array<i32>} : memref<200x288xf32, #tpu.memory_space<vmem>>, vector<8x32xf32>,
    %c8_765 = arith.constant 8 : index
    %c96_766 = arith.constant 96 : index
    %812 = vector.load %arg10[%c8_765, %c96_766] : memref<56x224xf32, #tpu.memory_space<vmem>>, vector<8x32xf32>
    %c16_767 = arith.constant 16 : index
    %c128_768 = arith.constant 128 : index
    %813 = vector.load %arg11[%c16_767, %c128_768] : memref<200x288xf32, #tpu.memory_space<vmem>>, vector<8x32xf32>
    tpu.vector_store %arg11[%c16_767, %c128_768], %812 {strides = array<i32>} : memref<200x288xf32, #tpu.memory_space<vmem>>, vector<8x32xf32>,
    %c8_769 = arith.constant 8 : index
    %c128_770 = arith.constant 128 : index
    %814 = vector.load %arg10[%c8_769, %c128_770] : memref<56x224xf32, #tpu.memory_space<vmem>>, vector<8x32xf32>
    %c24_771 = arith.constant 24 : index
    %c128_772 = arith.constant 128 : index
    %815 = vector.load %arg11[%c24_771, %c128_772] : memref<200x288xf32, #tpu.memory_space<vmem>>, vector<8x32xf32>
    tpu.vector_store %arg11[%c24_771, %c128_772], %814 {strides = array<i32>} : memref<200x288xf32, #tpu.memory_space<vmem>>, vector<8x32xf32>,
    %c8_773 = arith.constant 8 : index
    %c160_774 = arith.constant 160 : index
    %816 = vector.load %arg10[%c8_773, %c160_774] : memref<56x224xf32, #tpu.memory_space<vmem>>, vector<8x32xf32>
    %c32_775 = arith.constant 32 : index
    %c128_776 = arith.constant 128 : index
    %817 = vector.load %arg11[%c32_775, %c128_776] : memref<200x288xf32, #tpu.memory_space<vmem>>, vector<8x32xf32>
    tpu.vector_store %arg11[%c32_775, %c128_776], %816 {strides = array<i32>} : memref<200x288xf32, #tpu.memory_space<vmem>>, vector<8x32xf32>,
    %c16_777 = arith.constant 16 : index
    %c32_778 = arith.constant 32 : index
    %818 = vector.load %arg10[%c16_777, %c32_778] : memref<56x224xf32, #tpu.memory_space<vmem>>, vector<8x32xf32>
    %c40_779 = arith.constant 40 : index
    %c128_780 = arith.constant 128 : index
    %819 = vector.load %arg11[%c40_779, %c128_780] : memref<200x288xf32, #tpu.memory_space<vmem>>, vector<8x32xf32>
    tpu.vector_store %arg11[%c40_779, %c128_780], %818 {strides = array<i32>} : memref<200x288xf32, #tpu.memory_space<vmem>>, vector<8x32xf32>,
    %c16_781 = arith.constant 16 : index
    %c64_782 = arith.constant 64 : index
    %820 = vector.load %arg10[%c16_781, %c64_782] : memref<56x224xf32, #tpu.memory_space<vmem>>, vector<8x32xf32>
    %c48_783 = arith.constant 48 : index
    %c128_784 = arith.constant 128 : index
    %821 = vector.load %arg11[%c48_783, %c128_784] : memref<200x288xf32, #tpu.memory_space<vmem>>, vector<8x32xf32>
    tpu.vector_store %arg11[%c48_783, %c128_784], %820 {strides = array<i32>} : memref<200x288xf32, #tpu.memory_space<vmem>>, vector<8x32xf32>,
    %c16_785 = arith.constant 16 : index
    %c96_786 = arith.constant 96 : index
    %822 = vector.load %arg10[%c16_785, %c96_786] : memref<56x224xf32, #tpu.memory_space<vmem>>, vector<8x32xf32>
    %c56_787 = arith.constant 56 : index
    %c128_788 = arith.constant 128 : index
    %823 = vector.load %arg11[%c56_787, %c128_788] : memref<200x288xf32, #tpu.memory_space<vmem>>, vector<8x32xf32>
    tpu.vector_store %arg11[%c56_787, %c128_788], %822 {strides = array<i32>} : memref<200x288xf32, #tpu.memory_space<vmem>>, vector<8x32xf32>,
    %c16_789 = arith.constant 16 : index
    %c128_790 = arith.constant 128 : index
    %824 = vector.load %arg10[%c16_789, %c128_790] : memref<56x224xf32, #tpu.memory_space<vmem>>, vector<8x32xf32>
    %c64_791 = arith.constant 64 : index
    %c128_792 = arith.constant 128 : index
    %825 = vector.load %arg11[%c64_791, %c128_792] : memref<200x288xf32, #tpu.memory_space<vmem>>, vector<8x32xf32>
    tpu.vector_store %arg11[%c64_791, %c128_792], %824 {strides = array<i32>} : memref<200x288xf32, #tpu.memory_space<vmem>>, vector<8x32xf32>,
    %c16_793 = arith.constant 16 : index
    %c160_794 = arith.constant 160 : index
    %826 = vector.load %arg10[%c16_793, %c160_794] : memref<56x224xf32, #tpu.memory_space<vmem>>, vector<8x32xf32>
    %c72_795 = arith.constant 72 : index
    %c128_796 = arith.constant 128 : index
    %827 = vector.load %arg11[%c72_795, %c128_796] : memref<200x288xf32, #tpu.memory_space<vmem>>, vector<8x32xf32>
    tpu.vector_store %arg11[%c72_795, %c128_796], %826 {strides = array<i32>} : memref<200x288xf32, #tpu.memory_space<vmem>>, vector<8x32xf32>,
    %c24_797 = arith.constant 24 : index
    %c32_798 = arith.constant 32 : index
    %828 = vector.load %arg10[%c24_797, %c32_798] : memref<56x224xf32, #tpu.memory_space<vmem>>, vector<8x32xf32>
    %c80_799 = arith.constant 80 : index
    %c128_800 = arith.constant 128 : index
    %829 = vector.load %arg11[%c80_799, %c128_800] : memref<200x288xf32, #tpu.memory_space<vmem>>, vector<8x32xf32>
    tpu.vector_store %arg11[%c80_799, %c128_800], %828 {strides = array<i32>} : memref<200x288xf32, #tpu.memory_space<vmem>>, vector<8x32xf32>,
    %c24_801 = arith.constant 24 : index
    %c64_802 = arith.constant 64 : index
    %830 = vector.load %arg10[%c24_801, %c64_802] : memref<56x224xf32, #tpu.memory_space<vmem>>, vector<8x32xf32>
    %c88_803 = arith.constant 88 : index
    %c128_804 = arith.constant 128 : index
    %831 = vector.load %arg11[%c88_803, %c128_804] : memref<200x288xf32, #tpu.memory_space<vmem>>, vector<8x32xf32>
    tpu.vector_store %arg11[%c88_803, %c128_804], %830 {strides = array<i32>} : memref<200x288xf32, #tpu.memory_space<vmem>>, vector<8x32xf32>,
    %c24_805 = arith.constant 24 : index
    %c96_806 = arith.constant 96 : index
    %832 = vector.load %arg10[%c24_805, %c96_806] : memref<56x224xf32, #tpu.memory_space<vmem>>, vector<8x32xf32>
    %c96_807 = arith.constant 96 : index
    %c128_808 = arith.constant 128 : index
    %833 = vector.load %arg11[%c96_807, %c128_808] : memref<200x288xf32, #tpu.memory_space<vmem>>, vector<8x32xf32>
    tpu.vector_store %arg11[%c96_807, %c128_808], %832 {strides = array<i32>} : memref<200x288xf32, #tpu.memory_space<vmem>>, vector<8x32xf32>,
    %c24_809 = arith.constant 24 : index
    %c128_810 = arith.constant 128 : index
    %834 = vector.load %arg10[%c24_809, %c128_810] : memref<56x224xf32, #tpu.memory_space<vmem>>, vector<8x32xf32>
    %c104_811 = arith.constant 104 : index
    %c128_812 = arith.constant 128 : index
    %835 = vector.load %arg11[%c104_811, %c128_812] : memref<200x288xf32, #tpu.memory_space<vmem>>, vector<8x32xf32>
    tpu.vector_store %arg11[%c104_811, %c128_812], %834 {strides = array<i32>} : memref<200x288xf32, #tpu.memory_space<vmem>>, vector<8x32xf32>,
    %c24_813 = arith.constant 24 : index
    %c160_814 = arith.constant 160 : index
    %836 = vector.load %arg10[%c24_813, %c160_814] : memref<56x224xf32, #tpu.memory_space<vmem>>, vector<8x32xf32>
    %c112_815 = arith.constant 112 : index
    %c128_816 = arith.constant 128 : index
    %837 = vector.load %arg11[%c112_815, %c128_816] : memref<200x288xf32, #tpu.memory_space<vmem>>, vector<8x32xf32>
    tpu.vector_store %arg11[%c112_815, %c128_816], %836 {strides = array<i32>} : memref<200x288xf32, #tpu.memory_space<vmem>>, vector<8x32xf32>,
    %c32_817 = arith.constant 32 : index
    %c32_818 = arith.constant 32 : index
    %838 = vector.load %arg10[%c32_817, %c32_818] : memref<56x224xf32, #tpu.memory_space<vmem>>, vector<8x32xf32>
    %c120_819 = arith.constant 120 : index
    %c128_820 = arith.constant 128 : index
    %839 = vector.load %arg11[%c120_819, %c128_820] : memref<200x288xf32, #tpu.memory_space<vmem>>, vector<8x32xf32>
    tpu.vector_store %arg11[%c120_819, %c128_820], %838 {strides = array<i32>} : memref<200x288xf32, #tpu.memory_space<vmem>>, vector<8x32xf32>,
    %c32_821 = arith.constant 32 : index
    %c64_822 = arith.constant 64 : index
    %840 = vector.load %arg10[%c32_821, %c64_822] : memref<56x224xf32, #tpu.memory_space<vmem>>, vector<8x32xf32>
    %c128_823 = arith.constant 128 : index
    %c128_824 = arith.constant 128 : index
    %841 = vector.load %arg11[%c128_823, %c128_824] : memref<200x288xf32, #tpu.memory_space<vmem>>, vector<8x32xf32>
    tpu.vector_store %arg11[%c128_823, %c128_824], %840 {strides = array<i32>} : memref<200x288xf32, #tpu.memory_space<vmem>>, vector<8x32xf32>,
    %c32_825 = arith.constant 32 : index
    %c96_826 = arith.constant 96 : index
    %842 = vector.load %arg10[%c32_825, %c96_826] : memref<56x224xf32, #tpu.memory_space<vmem>>, vector<8x32xf32>
    %c136_827 = arith.constant 136 : index
    %c128_828 = arith.constant 128 : index
    %843 = vector.load %arg11[%c136_827, %c128_828] : memref<200x288xf32, #tpu.memory_space<vmem>>, vector<8x32xf32>
    tpu.vector_store %arg11[%c136_827, %c128_828], %842 {strides = array<i32>} : memref<200x288xf32, #tpu.memory_space<vmem>>, vector<8x32xf32>,
    %c32_829 = arith.constant 32 : index
    %c128_830 = arith.constant 128 : index
    %844 = vector.load %arg10[%c32_829, %c128_830] : memref<56x224xf32, #tpu.memory_space<vmem>>, vector<8x32xf32>
    %c144_831 = arith.constant 144 : index
    %c128_832 = arith.constant 128 : index
    %845 = vector.load %arg11[%c144_831, %c128_832] : memref<200x288xf32, #tpu.memory_space<vmem>>, vector<8x32xf32>
    tpu.vector_store %arg11[%c144_831, %c128_832], %844 {strides = array<i32>} : memref<200x288xf32, #tpu.memory_space<vmem>>, vector<8x32xf32>,
    %c32_833 = arith.constant 32 : index
    %c160_834 = arith.constant 160 : index
    %846 = vector.load %arg10[%c32_833, %c160_834] : memref<56x224xf32, #tpu.memory_space<vmem>>, vector<8x32xf32>
    %c152_835 = arith.constant 152 : index
    %c128_836 = arith.constant 128 : index
    %847 = vector.load %arg11[%c152_835, %c128_836] : memref<200x288xf32, #tpu.memory_space<vmem>>, vector<8x32xf32>
    tpu.vector_store %arg11[%c152_835, %c128_836], %846 {strides = array<i32>} : memref<200x288xf32, #tpu.memory_space<vmem>>, vector<8x32xf32>,
    %c40_837 = arith.constant 40 : index
    %c32_838 = arith.constant 32 : index
    %848 = vector.load %arg10[%c40_837, %c32_838] : memref<56x224xf32, #tpu.memory_space<vmem>>, vector<8x32xf32>
    %c160_839 = arith.constant 160 : index
    %c128_840 = arith.constant 128 : index
    %849 = vector.load %arg11[%c160_839, %c128_840] : memref<200x288xf32, #tpu.memory_space<vmem>>, vector<8x32xf32>
    tpu.vector_store %arg11[%c160_839, %c128_840], %848 {strides = array<i32>} : memref<200x288xf32, #tpu.memory_space<vmem>>, vector<8x32xf32>,
    %c40_841 = arith.constant 40 : index
    %c64_842 = arith.constant 64 : index
    %850 = vector.load %arg10[%c40_841, %c64_842] : memref<56x224xf32, #tpu.memory_space<vmem>>, vector<8x32xf32>
    %c168_843 = arith.constant 168 : index
    %c128_844 = arith.constant 128 : index
    %851 = vector.load %arg11[%c168_843, %c128_844] : memref<200x288xf32, #tpu.memory_space<vmem>>, vector<8x32xf32>
    tpu.vector_store %arg11[%c168_843, %c128_844], %850 {strides = array<i32>} : memref<200x288xf32, #tpu.memory_space<vmem>>, vector<8x32xf32>,
    %c40_845 = arith.constant 40 : index
    %c96_846 = arith.constant 96 : index
    %852 = vector.load %arg10[%c40_845, %c96_846] : memref<56x224xf32, #tpu.memory_space<vmem>>, vector<8x32xf32>
    %c176_847 = arith.constant 176 : index
    %c128_848 = arith.constant 128 : index
    %853 = vector.load %arg11[%c176_847, %c128_848] : memref<200x288xf32, #tpu.memory_space<vmem>>, vector<8x32xf32>
    tpu.vector_store %arg11[%c176_847, %c128_848], %852 {strides = array<i32>} : memref<200x288xf32, #tpu.memory_space<vmem>>, vector<8x32xf32>,
    %c40_849 = arith.constant 40 : index
    %c128_850 = arith.constant 128 : index
    %854 = vector.load %arg10[%c40_849, %c128_850] : memref<56x224xf32, #tpu.memory_space<vmem>>, vector<8x32xf32>
    %c184_851 = arith.constant 184 : index
    %c128_852 = arith.constant 128 : index
    %855 = vector.load %arg11[%c184_851, %c128_852] : memref<200x288xf32, #tpu.memory_space<vmem>>, vector<8x32xf32>
    tpu.vector_store %arg11[%c184_851, %c128_852], %854 {strides = array<i32>} : memref<200x288xf32, #tpu.memory_space<vmem>>, vector<8x32xf32>,
    %c40_853 = arith.constant 40 : index
    %c160_854 = arith.constant 160 : index
    %856 = vector.load %arg10[%c40_853, %c160_854] : memref<56x224xf32, #tpu.memory_space<vmem>>, vector<8x32xf32>
    %c192_855 = arith.constant 192 : index
    %c128_856 = arith.constant 128 : index
    %857 = vector.load %arg11[%c192_855, %c128_856] : memref<200x288xf32, #tpu.memory_space<vmem>>, vector<8x32xf32>
    tpu.vector_store %arg11[%c192_855, %c128_856], %856 {strides = array<i32>} : memref<200x288xf32, #tpu.memory_space<vmem>>, vector<8x32xf32>,
    %c8_857 = arith.constant 8 : index
    %c64_858 = arith.constant 64 : index
    %858 = vector.load %arg10[%c8_857, %c64_858] : memref<56x224xf32, #tpu.memory_space<vmem>>, vector<8x32xf32>
    %c0_859 = arith.constant 0 : index
    %c160_860 = arith.constant 160 : index
    %859 = vector.load %arg11[%c0_859, %c160_860] : memref<200x288xf32, #tpu.memory_space<vmem>>, vector<8x32xf32>
    tpu.vector_store %arg11[%c0_859, %c160_860], %858 {strides = array<i32>} : memref<200x288xf32, #tpu.memory_space<vmem>>, vector<8x32xf32>,
    %c8_861 = arith.constant 8 : index
    %c96_862 = arith.constant 96 : index
    %860 = vector.load %arg10[%c8_861, %c96_862] : memref<56x224xf32, #tpu.memory_space<vmem>>, vector<8x32xf32>
    %c8_863 = arith.constant 8 : index
    %c160_864 = arith.constant 160 : index
    %861 = vector.load %arg11[%c8_863, %c160_864] : memref<200x288xf32, #tpu.memory_space<vmem>>, vector<8x32xf32>
    tpu.vector_store %arg11[%c8_863, %c160_864], %860 {strides = array<i32>} : memref<200x288xf32, #tpu.memory_space<vmem>>, vector<8x32xf32>,
    %c8_865 = arith.constant 8 : index
    %c128_866 = arith.constant 128 : index
    %862 = vector.load %arg10[%c8_865, %c128_866] : memref<56x224xf32, #tpu.memory_space<vmem>>, vector<8x32xf32>
    %c16_867 = arith.constant 16 : index
    %c160_868 = arith.constant 160 : index
    %863 = vector.load %arg11[%c16_867, %c160_868] : memref<200x288xf32, #tpu.memory_space<vmem>>, vector<8x32xf32>
    tpu.vector_store %arg11[%c16_867, %c160_868], %862 {strides = array<i32>} : memref<200x288xf32, #tpu.memory_space<vmem>>, vector<8x32xf32>,
    %c8_869 = arith.constant 8 : index
    %c160_870 = arith.constant 160 : index
    %864 = vector.load %arg10[%c8_869, %c160_870] : memref<56x224xf32, #tpu.memory_space<vmem>>, vector<8x32xf32>
    %c24_871 = arith.constant 24 : index
    %c160_872 = arith.constant 160 : index
    %865 = vector.load %arg11[%c24_871, %c160_872] : memref<200x288xf32, #tpu.memory_space<vmem>>, vector<8x32xf32>
    tpu.vector_store %arg11[%c24_871, %c160_872], %864 {strides = array<i32>} : memref<200x288xf32, #tpu.memory_space<vmem>>, vector<8x32xf32>,
    %c8_873 = arith.constant 8 : index
    %c192_874 = arith.constant 192 : index
    %866 = vector.load %arg10[%c8_873, %c192_874] : memref<56x224xf32, #tpu.memory_space<vmem>>, vector<8x32xf32>
    %c32_875 = arith.constant 32 : index
    %c160_876 = arith.constant 160 : index
    %867 = vector.load %arg11[%c32_875, %c160_876] : memref<200x288xf32, #tpu.memory_space<vmem>>, vector<8x32xf32>
    tpu.vector_store %arg11[%c32_875, %c160_876], %866 {strides = array<i32>} : memref<200x288xf32, #tpu.memory_space<vmem>>, vector<8x32xf32>,
    %c16_877 = arith.constant 16 : index
    %c64_878 = arith.constant 64 : index
    %868 = vector.load %arg10[%c16_877, %c64_878] : memref<56x224xf32, #tpu.memory_space<vmem>>, vector<8x32xf32>
    %c40_879 = arith.constant 40 : index
    %c160_880 = arith.constant 160 : index
    %869 = vector.load %arg11[%c40_879, %c160_880] : memref<200x288xf32, #tpu.memory_space<vmem>>, vector<8x32xf32>
    tpu.vector_store %arg11[%c40_879, %c160_880], %868 {strides = array<i32>} : memref<200x288xf32, #tpu.memory_space<vmem>>, vector<8x32xf32>,
    %c16_881 = arith.constant 16 : index
    %c96_882 = arith.constant 96 : index
    %870 = vector.load %arg10[%c16_881, %c96_882] : memref<56x224xf32, #tpu.memory_space<vmem>>, vector<8x32xf32>
    %c48_883 = arith.constant 48 : index
    %c160_884 = arith.constant 160 : index
    %871 = vector.load %arg11[%c48_883, %c160_884] : memref<200x288xf32, #tpu.memory_space<vmem>>, vector<8x32xf32>
    tpu.vector_store %arg11[%c48_883, %c160_884], %870 {strides = array<i32>} : memref<200x288xf32, #tpu.memory_space<vmem>>, vector<8x32xf32>,
    %c16_885 = arith.constant 16 : index
    %c128_886 = arith.constant 128 : index
    %872 = vector.load %arg10[%c16_885, %c128_886] : memref<56x224xf32, #tpu.memory_space<vmem>>, vector<8x32xf32>
    %c56_887 = arith.constant 56 : index
    %c160_888 = arith.constant 160 : index
    %873 = vector.load %arg11[%c56_887, %c160_888] : memref<200x288xf32, #tpu.memory_space<vmem>>, vector<8x32xf32>
    tpu.vector_store %arg11[%c56_887, %c160_888], %872 {strides = array<i32>} : memref<200x288xf32, #tpu.memory_space<vmem>>, vector<8x32xf32>,
    %c16_889 = arith.constant 16 : index
    %c160_890 = arith.constant 160 : index
    %874 = vector.load %arg10[%c16_889, %c160_890] : memref<56x224xf32, #tpu.memory_space<vmem>>, vector<8x32xf32>
    %c64_891 = arith.constant 64 : index
    %c160_892 = arith.constant 160 : index
    %875 = vector.load %arg11[%c64_891, %c160_892] : memref<200x288xf32, #tpu.memory_space<vmem>>, vector<8x32xf32>
    tpu.vector_store %arg11[%c64_891, %c160_892], %874 {strides = array<i32>} : memref<200x288xf32, #tpu.memory_space<vmem>>, vector<8x32xf32>,
    %c16_893 = arith.constant 16 : index
    %c192_894 = arith.constant 192 : index
    %876 = vector.load %arg10[%c16_893, %c192_894] : memref<56x224xf32, #tpu.memory_space<vmem>>, vector<8x32xf32>
    %c72_895 = arith.constant 72 : index
    %c160_896 = arith.constant 160 : index
    %877 = vector.load %arg11[%c72_895, %c160_896] : memref<200x288xf32, #tpu.memory_space<vmem>>, vector<8x32xf32>
    tpu.vector_store %arg11[%c72_895, %c160_896], %876 {strides = array<i32>} : memref<200x288xf32, #tpu.memory_space<vmem>>, vector<8x32xf32>,
    %c24_897 = arith.constant 24 : index
    %c64_898 = arith.constant 64 : index
    %878 = vector.load %arg10[%c24_897, %c64_898] : memref<56x224xf32, #tpu.memory_space<vmem>>, vector<8x32xf32>
    %c80_899 = arith.constant 80 : index
    %c160_900 = arith.constant 160 : index
    %879 = vector.load %arg11[%c80_899, %c160_900] : memref<200x288xf32, #tpu.memory_space<vmem>>, vector<8x32xf32>
    tpu.vector_store %arg11[%c80_899, %c160_900], %878 {strides = array<i32>} : memref<200x288xf32, #tpu.memory_space<vmem>>, vector<8x32xf32>,
    %c24_901 = arith.constant 24 : index
    %c96_902 = arith.constant 96 : index
    %880 = vector.load %arg10[%c24_901, %c96_902] : memref<56x224xf32, #tpu.memory_space<vmem>>, vector<8x32xf32>
    %c88_903 = arith.constant 88 : index
    %c160_904 = arith.constant 160 : index
    %881 = vector.load %arg11[%c88_903, %c160_904] : memref<200x288xf32, #tpu.memory_space<vmem>>, vector<8x32xf32>
    tpu.vector_store %arg11[%c88_903, %c160_904], %880 {strides = array<i32>} : memref<200x288xf32, #tpu.memory_space<vmem>>, vector<8x32xf32>,
    %c24_905 = arith.constant 24 : index
    %c128_906 = arith.constant 128 : index
    %882 = vector.load %arg10[%c24_905, %c128_906] : memref<56x224xf32, #tpu.memory_space<vmem>>, vector<8x32xf32>
    %c96_907 = arith.constant 96 : index
    %c160_908 = arith.constant 160 : index
    %883 = vector.load %arg11[%c96_907, %c160_908] : memref<200x288xf32, #tpu.memory_space<vmem>>, vector<8x32xf32>
    tpu.vector_store %arg11[%c96_907, %c160_908], %882 {strides = array<i32>} : memref<200x288xf32, #tpu.memory_space<vmem>>, vector<8x32xf32>,
    %c24_909 = arith.constant 24 : index
    %c160_910 = arith.constant 160 : index
    %884 = vector.load %arg10[%c24_909, %c160_910] : memref<56x224xf32, #tpu.memory_space<vmem>>, vector<8x32xf32>
    %c104_911 = arith.constant 104 : index
    %c160_912 = arith.constant 160 : index
    %885 = vector.load %arg11[%c104_911, %c160_912] : memref<200x288xf32, #tpu.memory_space<vmem>>, vector<8x32xf32>
    tpu.vector_store %arg11[%c104_911, %c160_912], %884 {strides = array<i32>} : memref<200x288xf32, #tpu.memory_space<vmem>>, vector<8x32xf32>,
    %c24_913 = arith.constant 24 : index
    %c192_914 = arith.constant 192 : index
    %886 = vector.load %arg10[%c24_913, %c192_914] : memref<56x224xf32, #tpu.memory_space<vmem>>, vector<8x32xf32>
    %c112_915 = arith.constant 112 : index
    %c160_916 = arith.constant 160 : index
    %887 = vector.load %arg11[%c112_915, %c160_916] : memref<200x288xf32, #tpu.memory_space<vmem>>, vector<8x32xf32>
    tpu.vector_store %arg11[%c112_915, %c160_916], %886 {strides = array<i32>} : memref<200x288xf32, #tpu.memory_space<vmem>>, vector<8x32xf32>,
    %c32_917 = arith.constant 32 : index
    %c64_918 = arith.constant 64 : index
    %888 = vector.load %arg10[%c32_917, %c64_918] : memref<56x224xf32, #tpu.memory_space<vmem>>, vector<8x32xf32>
    %c120_919 = arith.constant 120 : index
    %c160_920 = arith.constant 160 : index
    %889 = vector.load %arg11[%c120_919, %c160_920] : memref<200x288xf32, #tpu.memory_space<vmem>>, vector<8x32xf32>
    tpu.vector_store %arg11[%c120_919, %c160_920], %888 {strides = array<i32>} : memref<200x288xf32, #tpu.memory_space<vmem>>, vector<8x32xf32>,
    %c32_921 = arith.constant 32 : index
    %c96_922 = arith.constant 96 : index
    %890 = vector.load %arg10[%c32_921, %c96_922] : memref<56x224xf32, #tpu.memory_space<vmem>>, vector<8x32xf32>
    %c128_923 = arith.constant 128 : index
    %c160_924 = arith.constant 160 : index
    %891 = vector.load %arg11[%c128_923, %c160_924] : memref<200x288xf32, #tpu.memory_space<vmem>>, vector<8x32xf32>
    tpu.vector_store %arg11[%c128_923, %c160_924], %890 {strides = array<i32>} : memref<200x288xf32, #tpu.memory_space<vmem>>, vector<8x32xf32>,
    %c32_925 = arith.constant 32 : index
    %c128_926 = arith.constant 128 : index
    %892 = vector.load %arg10[%c32_925, %c128_926] : memref<56x224xf32, #tpu.memory_space<vmem>>, vector<8x32xf32>
    %c136_927 = arith.constant 136 : index
    %c160_928 = arith.constant 160 : index
    %893 = vector.load %arg11[%c136_927, %c160_928] : memref<200x288xf32, #tpu.memory_space<vmem>>, vector<8x32xf32>
    tpu.vector_store %arg11[%c136_927, %c160_928], %892 {strides = array<i32>} : memref<200x288xf32, #tpu.memory_space<vmem>>, vector<8x32xf32>,
    %c32_929 = arith.constant 32 : index
    %c160_930 = arith.constant 160 : index
    %894 = vector.load %arg10[%c32_929, %c160_930] : memref<56x224xf32, #tpu.memory_space<vmem>>, vector<8x32xf32>
    %c144_931 = arith.constant 144 : index
    %c160_932 = arith.constant 160 : index
    %895 = vector.load %arg11[%c144_931, %c160_932] : memref<200x288xf32, #tpu.memory_space<vmem>>, vector<8x32xf32>
    tpu.vector_store %arg11[%c144_931, %c160_932], %894 {strides = array<i32>} : memref<200x288xf32, #tpu.memory_space<vmem>>, vector<8x32xf32>,
    %c32_933 = arith.constant 32 : index
    %c192_934 = arith.constant 192 : index
    %896 = vector.load %arg10[%c32_933, %c192_934] : memref<56x224xf32, #tpu.memory_space<vmem>>, vector<8x32xf32>
    %c152_935 = arith.constant 152 : index
    %c160_936 = arith.constant 160 : index
    %897 = vector.load %arg11[%c152_935, %c160_936] : memref<200x288xf32, #tpu.memory_space<vmem>>, vector<8x32xf32>
    tpu.vector_store %arg11[%c152_935, %c160_936], %896 {strides = array<i32>} : memref<200x288xf32, #tpu.memory_space<vmem>>, vector<8x32xf32>,
    %c40_937 = arith.constant 40 : index
    %c64_938 = arith.constant 64 : index
    %898 = vector.load %arg10[%c40_937, %c64_938] : memref<56x224xf32, #tpu.memory_space<vmem>>, vector<8x32xf32>
    %c160_939 = arith.constant 160 : index
    %c160_940 = arith.constant 160 : index
    %899 = vector.load %arg11[%c160_939, %c160_940] : memref<200x288xf32, #tpu.memory_space<vmem>>, vector<8x32xf32>
    tpu.vector_store %arg11[%c160_939, %c160_940], %898 {strides = array<i32>} : memref<200x288xf32, #tpu.memory_space<vmem>>, vector<8x32xf32>,
    %c40_941 = arith.constant 40 : index
    %c96_942 = arith.constant 96 : index
    %900 = vector.load %arg10[%c40_941, %c96_942] : memref<56x224xf32, #tpu.memory_space<vmem>>, vector<8x32xf32>
    %c168_943 = arith.constant 168 : index
    %c160_944 = arith.constant 160 : index
    %901 = vector.load %arg11[%c168_943, %c160_944] : memref<200x288xf32, #tpu.memory_space<vmem>>, vector<8x32xf32>
    tpu.vector_store %arg11[%c168_943, %c160_944], %900 {strides = array<i32>} : memref<200x288xf32, #tpu.memory_space<vmem>>, vector<8x32xf32>,
    %c40_945 = arith.constant 40 : index
    %c128_946 = arith.constant 128 : index
    %902 = vector.load %arg10[%c40_945, %c128_946] : memref<56x224xf32, #tpu.memory_space<vmem>>, vector<8x32xf32>
    %c176_947 = arith.constant 176 : index
    %c160_948 = arith.constant 160 : index
    %903 = vector.load %arg11[%c176_947, %c160_948] : memref<200x288xf32, #tpu.memory_space<vmem>>, vector<8x32xf32>
    tpu.vector_store %arg11[%c176_947, %c160_948], %902 {strides = array<i32>} : memref<200x288xf32, #tpu.memory_space<vmem>>, vector<8x32xf32>,
    %c40_949 = arith.constant 40 : index
    %c160_950 = arith.constant 160 : index
    %904 = vector.load %arg10[%c40_949, %c160_950] : memref<56x224xf32, #tpu.memory_space<vmem>>, vector<8x32xf32>
    %c184_951 = arith.constant 184 : index
    %c160_952 = arith.constant 160 : index
    %905 = vector.load %arg11[%c184_951, %c160_952] : memref<200x288xf32, #tpu.memory_space<vmem>>, vector<8x32xf32>
    tpu.vector_store %arg11[%c184_951, %c160_952], %904 {strides = array<i32>} : memref<200x288xf32, #tpu.memory_space<vmem>>, vector<8x32xf32>,
    %c40_953 = arith.constant 40 : index
    %c192_954 = arith.constant 192 : index
    %906 = vector.load %arg10[%c40_953, %c192_954] : memref<56x224xf32, #tpu.memory_space<vmem>>, vector<8x32xf32>
    %c192_955 = arith.constant 192 : index
    %c160_956 = arith.constant 160 : index
    %907 = vector.load %arg11[%c192_955, %c160_956] : memref<200x288xf32, #tpu.memory_space<vmem>>, vector<8x32xf32>
    tpu.vector_store %arg11[%c192_955, %c160_956], %906 {strides = array<i32>} : memref<200x288xf32, #tpu.memory_space<vmem>>, vector<8x32xf32>,
    %c16_957 = arith.constant 16 : index
    %c0_958 = arith.constant 0 : index
    %908 = vector.load %arg10[%c16_957, %c0_958] : memref<56x224xf32, #tpu.memory_space<vmem>>, vector<8x32xf32>
    %c0_959 = arith.constant 0 : index
    %c192_960 = arith.constant 192 : index
    %909 = vector.load %arg11[%c0_959, %c192_960] : memref<200x288xf32, #tpu.memory_space<vmem>>, vector<8x32xf32>
    tpu.vector_store %arg11[%c0_959, %c192_960], %908 {strides = array<i32>} : memref<200x288xf32, #tpu.memory_space<vmem>>, vector<8x32xf32>,
    %c16_961 = arith.constant 16 : index
    %c32_962 = arith.constant 32 : index
    %910 = vector.load %arg10[%c16_961, %c32_962] : memref<56x224xf32, #tpu.memory_space<vmem>>, vector<8x32xf32>
    %c8_963 = arith.constant 8 : index
    %c192_964 = arith.constant 192 : index
    %911 = vector.load %arg11[%c8_963, %c192_964] : memref<200x288xf32, #tpu.memory_space<vmem>>, vector<8x32xf32>
    tpu.vector_store %arg11[%c8_963, %c192_964], %910 {strides = array<i32>} : memref<200x288xf32, #tpu.memory_space<vmem>>, vector<8x32xf32>,
    %c16_965 = arith.constant 16 : index
    %c64_966 = arith.constant 64 : index
    %912 = vector.load %arg10[%c16_965, %c64_966] : memref<56x224xf32, #tpu.memory_space<vmem>>, vector<8x32xf32>
    %c16_967 = arith.constant 16 : index
    %c192_968 = arith.constant 192 : index
    %913 = vector.load %arg11[%c16_967, %c192_968] : memref<200x288xf32, #tpu.memory_space<vmem>>, vector<8x32xf32>
    tpu.vector_store %arg11[%c16_967, %c192_968], %912 {strides = array<i32>} : memref<200x288xf32, #tpu.memory_space<vmem>>, vector<8x32xf32>,
    %c16_969 = arith.constant 16 : index
    %c96_970 = arith.constant 96 : index
    %914 = vector.load %arg10[%c16_969, %c96_970] : memref<56x224xf32, #tpu.memory_space<vmem>>, vector<8x32xf32>
    %c24_971 = arith.constant 24 : index
    %c192_972 = arith.constant 192 : index
    %915 = vector.load %arg11[%c24_971, %c192_972] : memref<200x288xf32, #tpu.memory_space<vmem>>, vector<8x32xf32>
    tpu.vector_store %arg11[%c24_971, %c192_972], %914 {strides = array<i32>} : memref<200x288xf32, #tpu.memory_space<vmem>>, vector<8x32xf32>,
    %c16_973 = arith.constant 16 : index
    %c128_974 = arith.constant 128 : index
    %916 = vector.load %arg10[%c16_973, %c128_974] : memref<56x224xf32, #tpu.memory_space<vmem>>, vector<8x32xf32>
    %c32_975 = arith.constant 32 : index
    %c192_976 = arith.constant 192 : index
    %917 = vector.load %arg11[%c32_975, %c192_976] : memref<200x288xf32, #tpu.memory_space<vmem>>, vector<8x32xf32>
    tpu.vector_store %arg11[%c32_975, %c192_976], %916 {strides = array<i32>} : memref<200x288xf32, #tpu.memory_space<vmem>>, vector<8x32xf32>,
    %c24_977 = arith.constant 24 : index
    %c0_978 = arith.constant 0 : index
    %918 = vector.load %arg10[%c24_977, %c0_978] : memref<56x224xf32, #tpu.memory_space<vmem>>, vector<8x32xf32>
    %c40_979 = arith.constant 40 : index
    %c192_980 = arith.constant 192 : index
    %919 = vector.load %arg11[%c40_979, %c192_980] : memref<200x288xf32, #tpu.memory_space<vmem>>, vector<8x32xf32>
    tpu.vector_store %arg11[%c40_979, %c192_980], %918 {strides = array<i32>} : memref<200x288xf32, #tpu.memory_space<vmem>>, vector<8x32xf32>,
    %c24_981 = arith.constant 24 : index
    %c32_982 = arith.constant 32 : index
    %920 = vector.load %arg10[%c24_981, %c32_982] : memref<56x224xf32, #tpu.memory_space<vmem>>, vector<8x32xf32>
    %c48_983 = arith.constant 48 : index
    %c192_984 = arith.constant 192 : index
    %921 = vector.load %arg11[%c48_983, %c192_984] : memref<200x288xf32, #tpu.memory_space<vmem>>, vector<8x32xf32>
    tpu.vector_store %arg11[%c48_983, %c192_984], %920 {strides = array<i32>} : memref<200x288xf32, #tpu.memory_space<vmem>>, vector<8x32xf32>,
    %c24_985 = arith.constant 24 : index
    %c64_986 = arith.constant 64 : index
    %922 = vector.load %arg10[%c24_985, %c64_986] : memref<56x224xf32, #tpu.memory_space<vmem>>, vector<8x32xf32>
    %c56_987 = arith.constant 56 : index
    %c192_988 = arith.constant 192 : index
    %923 = vector.load %arg11[%c56_987, %c192_988] : memref<200x288xf32, #tpu.memory_space<vmem>>, vector<8x32xf32>
    tpu.vector_store %arg11[%c56_987, %c192_988], %922 {strides = array<i32>} : memref<200x288xf32, #tpu.memory_space<vmem>>, vector<8x32xf32>,
    %c24_989 = arith.constant 24 : index
    %c96_990 = arith.constant 96 : index
    %924 = vector.load %arg10[%c24_989, %c96_990] : memref<56x224xf32, #tpu.memory_space<vmem>>, vector<8x32xf32>
    %c64_991 = arith.constant 64 : index
    %c192_992 = arith.constant 192 : index
    %925 = vector.load %arg11[%c64_991, %c192_992] : memref<200x288xf32, #tpu.memory_space<vmem>>, vector<8x32xf32>
    tpu.vector_store %arg11[%c64_991, %c192_992], %924 {strides = array<i32>} : memref<200x288xf32, #tpu.memory_space<vmem>>, vector<8x32xf32>,
    %c24_993 = arith.constant 24 : index
    %c128_994 = arith.constant 128 : index
    %926 = vector.load %arg10[%c24_993, %c128_994] : memref<56x224xf32, #tpu.memory_space<vmem>>, vector<8x32xf32>
    %c72_995 = arith.constant 72 : index
    %c192_996 = arith.constant 192 : index
    %927 = vector.load %arg11[%c72_995, %c192_996] : memref<200x288xf32, #tpu.memory_space<vmem>>, vector<8x32xf32>
    tpu.vector_store %arg11[%c72_995, %c192_996], %926 {strides = array<i32>} : memref<200x288xf32, #tpu.memory_space<vmem>>, vector<8x32xf32>,
    %c32_997 = arith.constant 32 : index
    %c0_998 = arith.constant 0 : index
    %928 = vector.load %arg10[%c32_997, %c0_998] : memref<56x224xf32, #tpu.memory_space<vmem>>, vector<8x32xf32>
    %c80_999 = arith.constant 80 : index
    %c192_1000 = arith.constant 192 : index
    %929 = vector.load %arg11[%c80_999, %c192_1000] : memref<200x288xf32, #tpu.memory_space<vmem>>, vector<8x32xf32>
    tpu.vector_store %arg11[%c80_999, %c192_1000], %928 {strides = array<i32>} : memref<200x288xf32, #tpu.memory_space<vmem>>, vector<8x32xf32>,
    %c32_1001 = arith.constant 32 : index
    %c32_1002 = arith.constant 32 : index
    %930 = vector.load %arg10[%c32_1001, %c32_1002] : memref<56x224xf32, #tpu.memory_space<vmem>>, vector<8x32xf32>
    %c88_1003 = arith.constant 88 : index
    %c192_1004 = arith.constant 192 : index
    %931 = vector.load %arg11[%c88_1003, %c192_1004] : memref<200x288xf32, #tpu.memory_space<vmem>>, vector<8x32xf32>
    tpu.vector_store %arg11[%c88_1003, %c192_1004], %930 {strides = array<i32>} : memref<200x288xf32, #tpu.memory_space<vmem>>, vector<8x32xf32>,
    %c32_1005 = arith.constant 32 : index
    %c64_1006 = arith.constant 64 : index
    %932 = vector.load %arg10[%c32_1005, %c64_1006] : memref<56x224xf32, #tpu.memory_space<vmem>>, vector<8x32xf32>
    %c96_1007 = arith.constant 96 : index
    %c192_1008 = arith.constant 192 : index
    %933 = vector.load %arg11[%c96_1007, %c192_1008] : memref<200x288xf32, #tpu.memory_space<vmem>>, vector<8x32xf32>
    tpu.vector_store %arg11[%c96_1007, %c192_1008], %932 {strides = array<i32>} : memref<200x288xf32, #tpu.memory_space<vmem>>, vector<8x32xf32>,
    %c32_1009 = arith.constant 32 : index
    %c96_1010 = arith.constant 96 : index
    %934 = vector.load %arg10[%c32_1009, %c96_1010] : memref<56x224xf32, #tpu.memory_space<vmem>>, vector<8x32xf32>
    %c104_1011 = arith.constant 104 : index
    %c192_1012 = arith.constant 192 : index
    %935 = vector.load %arg11[%c104_1011, %c192_1012] : memref<200x288xf32, #tpu.memory_space<vmem>>, vector<8x32xf32>
    tpu.vector_store %arg11[%c104_1011, %c192_1012], %934 {strides = array<i32>} : memref<200x288xf32, #tpu.memory_space<vmem>>, vector<8x32xf32>,
    %c32_1013 = arith.constant 32 : index
    %c128_1014 = arith.constant 128 : index
    %936 = vector.load %arg10[%c32_1013, %c128_1014] : memref<56x224xf32, #tpu.memory_space<vmem>>, vector<8x32xf32>
    %c112_1015 = arith.constant 112 : index
    %c192_1016 = arith.constant 192 : index
    %937 = vector.load %arg11[%c112_1015, %c192_1016] : memref<200x288xf32, #tpu.memory_space<vmem>>, vector<8x32xf32>
    tpu.vector_store %arg11[%c112_1015, %c192_1016], %936 {strides = array<i32>} : memref<200x288xf32, #tpu.memory_space<vmem>>, vector<8x32xf32>,
    %c40_1017 = arith.constant 40 : index
    %c0_1018 = arith.constant 0 : index
    %938 = vector.load %arg10[%c40_1017, %c0_1018] : memref<56x224xf32, #tpu.memory_space<vmem>>, vector<8x32xf32>
    %c120_1019 = arith.constant 120 : index
    %c192_1020 = arith.constant 192 : index
    %939 = vector.load %arg11[%c120_1019, %c192_1020] : memref<200x288xf32, #tpu.memory_space<vmem>>, vector<8x32xf32>
    tpu.vector_store %arg11[%c120_1019, %c192_1020], %938 {strides = array<i32>} : memref<200x288xf32, #tpu.memory_space<vmem>>, vector<8x32xf32>,
    %c40_1021 = arith.constant 40 : index
    %c32_1022 = arith.constant 32 : index
    %940 = vector.load %arg10[%c40_1021, %c32_1022] : memref<56x224xf32, #tpu.memory_space<vmem>>, vector<8x32xf32>
    %c128_1023 = arith.constant 128 : index
    %c192_1024 = arith.constant 192 : index
    %941 = vector.load %arg11[%c128_1023, %c192_1024] : memref<200x288xf32, #tpu.memory_space<vmem>>, vector<8x32xf32>
    tpu.vector_store %arg11[%c128_1023, %c192_1024], %940 {strides = array<i32>} : memref<200x288xf32, #tpu.memory_space<vmem>>, vector<8x32xf32>,
    %c40_1025 = arith.constant 40 : index
    %c64_1026 = arith.constant 64 : index
    %942 = vector.load %arg10[%c40_1025, %c64_1026] : memref<56x224xf32, #tpu.memory_space<vmem>>, vector<8x32xf32>
    %c136_1027 = arith.constant 136 : index
    %c192_1028 = arith.constant 192 : index
    %943 = vector.load %arg11[%c136_1027, %c192_1028] : memref<200x288xf32, #tpu.memory_space<vmem>>, vector<8x32xf32>
    tpu.vector_store %arg11[%c136_1027, %c192_1028], %942 {strides = array<i32>} : memref<200x288xf32, #tpu.memory_space<vmem>>, vector<8x32xf32>,
    %c40_1029 = arith.constant 40 : index
    %c96_1030 = arith.constant 96 : index
    %944 = vector.load %arg10[%c40_1029, %c96_1030] : memref<56x224xf32, #tpu.memory_space<vmem>>, vector<8x32xf32>
    %c144_1031 = arith.constant 144 : index
    %c192_1032 = arith.constant 192 : index
    %945 = vector.load %arg11[%c144_1031, %c192_1032] : memref<200x288xf32, #tpu.memory_space<vmem>>, vector<8x32xf32>
    tpu.vector_store %arg11[%c144_1031, %c192_1032], %944 {strides = array<i32>} : memref<200x288xf32, #tpu.memory_space<vmem>>, vector<8x32xf32>,
    %c40_1033 = arith.constant 40 : index
    %c128_1034 = arith.constant 128 : index
    %946 = vector.load %arg10[%c40_1033, %c128_1034] : memref<56x224xf32, #tpu.memory_space<vmem>>, vector<8x32xf32>
    %c152_1035 = arith.constant 152 : index
    %c192_1036 = arith.constant 192 : index
    %947 = vector.load %arg11[%c152_1035, %c192_1036] : memref<200x288xf32, #tpu.memory_space<vmem>>, vector<8x32xf32>
    tpu.vector_store %arg11[%c152_1035, %c192_1036], %946 {strides = array<i32>} : memref<200x288xf32, #tpu.memory_space<vmem>>, vector<8x32xf32>,
    %c48_1037 = arith.constant 48 : index
    %c0_1038 = arith.constant 0 : index
    %948 = vector.load %arg10[%c48_1037, %c0_1038] : memref<56x224xf32, #tpu.memory_space<vmem>>, vector<8x32xf32>
    %c160_1039 = arith.constant 160 : index
    %c192_1040 = arith.constant 192 : index
    %949 = vector.load %arg11[%c160_1039, %c192_1040] : memref<200x288xf32, #tpu.memory_space<vmem>>, vector<8x32xf32>
    tpu.vector_store %arg11[%c160_1039, %c192_1040], %948 {strides = array<i32>} : memref<200x288xf32, #tpu.memory_space<vmem>>, vector<8x32xf32>,
    %c48_1041 = arith.constant 48 : index
    %c32_1042 = arith.constant 32 : index
    %950 = vector.load %arg10[%c48_1041, %c32_1042] : memref<56x224xf32, #tpu.memory_space<vmem>>, vector<8x32xf32>
    %c168_1043 = arith.constant 168 : index
    %c192_1044 = arith.constant 192 : index
    %951 = vector.load %arg11[%c168_1043, %c192_1044] : memref<200x288xf32, #tpu.memory_space<vmem>>, vector<8x32xf32>
    tpu.vector_store %arg11[%c168_1043, %c192_1044], %950 {strides = array<i32>} : memref<200x288xf32, #tpu.memory_space<vmem>>, vector<8x32xf32>,
    %c48_1045 = arith.constant 48 : index
    %c64_1046 = arith.constant 64 : index
    %952 = vector.load %arg10[%c48_1045, %c64_1046] : memref<56x224xf32, #tpu.memory_space<vmem>>, vector<8x32xf32>
    %c176_1047 = arith.constant 176 : index
    %c192_1048 = arith.constant 192 : index
    %953 = vector.load %arg11[%c176_1047, %c192_1048] : memref<200x288xf32, #tpu.memory_space<vmem>>, vector<8x32xf32>
    tpu.vector_store %arg11[%c176_1047, %c192_1048], %952 {strides = array<i32>} : memref<200x288xf32, #tpu.memory_space<vmem>>, vector<8x32xf32>,
    %c48_1049 = arith.constant 48 : index
    %c96_1050 = arith.constant 96 : index
    %954 = vector.load %arg10[%c48_1049, %c96_1050] : memref<56x224xf32, #tpu.memory_space<vmem>>, vector<8x32xf32>
    %c184_1051 = arith.constant 184 : index
    %c192_1052 = arith.constant 192 : index
    %955 = vector.load %arg11[%c184_1051, %c192_1052] : memref<200x288xf32, #tpu.memory_space<vmem>>, vector<8x32xf32>
    tpu.vector_store %arg11[%c184_1051, %c192_1052], %954 {strides = array<i32>} : memref<200x288xf32, #tpu.memory_space<vmem>>, vector<8x32xf32>,
    %c48_1053 = arith.constant 48 : index
    %c128_1054 = arith.constant 128 : index
    %956 = vector.load %arg10[%c48_1053, %c128_1054] : memref<56x224xf32, #tpu.memory_space<vmem>>, vector<8x32xf32>
    %c192_1055 = arith.constant 192 : index
    %c192_1056 = arith.constant 192 : index
    %957 = vector.load %arg11[%c192_1055, %c192_1056] : memref<200x288xf32, #tpu.memory_space<vmem>>, vector<8x32xf32>
    tpu.vector_store %arg11[%c192_1055, %c192_1056], %956 {strides = array<i32>} : memref<200x288xf32, #tpu.memory_space<vmem>>, vector<8x32xf32>,
    %c16_1057 = arith.constant 16 : index
    %c32_1058 = arith.constant 32 : index
    %958 = vector.load %arg10[%c16_1057, %c32_1058] : memref<56x224xf32, #tpu.memory_space<vmem>>, vector<8x32xf32>
    %c0_1059 = arith.constant 0 : index
    %c224 = arith.constant 224 : index
    %959 = vector.load %arg11[%c0_1059, %c224] : memref<200x288xf32, #tpu.memory_space<vmem>>, vector<8x32xf32>
    tpu.vector_store %arg11[%c0_1059, %c224], %958 {strides = array<i32>} : memref<200x288xf32, #tpu.memory_space<vmem>>, vector<8x32xf32>,
    %c16_1060 = arith.constant 16 : index
    %c64_1061 = arith.constant 64 : index
    %960 = vector.load %arg10[%c16_1060, %c64_1061] : memref<56x224xf32, #tpu.memory_space<vmem>>, vector<8x32xf32>
    %c8_1062 = arith.constant 8 : index
    %c224_1063 = arith.constant 224 : index
    %961 = vector.load %arg11[%c8_1062, %c224_1063] : memref<200x288xf32, #tpu.memory_space<vmem>>, vector<8x32xf32>
    tpu.vector_store %arg11[%c8_1062, %c224_1063], %960 {strides = array<i32>} : memref<200x288xf32, #tpu.memory_space<vmem>>, vector<8x32xf32>,
    %c16_1064 = arith.constant 16 : index
    %c96_1065 = arith.constant 96 : index
    %962 = vector.load %arg10[%c16_1064, %c96_1065] : memref<56x224xf32, #tpu.memory_space<vmem>>, vector<8x32xf32>
    %c16_1066 = arith.constant 16 : index
    %c224_1067 = arith.constant 224 : index
    %963 = vector.load %arg11[%c16_1066, %c224_1067] : memref<200x288xf32, #tpu.memory_space<vmem>>, vector<8x32xf32>
    tpu.vector_store %arg11[%c16_1066, %c224_1067], %962 {strides = array<i32>} : memref<200x288xf32, #tpu.memory_space<vmem>>, vector<8x32xf32>,
    %c16_1068 = arith.constant 16 : index
    %c128_1069 = arith.constant 128 : index
    %964 = vector.load %arg10[%c16_1068, %c128_1069] : memref<56x224xf32, #tpu.memory_space<vmem>>, vector<8x32xf32>
    %c24_1070 = arith.constant 24 : index
    %c224_1071 = arith.constant 224 : index
    %965 = vector.load %arg11[%c24_1070, %c224_1071] : memref<200x288xf32, #tpu.memory_space<vmem>>, vector<8x32xf32>
    tpu.vector_store %arg11[%c24_1070, %c224_1071], %964 {strides = array<i32>} : memref<200x288xf32, #tpu.memory_space<vmem>>, vector<8x32xf32>,
    %c16_1072 = arith.constant 16 : index
    %c160_1073 = arith.constant 160 : index
    %966 = vector.load %arg10[%c16_1072, %c160_1073] : memref<56x224xf32, #tpu.memory_space<vmem>>, vector<8x32xf32>
    %c32_1074 = arith.constant 32 : index
    %c224_1075 = arith.constant 224 : index
    %967 = vector.load %arg11[%c32_1074, %c224_1075] : memref<200x288xf32, #tpu.memory_space<vmem>>, vector<8x32xf32>
    tpu.vector_store %arg11[%c32_1074, %c224_1075], %966 {strides = array<i32>} : memref<200x288xf32, #tpu.memory_space<vmem>>, vector<8x32xf32>,
    %c24_1076 = arith.constant 24 : index
    %c32_1077 = arith.constant 32 : index
    %968 = vector.load %arg10[%c24_1076, %c32_1077] : memref<56x224xf32, #tpu.memory_space<vmem>>, vector<8x32xf32>
    %c40_1078 = arith.constant 40 : index
    %c224_1079 = arith.constant 224 : index
    %969 = vector.load %arg11[%c40_1078, %c224_1079] : memref<200x288xf32, #tpu.memory_space<vmem>>, vector<8x32xf32>
    tpu.vector_store %arg11[%c40_1078, %c224_1079], %968 {strides = array<i32>} : memref<200x288xf32, #tpu.memory_space<vmem>>, vector<8x32xf32>,
    %c24_1080 = arith.constant 24 : index
    %c64_1081 = arith.constant 64 : index
    %970 = vector.load %arg10[%c24_1080, %c64_1081] : memref<56x224xf32, #tpu.memory_space<vmem>>, vector<8x32xf32>
    %c48_1082 = arith.constant 48 : index
    %c224_1083 = arith.constant 224 : index
    %971 = vector.load %arg11[%c48_1082, %c224_1083] : memref<200x288xf32, #tpu.memory_space<vmem>>, vector<8x32xf32>
    tpu.vector_store %arg11[%c48_1082, %c224_1083], %970 {strides = array<i32>} : memref<200x288xf32, #tpu.memory_space<vmem>>, vector<8x32xf32>,
    %c24_1084 = arith.constant 24 : index
    %c96_1085 = arith.constant 96 : index
    %972 = vector.load %arg10[%c24_1084, %c96_1085] : memref<56x224xf32, #tpu.memory_space<vmem>>, vector<8x32xf32>
    %c56_1086 = arith.constant 56 : index
    %c224_1087 = arith.constant 224 : index
    %973 = vector.load %arg11[%c56_1086, %c224_1087] : memref<200x288xf32, #tpu.memory_space<vmem>>, vector<8x32xf32>
    tpu.vector_store %arg11[%c56_1086, %c224_1087], %972 {strides = array<i32>} : memref<200x288xf32, #tpu.memory_space<vmem>>, vector<8x32xf32>,
    %c24_1088 = arith.constant 24 : index
    %c128_1089 = arith.constant 128 : index
    %974 = vector.load %arg10[%c24_1088, %c128_1089] : memref<56x224xf32, #tpu.memory_space<vmem>>, vector<8x32xf32>
    %c64_1090 = arith.constant 64 : index
    %c224_1091 = arith.constant 224 : index
    %975 = vector.load %arg11[%c64_1090, %c224_1091] : memref<200x288xf32, #tpu.memory_space<vmem>>, vector<8x32xf32>
    tpu.vector_store %arg11[%c64_1090, %c224_1091], %974 {strides = array<i32>} : memref<200x288xf32, #tpu.memory_space<vmem>>, vector<8x32xf32>,
    %c24_1092 = arith.constant 24 : index
    %c160_1093 = arith.constant 160 : index
    %976 = vector.load %arg10[%c24_1092, %c160_1093] : memref<56x224xf32, #tpu.memory_space<vmem>>, vector<8x32xf32>
    %c72_1094 = arith.constant 72 : index
    %c224_1095 = arith.constant 224 : index
    %977 = vector.load %arg11[%c72_1094, %c224_1095] : memref<200x288xf32, #tpu.memory_space<vmem>>, vector<8x32xf32>
    tpu.vector_store %arg11[%c72_1094, %c224_1095], %976 {strides = array<i32>} : memref<200x288xf32, #tpu.memory_space<vmem>>, vector<8x32xf32>,
    %c32_1096 = arith.constant 32 : index
    %c32_1097 = arith.constant 32 : index
    %978 = vector.load %arg10[%c32_1096, %c32_1097] : memref<56x224xf32, #tpu.memory_space<vmem>>, vector<8x32xf32>
    %c80_1098 = arith.constant 80 : index
    %c224_1099 = arith.constant 224 : index
    %979 = vector.load %arg11[%c80_1098, %c224_1099] : memref<200x288xf32, #tpu.memory_space<vmem>>, vector<8x32xf32>
    tpu.vector_store %arg11[%c80_1098, %c224_1099], %978 {strides = array<i32>} : memref<200x288xf32, #tpu.memory_space<vmem>>, vector<8x32xf32>,
    %c32_1100 = arith.constant 32 : index
    %c64_1101 = arith.constant 64 : index
    %980 = vector.load %arg10[%c32_1100, %c64_1101] : memref<56x224xf32, #tpu.memory_space<vmem>>, vector<8x32xf32>
    %c88_1102 = arith.constant 88 : index
    %c224_1103 = arith.constant 224 : index
    %981 = vector.load %arg11[%c88_1102, %c224_1103] : memref<200x288xf32, #tpu.memory_space<vmem>>, vector<8x32xf32>
    tpu.vector_store %arg11[%c88_1102, %c224_1103], %980 {strides = array<i32>} : memref<200x288xf32, #tpu.memory_space<vmem>>, vector<8x32xf32>,
    %c32_1104 = arith.constant 32 : index
    %c96_1105 = arith.constant 96 : index
    %982 = vector.load %arg10[%c32_1104, %c96_1105] : memref<56x224xf32, #tpu.memory_space<vmem>>, vector<8x32xf32>
    %c96_1106 = arith.constant 96 : index
    %c224_1107 = arith.constant 224 : index
    %983 = vector.load %arg11[%c96_1106, %c224_1107] : memref<200x288xf32, #tpu.memory_space<vmem>>, vector<8x32xf32>
    tpu.vector_store %arg11[%c96_1106, %c224_1107], %982 {strides = array<i32>} : memref<200x288xf32, #tpu.memory_space<vmem>>, vector<8x32xf32>,
    %c32_1108 = arith.constant 32 : index
    %c128_1109 = arith.constant 128 : index
    %984 = vector.load %arg10[%c32_1108, %c128_1109] : memref<56x224xf32, #tpu.memory_space<vmem>>, vector<8x32xf32>
    %c104_1110 = arith.constant 104 : index
    %c224_1111 = arith.constant 224 : index
    %985 = vector.load %arg11[%c104_1110, %c224_1111] : memref<200x288xf32, #tpu.memory_space<vmem>>, vector<8x32xf32>
    tpu.vector_store %arg11[%c104_1110, %c224_1111], %984 {strides = array<i32>} : memref<200x288xf32, #tpu.memory_space<vmem>>, vector<8x32xf32>,
    %c32_1112 = arith.constant 32 : index
    %c160_1113 = arith.constant 160 : index
    %986 = vector.load %arg10[%c32_1112, %c160_1113] : memref<56x224xf32, #tpu.memory_space<vmem>>, vector<8x32xf32>
    %c112_1114 = arith.constant 112 : index
    %c224_1115 = arith.constant 224 : index
    %987 = vector.load %arg11[%c112_1114, %c224_1115] : memref<200x288xf32, #tpu.memory_space<vmem>>, vector<8x32xf32>
    tpu.vector_store %arg11[%c112_1114, %c224_1115], %986 {strides = array<i32>} : memref<200x288xf32, #tpu.memory_space<vmem>>, vector<8x32xf32>,
    %c40_1116 = arith.constant 40 : index
    %c32_1117 = arith.constant 32 : index
    %988 = vector.load %arg10[%c40_1116, %c32_1117] : memref<56x224xf32, #tpu.memory_space<vmem>>, vector<8x32xf32>
    %c120_1118 = arith.constant 120 : index
    %c224_1119 = arith.constant 224 : index
    %989 = vector.load %arg11[%c120_1118, %c224_1119] : memref<200x288xf32, #tpu.memory_space<vmem>>, vector<8x32xf32>
    tpu.vector_store %arg11[%c120_1118, %c224_1119], %988 {strides = array<i32>} : memref<200x288xf32, #tpu.memory_space<vmem>>, vector<8x32xf32>,
    %c40_1120 = arith.constant 40 : index
    %c64_1121 = arith.constant 64 : index
    %990 = vector.load %arg10[%c40_1120, %c64_1121] : memref<56x224xf32, #tpu.memory_space<vmem>>, vector<8x32xf32>
    %c128_1122 = arith.constant 128 : index
    %c224_1123 = arith.constant 224 : index
    %991 = vector.load %arg11[%c128_1122, %c224_1123] : memref<200x288xf32, #tpu.memory_space<vmem>>, vector<8x32xf32>
    tpu.vector_store %arg11[%c128_1122, %c224_1123], %990 {strides = array<i32>} : memref<200x288xf32, #tpu.memory_space<vmem>>, vector<8x32xf32>,
    %c40_1124 = arith.constant 40 : index
    %c96_1125 = arith.constant 96 : index
    %992 = vector.load %arg10[%c40_1124, %c96_1125] : memref<56x224xf32, #tpu.memory_space<vmem>>, vector<8x32xf32>
    %c136_1126 = arith.constant 136 : index
    %c224_1127 = arith.constant 224 : index
    %993 = vector.load %arg11[%c136_1126, %c224_1127] : memref<200x288xf32, #tpu.memory_space<vmem>>, vector<8x32xf32>
    tpu.vector_store %arg11[%c136_1126, %c224_1127], %992 {strides = array<i32>} : memref<200x288xf32, #tpu.memory_space<vmem>>, vector<8x32xf32>,
    %c40_1128 = arith.constant 40 : index
    %c128_1129 = arith.constant 128 : index
    %994 = vector.load %arg10[%c40_1128, %c128_1129] : memref<56x224xf32, #tpu.memory_space<vmem>>, vector<8x32xf32>
    %c144_1130 = arith.constant 144 : index
    %c224_1131 = arith.constant 224 : index
    %995 = vector.load %arg11[%c144_1130, %c224_1131] : memref<200x288xf32, #tpu.memory_space<vmem>>, vector<8x32xf32>
    tpu.vector_store %arg11[%c144_1130, %c224_1131], %994 {strides = array<i32>} : memref<200x288xf32, #tpu.memory_space<vmem>>, vector<8x32xf32>,
    %c40_1132 = arith.constant 40 : index
    %c160_1133 = arith.constant 160 : index
    %996 = vector.load %arg10[%c40_1132, %c160_1133] : memref<56x224xf32, #tpu.memory_space<vmem>>, vector<8x32xf32>
    %c152_1134 = arith.constant 152 : index
    %c224_1135 = arith.constant 224 : index
    %997 = vector.load %arg11[%c152_1134, %c224_1135] : memref<200x288xf32, #tpu.memory_space<vmem>>, vector<8x32xf32>
    tpu.vector_store %arg11[%c152_1134, %c224_1135], %996 {strides = array<i32>} : memref<200x288xf32, #tpu.memory_space<vmem>>, vector<8x32xf32>,
    %c48_1136 = arith.constant 48 : index
    %c32_1137 = arith.constant 32 : index
    %998 = vector.load %arg10[%c48_1136, %c32_1137] : memref<56x224xf32, #tpu.memory_space<vmem>>, vector<8x32xf32>
    %c160_1138 = arith.constant 160 : index
    %c224_1139 = arith.constant 224 : index
    %999 = vector.load %arg11[%c160_1138, %c224_1139] : memref<200x288xf32, #tpu.memory_space<vmem>>, vector<8x32xf32>
    tpu.vector_store %arg11[%c160_1138, %c224_1139], %998 {strides = array<i32>} : memref<200x288xf32, #tpu.memory_space<vmem>>, vector<8x32xf32>,
    %c48_1140 = arith.constant 48 : index
    %c64_1141 = arith.constant 64 : index
    %1000 = vector.load %arg10[%c48_1140, %c64_1141] : memref<56x224xf32, #tpu.memory_space<vmem>>, vector<8x32xf32>
    %c168_1142 = arith.constant 168 : index
    %c224_1143 = arith.constant 224 : index
    %1001 = vector.load %arg11[%c168_1142, %c224_1143] : memref<200x288xf32, #tpu.memory_space<vmem>>, vector<8x32xf32>
    tpu.vector_store %arg11[%c168_1142, %c224_1143], %1000 {strides = array<i32>} : memref<200x288xf32, #tpu.memory_space<vmem>>, vector<8x32xf32>,
    %c48_1144 = arith.constant 48 : index
    %c96_1145 = arith.constant 96 : index
    %1002 = vector.load %arg10[%c48_1144, %c96_1145] : memref<56x224xf32, #tpu.memory_space<vmem>>, vector<8x32xf32>
    %c176_1146 = arith.constant 176 : index
    %c224_1147 = arith.constant 224 : index
    %1003 = vector.load %arg11[%c176_1146, %c224_1147] : memref<200x288xf32, #tpu.memory_space<vmem>>, vector<8x32xf32>
    tpu.vector_store %arg11[%c176_1146, %c224_1147], %1002 {strides = array<i32>} : memref<200x288xf32, #tpu.memory_space<vmem>>, vector<8x32xf32>,
    %c48_1148 = arith.constant 48 : index
    %c128_1149 = arith.constant 128 : index
    %1004 = vector.load %arg10[%c48_1148, %c128_1149] : memref<56x224xf32, #tpu.memory_space<vmem>>, vector<8x32xf32>
    %c184_1150 = arith.constant 184 : index
    %c224_1151 = arith.constant 224 : index
    %1005 = vector.load %arg11[%c184_1150, %c224_1151] : memref<200x288xf32, #tpu.memory_space<vmem>>, vector<8x32xf32>
    tpu.vector_store %arg11[%c184_1150, %c224_1151], %1004 {strides = array<i32>} : memref<200x288xf32, #tpu.memory_space<vmem>>, vector<8x32xf32>,
    %c48_1152 = arith.constant 48 : index
    %c160_1153 = arith.constant 160 : index
    %1006 = vector.load %arg10[%c48_1152, %c160_1153] : memref<56x224xf32, #tpu.memory_space<vmem>>, vector<8x32xf32>
    %c192_1154 = arith.constant 192 : index
    %c224_1155 = arith.constant 224 : index
    %1007 = vector.load %arg11[%c192_1154, %c224_1155] : memref<200x288xf32, #tpu.memory_space<vmem>>, vector<8x32xf32>
    tpu.vector_store %arg11[%c192_1154, %c224_1155], %1006 {strides = array<i32>} : memref<200x288xf32, #tpu.memory_space<vmem>>, vector<8x32xf32>,
    %c16_1156 = arith.constant 16 : index
    %c64_1157 = arith.constant 64 : index
    %1008 = vector.load %arg10[%c16_1156, %c64_1157] : memref<56x224xf32, #tpu.memory_space<vmem>>, vector<8x32xf32>
    %c0_1158 = arith.constant 0 : index
    %c256 = arith.constant 256 : index
    %1009 = vector.load %arg11[%c0_1158, %c256] : memref<200x288xf32, #tpu.memory_space<vmem>>, vector<8x32xf32>
    tpu.vector_store %arg11[%c0_1158, %c256], %1008 {strides = array<i32>} : memref<200x288xf32, #tpu.memory_space<vmem>>, vector<8x32xf32>,
    %c16_1159 = arith.constant 16 : index
    %c96_1160 = arith.constant 96 : index
    %1010 = vector.load %arg10[%c16_1159, %c96_1160] : memref<56x224xf32, #tpu.memory_space<vmem>>, vector<8x32xf32>
    %c8_1161 = arith.constant 8 : index
    %c256_1162 = arith.constant 256 : index
    %1011 = vector.load %arg11[%c8_1161, %c256_1162] : memref<200x288xf32, #tpu.memory_space<vmem>>, vector<8x32xf32>
    tpu.vector_store %arg11[%c8_1161, %c256_1162], %1010 {strides = array<i32>} : memref<200x288xf32, #tpu.memory_space<vmem>>, vector<8x32xf32>,
    %c16_1163 = arith.constant 16 : index
    %c128_1164 = arith.constant 128 : index
    %1012 = vector.load %arg10[%c16_1163, %c128_1164] : memref<56x224xf32, #tpu.memory_space<vmem>>, vector<8x32xf32>
    %c16_1165 = arith.constant 16 : index
    %c256_1166 = arith.constant 256 : index
    %1013 = vector.load %arg11[%c16_1165, %c256_1166] : memref<200x288xf32, #tpu.memory_space<vmem>>, vector<8x32xf32>
    tpu.vector_store %arg11[%c16_1165, %c256_1166], %1012 {strides = array<i32>} : memref<200x288xf32, #tpu.memory_space<vmem>>, vector<8x32xf32>,
    %c16_1167 = arith.constant 16 : index
    %c160_1168 = arith.constant 160 : index
    %1014 = vector.load %arg10[%c16_1167, %c160_1168] : memref<56x224xf32, #tpu.memory_space<vmem>>, vector<8x32xf32>
    %c24_1169 = arith.constant 24 : index
    %c256_1170 = arith.constant 256 : index
    %1015 = vector.load %arg11[%c24_1169, %c256_1170] : memref<200x288xf32, #tpu.memory_space<vmem>>, vector<8x32xf32>
    tpu.vector_store %arg11[%c24_1169, %c256_1170], %1014 {strides = array<i32>} : memref<200x288xf32, #tpu.memory_space<vmem>>, vector<8x32xf32>,
    %c16_1171 = arith.constant 16 : index
    %c192_1172 = arith.constant 192 : index
    %1016 = vector.load %arg10[%c16_1171, %c192_1172] : memref<56x224xf32, #tpu.memory_space<vmem>>, vector<8x32xf32>
    %c32_1173 = arith.constant 32 : index
    %c256_1174 = arith.constant 256 : index
    %1017 = vector.load %arg11[%c32_1173, %c256_1174] : memref<200x288xf32, #tpu.memory_space<vmem>>, vector<8x32xf32>
    tpu.vector_store %arg11[%c32_1173, %c256_1174], %1016 {strides = array<i32>} : memref<200x288xf32, #tpu.memory_space<vmem>>, vector<8x32xf32>,
    %c24_1175 = arith.constant 24 : index
    %c64_1176 = arith.constant 64 : index
    %1018 = vector.load %arg10[%c24_1175, %c64_1176] : memref<56x224xf32, #tpu.memory_space<vmem>>, vector<8x32xf32>
    %c40_1177 = arith.constant 40 : index
    %c256_1178 = arith.constant 256 : index
    %1019 = vector.load %arg11[%c40_1177, %c256_1178] : memref<200x288xf32, #tpu.memory_space<vmem>>, vector<8x32xf32>
    tpu.vector_store %arg11[%c40_1177, %c256_1178], %1018 {strides = array<i32>} : memref<200x288xf32, #tpu.memory_space<vmem>>, vector<8x32xf32>,
    %c24_1179 = arith.constant 24 : index
    %c96_1180 = arith.constant 96 : index
    %1020 = vector.load %arg10[%c24_1179, %c96_1180] : memref<56x224xf32, #tpu.memory_space<vmem>>, vector<8x32xf32>
    %c48_1181 = arith.constant 48 : index
    %c256_1182 = arith.constant 256 : index
    %1021 = vector.load %arg11[%c48_1181, %c256_1182] : memref<200x288xf32, #tpu.memory_space<vmem>>, vector<8x32xf32>
    tpu.vector_store %arg11[%c48_1181, %c256_1182], %1020 {strides = array<i32>} : memref<200x288xf32, #tpu.memory_space<vmem>>, vector<8x32xf32>,
    %c24_1183 = arith.constant 24 : index
    %c128_1184 = arith.constant 128 : index
    %1022 = vector.load %arg10[%c24_1183, %c128_1184] : memref<56x224xf32, #tpu.memory_space<vmem>>, vector<8x32xf32>
    %c56_1185 = arith.constant 56 : index
    %c256_1186 = arith.constant 256 : index
    %1023 = vector.load %arg11[%c56_1185, %c256_1186] : memref<200x288xf32, #tpu.memory_space<vmem>>, vector<8x32xf32>
    tpu.vector_store %arg11[%c56_1185, %c256_1186], %1022 {strides = array<i32>} : memref<200x288xf32, #tpu.memory_space<vmem>>, vector<8x32xf32>,
    %c24_1187 = arith.constant 24 : index
    %c160_1188 = arith.constant 160 : index
    %1024 = vector.load %arg10[%c24_1187, %c160_1188] : memref<56x224xf32, #tpu.memory_space<vmem>>, vector<8x32xf32>
    %c64_1189 = arith.constant 64 : index
    %c256_1190 = arith.constant 256 : index
    %1025 = vector.load %arg11[%c64_1189, %c256_1190] : memref<200x288xf32, #tpu.memory_space<vmem>>, vector<8x32xf32>
    tpu.vector_store %arg11[%c64_1189, %c256_1190], %1024 {strides = array<i32>} : memref<200x288xf32, #tpu.memory_space<vmem>>, vector<8x32xf32>,
    %c24_1191 = arith.constant 24 : index
    %c192_1192 = arith.constant 192 : index
    %1026 = vector.load %arg10[%c24_1191, %c192_1192] : memref<56x224xf32, #tpu.memory_space<vmem>>, vector<8x32xf32>
    %c72_1193 = arith.constant 72 : index
    %c256_1194 = arith.constant 256 : index
    %1027 = vector.load %arg11[%c72_1193, %c256_1194] : memref<200x288xf32, #tpu.memory_space<vmem>>, vector<8x32xf32>
    tpu.vector_store %arg11[%c72_1193, %c256_1194], %1026 {strides = array<i32>} : memref<200x288xf32, #tpu.memory_space<vmem>>, vector<8x32xf32>,
    %c32_1195 = arith.constant 32 : index
    %c64_1196 = arith.constant 64 : index
    %1028 = vector.load %arg10[%c32_1195, %c64_1196] : memref<56x224xf32, #tpu.memory_space<vmem>>, vector<8x32xf32>
    %c80_1197 = arith.constant 80 : index
    %c256_1198 = arith.constant 256 : index
    %1029 = vector.load %arg11[%c80_1197, %c256_1198] : memref<200x288xf32, #tpu.memory_space<vmem>>, vector<8x32xf32>
    tpu.vector_store %arg11[%c80_1197, %c256_1198], %1028 {strides = array<i32>} : memref<200x288xf32, #tpu.memory_space<vmem>>, vector<8x32xf32>,
    %c32_1199 = arith.constant 32 : index
    %c96_1200 = arith.constant 96 : index
    %1030 = vector.load %arg10[%c32_1199, %c96_1200] : memref<56x224xf32, #tpu.memory_space<vmem>>, vector<8x32xf32>
    %c88_1201 = arith.constant 88 : index
    %c256_1202 = arith.constant 256 : index
    %1031 = vector.load %arg11[%c88_1201, %c256_1202] : memref<200x288xf32, #tpu.memory_space<vmem>>, vector<8x32xf32>
    tpu.vector_store %arg11[%c88_1201, %c256_1202], %1030 {strides = array<i32>} : memref<200x288xf32, #tpu.memory_space<vmem>>, vector<8x32xf32>,
    %c32_1203 = arith.constant 32 : index
    %c128_1204 = arith.constant 128 : index
    %1032 = vector.load %arg10[%c32_1203, %c128_1204] : memref<56x224xf32, #tpu.memory_space<vmem>>, vector<8x32xf32>
    %c96_1205 = arith.constant 96 : index
    %c256_1206 = arith.constant 256 : index
    %1033 = vector.load %arg11[%c96_1205, %c256_1206] : memref<200x288xf32, #tpu.memory_space<vmem>>, vector<8x32xf32>
    tpu.vector_store %arg11[%c96_1205, %c256_1206], %1032 {strides = array<i32>} : memref<200x288xf32, #tpu.memory_space<vmem>>, vector<8x32xf32>,
    %c32_1207 = arith.constant 32 : index
    %c160_1208 = arith.constant 160 : index
    %1034 = vector.load %arg10[%c32_1207, %c160_1208] : memref<56x224xf32, #tpu.memory_space<vmem>>, vector<8x32xf32>
    %c104_1209 = arith.constant 104 : index
    %c256_1210 = arith.constant 256 : index
    %1035 = vector.load %arg11[%c104_1209, %c256_1210] : memref<200x288xf32, #tpu.memory_space<vmem>>, vector<8x32xf32>
    tpu.vector_store %arg11[%c104_1209, %c256_1210], %1034 {strides = array<i32>} : memref<200x288xf32, #tpu.memory_space<vmem>>, vector<8x32xf32>,
    %c32_1211 = arith.constant 32 : index
    %c192_1212 = arith.constant 192 : index
    %1036 = vector.load %arg10[%c32_1211, %c192_1212] : memref<56x224xf32, #tpu.memory_space<vmem>>, vector<8x32xf32>
    %c112_1213 = arith.constant 112 : index
    %c256_1214 = arith.constant 256 : index
    %1037 = vector.load %arg11[%c112_1213, %c256_1214] : memref<200x288xf32, #tpu.memory_space<vmem>>, vector<8x32xf32>
    tpu.vector_store %arg11[%c112_1213, %c256_1214], %1036 {strides = array<i32>} : memref<200x288xf32, #tpu.memory_space<vmem>>, vector<8x32xf32>,
    %c40_1215 = arith.constant 40 : index
    %c64_1216 = arith.constant 64 : index
    %1038 = vector.load %arg10[%c40_1215, %c64_1216] : memref<56x224xf32, #tpu.memory_space<vmem>>, vector<8x32xf32>
    %c120_1217 = arith.constant 120 : index
    %c256_1218 = arith.constant 256 : index
    %1039 = vector.load %arg11[%c120_1217, %c256_1218] : memref<200x288xf32, #tpu.memory_space<vmem>>, vector<8x32xf32>
    tpu.vector_store %arg11[%c120_1217, %c256_1218], %1038 {strides = array<i32>} : memref<200x288xf32, #tpu.memory_space<vmem>>, vector<8x32xf32>,
    %c40_1219 = arith.constant 40 : index
    %c96_1220 = arith.constant 96 : index
    %1040 = vector.load %arg10[%c40_1219, %c96_1220] : memref<56x224xf32, #tpu.memory_space<vmem>>, vector<8x32xf32>
    %c128_1221 = arith.constant 128 : index
    %c256_1222 = arith.constant 256 : index
    %1041 = vector.load %arg11[%c128_1221, %c256_1222] : memref<200x288xf32, #tpu.memory_space<vmem>>, vector<8x32xf32>
    tpu.vector_store %arg11[%c128_1221, %c256_1222], %1040 {strides = array<i32>} : memref<200x288xf32, #tpu.memory_space<vmem>>, vector<8x32xf32>,
    %c40_1223 = arith.constant 40 : index
    %c128_1224 = arith.constant 128 : index
    %1042 = vector.load %arg10[%c40_1223, %c128_1224] : memref<56x224xf32, #tpu.memory_space<vmem>>, vector<8x32xf32>
    %c136_1225 = arith.constant 136 : index
    %c256_1226 = arith.constant 256 : index
    %1043 = vector.load %arg11[%c136_1225, %c256_1226] : memref<200x288xf32, #tpu.memory_space<vmem>>, vector<8x32xf32>
    tpu.vector_store %arg11[%c136_1225, %c256_1226], %1042 {strides = array<i32>} : memref<200x288xf32, #tpu.memory_space<vmem>>, vector<8x32xf32>,
    %c40_1227 = arith.constant 40 : index
    %c160_1228 = arith.constant 160 : index
    %1044 = vector.load %arg10[%c40_1227, %c160_1228] : memref<56x224xf32, #tpu.memory_space<vmem>>, vector<8x32xf32>
    %c144_1229 = arith.constant 144 : index
    %c256_1230 = arith.constant 256 : index
    %1045 = vector.load %arg11[%c144_1229, %c256_1230] : memref<200x288xf32, #tpu.memory_space<vmem>>, vector<8x32xf32>
    tpu.vector_store %arg11[%c144_1229, %c256_1230], %1044 {strides = array<i32>} : memref<200x288xf32, #tpu.memory_space<vmem>>, vector<8x32xf32>,
    %c40_1231 = arith.constant 40 : index
    %c192_1232 = arith.constant 192 : index
    %1046 = vector.load %arg10[%c40_1231, %c192_1232] : memref<56x224xf32, #tpu.memory_space<vmem>>, vector<8x32xf32>
    %c152_1233 = arith.constant 152 : index
    %c256_1234 = arith.constant 256 : index
    %1047 = vector.load %arg11[%c152_1233, %c256_1234] : memref<200x288xf32, #tpu.memory_space<vmem>>, vector<8x32xf32>
    tpu.vector_store %arg11[%c152_1233, %c256_1234], %1046 {strides = array<i32>} : memref<200x288xf32, #tpu.memory_space<vmem>>, vector<8x32xf32>,
    %c48_1235 = arith.constant 48 : index
    %c64_1236 = arith.constant 64 : index
    %1048 = vector.load %arg10[%c48_1235, %c64_1236] : memref<56x224xf32, #tpu.memory_space<vmem>>, vector<8x32xf32>
    %c160_1237 = arith.constant 160 : index
    %c256_1238 = arith.constant 256 : index
    %1049 = vector.load %arg11[%c160_1237, %c256_1238] : memref<200x288xf32, #tpu.memory_space<vmem>>, vector<8x32xf32>
    tpu.vector_store %arg11[%c160_1237, %c256_1238], %1048 {strides = array<i32>} : memref<200x288xf32, #tpu.memory_space<vmem>>, vector<8x32xf32>,
    %c48_1239 = arith.constant 48 : index
    %c96_1240 = arith.constant 96 : index
    %1050 = vector.load %arg10[%c48_1239, %c96_1240] : memref<56x224xf32, #tpu.memory_space<vmem>>, vector<8x32xf32>
    %c168_1241 = arith.constant 168 : index
    %c256_1242 = arith.constant 256 : index
    %1051 = vector.load %arg11[%c168_1241, %c256_1242] : memref<200x288xf32, #tpu.memory_space<vmem>>, vector<8x32xf32>
    tpu.vector_store %arg11[%c168_1241, %c256_1242], %1050 {strides = array<i32>} : memref<200x288xf32, #tpu.memory_space<vmem>>, vector<8x32xf32>,
    %c48_1243 = arith.constant 48 : index
    %c128_1244 = arith.constant 128 : index
    %1052 = vector.load %arg10[%c48_1243, %c128_1244] : memref<56x224xf32, #tpu.memory_space<vmem>>, vector<8x32xf32>
    %c176_1245 = arith.constant 176 : index
    %c256_1246 = arith.constant 256 : index
    %1053 = vector.load %arg11[%c176_1245, %c256_1246] : memref<200x288xf32, #tpu.memory_space<vmem>>, vector<8x32xf32>
    tpu.vector_store %arg11[%c176_1245, %c256_1246], %1052 {strides = array<i32>} : memref<200x288xf32, #tpu.memory_space<vmem>>, vector<8x32xf32>,
    %c48_1247 = arith.constant 48 : index
    %c160_1248 = arith.constant 160 : index
    %1054 = vector.load %arg10[%c48_1247, %c160_1248] : memref<56x224xf32, #tpu.memory_space<vmem>>, vector<8x32xf32>
    %c184_1249 = arith.constant 184 : index
    %c256_1250 = arith.constant 256 : index
    %1055 = vector.load %arg11[%c184_1249, %c256_1250] : memref<200x288xf32, #tpu.memory_space<vmem>>, vector<8x32xf32>
    tpu.vector_store %arg11[%c184_1249, %c256_1250], %1054 {strides = array<i32>} : memref<200x288xf32, #tpu.memory_space<vmem>>, vector<8x32xf32>,
    %c48_1251 = arith.constant 48 : index
    %c192_1252 = arith.constant 192 : index
    %1056 = vector.load %arg10[%c48_1251, %c192_1252] : memref<56x224xf32, #tpu.memory_space<vmem>>, vector<8x32xf32>
    %c192_1253 = arith.constant 192 : index
    %c256_1254 = arith.constant 256 : index
    %1057 = vector.load %arg11[%c192_1253, %c256_1254] : memref<200x288xf32, #tpu.memory_space<vmem>>, vector<8x32xf32>
    tpu.vector_store %arg11[%c192_1253, %c256_1254], %1056 {strides = array<i32>} : memref<200x288xf32, #tpu.memory_space<vmem>>, vector<8x32xf32>,
    %c0_1255 = arith.constant 0 : index
    %c0_1256 = arith.constant 0 : index
    %1058 = vector.load %arg11[%c0_1255, %c0_1256] : memref<200x288xf32, #tpu.memory_space<vmem>>, vector<200x288xf32>
    %c0_1257 = arith.constant 0 : index
    %c0_1258 = arith.constant 0 : index
    %1059 = vector.load %arg4[%c0_1257, %c0_1258] : memref<288x128xf32, #tpu.memory_space<vmem>>, vector<288x128xf32>
    %cst_1259 = arith.constant dense<0.000000e+00> : vector<200x128xf32>
    %1060 = tpu.matmul %1058, %1059, %cst_1259 {dimension_numbers = #tpu.dot_dimension_numbers<[1], [0], [0], [1], [0, 0, 1, 1], [], []>} : vector<200x288xf32>, vector<288x128xf32>, vector<200x128xf32> -> vector<200x128xf32>
    %c0_1260 = arith.constant 0 : index
    %c0_1261 = arith.constant 0 : index
    %1061 = vector.load %arg5[%c0_1260, %c0_1261] : memref<1x128xf32, #tpu.memory_space<vmem>>, vector<1x128xf32>
    %1062 = vector.broadcast %1061 : vector<1x128xf32> to vector<200x128xf32>
    %1063 = arith.addf %1060, %1062 : vector<200x128xf32>
    %cst_1262 = arith.constant 0.000000e+00 : f32
    %1064 = vector.broadcast %cst_1262 : f32 to vector<200x128xf32>
    %1065 = arith.maximumf %1063, %1064 : vector<200x128xf32>
    %c0_1263 = arith.constant 0 : index
    %c0_1264 = arith.constant 0 : index
    %1066 = vector.load %arg12[%c0_1263, %c0_1264] : memref<200x128xf32, #tpu.memory_space<vmem>>, vector<200x128xf32>
    tpu.vector_store %arg12[%c0_1263, %c0_1264], %1065 {strides = array<i32>} : memref<200x128xf32, #tpu.memory_space<vmem>>, vector<200x128xf32>,
    %c0_1265 = arith.constant 0 : index
    %c0_1266 = arith.constant 0 : index
    %1067 = vector.load %arg12[%c0_1265, %c0_1266] : memref<200x128xf32, #tpu.memory_space<vmem>>, vector<8x128xf32>
    %c8_1267 = arith.constant 8 : index
    %c0_1268 = arith.constant 0 : index
    %1068 = vector.load %arg12[%c8_1267, %c0_1268] : memref<200x128xf32, #tpu.memory_space<vmem>>, vector<8x128xf32>
    %1069 = arith.maximumf %1067, %1068 : vector<8x128xf32>
    %c40_1269 = arith.constant 40 : index
    %c0_1270 = arith.constant 0 : index
    %1070 = vector.load %arg12[%c40_1269, %c0_1270] : memref<200x128xf32, #tpu.memory_space<vmem>>, vector<8x128xf32>
    %c48_1271 = arith.constant 48 : index
    %c0_1272 = arith.constant 0 : index
    %1071 = vector.load %arg12[%c48_1271, %c0_1272] : memref<200x128xf32, #tpu.memory_space<vmem>>, vector<8x128xf32>
    %1072 = arith.maximumf %1070, %1071 : vector<8x128xf32>
    %1073 = arith.maximumf %1069, %1072 : vector<8x128xf32>
    %c16_1273 = arith.constant 16 : index
    %c0_1274 = arith.constant 0 : index
    %1074 = vector.load %arg12[%c16_1273, %c0_1274] : memref<200x128xf32, #tpu.memory_space<vmem>>, vector<8x128xf32>
    %c24_1275 = arith.constant 24 : index
    %c0_1276 = arith.constant 0 : index
    %1075 = vector.load %arg12[%c24_1275, %c0_1276] : memref<200x128xf32, #tpu.memory_space<vmem>>, vector<8x128xf32>
    %1076 = arith.maximumf %1074, %1075 : vector<8x128xf32>
    %c56_1277 = arith.constant 56 : index
    %c0_1278 = arith.constant 0 : index
    %1077 = vector.load %arg12[%c56_1277, %c0_1278] : memref<200x128xf32, #tpu.memory_space<vmem>>, vector<8x128xf32>
    %c64_1279 = arith.constant 64 : index
    %c0_1280 = arith.constant 0 : index
    %1078 = vector.load %arg12[%c64_1279, %c0_1280] : memref<200x128xf32, #tpu.memory_space<vmem>>, vector<8x128xf32>
    %1079 = arith.maximumf %1077, %1078 : vector<8x128xf32>
    %1080 = arith.maximumf %1076, %1079 : vector<8x128xf32>
    %c80_1281 = arith.constant 80 : index
    %c0_1282 = arith.constant 0 : index
    %1081 = vector.load %arg12[%c80_1281, %c0_1282] : memref<200x128xf32, #tpu.memory_space<vmem>>, vector<8x128xf32>
    %c88_1283 = arith.constant 88 : index
    %c0_1284 = arith.constant 0 : index
    %1082 = vector.load %arg12[%c88_1283, %c0_1284] : memref<200x128xf32, #tpu.memory_space<vmem>>, vector<8x128xf32>
    %1083 = arith.maximumf %1081, %1082 : vector<8x128xf32>
    %c120_1285 = arith.constant 120 : index
    %c0_1286 = arith.constant 0 : index
    %1084 = vector.load %arg12[%c120_1285, %c0_1286] : memref<200x128xf32, #tpu.memory_space<vmem>>, vector<8x128xf32>
    %c128_1287 = arith.constant 128 : index
    %c0_1288 = arith.constant 0 : index
    %1085 = vector.load %arg12[%c128_1287, %c0_1288] : memref<200x128xf32, #tpu.memory_space<vmem>>, vector<8x128xf32>
    %1086 = arith.maximumf %1084, %1085 : vector<8x128xf32>
    %1087 = arith.maximumf %1083, %1086 : vector<8x128xf32>
    %c96_1289 = arith.constant 96 : index
    %c0_1290 = arith.constant 0 : index
    %1088 = vector.load %arg12[%c96_1289, %c0_1290] : memref<200x128xf32, #tpu.memory_space<vmem>>, vector<8x128xf32>
    %c104_1291 = arith.constant 104 : index
    %c0_1292 = arith.constant 0 : index
    %1089 = vector.load %arg12[%c104_1291, %c0_1292] : memref<200x128xf32, #tpu.memory_space<vmem>>, vector<8x128xf32>
    %1090 = arith.maximumf %1088, %1089 : vector<8x128xf32>
    %c136_1293 = arith.constant 136 : index
    %c0_1294 = arith.constant 0 : index
    %1091 = vector.load %arg12[%c136_1293, %c0_1294] : memref<200x128xf32, #tpu.memory_space<vmem>>, vector<8x128xf32>
    %c144_1295 = arith.constant 144 : index
    %c0_1296 = arith.constant 0 : index
    %1092 = vector.load %arg12[%c144_1295, %c0_1296] : memref<200x128xf32, #tpu.memory_space<vmem>>, vector<8x128xf32>
    %1093 = arith.maximumf %1091, %1092 : vector<8x128xf32>
    %1094 = arith.maximumf %1090, %1093 : vector<8x128xf32>
    %1095 = tpu.concatenate %1073, %1080, %1087, %1094 in 1 : vector<8x128xf32>, vector<8x128xf32>, vector<8x128xf32>, vector<8x128xf32> -> vector<8x512xf32>
    %c0_1297 = arith.constant 0 : index
    %c0_1298 = arith.constant 0 : index
    %1096 = vector.load %arg6[%c0_1297, %c0_1298] : memref<512x128xf32, #tpu.memory_space<vmem>>, vector<512x128xf32>
    %cst_1299 = arith.constant dense<0.000000e+00> : vector<8x128xf32>
    %1097 = tpu.matmul %1095, %1096, %cst_1299 {dimension_numbers = #tpu.dot_dimension_numbers<[1], [0], [0], [1], [0, 0, 1, 1], [], []>} : vector<8x512xf32>, vector<512x128xf32>, vector<8x128xf32> -> vector<8x128xf32>
    %c0_1300 = arith.constant 0 : index
    %c0_1301 = arith.constant 0 : index
    %1098 = vector.load %arg7[%c0_1300, %c0_1301] : memref<1x128xf32, #tpu.memory_space<vmem>>, vector<1x128xf32>
    %1099 = vector.broadcast %1098 : vector<1x128xf32> to vector<8x128xf32>
    %1100 = arith.addf %1097, %1099 : vector<8x128xf32>
    %c0_1302 = arith.constant 0 : index
    %c0_1303 = arith.constant 0 : index
    %1101 = vector.load %arg8[%c0_1302, %c0_1303] : memref<8x128xf32, #tpu.memory_space<vmem>>, vector<8x128xf32>
    tpu.vector_store %arg8[%c0_1302, %c0_1303], %1100 {strides = array<i32>} : memref<8x128xf32, #tpu.memory_space<vmem>>, vector<8x128xf32>,
    return
  }
  func.func @transform_0(%arg0: i32) -> (i32, i32, i32) {
    %c0_i32 = arith.constant 0 : i32
    %c0_i32_0 = arith.constant 0 : i32
    %c0_i32_1 = arith.constant 0 : i32
    return %arg0, %c0_i32, %c0_i32_0 : i32, i32, i32
  }
  func.func @transform_1(%arg0: i32) -> (i32, i32) {
    %c0_i32 = arith.constant 0 : i32
    %c0_i32_0 = arith.constant 0 : i32
    %c0_i32_1 = arith.constant 0 : i32
    return %c0_i32, %c0_i32_0 : i32, i32
  }
  func.func @transform_2(%arg0: i32) -> (i32, i32) {
    %c0_i32 = arith.constant 0 : i32
    %c0_i32_0 = arith.constant 0 : i32
    %c0_i32_1 = arith.constant 0 : i32
    return %c0_i32, %c0_i32_0 : i32, i32
  }
  func.func @transform_3(%arg0: i32) -> (i32, i32) {
    %c0_i32 = arith.constant 0 : i32
    %c0_i32_0 = arith.constant 0 : i32
    %c0_i32_1 = arith.constant 0 : i32
    return %c0_i32, %c0_i32_0 : i32, i32
  }
  func.func @transform_4(%arg0: i32) -> (i32, i32) {
    %c0_i32 = arith.constant 0 : i32
    %c0_i32_0 = arith.constant 0 : i32
    %c0_i32_1 = arith.constant 0 : i32
    return %c0_i32, %c0_i32_0 : i32, i32
  }
  func.func @transform_5(%arg0: i32) -> (i32, i32) {
    %c0_i32 = arith.constant 0 : i32
    %c0_i32_0 = arith.constant 0 : i32
    %c0_i32_1 = arith.constant 0 : i32
    return %c0_i32, %c0_i32_0 : i32, i32
  }
  func.func @transform_6(%arg0: i32) -> (i32, i32) {
    %c0_i32 = arith.constant 0 : i32
    %c0_i32_0 = arith.constant 0 : i32
    %c0_i32_1 = arith.constant 0 : i32
    return %c0_i32, %c0_i32_0 : i32, i32
  }
  func.func @transform_7(%arg0: i32) -> (i32, i32) {
    %c0_i32 = arith.constant 0 : i32
    %c0_i32_0 = arith.constant 0 : i32
    return %arg0, %c0_i32 : i32, i32
  }
}

</mosaic_0001>

<llo_original>
// kernel: tile.11
$region0: #{tile.11}
  %s0 = inlined_call_operand.vmem [shape: f32[9,10,32], index: 0, kind: input, shape index: {}]
  %s1 = inlined_call_operand.vmem [shape: f32[9,320], index: 1, kind: output, shape index: {}]
  %v2 = vld [vmem:[%s0] ss:$4 sm:$0x7]
  %vm3 = vcmask 261120
  %4 = vst.msk [vmem:[%s1] ss:$8 sm:$0x7] %vm3, %v2
  %s5 = scalar_lea.vmem %s0, 16
  %v6 = vld [vmem:[%s5] ss:$4 sm:$0x7]
  %vm7 = vcmask 261120
  %s8 = scalar_lea.vmem %s1, 1
  %9 = vst.msk [vmem:[%s8] ss:$8 sm:$0x7] %vm7, %v6
  %s10 = scalar_lea.vmem %s0, 32
  %v11 = vld [vmem:[%s10] ss:$4 sm:$0x7]
  %vm12 = vcmask 261120
  %s13 = scalar_lea.vmem %s1, 2
  %14 = vst.msk [vmem:[%s13] ss:$8 sm:$0x7] %vm12, %v11
  %s15 = scalar_lea.vmem %s0, 48
  %v16 = vld [vmem:[%s15] ss:$4 sm:$0x7]
  %vm17 = vcmask 261120
  %s18 = scalar_lea.vmem %s1, 3
  %19 = vst.msk [vmem:[%s18] ss:$8 sm:$0x7] %vm17, %v16
  %s20 = scalar_lea.vmem %s0, 64
  %v21 = vld [vmem:[%s20] ss:$4 sm:$0x7]
  %vm22 = vcmask 261120
  %s23 = scalar_lea.vmem %s1, 4
  %24 = vst.msk [vmem:[%s23] ss:$8 sm:$0x7] %vm22, %v21
  %s25 = scalar_lea.vmem %s0, 80
  %v26 = vld [vmem:[%s25] ss:$4 sm:$0x7]
  %vm27 = vcmask 261120
  %s28 = scalar_lea.vmem %s1, 5
  %29 = vst.msk [vmem:[%s28] ss:$8 sm:$0x7] %vm27, %v26
  %s30 = scalar_lea.vmem %s0, 96
  %v31 = vld [vmem:[%s30] ss:$4 sm:$0x7]
  %vm32 = vcmask 261120
  %s33 = scalar_lea.vmem %s1, 6
  %34 = vst.msk [vmem:[%s33] ss:$8 sm:$0x7] %vm32, %v31
  %s35 = scalar_lea.vmem %s0, 112
  %v36 = vld [vmem:[%s35] ss:$4 sm:$0x7]
  %vm37 = vcmask 261120
  %s38 = scalar_lea.vmem %s1, 7
  %39 = vst.msk [vmem:[%s38] ss:$8 sm:$0x7] %vm37, %v36
  %s40 = scalar_lea.vmem %s0, 128
  %v41 = vld [vmem:[%s40] ss:$4 sm:$0x7]
  %vm42 = vcmask 261120
  %s43 = scalar_lea.vmem %s1, 24
  %44 = vst.msk [vmem:[%s43] ss:$8 sm:$0x7] %vm42, %v41
  %s45 = scalar_lea.vmem %s0, 3
  %s46 = smov 3
  %v47 = vld [vmem:[%s45] ss:$16 sm:%s46]
  %s48 = scalar_lea.vmem %s0, 3
  %s49 = smov 12
  %v50 = vld [vmem:[%s48] ss:$16 sm:%s49]
  %vm51 = vcmask 1043458
  %v52 = vsel %vm51, %v50, %v47
  %s53 = scalar_lea.vmem %s0, 3
  %s54 = smov 48
  %v55 = vld [vmem:[%s53] ss:$16 sm:%s54]
  %vm56 = vcmask 1045508
  %v57 = vsel %vm56, %v55, %v52
  %s58 = scalar_lea.vmem %s0, 3
  %s59 = smov 192
  %v60 = vld [vmem:[%s58] ss:$16 sm:%s59]
  %vm61 = vcmask 1047558
  %v62 = vsel %vm61, %v60, %v57
  %63 = vrot.lane.b32.xlu0 %v62, 96
  %v64 = vpop.permute.xlu0 %63
  %vm65 = vcmask 1048320
  %66 = vst.msk [vmem:[%s1] sm:$0xff] %vm65, %v64
  %s67 = scalar_lea.vmem %s0, 135
  %v68 = vld [vmem:[%s67] sm:$0x1]
  %s69 = scalar_lea.vmem %s0, 4294967287
  %s70 = smov 6
  %v71 = vld [vmem:[%s69] ss:$16 sm:%s70]
  %vm72 = vcmask 1042433
  %v73 = vsel %vm72, %v71, %v68
  %s74 = scalar_lea.vmem %s0, 4294967287
  %s75 = smov 24
  %v76 = vld [vmem:[%s74] ss:$16 sm:%s75]
  %vm77 = vcmask 1044483
  %v78 = vsel %vm77, %v76, %v73
  %s79 = scalar_lea.vmem %s0, 4294967287
  %s80 = smov 96
  %v81 = vld [vmem:[%s79] ss:$16 sm:%s80]
  %vm82 = vcmask 1046533
  %v83 = vsel %vm82, %v81, %v78
  %s84 = scalar_lea.vmem %s0, 96
  %v85 = vld [vmem:[%s84] sm:$0x80]
  %vm86 = vcmask 1047559
  %v87 = vsel %vm86, %v85, %v83
  %88 = vrot.lane.b32.xlu0 %v87, 96
  %v89 = vpop.permute.xlu0 %88
  %vm90 = vcmask 1048320
  %s91 = scalar_lea.vmem %s1, 32
  %92 = vst.msk [vmem:[%s91] ss:$-24 sm:$0x3] %vm90, %v89
  %s93 = scalar_lea.vmem %s1, 7
  %94 = vst.msk [vmem:[%s93] sm:$0xfc] %vm90, %v89
  %s95 = scalar_lea.vmem %s0, 119
  %s96 = smov 3
  %v97 = vld [vmem:[%s95] ss:$12 sm:%s96]
  %98 = vrot.lane.b32.xlu0 %v97, 96
  %v99 = vpop.permute.xlu0 %98
  %vm100 = vcmask 1048320
  %s101 = scalar_lea.vmem %s1, 15
  %102 = vst.msk [vmem:[%s101] ss:$9 sm:$0x3] %vm100, %v99
  %s103 = scalar_lea.vmem %s0, 2
  %s104 = smov 3
  %v105 = vld [vmem:[%s103] ss:$16 sm:%s104]
  %s106 = scalar_lea.vmem %s0, 2
  %s107 = smov 12
  %v108 = vld [vmem:[%s106] ss:$16 sm:%s107]
  %vm109 = vcmask 1043458
  %v110 = vsel %vm109, %v108, %v105
  %s111 = scalar_lea.vmem %s0, 2
  %s112 = smov 48
  %v113 = vld [vmem:[%s111] ss:$16 sm:%s112]
  %vm114 = vcmask 1045508
  %v115 = vsel %vm114, %v113, %v110
  %s116 = scalar_lea.vmem %s0, 2
  %s117 = smov 192
  %v118 = vld [vmem:[%s116] ss:$16 sm:%s117]
  %vm119 = vcmask 1047558
  %v120 = vsel %vm119, %v118, %v115
  %121 = vrot.lane.b32.xlu0 %v120, 64
  %v122 = vpop.permute.xlu0 %121
  %vm123 = vcmask 785920
  %124 = vst.msk [vmem:[%s1] sm:$0xff] %vm123, %v122
  %s125 = scalar_lea.vmem %s0, 134
  %v126 = vld [vmem:[%s125] sm:$0x1]
  %s127 = scalar_lea.vmem %s0, 4294967286
  %s128 = smov 6
  %v129 = vld [vmem:[%s127] ss:$16 sm:%s128]
  %vm130 = vcmask 1042433
  %v131 = vsel %vm130, %v129, %v126
  %s132 = scalar_lea.vmem %s0, 4294967286
  %s133 = smov 24
  %v134 = vld [vmem:[%s132] ss:$16 sm:%s133]
  %vm135 = vcmask 1044483
  %v136 = vsel %vm135, %v134, %v131
  %s137 = scalar_lea.vmem %s0, 4294967286
  %s138 = smov 96
  %v139 = vld [vmem:[%s137] ss:$16 sm:%s138]
  %vm140 = vcmask 1046533
  %v141 = vsel %vm140, %v139, %v136
  %s142 = scalar_lea.vmem %s0, 95
  %v143 = vld [vmem:[%s142] sm:$0x80]
  %vm144 = vcmask 1047559
  %v145 = vsel %vm144, %v143, %v141
  %146 = vrot.lane.b32.xlu0 %v145, 64
  %v147 = vpop.permute.xlu0 %146
  %vm148 = vcmask 785920
  %s149 = scalar_lea.vmem %s1, 32
  %150 = vst.msk [vmem:[%s149] ss:$-24 sm:$0x3] %vm148, %v147
  %s151 = scalar_lea.vmem %s1, 7
  %152 = vst.msk [vmem:[%s151] sm:$0xfc] %vm148, %v147
  %s153 = scalar_lea.vmem %s0, 118
  %s154 = smov 3
  %v155 = vld [vmem:[%s153] ss:$12 sm:%s154]
  %156 = vrot.lane.b32.xlu0 %v155, 64
  %v157 = vpop.permute.xlu0 %156
  %vm158 = vcmask 785920
  %s159 = scalar_lea.vmem %s1, 15
  %160 = vst.msk [vmem:[%s159] ss:$9 sm:$0x3] %vm158, %v157
  %s161 = scalar_lea.vmem %s0, 1
  %s162 = smov 3
  %v163 = vld [vmem:[%s161] ss:$16 sm:%s162]
  %s164 = scalar_lea.vmem %s0, 1
  %s165 = smov 12
  %v166 = vld [vmem:[%s164] ss:$16 sm:%s165]
  %vm167 = vcmask 1043458
  %v168 = vsel %vm167, %v166, %v163
  %s169 = scalar_lea.vmem %s0, 1
  %s170 = smov 48
  %v171 = vld [vmem:[%s169] ss:$16 sm:%s170]
  %vm172 = vcmask 1045508
  %v173 = vsel %vm172, %v171, %v168
  %s174 = scalar_lea.vmem %s0, 1
  %s175 = smov 192
  %v176 = vld [vmem:[%s174] ss:$16 sm:%s175]
  %vm177 = vcmask 1047558
  %v178 = vsel %vm177, %v176, %v173
  %179 = vrot.lane.b32.xlu0 %v178, 32
  %v180 = vpop.permute.xlu0 %179
  %vm181 = vcmask 523520
  %182 = vst.msk [vmem:[%s1] sm:$0xff] %vm181, %v180
  %s183 = scalar_lea.vmem %s0, 133
  %v184 = vld [vmem:[%s183] sm:$0x1]
  %s185 = scalar_lea.vmem %s0, 4294967285
  %s186 = smov 6
  %v187 = vld [vmem:[%s185] ss:$16 sm:%s186]
  %vm188 = vcmask 1042433
  %v189 = vsel %vm188, %v187, %v184
  %s190 = scalar_lea.vmem %s0, 4294967285
  %s191 = smov 24
  %v192 = vld [vmem:[%s190] ss:$16 sm:%s191]
  %vm193 = vcmask 1044483
  %v194 = vsel %vm193, %v192, %v189
  %s195 = scalar_lea.vmem %s0, 4294967285
  %s196 = smov 96
  %v197 = vld [vmem:[%s195] ss:$16 sm:%s196]
  %vm198 = vcmask 1046533
  %v199 = vsel %vm198, %v197, %v194
  %s200 = scalar_lea.vmem %s0, 94
  %v201 = vld [vmem:[%s200] sm:$0x80]
  %vm202 = vcmask 1047559
  %v203 = vsel %vm202, %v201, %v199
  %204 = vrot.lane.b32.xlu0 %v203, 32
  %v205 = vpop.permute.xlu0 %204
  %vm206 = vcmask 523520
  %s207 = scalar_lea.vmem %s1, 32
  %208 = vst.msk [vmem:[%s207] ss:$-24 sm:$0x3] %vm206, %v205
  %s209 = scalar_lea.vmem %s1, 7
  %210 = vst.msk [vmem:[%s209] sm:$0xfc] %vm206, %v205
  %s211 = scalar_lea.vmem %s0, 137
  %s212 = smov 3
  %v213 = vld [vmem:[%s211] ss:$-20 sm:%s212]
  %s214 = scalar_lea.vmem %s0, 4294967273
  %s215 = smov 12
  %v216 = vld [vmem:[%s214] ss:$16 sm:%s215]
  %vm217 = vcmask 1043458
  %v218 = vsel %vm217, %v216, %v213
  %s219 = scalar_lea.vmem %s0, 4294967273
  %s220 = smov 48
  %v221 = vld [vmem:[%s219] ss:$16 sm:%s220]
  %vm222 = vcmask 1045508
  %v223 = vsel %vm222, %v221, %v218
  %s224 = scalar_lea.vmem %s0, 4294967273
  %s225 = smov 192
  %v226 = vld [vmem:[%s224] ss:$16 sm:%s225]
  %vm227 = vcmask 1047558
  %v228 = vsel %vm227, %v226, %v223
  %229 = vrot.lane.b32.xlu0 %v228, 32
  %v230 = vpop.permute.xlu0 %229
  %vm231 = vcmask 523520
  %s232 = scalar_lea.vmem %s1, 40
  %233 = vst.msk [vmem:[%s232] ss:$-25 sm:$0x3] %vm231, %v230
  %s234 = scalar_lea.vmem %s1, 14
  %235 = vst.msk [vmem:[%s234] sm:$0xfc] %vm231, %v230
  %s236 = scalar_lea.vmem %s0, 105
  %s237 = smov 3
  %v238 = vld [vmem:[%s236] ss:$16 sm:%s237]
  %s239 = scalar_lea.vmem %s0, 127
  %v240 = vld [vmem:[%s239] sm:$0x4]
  %vm241 = vcmask 1042434
  %v242 = vsel %vm241, %v240, %v238
  %243 = vrot.lane.b32.xlu0 %v242, 32
  %v244 = vpop.permute.xlu0 %243
  %vm245 = vcmask 523520
  %s246 = scalar_lea.vmem %s1, 22
  %247 = vst.msk [vmem:[%s246] sm:$0x7] %vm245, %v244

// kernel: nn_model_forward.1
$region0: #{nn_model_forward.1}
  #allocation0 [shape = 'u32[]', space=smem, size = 0x4, offset = 0x4, fixed_abs, tag = 'smem constant byte address 0x4 - core index']
  #allocation1 [shape = 'u32[72,128]{1,0:T(1,128)}', space=vmem, size = 0x9000, scoped, tag = 'internal scratch']
  #allocation2 [shape = 'f32[96,384]{1,0:T(8,128)}', space=vmem, size = 0x24000, scoped, tag = 'scratch operand']
  #allocation3 [shape = 'f32[56,224]{1,0:T(8,128)}', space=vmem, size = 0xe000, scoped, tag = 'scratch operand']
  #allocation4 [shape = 'f32[200,288]{1,0:T(8,128)}', space=vmem, size = 0x4b000, scoped, tag = 'scratch operand']
  #allocation5 [shape = 'f32[200,128]{1,0:T(8,128)}', space=vmem, size = 0x19000, scoped, tag = 'scratch operand']
  %s0 = inlined_call_operand.vmem [shape: f32[1,96,12], index: 0, kind: input, shape index: {}]
  %s1 = inlined_call_operand.vmem [shape: f32[9,320], index: 1, kind: input, shape index: {}]
  %s2 = inlined_call_operand.vmem [shape: f32[1,320], index: 2, kind: input, shape index: {}]
  %s3 = inlined_call_operand.vmem [shape: f32[288,128], index: 3, kind: input, shape index: {}]
  %s4 = inlined_call_operand.vmem [shape: f32[1,128], index: 4, kind: input, shape index: {}]
  %s5 = inlined_call_operand.vmem [shape: f32[512,128], index: 5, kind: input, shape index: {}]
  %s6 = inlined_call_operand.vmem [shape: f32[1,128], index: 6, kind: input, shape index: {}]
  %s7 = inlined_call_operand.vmem [shape: f32[8,128], index: 7, kind: output, shape index: {}]
  %s8 = sld [smem:[#allocation0]]
  $region38: #{nn_model_forward.1} parent=0
    _
  %s10 = ssub.s32 1, %s8
  %s11 = scalar_select 0, %s10, %s8
  // Predicated region
  $region2: #{nn_model_forward.1} parent=0 // pred_check
    _
  $region3: #{nn_model_forward.1} parent=0 // pred_check_branch
    %13 = sbr.rel (0) target = $region5
  $region4: #{nn_model_forward.1} parent=0 // pred_region
    _
  $region5: #{nn_model_forward.1} parent=0 // pred_fallthru
    _
  // Predicated region
  $region6: #{nn_model_forward.1} parent=0 // pred_check
    _
  $region7: #{nn_model_forward.1} parent=0 // pred_check_branch
    %15 = sbr.rel (0) target = $region9
  $region8: #{nn_model_forward.1} parent=0 // pred_region
    _
  $region9: #{nn_model_forward.1} parent=0 // pred_fallthru
    _
  // Predicated region
  $region10: #{nn_model_forward.1} parent=0 // pred_check
    _
  $region11: #{nn_model_forward.1} parent=0 // pred_check_branch
    %17 = sbr.rel (0) target = $region13
  $region12: #{nn_model_forward.1} parent=0 // pred_region
    _
  $region13: #{nn_model_forward.1} parent=0 // pred_fallthru
    _
  // Predicated region
  $region14: #{nn_model_forward.1} parent=0 // pred_check
    _
  $region15: #{nn_model_forward.1} parent=0 // pred_check_branch
    %19 = sbr.rel (0) target = $region17
  $region16: #{nn_model_forward.1} parent=0 // pred_region
    _
  $region17: #{nn_model_forward.1} parent=0 // pred_fallthru
    _
  // Predicated region
  $region18: #{nn_model_forward.1} parent=0 // pred_check
    _
  $region19: #{nn_model_forward.1} parent=0 // pred_check_branch
    %21 = sbr.rel (0) target = $region21
  $region20: #{nn_model_forward.1} parent=0 // pred_region
    _
  $region21: #{nn_model_forward.1} parent=0 // pred_fallthru
    _
  // Predicated region
  $region22: #{nn_model_forward.1} parent=0 // pred_check
    _
  $region23: #{nn_model_forward.1} parent=0 // pred_check_branch
    %23 = sbr.rel (0) target = $region25
  $region24: #{nn_model_forward.1} parent=0 // pred_region
    _
  $region25: #{nn_model_forward.1} parent=0 // pred_fallthru
    _
  // Predicated region
  $region26: #{nn_model_forward.1} parent=0 // pred_check
    _
  $region27: #{nn_model_forward.1} parent=0 // pred_check_branch
    %25 = sbr.rel (0) target = $region29
  $region28: #{nn_model_forward.1} parent=0 // pred_region
    _
  $region29: #{nn_model_forward.1} parent=0 // pred_fallthru
    _
  %v26 = vld [vmem:[%s0] sm:$0xff]
  %v27 = vld [vmem:[%s0 + $0x8] sm:$0xff]
  %v28 = vld [vmem:[%s0 + $0x10] sm:$0xff]
  %v29 = vld [vmem:[%s0 + $0x18] sm:$0xff]
  %v30 = vld [vmem:[%s0 + $0x20] sm:$0xff]
  %v31 = vld [vmem:[%s0 + $0x28] sm:$0xff]
  %v32 = vld [vmem:[%s0 + $0x30] sm:$0xff]
  %v33 = vld [vmem:[%s0 + $0x38] sm:$0xff]
  %v34 = vld [vmem:[%s0 + $0x40] sm:$0xff]
  %v35 = vld [vmem:[%s0 + $0x48] sm:$0xff]
  %v36 = vld [vmem:[%s0 + $0x50] sm:$0xff]
  %v37 = vld [vmem:[%s0 + $0x58] sm:$0xff]
  %39 = vset.pattern.permute.xlu0 0
  %40 = vperm.xlu0 %39, %v26
  %v41 = vpop.permute.xlu0 %40
  %44 = vset.pattern.permute.xlu0 0
  %45 = vperm.xlu0 %44, %v27
  %v46 = vpop.permute.xlu0 %45
  %49 = vset.pattern.permute.xlu0 0
  %50 = vperm.xlu0 %49, %v28
  %v51 = vpop.permute.xlu0 %50
  %54 = vset.pattern.permute.xlu0 0
  %55 = vperm.xlu0 %54, %v29
  %v56 = vpop.permute.xlu0 %55
  %59 = vset.pattern.permute.xlu0 0
  %60 = vperm.xlu0 %59, %v30
  %v61 = vpop.permute.xlu0 %60
  %64 = vset.pattern.permute.xlu0 0
  %65 = vperm.xlu0 %64, %v31
  %v66 = vpop.permute.xlu0 %65
  %69 = vset.pattern.permute.xlu0 0
  %70 = vperm.xlu0 %69, %v32
  %v71 = vpop.permute.xlu0 %70
  %74 = vset.pattern.permute.xlu0 0
  %75 = vperm.xlu0 %74, %v33
  %v76 = vpop.permute.xlu0 %75
  %79 = vset.pattern.permute.xlu0 0
  %80 = vperm.xlu0 %79, %v34
  %v81 = vpop.permute.xlu0 %80
  %84 = vset.pattern.permute.xlu0 0
  %85 = vperm.xlu0 %84, %v35
  %v86 = vpop.permute.xlu0 %85
  %89 = vset.pattern.permute.xlu0 0
  %90 = vperm.xlu0 %89, %v36
  %v91 = vpop.permute.xlu0 %90
  %94 = vset.pattern.permute.xlu0 0
  %95 = vperm.xlu0 %94, %v37
  %v96 = vpop.permute.xlu0 %95
  %98 = vset.pattern.permute.xlu0 1
  %99 = vperm.xlu0 %98, %v26
  %v100 = vpop.permute.xlu0 %99
  %102 = vset.pattern.permute.xlu0 1
  %103 = vperm.xlu0 %102, %v27
  %v104 = vpop.permute.xlu0 %103
  %106 = vset.pattern.permute.xlu0 1
  %107 = vperm.xlu0 %106, %v28
  %v108 = vpop.permute.xlu0 %107
  %110 = vset.pattern.permute.xlu0 1
  %111 = vperm.xlu0 %110, %v29
  %v112 = vpop.permute.xlu0 %111
  %114 = vset.pattern.permute.xlu0 1
  %115 = vperm.xlu0 %114, %v30
  %v116 = vpop.permute.xlu0 %115
  %118 = vset.pattern.permute.xlu0 1
  %119 = vperm.xlu0 %118, %v31
  %v120 = vpop.permute.xlu0 %119
  %122 = vset.pattern.permute.xlu0 1
  %123 = vperm.xlu0 %122, %v32
  %v124 = vpop.permute.xlu0 %123
  %126 = vset.pattern.permute.xlu0 1
  %127 = vperm.xlu0 %126, %v33
  %v128 = vpop.permute.xlu0 %127
  %130 = vset.pattern.permute.xlu0 1
  %131 = vperm.xlu0 %130, %v34
  %v132 = vpop.permute.xlu0 %131
  %134 = vset.pattern.permute.xlu0 1
  %135 = vperm.xlu0 %134, %v35
  %v136 = vpop.permute.xlu0 %135
  %138 = vset.pattern.permute.xlu0 1
  %139 = vperm.xlu0 %138, %v36
  %v140 = vpop.permute.xlu0 %139
  %142 = vset.pattern.permute.xlu0 1
  %143 = vperm.xlu0 %142, %v37
  %v144 = vpop.permute.xlu0 %143
  %146 = vset.pattern.permute.xlu0 2
  %147 = vperm.xlu0 %146, %v26
  %v148 = vpop.permute.xlu0 %147
  %150 = vset.pattern.permute.xlu0 2
  %151 = vperm.xlu0 %150, %v27
  %v152 = vpop.permute.xlu0 %151
  %154 = vset.pattern.permute.xlu0 2
  %155 = vperm.xlu0 %154, %v28
  %v156 = vpop.permute.xlu0 %155
  %158 = vset.pattern.permute.xlu0 2
  %159 = vperm.xlu0 %158, %v29
  %v160 = vpop.permute.xlu0 %159
  %162 = vset.pattern.permute.xlu0 2
  %163 = vperm.xlu0 %162, %v30
  %v164 = vpop.permute.xlu0 %163
  %166 = vset.pattern.permute.xlu0 2
  %167 = vperm.xlu0 %166, %v31
  %v168 = vpop.permute.xlu0 %167
  %170 = vset.pattern.permute.xlu0 2
  %171 = vperm.xlu0 %170, %v32
  %v172 = vpop.permute.xlu0 %171
  %174 = vset.pattern.permute.xlu0 2
  %175 = vperm.xlu0 %174, %v33
  %v176 = vpop.permute.xlu0 %175
  %178 = vset.pattern.permute.xlu0 2
  %179 = vperm.xlu0 %178, %v34
  %v180 = vpop.permute.xlu0 %179
  %182 = vset.pattern.permute.xlu0 2
  %183 = vperm.xlu0 %182, %v35
  %v184 = vpop.permute.xlu0 %183
  %186 = vset.pattern.permute.xlu0 2
  %187 = vperm.xlu0 %186, %v36
  %v188 = vpop.permute.xlu0 %187
  %190 = vset.pattern.permute.xlu0 2
  %191 = vperm.xlu0 %190, %v37
  %v192 = vpop.permute.xlu0 %191
  %194 = vset.pattern.permute.xlu0 3
  %195 = vperm.xlu0 %194, %v26
  %v196 = vpop.permute.xlu0 %195
  %198 = vset.pattern.permute.xlu0 3
  %199 = vperm.xlu0 %198, %v27
  %v200 = vpop.permute.xlu0 %199
  %202 = vset.pattern.permute.xlu0 3
  %203 = vperm.xlu0 %202, %v28
  %v204 = vpop.permute.xlu0 %203
  %206 = vset.pattern.permute.xlu0 3
  %207 = vperm.xlu0 %206, %v29
  %v208 = vpop.permute.xlu0 %207
  %210 = vset.pattern.permute.xlu0 3
  %211 = vperm.xlu0 %210, %v30
  %v212 = vpop.permute.xlu0 %211
  %214 = vset.pattern.permute.xlu0 3
  %215 = vperm.xlu0 %214, %v31
  %v216 = vpop.permute.xlu0 %215
  %218 = vset.pattern.permute.xlu0 3
  %219 = vperm.xlu0 %218, %v32
  %v220 = vpop.permute.xlu0 %219
  %222 = vset.pattern.permute.xlu0 3
  %223 = vperm.xlu0 %222, %v33
  %v224 = vpop.permute.xlu0 %223
  %226 = vset.pattern.permute.xlu0 3
  %227 = vperm.xlu0 %226, %v34
  %v228 = vpop.permute.xlu0 %227
  %230 = vset.pattern.permute.xlu0 3
  %231 = vperm.xlu0 %230, %v35
  %v232 = vpop.permute.xlu0 %231
  %234 = vset.pattern.permute.xlu0 3
  %235 = vperm.xlu0 %234, %v36
  %v236 = vpop.permute.xlu0 %235
  %238 = vset.pattern.permute.xlu0 3
  %239 = vperm.xlu0 %238, %v37
  %v240 = vpop.permute.xlu0 %239
  %242 = vset.pattern.permute.xlu0 4
  %243 = vperm.xlu0 %242, %v26
  %v244 = vpop.permute.xlu0 %243
  %246 = vset.pattern.permute.xlu0 4
  %247 = vperm.xlu0 %246, %v27
  %v248 = vpop.permute.xlu0 %247
  %250 = vset.pattern.permute.xlu0 4
  %251 = vperm.xlu0 %250, %v28
  %v252 = vpop.permute.xlu0 %251
  %254 = vset.pattern.permute.xlu0 4
  %255 = vperm.xlu0 %254, %v29
  %v256 = vpop.permute.xlu0 %255
  %258 = vset.pattern.permute.xlu0 4
  %259 = vperm.xlu0 %258, %v30
  %v260 = vpop.permute.xlu0 %259
  %262 = vset.pattern.permute.xlu0 4
  %263 = vperm.xlu0 %262, %v31
  %v264 = vpop.permute.xlu0 %263
  %266 = vset.pattern.permute.xlu0 4
  %267 = vperm.xlu0 %266, %v32
  %v268 = vpop.permute.xlu0 %267
  %270 = vset.pattern.permute.xlu0 4
  %271 = vperm.xlu0 %270, %v33
  %v272 = vpop.permute.xlu0 %271
  %274 = vset.pattern.permute.xlu0 4
  %275 = vperm.xlu0 %274, %v34
  %v276 = vpop.permute.xlu0 %275
  %278 = vset.pattern.permute.xlu0 4
  %279 = vperm.xlu0 %278, %v35
  %v280 = vpop.permute.xlu0 %279
  %282 = vset.pattern.permute.xlu0 4
  %283 = vperm.xlu0 %282, %v36
  %v284 = vpop.permute.xlu0 %283
  %286 = vset.pattern.permute.xlu0 4
  %287 = vperm.xlu0 %286, %v37
  %v288 = vpop.permute.xlu0 %287
  %290 = vset.pattern.permute.xlu0 5
  %291 = vperm.xlu0 %290, %v26
  %v292 = vpop.permute.xlu0 %291
  %294 = vset.pattern.permute.xlu0 5
  %295 = vperm.xlu0 %294, %v27
  %v296 = vpop.permute.xlu0 %295
  %298 = vset.pattern.permute.xlu0 5
  %299 = vperm.xlu0 %298, %v28
  %v300 = vpop.permute.xlu0 %299
  %302 = vset.pattern.permute.xlu0 5
  %303 = vperm.xlu0 %302, %v29
  %v304 = vpop.permute.xlu0 %303
  %306 = vset.pattern.permute.xlu0 5
  %307 = vperm.xlu0 %306, %v30
  %v308 = vpop.permute.xlu0 %307
  %310 = vset.pattern.permute.xlu0 5
  %311 = vperm.xlu0 %310, %v31
  %v312 = vpop.permute.xlu0 %311
  %314 = vset.pattern.permute.xlu0 5
  %315 = vperm.xlu0 %314, %v32
  %v316 = vpop.permute.xlu0 %315
  %318 = vset.pattern.permute.xlu0 5
  %319 = vperm.xlu0 %318, %v33
  %v320 = vpop.permute.xlu0 %319
  %322 = vset.pattern.permute.xlu0 5
  %323 = vperm.xlu0 %322, %v34
  %v324 = vpop.permute.xlu0 %323
  %326 = vset.pattern.permute.xlu0 5
  %327 = vperm.xlu0 %326, %v35
  %v328 = vpop.permute.xlu0 %327
  %330 = vset.pattern.permute.xlu0 5
  %331 = vperm.xlu0 %330, %v36
  %v332 = vpop.permute.xlu0 %331
  %334 = vset.pattern.permute.xlu0 5
  %335 = vperm.xlu0 %334, %v37
  %v336 = vpop.permute.xlu0 %335
  %338 = vset.pattern.permute.xlu0 6
  %339 = vperm.xlu0 %338, %v26
  %v340 = vpop.permute.xlu0 %339
  %342 = vset.pattern.permute.xlu0 6
  %343 = vperm.xlu0 %342, %v27
  %v344 = vpop.permute.xlu0 %343
  %346 = vset.pattern.permute.xlu0 6
  %347 = vperm.xlu0 %346, %v28
  %v348 = vpop.permute.xlu0 %347
  %350 = vset.pattern.permute.xlu0 6
  %351 = vperm.xlu0 %350, %v29
  %v352 = vpop.permute.xlu0 %351
  %354 = vset.pattern.permute.xlu0 6
  %355 = vperm.xlu0 %354, %v30
  %v356 = vpop.permute.xlu0 %355
  %358 = vset.pattern.permute.xlu0 6
  %359 = vperm.xlu0 %358, %v31
  %v360 = vpop.permute.xlu0 %359
  %362 = vset.pattern.permute.xlu0 6
  %363 = vperm.xlu0 %362, %v32
  %v364 = vpop.permute.xlu0 %363
  %366 = vset.pattern.permute.xlu0 6
  %367 = vperm.xlu0 %366, %v33
  %v368 = vpop.permute.xlu0 %367
  %370 = vset.pattern.permute.xlu0 6
  %371 = vperm.xlu0 %370, %v34
  %v372 = vpop.permute.xlu0 %371
  %374 = vset.pattern.permute.xlu0 6
  %375 = vperm.xlu0 %374, %v35
  %v376 = vpop.permute.xlu0 %375
  %378 = vset.pattern.permute.xlu0 6
  %379 = vperm.xlu0 %378, %v36
  %v380 = vpop.permute.xlu0 %379
  %382 = vset.pattern.permute.xlu0 6
  %383 = vperm.xlu0 %382, %v37
  %v384 = vpop.permute.xlu0 %383
  %386 = vset.pattern.permute.xlu0 7
  %387 = vperm.xlu0 %386, %v26
  %v388 = vpop.permute.xlu0 %387
  %390 = vset.pattern.permute.xlu0 7
  %391 = vperm.xlu0 %390, %v27
  %v392 = vpop.permute.xlu0 %391
  %394 = vset.pattern.permute.xlu0 7
  %395 = vperm.xlu0 %394, %v28
  %v396 = vpop.permute.xlu0 %395
  %398 = vset.pattern.permute.xlu0 7
  %399 = vperm.xlu0 %398, %v29
  %v400 = vpop.permute.xlu0 %399
  %402 = vset.pattern.permute.xlu0 7
  %403 = vperm.xlu0 %402, %v30
  %v404 = vpop.permute.xlu0 %403
  %406 = vset.pattern.permute.xlu0 7
  %407 = vperm.xlu0 %406, %v31
  %v408 = vpop.permute.xlu0 %407
  %410 = vset.pattern.permute.xlu0 7
  %411 = vperm.xlu0 %410, %v32
  %v412 = vpop.permute.xlu0 %411
  %414 = vset.pattern.permute.xlu0 7
  %415 = vperm.xlu0 %414, %v33
  %v416 = vpop.permute.xlu0 %415
  %418 = vset.pattern.permute.xlu0 7
  %419 = vperm.xlu0 %418, %v34
  %v420 = vpop.permute.xlu0 %419
  %422 = vset.pattern.permute.xlu0 7
  %423 = vperm.xlu0 %422, %v35
  %v424 = vpop.permute.xlu0 %423
  %426 = vset.pattern.permute.xlu0 7
  %427 = vperm.xlu0 %426, %v36
  %v428 = vpop.permute.xlu0 %427
  %430 = vset.pattern.permute.xlu0 7
  %431 = vperm.xlu0 %430, %v37
  %v432 = vpop.permute.xlu0 %431
  %434 = vset.pattern.permute.xlu0 8
  %435 = vperm.xlu0 %434, %v26
  %v436 = vpop.permute.xlu0 %435
  %438 = vset.pattern.permute.xlu0 8
  %439 = vperm.xlu0 %438, %v27
  %v440 = vpop.permute.xlu0 %439
  %442 = vset.pattern.permute.xlu0 8
  %443 = vperm.xlu0 %442, %v28
  %v444 = vpop.permute.xlu0 %443
  %446 = vset.pattern.permute.xlu0 8
  %447 = vperm.xlu0 %446, %v29
  %v448 = vpop.permute.xlu0 %447
  %450 = vset.pattern.permute.xlu0 8
  %451 = vperm.xlu0 %450, %v30
  %v452 = vpop.permute.xlu0 %451
  %454 = vset.pattern.permute.xlu0 8
  %455 = vperm.xlu0 %454, %v31
  %v456 = vpop.permute.xlu0 %455
  %458 = vset.pattern.permute.xlu0 8
  %459 = vperm.xlu0 %458, %v32
  %v460 = vpop.permute.xlu0 %459
  %462 = vset.pattern.permute.xlu0 8
  %463 = vperm.xlu0 %462, %v33
  %v464 = vpop.permute.xlu0 %463
  %466 = vset.pattern.permute.xlu0 8
  %467 = vperm.xlu0 %466, %v34
  %v468 = vpop.permute.xlu0 %467
  %470 = vset.pattern.permute.xlu0 8
  %471 = vperm.xlu0 %470, %v35
  %v472 = vpop.permute.xlu0 %471
  %474 = vset.pattern.permute.xlu0 8
  %475 = vperm.xlu0 %474, %v36
  %v476 = vpop.permute.xlu0 %475
  %478 = vset.pattern.permute.xlu0 8
  %479 = vperm.xlu0 %478, %v37
  %v480 = vpop.permute.xlu0 %479
  %482 = vset.pattern.permute.xlu0 9
  %483 = vperm.xlu0 %482, %v26
  %v484 = vpop.permute.xlu0 %483
  %486 = vset.pattern.permute.xlu0 9
  %487 = vperm.xlu0 %486, %v27
  %v488 = vpop.permute.xlu0 %487
  %490 = vset.pattern.permute.xlu0 9
  %491 = vperm.xlu0 %490, %v28
  %v492 = vpop.permute.xlu0 %491
  %494 = vset.pattern.permute.xlu0 9
  %495 = vperm.xlu0 %494, %v29
  %v496 = vpop.permute.xlu0 %495
  %498 = vset.pattern.permute.xlu0 9
  %499 = vperm.xlu0 %498, %v30
  %v500 = vpop.permute.xlu0 %499
  %502 = vset.pattern.permute.xlu0 9
  %503 = vperm.xlu0 %502, %v31
  %v504 = vpop.permute.xlu0 %503
  %506 = vset.pattern.permute.xlu0 9
  %507 = vperm.xlu0 %506, %v32
  %v508 = vpop.permute.xlu0 %507
  %510 = vset.pattern.permute.xlu0 9
  %511 = vperm.xlu0 %510, %v33
  %v512 = vpop.permute.xlu0 %511
  %514 = vset.pattern.permute.xlu0 9
  %515 = vperm.xlu0 %514, %v34
  %v516 = vpop.permute.xlu0 %515
  %518 = vset.pattern.permute.xlu0 9
  %519 = vperm.xlu0 %518, %v35
  %v520 = vpop.permute.xlu0 %519
  %522 = vset.pattern.permute.xlu0 9
  %523 = vperm.xlu0 %522, %v36
  %v524 = vpop.permute.xlu0 %523
  %526 = vset.pattern.permute.xlu0 9
  %527 = vperm.xlu0 %526, %v37
  %v528 = vpop.permute.xlu0 %527
  %530 = vset.pattern.permute.xlu0 10
  %531 = vperm.xlu0 %530, %v26
  %v532 = vpop.permute.xlu0 %531
  %534 = vset.pattern.permute.xlu0 10
  %535 = vperm.xlu0 %534, %v27
  %v536 = vpop.permute.xlu0 %535
  %538 = vset.pattern.permute.xlu0 10
  %539 = vperm.xlu0 %538, %v28
  %v540 = vpop.permute.xlu0 %539
  %542 = vset.pattern.permute.xlu0 10
  %543 = vperm.xlu0 %542, %v29
  %v544 = vpop.permute.xlu0 %543
  %546 = vset.pattern.permute.xlu0 10
  %547 = vperm.xlu0 %546, %v30
  %v548 = vpop.permute.xlu0 %547
  %550 = vset.pattern.permute.xlu0 10
  %551 = vperm.xlu0 %550, %v31
  %v552 = vpop.permute.xlu0 %551
  %554 = vset.pattern.permute.xlu0 10
  %555 = vperm.xlu0 %554, %v32
  %v556 = vpop.permute.xlu0 %555
  %558 = vset.pattern.permute.xlu0 10
  %559 = vperm.xlu0 %558, %v33
  %v560 = vpop.permute.xlu0 %559
  %562 = vset.pattern.permute.xlu0 10
  %563 = vperm.xlu0 %562, %v34
  %v564 = vpop.permute.xlu0 %563
  %566 = vset.pattern.permute.xlu0 10
  %567 = vperm.xlu0 %566, %v35
  %v568 = vpop.permute.xlu0 %567
  %570 = vset.pattern.permute.xlu0 10
  %571 = vperm.xlu0 %570, %v36
  %v572 = vpop.permute.xlu0 %571
  %574 = vset.pattern.permute.xlu0 10
  %575 = vperm.xlu0 %574, %v37
  %v576 = vpop.permute.xlu0 %575
  %578 = vset.pattern.permute.xlu0 11
  %579 = vperm.xlu0 %578, %v26
  %v580 = vpop.permute.xlu0 %579
  %582 = vset.pattern.permute.xlu0 11
  %583 = vperm.xlu0 %582, %v27
  %v584 = vpop.permute.xlu0 %583
  %586 = vset.pattern.permute.xlu0 11
  %587 = vperm.xlu0 %586, %v28
  %v588 = vpop.permute.xlu0 %587
  %590 = vset.pattern.permute.xlu0 11
  %591 = vperm.xlu0 %590, %v29
  %v592 = vpop.permute.xlu0 %591
  %594 = vset.pattern.permute.xlu0 11
  %595 = vperm.xlu0 %594, %v30
  %v596 = vpop.permute.xlu0 %595
  %598 = vset.pattern.permute.xlu0 11
  %599 = vperm.xlu0 %598, %v31
  %v600 = vpop.permute.xlu0 %599
  %602 = vset.pattern.permute.xlu0 11
  %603 = vperm.xlu0 %602, %v32
  %v604 = vpop.permute.xlu0 %603
  %606 = vset.pattern.permute.xlu0 11
  %607 = vperm.xlu0 %606, %v33
  %v608 = vpop.permute.xlu0 %607
  %610 = vset.pattern.permute.xlu0 11
  %611 = vperm.xlu0 %610, %v34
  %v612 = vpop.permute.xlu0 %611
  %614 = vset.pattern.permute.xlu0 11
  %615 = vperm.xlu0 %614, %v35
  %v616 = vpop.permute.xlu0 %615
  %618 = vset.pattern.permute.xlu0 11
  %619 = vperm.xlu0 %618, %v36
  %v620 = vpop.permute.xlu0 %619
  %622 = vset.pattern.permute.xlu0 11
  %623 = vperm.xlu0 %622, %v37
  %v624 = vpop.permute.xlu0 %623
  %vm626 = vcmask 261120
  %v627 = vsel %vm626, %v41, %v100
  %v628 = vsel %vm626, %v46, %v104
  %v629 = vsel %vm626, %v51, %v108
  %v630 = vsel %vm626, %v56, %v112
  %v631 = vsel %vm626, %v61, %v116
  %v632 = vsel %vm626, %v66, %v120
  %v633 = vsel %vm626, %v71, %v124
  %v634 = vsel %vm626, %v76, %v128
  %v635 = vsel %vm626, %v81, %v132
  %v636 = vsel %vm626, %v86, %v136
  %v637 = vsel %vm626, %v91, %v140
  %v638 = vsel %vm626, %v96, %v144
  %vm639 = vcmask 523264
  %v640 = vsel %vm639, %v627, %v148
  %v641 = vsel %vm639, %v628, %v152
  %v642 = vsel %vm639, %v629, %v156
  %v643 = vsel %vm639, %v630, %v160
  %v644 = vsel %vm639, %v631, %v164
  %v645 = vsel %vm639, %v632, %v168
  %v646 = vsel %vm639, %v633, %v172
  %v647 = vsel %vm639, %v634, %v176
  %v648 = vsel %vm639, %v635, %v180
  %v649 = vsel %vm639, %v636, %v184
  %v650 = vsel %vm639, %v637, %v188
  %v651 = vsel %vm639, %v638, %v192
  %vm652 = vcmask 785408
  %v653 = vsel %vm652, %v640, %v196
  %v654 = vsel %vm652, %v641, %v200
  %v655 = vsel %vm652, %v642, %v204
  %v656 = vsel %vm652, %v643, %v208
  %v657 = vsel %vm652, %v644, %v212
  %v658 = vsel %vm652, %v645, %v216
  %v659 = vsel %vm652, %v646, %v220
  %v660 = vsel %vm652, %v647, %v224
  %v661 = vsel %vm652, %v648, %v228
  %v662 = vsel %vm652, %v649, %v232
  %v663 = vsel %vm652, %v650, %v236
  %v664 = vsel %vm652, %v651, %v240
  %v665 = vsel %vm626, %v244, %v292
  %v666 = vsel %vm626, %v248, %v296
  %v667 = vsel %vm626, %v252, %v300
  %v668 = vsel %vm626, %v256, %v304
  %v669 = vsel %vm626, %v260, %v308
  %v670 = vsel %vm626, %v264, %v312
  %v671 = vsel %vm626, %v268, %v316
  %v672 = vsel %vm626, %v272, %v320
  %v673 = vsel %vm626, %v276, %v324
  %v674 = vsel %vm626, %v280, %v328
  %v675 = vsel %vm626, %v284, %v332
  %v676 = vsel %vm626, %v288, %v336
  %v677 = vsel %vm639, %v665, %v340
  %v678 = vsel %vm639, %v666, %v344
  %v679 = vsel %vm639, %v667, %v348
  %v680 = vsel %vm639, %v668, %v352
  %v681 = vsel %vm639, %v669, %v356
  %v682 = vsel %vm639, %v670, %v360
  %v683 = vsel %vm639, %v671, %v364
  %v684 = vsel %vm639, %v672, %v368
  %v685 = vsel %vm639, %v673, %v372
  %v686 = vsel %vm639, %v674, %v376
  %v687 = vsel %vm639, %v675, %v380
  %v688 = vsel %vm639, %v676, %v384
  %v689 = vsel %vm652, %v677, %v388
  %v690 = vsel %vm652, %v678, %v392
  %v691 = vsel %vm652, %v679, %v396
  %v692 = vsel %vm652, %v680, %v400
  %v693 = vsel %vm652, %v681, %v404
  %v694 = vsel %vm652, %v682, %v408
  %v695 = vsel %vm652, %v683, %v412
  %v696 = vsel %vm652, %v684, %v416
  %v697 = vsel %vm652, %v685, %v420
  %v698 = vsel %vm652, %v686, %v424
  %v699 = vsel %vm652, %v687, %v428
  %v700 = vsel %vm652, %v688, %v432
  %v701 = vsel %vm626, %v436, %v484
  %v702 = vsel %vm626, %v440, %v488
  %v703 = vsel %vm626, %v444, %v492
  %v704 = vsel %vm626, %v448, %v496
  %v705 = vsel %vm626, %v452, %v500
  %v706 = vsel %vm626, %v456, %v504
  %v707 = vsel %vm626, %v460, %v508
  %v708 = vsel %vm626, %v464, %v512
  %v709 = vsel %vm626, %v468, %v516
  %v710 = vsel %vm626, %v472, %v520
  %v711 = vsel %vm626, %v476, %v524
  %v712 = vsel %vm626, %v480, %v528
  %v713 = vsel %vm639, %v701, %v532
  %v714 = vsel %vm639, %v702, %v536
  %v715 = vsel %vm639, %v703, %v540
  %v716 = vsel %vm639, %v704, %v544
  %v717 = vsel %vm639, %v705, %v548
  %v718 = vsel %vm639, %v706, %v552
  %v719 = vsel %vm639, %v707, %v556
  %v720 = vsel %vm639, %v708, %v560
  %v721 = vsel %vm639, %v709, %v564
  %v722 = vsel %vm639, %v710, %v568
  %v723 = vsel %vm639, %v711, %v572
  %v724 = vsel %vm639, %v712, %v576
  %v725 = vsel %vm652, %v713, %v580
  %v726 = vsel %vm652, %v714, %v584
  %v727 = vsel %vm652, %v715, %v588
  %v728 = vsel %vm652, %v716, %v592
  %v729 = vsel %vm652, %v717, %v596
  %v730 = vsel %vm652, %v718, %v600
  %v731 = vsel %vm652, %v719, %v604
  %v732 = vsel %vm652, %v720, %v608
  %v733 = vsel %vm652, %v721, %v612
  %v734 = vsel %vm652, %v722, %v616
  %v735 = vsel %vm652, %v723, %v620
  %v736 = vsel %vm652, %v724, %v624
  %737 = vst [vmem:[#allocation2] sm:$0xff] %v653
  %738 = vst [vmem:[#allocation2 + $0x8] sm:$0xff] %v689
  %739 = vst [vmem:[#allocation2 + $0x10] sm:$0xff] %v725
  %740 = vst [vmem:[#allocation2 + $0x18] sm:$0xff] %v654
  %741 = vst [vmem:[#allocation2 + $0x20] sm:$0xff] %v690
  %742 = vst [vmem:[#allocation2 + $0x28] sm:$0xff] %v726
  %743 = vst [vmem:[#allocation2 + $0x30] sm:$0xff] %v655
  %744 = vst [vmem:[#allocation2 + $0x38] sm:$0xff] %v691
  %745 = vst [vmem:[#allocation2 + $0x40] sm:$0xff] %v727
  %746 = vst [vmem:[#allocation2 + $0x48] sm:$0xff] %v656
  %747 = vst [vmem:[#allocation2 + $0x50] sm:$0xff] %v692
  %748 = vst [vmem:[#allocation2 + $0x58] sm:$0xff] %v728
  %749 = vst [vmem:[#allocation2 + $0x60] sm:$0xff] %v657
  %750 = vst [vmem:[#allocation2 + $0x68] sm:$0xff] %v693
  %751 = vst [vmem:[#allocation2 + $0x70] sm:$0xff] %v729
  %752 = vst [vmem:[#allocation2 + $0x78] sm:$0xff] %v658
  %753 = vst [vmem:[#allocation2 + $0x80] sm:$0xff] %v694
  %754 = vst [vmem:[#allocation2 + $0x88] sm:$0xff] %v730
  %755 = vst [vmem:[#allocation2 + $0x90] sm:$0xff] %v659
  %756 = vst [vmem:[#allocation2 + $0x98] sm:$0xff] %v695
  %757 = vst [vmem:[#allocation2 + $0xa0] sm:$0xff] %v731
  %758 = vst [vmem:[#allocation2 + $0xa8] sm:$0xff] %v660
  %759 = vst [vmem:[#allocation2 + $0xb0] sm:$0xff] %v696
  %760 = vst [vmem:[#allocation2 + $0xb8] sm:$0xff] %v732
  %761 = vst [vmem:[#allocation2 + $0xc0] sm:$0xff] %v661
  %762 = vst [vmem:[#allocation2 + $0xc8] sm:$0xff] %v697
  %763 = vst [vmem:[#allocation2 + $0xd0] sm:$0xff] %v733
  %764 = vst [vmem:[#allocation2 + $0xd8] sm:$0xff] %v662
  %765 = vst [vmem:[#allocation2 + $0xe0] sm:$0xff] %v698
  %766 = vst [vmem:[#allocation2 + $0xe8] sm:$0xff] %v734
  %767 = vst [vmem:[#allocation2 + $0xf0] sm:$0xff] %v663
  %768 = vst [vmem:[#allocation2 + $0xf8] sm:$0xff] %v699
  %769 = vst [vmem:[#allocation2 + $0x100] sm:$0xff] %v735
  %770 = vst [vmem:[#allocation2 + $0x108] sm:$0xff] %v664
  %771 = vst [vmem:[#allocation2 + $0x110] sm:$0xff] %v700
  %772 = vst [vmem:[#allocation2 + $0x118] sm:$0xff] %v736
  %773 = vst [vmem:[#allocation3] sm:$0xff] 0.0
  %774 = vst.msk [vmem:[#allocation3 + $0x8] sm:$0xff] %vm652, 0.0
  %775 = vst [vmem:[#allocation3 + $0x10] sm:$0xff] 0.0
  %776 = vst.msk [vmem:[#allocation3 + $0x18] sm:$0xff] %vm652, 0.0
  %777 = vst [vmem:[#allocation3 + $0x20] sm:$0xff] 0.0
  %778 = vst.msk [vmem:[#allocation3 + $0x28] sm:$0xff] %vm652, 0.0
  %779 = vst [vmem:[#allocation3 + $0x30] sm:$0xff] 0.0
  %780 = vst.msk [vmem:[#allocation3 + $0x38] sm:$0xff] %vm652, 0.0
  %781 = vst [vmem:[#allocation3 + $0x40] sm:$0xff] 0.0
  %782 = vst.msk [vmem:[#allocation3 + $0x48] sm:$0xff] %vm652, 0.0
  %783 = vst [vmem:[#allocation3 + $0x50] sm:$0xff] 0.0
  %784 = vst.msk [vmem:[#allocation3 + $0x58] sm:$0xff] %vm652, 0.0
  %785 = vst [vmem:[#allocation3 + $0x60] sm:$0xff] 0.0
  %786 = vst.msk [vmem:[#allocation3 + $0x68] sm:$0xff] %vm652, 0.0
  %v787 = vld [vmem:[%s2] sm:$0x7]
  %v789 = vperm.slane %v787, 0
  %v790 = vperm.slane %v787, 1
  %v791 = vperm.slane %v787, 2
  %v795 = vld [vmem:[#allocation2] sm:$0xff]
  %v796 = vld [vmem:[#allocation2 + $0x8] sm:$0xff]
  %v797 = vld [vmem:[#allocation2 + $0x10] sm:$0xff]
  %v798 = vld [vmem:[%s1] ss:$8 sm:$0x7]
  %v800 = vperm.slane %v798, 0
  %v801 = vperm.slane %v798, 1
  %v802 = vperm.slane %v798, 2
  %v806 = vmul.f32 %v795, %v800
  %v807 = vmul.f32 %v796, %v801
  %v808 = vmul.f32 %v797, %v802
  %v809 = vadd.f32 %v789, %v806
  %v810 = vadd.f32 %v790, %v807
  %v811 = vadd.f32 %v791, %v808
  %s812 = scalar_lea.vmem %s1, 1
  %v813 = vld [vmem:[%s812] ss:$8 sm:$0x7]
  %v815 = vperm.slane %v813, 0
  %v816 = vperm.slane %v813, 1
  %v817 = vperm.slane %v813, 2
  %818 = vrot.lane.b32.xlu0 %v815, 32
  %v819 = vpop.permute.xlu0 %818
  %820 = vrot.lane.b32.xlu0 %v816, 32
  %v821 = vpop.permute.xlu0 %820
  %822 = vrot.lane.b32.xlu0 %v817, 32
  %v823 = vpop.permute.xlu0 %822
  %v824 = vsel %vm626, %v819, %v821
  %v825 = vsel %vm626, %v821, %v823
  %v829 = vmul.f32 %v795, %v819
  %v830 = vmul.f32 %v796, %v824
  %v831 = vmul.f32 %v797, %v825
  %835 = vrot.lane.b32.xlu0 %v829, 96
  %v836 = vpop.permute.xlu0 %835
  %837 = vrot.lane.b32.xlu0 %v830, 96
  %v838 = vpop.permute.xlu0 %837
  %839 = vrot.lane.b32.xlu0 %v831, 96
  %v840 = vpop.permute.xlu0 %839
  %v841 = vsel %vm652, %v836, %v838
  %v842 = vsel %vm652, %v838, %v840
  %v846 = vadd.f32 %v809, %v841
  %v847 = vadd.f32 %v810, %v842
  %v848 = vadd.f32 %v811, %v840
  %s849 = scalar_lea.vmem %s1, 2
  %v850 = vld [vmem:[%s849] ss:$8 sm:$0x7]
  %v852 = vperm.slane %v850, 0
  %v853 = vperm.slane %v850, 1
  %v854 = vperm.slane %v850, 2
  %855 = vrot.lane.b32.xlu0 %v852, 64
  %v856 = vpop.permute.xlu0 %855
  %857 = vrot.lane.b32.xlu0 %v853, 64
  %v858 = vpop.permute.xlu0 %857
  %859 = vrot.lane.b32.xlu0 %v854, 64
  %v860 = vpop.permute.xlu0 %859
  %v861 = vsel %vm639, %v856, %v858
  %v862 = vsel %vm639, %v858, %v860
  %v866 = vmul.f32 %v795, %v856
  %v867 = vmul.f32 %v796, %v861
  %v868 = vmul.f32 %v797, %v862
  %872 = vrot.lane.b32.xlu0 %v866, 64
  %v873 = vpop.permute.xlu0 %872
  %874 = vrot.lane.b32.xlu0 %v867, 64
  %v875 = vpop.permute.xlu0 %874
  %876 = vrot.lane.b32.xlu0 %v868, 64
  %v877 = vpop.permute.xlu0 %876
  %v878 = vsel %vm639, %v873, %v875
  %v879 = vsel %vm639, %v875, %v877
  %v883 = vadd.f32 %v846, %v878
  %v884 = vadd.f32 %v847, %v879
  %v885 = vadd.f32 %v848, %v877
  %v886 = vld [vmem:[#allocation2 + $0x18] sm:$0xff]
  %v887 = vld [vmem:[#allocation2 + $0x20] sm:$0xff]
  %v888 = vld [vmem:[#allocation2 + $0x28] sm:$0xff]
  %s889 = scalar_lea.vmem %s1, 3
  %v890 = vld [vmem:[%s889] ss:$8 sm:$0x7]
  %v892 = vperm.slane %v890, 0
  %v893 = vperm.slane %v890, 1
  %v894 = vperm.slane %v890, 2
  %v898 = vmul.f32 %v886, %v892
  %v899 = vmul.f32 %v887, %v893
  %v900 = vmul.f32 %v888, %v894
  %v901 = vadd.f32 %v883, %v898
  %v902 = vadd.f32 %v884, %v899
  %v903 = vadd.f32 %v885, %v900
  %s904 = scalar_lea.vmem %s1, 4
  %v905 = vld [vmem:[%s904] ss:$8 sm:$0x7]
  %v907 = vperm.slane %v905, 0
  %v908 = vperm.slane %v905, 1
  %v909 = vperm.slane %v905, 2
  %910 = vrot.lane.b32.xlu0 %v907, 32
  %v911 = vpop.permute.xlu0 %910
  %912 = vrot.lane.b32.xlu0 %v908, 32
  %v913 = vpop.permute.xlu0 %912
  %914 = vrot.lane.b32.xlu0 %v909, 32
  %v915 = vpop.permute.xlu0 %914
  %v916 = vsel %vm626, %v911, %v913
  %v917 = vsel %vm626, %v913, %v915
  %v921 = vmul.f32 %v886, %v911
  %v922 = vmul.f32 %v887, %v916
  %v923 = vmul.f32 %v888, %v917
  %927 = vrot.lane.b32.xlu0 %v921, 96
  %v928 = vpop.permute.xlu0 %927
  %929 = vrot.lane.b32.xlu0 %v922, 96
  %v930 = vpop.permute.xlu0 %929
  %931 = vrot.lane.b32.xlu0 %v923, 96
  %v932 = vpop.permute.xlu0 %931
  %v933 = vsel %vm652, %v928, %v930
  %v934 = vsel %vm652, %v930, %v932
  %v938 = vadd.f32 %v901, %v933
  %v939 = vadd.f32 %v902, %v934
  %v940 = vadd.f32 %v903, %v932
  %s941 = scalar_lea.vmem %s1, 5
  %v942 = vld [vmem:[%s941] ss:$8 sm:$0x7]
  %v944 = vperm.slane %v942, 0
  %v945 = vperm.slane %v942, 1
  %v946 = vperm.slane %v942, 2
  %947 = vrot.lane.b32.xlu0 %v944, 64
  %v948 = vpop.permute.xlu0 %947
  %949 = vrot.lane.b32.xlu0 %v945, 64
  %v950 = vpop.permute.xlu0 %949
  %951 = vrot.lane.b32.xlu0 %v946, 64
  %v952 = vpop.permute.xlu0 %951
  %v953 = vsel %vm639, %v948, %v950
  %v954 = vsel %vm639, %v950, %v952
  %v958 = vmul.f32 %v886, %v948
  %v959 = vmul.f32 %v887, %v953
  %v960 = vmul.f32 %v888, %v954
  %964 = vrot.lane.b32.xlu0 %v958, 64
  %v965 = vpop.permute.xlu0 %964
  %966 = vrot.lane.b32.xlu0 %v959, 64
  %v967 = vpop.permute.xlu0 %966
  %968 = vrot.lane.b32.xlu0 %v960, 64
  %v969 = vpop.permute.xlu0 %968
  %v970 = vsel %vm639, %v965, %v967
  %v971 = vsel %vm639, %v967, %v969
  %v975 = vadd.f32 %v938, %v970
  %v976 = vadd.f32 %v939, %v971
  %v977 = vadd.f32 %v940, %v969
  %v978 = vld [vmem:[#allocation2 + $0x30] sm:$0xff]
  %v979 = vld [vmem:[#allocation2 + $0x38] sm:$0xff]
  %v980 = vld [vmem:[#allocation2 + $0x40] sm:$0xff]
  %s981 = scalar_lea.vmem %s1, 6
  %v982 = vld [vmem:[%s981] ss:$8 sm:$0x7]
  %v984 = vperm.slane %v982, 0
  %v985 = vperm.slane %v982, 1
  %v986 = vperm.slane %v982, 2
  %v990 = vmul.f32 %v978, %v984
  %v991 = vmul.f32 %v979, %v985
  %v992 = vmul.f32 %v980, %v986
  %v993 = vadd.f32 %v975, %v990
  %v994 = vadd.f32 %v976, %v991
  %v995 = vadd.f32 %v977, %v992
  %s996 = scalar_lea.vmem %s1, 7
  %v997 = vld [vmem:[%s996] ss:$8 sm:$0x7]
  %v999 = vperm.slane %v997, 0
  %v1000 = vperm.slane %v997, 1
  %v1001 = vperm.slane %v997, 2
  %1002 = vrot.lane.b32.xlu0 %v999, 32
  %v1003 = vpop.permute.xlu0 %1002
  %1004 = vrot.lane.b32.xlu0 %v1000, 32
  %v1005 = vpop.permute.xlu0 %1004
  %1006 = vrot.lane.b32.xlu0 %v1001, 32
  %v1007 = vpop.permute.xlu0 %1006
  %v1008 = vsel %vm626, %v1003, %v1005
  %v1009 = vsel %vm626, %v1005, %v1007
  %v1013 = vmul.f32 %v978, %v1003
  %v1014 = vmul.f32 %v979, %v1008
  %v1015 = vmul.f32 %v980, %v1009
  %1019 = vrot.lane.b32.xlu0 %v1013, 96
  %v1020 = vpop.permute.xlu0 %1019
  %1021 = vrot.lane.b32.xlu0 %v1014, 96
  %v1022 = vpop.permute.xlu0 %1021
  %1023 = vrot.lane.b32.xlu0 %v1015, 96
  %v1024 = vpop.permute.xlu0 %1023
  %v1025 = vsel %vm652, %v1020, %v1022
  %v1026 = vsel %vm652, %v1022, %v1024
  %v1030 = vadd.f32 %v993, %v1025
  %v1031 = vadd.f32 %v994, %v1026
  %v1032 = vadd.f32 %v995, %v1024
  %s1033 = scalar_lea.vmem %s1, 24
  %v1034 = vld [vmem:[%s1033] ss:$8 sm:$0x7]
  %v1036 = vperm.slane %v1034, 0
  %v1037 = vperm.slane %v1034, 1
  %v1038 = vperm.slane %v1034, 2
  %1039 = vrot.lane.b32.xlu0 %v1036, 64
  %v1040 = vpop.permute.xlu0 %1039
  %1041 = vrot.lane.b32.xlu0 %v1037, 64
  %v1042 = vpop.permute.xlu0 %1041
  %1043 = vrot.lane.b32.xlu0 %v1038, 64
  %v1044 = vpop.permute.xlu0 %1043
  %v1045 = vsel %vm639, %v1040, %v1042
  %v1046 = vsel %vm639, %v1042, %v1044
  %v1050 = vmul.f32 %v978, %v1040
  %v1051 = vmul.f32 %v979, %v1045
  %v1052 = vmul.f32 %v980, %v1046
  %1056 = vrot.lane.b32.xlu0 %v1050, 64
  %v1057 = vpop.permute.xlu0 %1056
  %1058 = vrot.lane.b32.xlu0 %v1051, 64
  %v1059 = vpop.permute.xlu0 %1058
  %1060 = vrot.lane.b32.xlu0 %v1052, 64
  %v1061 = vpop.permute.xlu0 %1060
  %v1062 = vsel %vm639, %v1057, %v1059
  %v1063 = vsel %vm639, %v1059, %v1061
  %v1067 = vadd.f32 %v1030, %v1062
  %v1068 = vadd.f32 %v1031, %v1063
  %v1069 = vadd.f32 %v1032, %v1061
  %v1070 = vmax.f32 %v1067, 0.0
  %v1071 = vmax.f32 %v1068, 0.0
  %v1072 = vmax.f32 %v1069, 0.0
  %v1073 = vmul.f32 %v886, %v800
  %v1074 = vmul.f32 %v887, %v801
  %v1075 = vmul.f32 %v888, %v802
  %v1076 = vadd.f32 %v789, %v1073
  %v1077 = vadd.f32 %v790, %v1074
  %v1078 = vadd.f32 %v791, %v1075
  %v1079 = vmul.f32 %v886, %v819
  %v1080 = vmul.f32 %v887, %v824
  %v1081 = vmul.f32 %v888, %v825
  %1085 = vrot.lane.b32.xlu0 %v1079, 96
  %v1086 = vpop.permute.xlu0 %1085
  %1087 = vrot.lane.b32.xlu0 %v1080, 96
  %v1088 = vpop.permute.xlu0 %1087
  %1089 = vrot.lane.b32.xlu0 %v1081, 96
  %v1090 = vpop.permute.xlu0 %1089
  %v1091 = vsel %vm652, %v1086, %v1088
  %v1092 = vsel %vm652, %v1088, %v1090
  %v1096 = vadd.f32 %v1076, %v1091
  %v1097 = vadd.f32 %v1077, %v1092
  %v1098 = vadd.f32 %v1078, %v1090
  %v1099 = vmul.f32 %v886, %v856
  %v1100 = vmul.f32 %v887, %v861
  %v1101 = vmul.f32 %v888, %v862
  %1105 = vrot.lane.b32.xlu0 %v1099, 64
  %v1106 = vpop.permute.xlu0 %1105
  %1107 = vrot.lane.b32.xlu0 %v1100, 64
  %v1108 = vpop.permute.xlu0 %1107
  %1109 = vrot.lane.b32.xlu0 %v1101, 64
  %v1110 = vpop.permute.xlu0 %1109
  %v1111 = vsel %vm639, %v1106, %v1108
  %v1112 = vsel %vm639, %v1108, %v1110
  %v1116 = vadd.f32 %v1096, %v1111
  %v1117 = vadd.f32 %v1097, %v1112
  %v1118 = vadd.f32 %v1098, %v1110
  %v1119 = vmul.f32 %v978, %v892
  %v1120 = vmul.f32 %v979, %v893
  %v1121 = vmul.f32 %v980, %v894
  %v1122 = vadd.f32 %v1116, %v1119
  %v1123 = vadd.f32 %v1117, %v1120
  %v1124 = vadd.f32 %v1118, %v1121
  %v1125 = vmul.f32 %v978, %v911
  %v1126 = vmul.f32 %v979, %v916
  %v1127 = vmul.f32 %v980, %v917
  %1131 = vrot.lane.b32.xlu0 %v1125, 96
  %v1132 = vpop.permute.xlu0 %1131
  %1133 = vrot.lane.b32.xlu0 %v1126, 96
  %v1134 = vpop.permute.xlu0 %1133
  %1135 = vrot.lane.b32.xlu0 %v1127, 96
  %v1136 = vpop.permute.xlu0 %1135
  %v1137 = vsel %vm652, %v1132, %v1134
  %v1138 = vsel %vm652, %v1134, %v1136
  %v1142 = vadd.f32 %v1122, %v1137
  %v1143 = vadd.f32 %v1123, %v1138
  %v1144 = vadd.f32 %v1124, %v1136
  %v1145 = vmul.f32 %v978, %v948
  %v1146 = vmul.f32 %v979, %v953
  %v1147 = vmul.f32 %v980, %v954
  %1151 = vrot.lane.b32.xlu0 %v1145, 64
  %v1152 = vpop.permute.xlu0 %1151
  %1153 = vrot.lane.b32.xlu0 %v1146, 64
  %v1154 = vpop.permute.xlu0 %1153
  %1155 = vrot.lane.b32.xlu0 %v1147, 64
  %v1156 = vpop.permute.xlu0 %1155
  %v1157 = vsel %vm639, %v1152, %v1154
  %v1158 = vsel %vm639, %v1154, %v1156
  %v1162 = vadd.f32 %v1142, %v1157
  %v1163 = vadd.f32 %v1143, %v1158
  %v1164 = vadd.f32 %v1144, %v1156
  %v1165 = vld [vmem:[#allocation2 + $0x48] sm:$0xff]
  %v1166 = vld [vmem:[#allocation2 + $0x50] sm:$0xff]
  %v1167 = vld [vmem:[#allocation2 + $0x58] sm:$0xff]
  %v1168 = vmul.f32 %v1165, %v984
  %v1169 = vmul.f32 %v1166, %v985
  %v1170 = vmul.f32 %v1167, %v986
  %v1171 = vadd.f32 %v1162, %v1168
  %v1172 = vadd.f32 %v1163, %v1169
  %v1173 = vadd.f32 %v1164, %v1170
  %v1174 = vmul.f32 %v1165, %v1003
  %v1175 = vmul.f32 %v1166, %v1008
  %v1176 = vmul.f32 %v1167, %v1009
  %1180 = vrot.lane.b32.xlu0 %v1174, 96
  %v1181 = vpop.permute.xlu0 %1180
  %1182 = vrot.lane.b32.xlu0 %v1175, 96
  %v1183 = vpop.permute.xlu0 %1182
  %1184 = vrot.lane.b32.xlu0 %v1176, 96
  %v1185 = vpop.permute.xlu0 %1184
  %v1186 = vsel %vm652, %v1181, %v1183
  %v1187 = vsel %vm652, %v1183, %v1185
  %v1191 = vadd.f32 %v1171, %v1186
  %v1192 = vadd.f32 %v1172, %v1187
  %v1193 = vadd.f32 %v1173, %v1185
  %v1194 = vmul.f32 %v1165, %v1040
  %v1195 = vmul.f32 %v1166, %v1045
  %v1196 = vmul.f32 %v1167, %v1046
  %1200 = vrot.lane.b32.xlu0 %v1194, 64
  %v1201 = vpop.permute.xlu0 %1200
  %1202 = vrot.lane.b32.xlu0 %v1195, 64
  %v1203 = vpop.permute.xlu0 %1202
  %1204 = vrot.lane.b32.xlu0 %v1196, 64
  %v1205 = vpop.permute.xlu0 %1204
  %v1206 = vsel %vm639, %v1201, %v1203
  %v1207 = vsel %vm639, %v1203, %v1205
  %v1211 = vadd.f32 %v1191, %v1206
  %v1212 = vadd.f32 %v1192, %v1207
  %v1213 = vadd.f32 %v1193, %v1205
  %v1214 = vmax.f32 %v1211, 0.0
  %v1215 = vmax.f32 %v1212, 0.0
  %v1216 = vmax.f32 %v1213, 0.0
  %v1217 = vmax.f32 %v1070, %v1214
  %v1218 = vmax.f32 %v1071, %v1215
  %v1219 = vmax.f32 %v1072, %v1216
  %1221 = vrot.lane.b32.xlu0 %v1217, 96
  %v1222 = vpop.permute.xlu0 %1221
  %1225 = vrot.lane.b32.xlu0 %v1218, 64
  %v1226 = vpop.permute.xlu0 %1225
  %1228 = vrot.lane.b32.xlu0 %v1218, 32
  %v1229 = vpop.permute.xlu0 %1228
  %v1231 = vsel %vm626, %v1217, %v1222
  %v1232 = vsel %vm639, %v1231, %v1226
  %v1233 = vsel %vm652, %v1232, %v1229
  %1234 = vrot.lane.b32.xlu0 %v1217, 64
  %v1235 = vpop.permute.xlu0 %1234
  %1238 = vrot.lane.b32.xlu0 %v1219, 96
  %v1239 = vpop.permute.xlu0 %1238
  %v1241 = vsel %vm626, %v1222, %v1235
  %v1242 = vsel %vm639, %v1241, %v1229
  %v1243 = vsel %vm652, %v1242, %v1218
  %v1244 = vmax.f32 %v1233, %v1243
  %v1245 = vmax.f32 %v1219, %v1239
  %1248 = vrot.lane.b32.xlu0 %v1244, 32
  %v1249 = vpop.permute.xlu0 %1248
  %1250 = vrot.lane.b32.xlu0 %v1245, 32
  %v1251 = vpop.permute.xlu0 %1250
  %v1252 = vsel %vm626, %v1249, %v1251
  %vm1255 = vcmask 1047808
  %1256 = vst.msk [vmem:[#allocation3 + $0x10] sm:$0xff] %vm1255, %v1249
  %1257 = vst.msk [vmem:[#allocation3 + $0x18] sm:$0xff] %vm639, %v1252
  %v1258 = vld [vmem:[#allocation2 + $0x30] sm:$0xff]
  %v1259 = vld [vmem:[#allocation2 + $0x38] sm:$0xff]
  %v1260 = vld [vmem:[#allocation2 + $0x40] sm:$0xff]
  %v1261 = vld [vmem:[%s1] ss:$8 sm:$0x7]
  %v1263 = vperm.slane %v1261, 0
  %v1264 = vperm.slane %v1261, 1
  %v1265 = vperm.slane %v1261, 2
  %v1269 = vmul.f32 %v1258, %v1263
  %v1270 = vmul.f32 %v1259, %v1264
  %v1271 = vmul.f32 %v1260, %v1265
  %v1272 = vadd.f32 %v789, %v1269
  %v1273 = vadd.f32 %v790, %v1270
  %v1274 = vadd.f32 %v791, %v1271
  %v1275 = vld [vmem:[%s812] ss:$8 sm:$0x7]
  %v1277 = vperm.slane %v1275, 0
  %v1278 = vperm.slane %v1275, 1
  %v1279 = vperm.slane %v1275, 2
  %1280 = vrot.lane.b32.xlu0 %v1277, 32
  %v1281 = vpop.permute.xlu0 %1280
  %1282 = vrot.lane.b32.xlu0 %v1278, 32
  %v1283 = vpop.permute.xlu0 %1282
  %1284 = vrot.lane.b32.xlu0 %v1279, 32
  %v1285 = vpop.permute.xlu0 %1284
  %v1286 = vsel %vm626, %v1281, %v1283
  %v1287 = vsel %vm626, %v1283, %v1285
  %v1291 = vmul.f32 %v1258, %v1281
  %v1292 = vmul.f32 %v1259, %v1286
  %v1293 = vmul.f32 %v1260, %v1287
  %1297 = vrot.lane.b32.xlu0 %v1291, 96
  %v1298 = vpop.permute.xlu0 %1297
  %1299 = vrot.lane.b32.xlu0 %v1292, 96
  %v1300 = vpop.permute.xlu0 %1299
  %1301 = vrot.lane.b32.xlu0 %v1293, 96
  %v1302 = vpop.permute.xlu0 %1301
  %v1303 = vsel %vm652, %v1298, %v1300
  %v1304 = vsel %vm652, %v1300, %v1302
  %v1308 = vadd.f32 %v1272, %v1303
  %v1309 = vadd.f32 %v1273, %v1304
  %v1310 = vadd.f32 %v1274, %v1302
  %v1311 = vld [vmem:[%s849] ss:$8 sm:$0x7]
  %v1313 = vperm.slane %v1311, 0
  %v1314 = vperm.slane %v1311, 1
  %v1315 = vperm.slane %v1311, 2
  %1316 = vrot.lane.b32.xlu0 %v1313, 64
  %v1317 = vpop.permute.xlu0 %1316
  %1318 = vrot.lane.b32.xlu0 %v1314, 64
  %v1319 = vpop.permute.xlu0 %1318
  %1320 = vrot.lane.b32.xlu0 %v1315, 64
  %v1321 = vpop.permute.xlu0 %1320
  %v1322 = vsel %vm639, %v1317, %v1319
  %v1323 = vsel %vm639, %v1319, %v1321
  %v1327 = vmul.f32 %v1258, %v1317
  %v1328 = vmul.f32 %v1259, %v1322
  %v1329 = vmul.f32 %v1260, %v1323
  %1333 = vrot.lane.b32.xlu0 %v1327, 64
  %v1334 = vpop.permute.xlu0 %1333
  %1335 = vrot.lane.b32.xlu0 %v1328, 64
  %v1336 = vpop.permute.xlu0 %1335
  %1337 = vrot.lane.b32.xlu0 %v1329, 64
  %v1338 = vpop.permute.xlu0 %1337
  %v1339 = vsel %vm639, %v1334, %v1336
  %v1340 = vsel %vm639, %v1336, %v1338
  %v1344 = vadd.f32 %v1308, %v1339
  %v1345 = vadd.f32 %v1309, %v1340
  %v1346 = vadd.f32 %v1310, %v1338
  %v1347 = vld [vmem:[#allocation2 + $0x48] sm:$0xff]
  %v1348 = vld [vmem:[#allocation2 + $0x50] sm:$0xff]
  %v1349 = vld [vmem:[#allocation2 + $0x58] sm:$0xff]
  %v1350 = vld [vmem:[%s889] ss:$8 sm:$0x7]
  %v1352 = vperm.slane %v1350, 0
  %v1353 = vperm.slane %v1350, 1
  %v1354 = vperm.slane %v1350, 2
  %v1358 = vmul.f32 %v1347, %v1352
  %v1359 = vmul.f32 %v1348, %v1353
  %v1360 = vmul.f32 %v1349, %v1354
  %v1361 = vadd.f32 %v1344, %v1358
  %v1362 = vadd.f32 %v1345, %v1359
  %v1363 = vadd.f32 %v1346, %v1360
  %v1364 = vld [vmem:[%s904] ss:$8 sm:$0x7]
  %v1366 = vperm.slane %v1364, 0
  %v1367 = vperm.slane %v1364, 1
  %v1368 = vperm.slane %v1364, 2
  %1369 = vrot.lane.b32.xlu0 %v1366, 32
  %v1370 = vpop.permute.xlu0 %1369
  %1371 = vrot.lane.b32.xlu0 %v1367, 32
  %v1372 = vpop.permute.xlu0 %1371
  %1373 = vrot.lane.b32.xlu0 %v1368, 32
  %v1374 = vpop.permute.xlu0 %1373
  %v1375 = vsel %vm626, %v1370, %v1372
  %v1376 = vsel %vm626, %v1372, %v1374
  %v1380 = vmul.f32 %v1347, %v1370
  %v1381 = vmul.f32 %v1348, %v1375
  %v1382 = vmul.f32 %v1349, %v1376
  %1386 = vrot.lane.b32.xlu0 %v1380, 96
  %v1387 = vpop.permute.xlu0 %1386
  %1388 = vrot.lane.b32.xlu0 %v1381, 96
  %v1389 = vpop.permute.xlu0 %1388
  %1390 = vrot.lane.b32.xlu0 %v1382, 96
  %v1391 = vpop.permute.xlu0 %1390
  %v1392 = vsel %vm652, %v1387, %v1389
  %v1393 = vsel %vm652, %v1389, %v1391
  %v1397 = vadd.f32 %v1361, %v1392
  %v1398 = vadd.f32 %v1362, %v1393
  %v1399 = vadd.f32 %v1363, %v1391
  %v1400 = vld [vmem:[%s941] ss:$8 sm:$0x7]
  %v1402 = vperm.slane %v1400, 0
  %v1403 = vperm.slane %v1400, 1
  %v1404 = vperm.slane %v1400, 2
  %1405 = vrot.lane.b32.xlu0 %v1402, 64
  %v1406 = vpop.permute.xlu0 %1405
  %1407 = vrot.lane.b32.xlu0 %v1403, 64
  %v1408 = vpop.permute.xlu0 %1407
  %1409 = vrot.lane.b32.xlu0 %v1404, 64
  %v1410 = vpop.permute.xlu0 %1409
  %v1411 = vsel %vm639, %v1406, %v1408
  %v1412 = vsel %vm639, %v1408, %v1410
  %v1416 = vmul.f32 %v1347, %v1406
  %v1417 = vmul.f32 %v1348, %v1411
  %v1418 = vmul.f32 %v1349, %v1412
  %1422 = vrot.lane.b32.xlu0 %v1416, 64
  %v1423 = vpop.permute.xlu0 %1422
  %1424 = vrot.lane.b32.xlu0 %v1417, 64
  %v1425 = vpop.permute.xlu0 %1424
  %1426 = vrot.lane.b32.xlu0 %v1418, 64
  %v1427 = vpop.permute.xlu0 %1426
  %v1428 = vsel %vm639, %v1423, %v1425
  %v1429 = vsel %vm639, %v1425, %v1427
  %v1433 = vadd.f32 %v1397, %v1428
  %v1434 = vadd.f32 %v1398, %v1429
  %v1435 = vadd.f32 %v1399, %v1427
  %v1436 = vld [vmem:[#allocation2 + $0x60] sm:$0xff]
  %v1437 = vld [vmem:[#allocation2 + $0x68] sm:$0xff]
  %v1438 = vld [vmem:[#allocation2 + $0x70] sm:$0xff]
  %v1439 = vld [vmem:[%s981] ss:$8 sm:$0x7]
  %v1441 = vperm.slane %v1439, 0
  %v1442 = vperm.slane %v1439, 1
  %v1443 = vperm.slane %v1439, 2
  %v1447 = vmul.f32 %v1436, %v1441
  %v1448 = vmul.f32 %v1437, %v1442
  %v1449 = vmul.f32 %v1438, %v1443
  %v1450 = vadd.f32 %v1433, %v1447
  %v1451 = vadd.f32 %v1434, %v1448
  %v1452 = vadd.f32 %v1435, %v1449
  %v1453 = vld [vmem:[%s996] ss:$8 sm:$0x7]
  %v1455 = vperm.slane %v1453, 0
  %v1456 = vperm.slane %v1453, 1
  %v1457 = vperm.slane %v1453, 2
  %1458 = vrot.lane.b32.xlu0 %v1455, 32
  %v1459 = vpop.permute.xlu0 %1458
  %1460 = vrot.lane.b32.xlu0 %v1456, 32
  %v1461 = vpop.permute.xlu0 %1460
  %1462 = vrot.lane.b32.xlu0 %v1457, 32
  %v1463 = vpop.permute.xlu0 %1462
  %v1464 = vsel %vm626, %v1459, %v1461
  %v1465 = vsel %vm626, %v1461, %v1463
  %v1469 = vmul.f32 %v1436, %v1459
  %v1470 = vmul.f32 %v1437, %v1464
  %v1471 = vmul.f32 %v1438, %v1465
  %1475 = vrot.lane.b32.xlu0 %v1469, 96
  %v1476 = vpop.permute.xlu0 %1475
  %1477 = vrot.lane.b32.xlu0 %v1470, 96
  %v1478 = vpop.permute.xlu0 %1477
  %1479 = vrot.lane.b32.xlu0 %v1471, 96
  %v1480 = vpop.permute.xlu0 %1479
  %v1481 = vsel %vm652, %v1476, %v1478
  %v1482 = vsel %vm652, %v1478, %v1480
  %v1486 = vadd.f32 %v1450, %v1481
  %v1487 = vadd.f32 %v1451, %v1482
  %v1488 = vadd.f32 %v1452, %v1480
  %v1489 = vld [vmem:[%s1033] ss:$8 sm:$0x7]
  %v1491 = vperm.slane %v1489, 0
  %v1492 = vperm.slane %v1489, 1
  %v1493 = vperm.slane %v1489, 2
  %1494 = vrot.lane.b32.xlu0 %v1491, 64
  %v1495 = vpop.permute.xlu0 %1494
  %1496 = vrot.lane.b32.xlu0 %v1492, 64
  %v1497 = vpop.permute.xlu0 %1496
  %1498 = vrot.lane.b32.xlu0 %v1493, 64
  %v1499 = vpop.permute.xlu0 %1498
  %v1500 = vsel %vm639, %v1495, %v1497
  %v1501 = vsel %vm639, %v1497, %v1499
  %v1505 = vmul.f32 %v1436, %v1495
  %v1506 = vmul.f32 %v1437, %v1500
  %v1507 = vmul.f32 %v1438, %v1501
  %1511 = vrot.lane.b32.xlu0 %v1505, 64
  %v1512 = vpop.permute.xlu0 %1511
  %1513 = vrot.lane.b32.xlu0 %v1506, 64
  %v1514 = vpop.permute.xlu0 %1513
  %1515 = vrot.lane.b32.xlu0 %v1507, 64
  %v1516 = vpop.permute.xlu0 %1515
  %v1517 = vsel %vm639, %v1512, %v1514
  %v1518 = vsel %vm639, %v1514, %v1516
  %v1522 = vadd.f32 %v1486, %v1517
  %v1523 = vadd.f32 %v1487, %v1518
  %v1524 = vadd.f32 %v1488, %v1516
  %v1525 = vmax.f32 %v1522, 0.0
  %v1526 = vmax.f32 %v1523, 0.0
  %v1527 = vmax.f32 %v1524, 0.0
  %v1528 = vmul.f32 %v1347, %v1263
  %v1529 = vmul.f32 %v1348, %v1264
  %v1530 = vmul.f32 %v1349, %v1265
  %v1531 = vadd.f32 %v789, %v1528
  %v1532 = vadd.f32 %v790, %v1529
  %v1533 = vadd.f32 %v791, %v1530
  %v1534 = vmul.f32 %v1347, %v1281
  %v1535 = vmul.f32 %v1348, %v1286
  %v1536 = vmul.f32 %v1349, %v1287
  %1540 = vrot.lane.b32.xlu0 %v1534, 96
  %v1541 = vpop.permute.xlu0 %1540
  %1542 = vrot.lane.b32.xlu0 %v1535, 96
  %v1543 = vpop.permute.xlu0 %1542
  %1544 = vrot.lane.b32.xlu0 %v1536, 96
  %v1545 = vpop.permute.xlu0 %1544
  %v1546 = vsel %vm652, %v1541, %v1543
  %v1547 = vsel %vm652, %v1543, %v1545
  %v1551 = vadd.f32 %v1531, %v1546
  %v1552 = vadd.f32 %v1532, %v1547
  %v1553 = vadd.f32 %v1533, %v1545
  %v1554 = vmul.f32 %v1347, %v1317
  %v1555 = vmul.f32 %v1348, %v1322
  %v1556 = vmul.f32 %v1349, %v1323
  %1560 = vrot.lane.b32.xlu0 %v1554, 64
  %v1561 = vpop.permute.xlu0 %1560
  %1562 = vrot.lane.b32.xlu0 %v1555, 64
  %v1563 = vpop.permute.xlu0 %1562
  %1564 = vrot.lane.b32.xlu0 %v1556, 64
  %v1565 = vpop.permute.xlu0 %1564
  %v1566 = vsel %vm639, %v1561, %v1563
  %v1567 = vsel %vm639, %v1563, %v1565
  %v1571 = vadd.f32 %v1551, %v1566
  %v1572 = vadd.f32 %v1552, %v1567
  %v1573 = vadd.f32 %v1553, %v1565
  %v1574 = vmul.f32 %v1436, %v1352
  %v1575 = vmul.f32 %v1437, %v1353
  %v1576 = vmul.f32 %v1438, %v1354
  %v1577 = vadd.f32 %v1571, %v1574
  %v1578 = vadd.f32 %v1572, %v1575
  %v1579 = vadd.f32 %v1573, %v1576
  %v1580 = vmul.f32 %v1436, %v1370
  %v1581 = vmul.f32 %v1437, %v1375
  %v1582 = vmul.f32 %v1438, %v1376
  %1586 = vrot.lane.b32.xlu0 %v1580, 96
  %v1587 = vpop.permute.xlu0 %1586
  %1588 = vrot.lane.b32.xlu0 %v1581, 96
  %v1589 = vpop.permute.xlu0 %1588
  %1590 = vrot.lane.b32.xlu0 %v1582, 96
  %v1591 = vpop.permute.xlu0 %1590
  %v1592 = vsel %vm652, %v1587, %v1589
  %v1593 = vsel %vm652, %v1589, %v1591
  %v1597 = vadd.f32 %v1577, %v1592
  %v1598 = vadd.f32 %v1578, %v1593
  %v1599 = vadd.f32 %v1579, %v1591
  %v1600 = vmul.f32 %v1436, %v1406
  %v1601 = vmul.f32 %v1437, %v1411
  %v1602 = vmul.f32 %v1438, %v1412
  %1606 = vrot.lane.b32.xlu0 %v1600, 64
  %v1607 = vpop.permute.xlu0 %1606
  %1608 = vrot.lane.b32.xlu0 %v1601, 64
  %v1609 = vpop.permute.xlu0 %1608
  %1610 = vrot.lane.b32.xlu0 %v1602, 64
  %v1611 = vpop.permute.xlu0 %1610
  %v1612 = vsel %vm639, %v1607, %v1609
  %v1613 = vsel %vm639, %v1609, %v1611
  %v1617 = vadd.f32 %v1597, %v1612
  %v1618 = vadd.f32 %v1598, %v1613
  %v1619 = vadd.f32 %v1599, %v1611
  %v1620 = vld [vmem:[#allocation2 + $0x78] sm:$0xff]
  %v1621 = vld [vmem:[#allocation2 + $0x80] sm:$0xff]
  %v1622 = vld [vmem:[#allocation2 + $0x88] sm:$0xff]
  %v1623 = vmul.f32 %v1620, %v1441
  %v1624 = vmul.f32 %v1621, %v1442
  %v1625 = vmul.f32 %v1622, %v1443
  %v1626 = vadd.f32 %v1617, %v1623
  %v1627 = vadd.f32 %v1618, %v1624
  %v1628 = vadd.f32 %v1619, %v1625
  %v1629 = vmul.f32 %v1620, %v1459
  %v1630 = vmul.f32 %v1621, %v1464
  %v1631 = vmul.f32 %v1622, %v1465
  %1635 = vrot.lane.b32.xlu0 %v1629, 96
  %v1636 = vpop.permute.xlu0 %1635
  %1637 = vrot.lane.b32.xlu0 %v1630, 96
  %v1638 = vpop.permute.xlu0 %1637
  %1639 = vrot.lane.b32.xlu0 %v1631, 96
  %v1640 = vpop.permute.xlu0 %1639
  %v1641 = vsel %vm652, %v1636, %v1638
  %v1642 = vsel %vm652, %v1638, %v1640
  %v1646 = vadd.f32 %v1626, %v1641
  %v1647 = vadd.f32 %v1627, %v1642
  %v1648 = vadd.f32 %v1628, %v1640
  %v1649 = vmul.f32 %v1620, %v1495
  %v1650 = vmul.f32 %v1621, %v1500
  %v1651 = vmul.f32 %v1622, %v1501
  %1655 = vrot.lane.b32.xlu0 %v1649, 64
  %v1656 = vpop.permute.xlu0 %1655
  %1657 = vrot.lane.b32.xlu0 %v1650, 64
  %v1658 = vpop.permute.xlu0 %1657
  %1659 = vrot.lane.b32.xlu0 %v1651, 64
  %v1660 = vpop.permute.xlu0 %1659
  %v1661 = vsel %vm639, %v1656, %v1658
  %v1662 = vsel %vm639, %v1658, %v1660
  %v1666 = vadd.f32 %v1646, %v1661
  %v1667 = vadd.f32 %v1647, %v1662
  %v1668 = vadd.f32 %v1648, %v1660
  %v1669 = vmax.f32 %v1666, 0.0
  %v1670 = vmax.f32 %v1667, 0.0
  %v1671 = vmax.f32 %v1668, 0.0
  %v1672 = vmax.f32 %v1525, %v1669
  %v1673 = vmax.f32 %v1526, %v1670
  %v1674 = vmax.f32 %v1527, %v1671
  %1676 = vrot.lane.b32.xlu0 %v1672, 96
  %v1677 = vpop.permute.xlu0 %1676
  %1680 = vrot.lane.b32.xlu0 %v1673, 64
  %v1681 = vpop.permute.xlu0 %1680
  %1683 = vrot.lane.b32.xlu0 %v1673, 32
  %v1684 = vpop.permute.xlu0 %1683
  %v1686 = vsel %vm626, %v1672, %v1677
  %v1687 = vsel %vm639, %v1686, %v1681
  %v1688 = vsel %vm652, %v1687, %v1684
  %1689 = vrot.lane.b32.xlu0 %v1672, 64
  %v1690 = vpop.permute.xlu0 %1689
  %1693 = vrot.lane.b32.xlu0 %v1674, 96
  %v1694 = vpop.permute.xlu0 %1693
  %v1696 = vsel %vm626, %v1677, %v1690
  %v1697 = vsel %vm639, %v1696, %v1684
  %v1698 = vsel %vm652, %v1697, %v1673
  %v1699 = vmax.f32 %v1688, %v1698
  %v1700 = vmax.f32 %v1674, %v1694
  %1703 = vrot.lane.b32.xlu0 %v1699, 32
  %v1704 = vpop.permute.xlu0 %1703
  %1705 = vrot.lane.b32.xlu0 %v1700, 32
  %v1706 = vpop.permute.xlu0 %1705
  %v1707 = vsel %vm626, %v1704, %v1706
  %1710 = vst.msk [vmem:[#allocation3 + $0x20] sm:$0xff] %vm1255, %v1704
  %1711 = vst.msk [vmem:[#allocation3 + $0x28] sm:$0xff] %vm639, %v1707
  %v1712 = vld [vmem:[#allocation2 + $0x60] sm:$0xff]
  %v1713 = vld [vmem:[#allocation2 + $0x68] sm:$0xff]
  %v1714 = vld [vmem:[#allocation2 + $0x70] sm:$0xff]
  %v1715 = vld [vmem:[%s1] ss:$8 sm:$0x7]
  %v1717 = vperm.slane %v1715, 0
  %v1718 = vperm.slane %v1715, 1
  %v1719 = vperm.slane %v1715, 2
  %v1723 = vmul.f32 %v1712, %v1717
  %v1724 = vmul.f32 %v1713, %v1718
  %v1725 = vmul.f32 %v1714, %v1719
  %v1726 = vadd.f32 %v789, %v1723
  %v1727 = vadd.f32 %v790, %v1724
  %v1728 = vadd.f32 %v791, %v1725
  %v1729 = vld [vmem:[%s812] ss:$8 sm:$0x7]
  %v1731 = vperm.slane %v1729, 0
  %v1732 = vperm.slane %v1729, 1
  %v1733 = vperm.slane %v1729, 2
  %1734 = vrot.lane.b32.xlu0 %v1731, 32
  %v1735 = vpop.permute.xlu0 %1734
  %1736 = vrot.lane.b32.xlu0 %v1732, 32
  %v1737 = vpop.permute.xlu0 %1736
  %1738 = vrot.lane.b32.xlu0 %v1733, 32
  %v1739 = vpop.permute.xlu0 %1738
  %v1740 = vsel %vm626, %v1735, %v1737
  %v1741 = vsel %vm626, %v1737, %v1739
  %v1745 = vmul.f32 %v1712, %v1735
  %v1746 = vmul.f32 %v1713, %v1740
  %v1747 = vmul.f32 %v1714, %v1741
  %1751 = vrot.lane.b32.xlu0 %v1745, 96
  %v1752 = vpop.permute.xlu0 %1751
  %1753 = vrot.lane.b32.xlu0 %v1746, 96
  %v1754 = vpop.permute.xlu0 %1753
  %1755 = vrot.lane.b32.xlu0 %v1747, 96
  %v1756 = vpop.permute.xlu0 %1755
  %v1757 = vsel %vm652, %v1752, %v1754
  %v1758 = vsel %vm652, %v1754, %v1756
  %v1762 = vadd.f32 %v1726, %v1757
  %v1763 = vadd.f32 %v1727, %v1758
  %v1764 = vadd.f32 %v1728, %v1756
  %v1765 = vld [vmem:[%s849] ss:$8 sm:$0x7]
  %v1767 = vperm.slane %v1765, 0
  %v1768 = vperm.slane %v1765, 1
  %v1769 = vperm.slane %v1765, 2
  %1770 = vrot.lane.b32.xlu0 %v1767, 64
  %v1771 = vpop.permute.xlu0 %1770
  %1772 = vrot.lane.b32.xlu0 %v1768, 64
  %v1773 = vpop.permute.xlu0 %1772
  %1774 = vrot.lane.b32.xlu0 %v1769, 64
  %v1775 = vpop.permute.xlu0 %1774
  %v1776 = vsel %vm639, %v1771, %v1773
  %v1777 = vsel %vm639, %v1773, %v1775
  %v1781 = vmul.f32 %v1712, %v1771
  %v1782 = vmul.f32 %v1713, %v1776
  %v1783 = vmul.f32 %v1714, %v1777
  %1787 = vrot.lane.b32.xlu0 %v1781, 64
  %v1788 = vpop.permute.xlu0 %1787
  %1789 = vrot.lane.b32.xlu0 %v1782, 64
  %v1790 = vpop.permute.xlu0 %1789
  %1791 = vrot.lane.b32.xlu0 %v1783, 64
  %v1792 = vpop.permute.xlu0 %1791
  %v1793 = vsel %vm639, %v1788, %v1790
  %v1794 = vsel %vm639, %v1790, %v1792
  %v1798 = vadd.f32 %v1762, %v1793
  %v1799 = vadd.f32 %v1763, %v1794
  %v1800 = vadd.f32 %v1764, %v1792
  %v1801 = vld [vmem:[#allocation2 + $0x78] sm:$0xff]
  %v1802 = vld [vmem:[#allocation2 + $0x80] sm:$0xff]
  %v1803 = vld [vmem:[#allocation2 + $0x88] sm:$0xff]
  %v1804 = vld [vmem:[%s889] ss:$8 sm:$0x7]
  %v1806 = vperm.slane %v1804, 0
  %v1807 = vperm.slane %v1804, 1
  %v1808 = vperm.slane %v1804, 2
  %v1812 = vmul.f32 %v1801, %v1806
  %v1813 = vmul.f32 %v1802, %v1807
  %v1814 = vmul.f32 %v1803, %v1808
  %v1815 = vadd.f32 %v1798, %v1812
  %v1816 = vadd.f32 %v1799, %v1813
  %v1817 = vadd.f32 %v1800, %v1814
  %v1818 = vld [vmem:[%s904] ss:$8 sm:$0x7]
  %v1820 = vperm.slane %v1818, 0
  %v1821 = vperm.slane %v1818, 1
  %v1822 = vperm.slane %v1818, 2
  %1823 = vrot.lane.b32.xlu0 %v1820, 32
  %v1824 = vpop.permute.xlu0 %1823
  %1825 = vrot.lane.b32.xlu0 %v1821, 32
  %v1826 = vpop.permute.xlu0 %1825
  %1827 = vrot.lane.b32.xlu0 %v1822, 32
  %v1828 = vpop.permute.xlu0 %1827
  %v1829 = vsel %vm626, %v1824, %v1826
  %v1830 = vsel %vm626, %v1826, %v1828
  %v1834 = vmul.f32 %v1801, %v1824
  %v1835 = vmul.f32 %v1802, %v1829
  %v1836 = vmul.f32 %v1803, %v1830
  %1840 = vrot.lane.b32.xlu0 %v1834, 96
  %v1841 = vpop.permute.xlu0 %1840
  %1842 = vrot.lane.b32.xlu0 %v1835, 96
  %v1843 = vpop.permute.xlu0 %1842
  %1844 = vrot.lane.b32.xlu0 %v1836, 96
  %v1845 = vpop.permute.xlu0 %1844
  %v1846 = vsel %vm652, %v1841, %v1843
  %v1847 = vsel %vm652, %v1843, %v1845
  %v1851 = vadd.f32 %v1815, %v1846
  %v1852 = vadd.f32 %v1816, %v1847
  %v1853 = vadd.f32 %v1817, %v1845
  %v1854 = vld [vmem:[%s941] ss:$8 sm:$0x7]
  %v1856 = vperm.slane %v1854, 0
  %v1857 = vperm.slane %v1854, 1
  %v1858 = vperm.slane %v1854, 2
  %1859 = vrot.lane.b32.xlu0 %v1856, 64
  %v1860 = vpop.permute.xlu0 %1859
  %1861 = vrot.lane.b32.xlu0 %v1857, 64
  %v1862 = vpop.permute.xlu0 %1861
  %1863 = vrot.lane.b32.xlu0 %v1858, 64
  %v1864 = vpop.permute.xlu0 %1863
  %v1865 = vsel %vm639, %v1860, %v1862
  %v1866 = vsel %vm639, %v1862, %v1864
  %v1870 = vmul.f32 %v1801, %v1860
  %v1871 = vmul.f32 %v1802, %v1865
  %v1872 = vmul.f32 %v1803, %v1866
  %1876 = vrot.lane.b32.xlu0 %v1870, 64
  %v1877 = vpop.permute.xlu0 %1876
  %1878 = vrot.lane.b32.xlu0 %v1871, 64
  %v1879 = vpop.permute.xlu0 %1878
  %1880 = vrot.lane.b32.xlu0 %v1872, 64
  %v1881 = vpop.permute.xlu0 %1880
  %v1882 = vsel %vm639, %v1877, %v1879
  %v1883 = vsel %vm639, %v1879, %v1881
  %v1887 = vadd.f32 %v1851, %v1882
  %v1888 = vadd.f32 %v1852, %v1883
  %v1889 = vadd.f32 %v1853, %v1881
  %v1890 = vld [vmem:[#allocation2 + $0x90] sm:$0xff]
  %v1891 = vld [vmem:[#allocation2 + $0x98] sm:$0xff]
  %v1892 = vld [vmem:[#allocation2 + $0xa0] sm:$0xff]
  %v1893 = vld [vmem:[%s981] ss:$8 sm:$0x7]
  %v1895 = vperm.slane %v1893, 0
  %v1896 = vperm.slane %v1893, 1
  %v1897 = vperm.slane %v1893, 2
  %v1901 = vmul.f32 %v1890, %v1895
  %v1902 = vmul.f32 %v1891, %v1896
  %v1903 = vmul.f32 %v1892, %v1897
  %v1904 = vadd.f32 %v1887, %v1901
  %v1905 = vadd.f32 %v1888, %v1902
  %v1906 = vadd.f32 %v1889, %v1903
  %v1907 = vld [vmem:[%s996] ss:$8 sm:$0x7]
  %v1909 = vperm.slane %v1907, 0
  %v1910 = vperm.slane %v1907, 1
  %v1911 = vperm.slane %v1907, 2
  %1912 = vrot.lane.b32.xlu0 %v1909, 32
  %v1913 = vpop.permute.xlu0 %1912
  %1914 = vrot.lane.b32.xlu0 %v1910, 32
  %v1915 = vpop.permute.xlu0 %1914
  %1916 = vrot.lane.b32.xlu0 %v1911, 32
  %v1917 = vpop.permute.xlu0 %1916
  %v1918 = vsel %vm626, %v1913, %v1915
  %v1919 = vsel %vm626, %v1915, %v1917
  %v1923 = vmul.f32 %v1890, %v1913
  %v1924 = vmul.f32 %v1891, %v1918
  %v1925 = vmul.f32 %v1892, %v1919
  %1929 = vrot.lane.b32.xlu0 %v1923, 96
  %v1930 = vpop.permute.xlu0 %1929
  %1931 = vrot.lane.b32.xlu0 %v1924, 96
  %v1932 = vpop.permute.xlu0 %1931
  %1933 = vrot.lane.b32.xlu0 %v1925, 96
  %v1934 = vpop.permute.xlu0 %1933
  %v1935 = vsel %vm652, %v1930, %v1932
  %v1936 = vsel %vm652, %v1932, %v1934
  %v1940 = vadd.f32 %v1904, %v1935
  %v1941 = vadd.f32 %v1905, %v1936
  %v1942 = vadd.f32 %v1906, %v1934
  %v1943 = vld [vmem:[%s1033] ss:$8 sm:$0x7]
  %v1945 = vperm.slane %v1943, 0
  %v1946 = vperm.slane %v1943, 1
  %v1947 = vperm.slane %v1943, 2
  %1948 = vrot.lane.b32.xlu0 %v1945, 64
  %v1949 = vpop.permute.xlu0 %1948
  %1950 = vrot.lane.b32.xlu0 %v1946, 64
  %v1951 = vpop.permute.xlu0 %1950
  %1952 = vrot.lane.b32.xlu0 %v1947, 64
  %v1953 = vpop.permute.xlu0 %1952
  %v1954 = vsel %vm639, %v1949, %v1951
  %v1955 = vsel %vm639, %v1951, %v1953
  %v1959 = vmul.f32 %v1890, %v1949
  %v1960 = vmul.f32 %v1891, %v1954
  %v1961 = vmul.f32 %v1892, %v1955
  %1965 = vrot.lane.b32.xlu0 %v1959, 64
  %v1966 = vpop.permute.xlu0 %1965
  %1967 = vrot.lane.b32.xlu0 %v1960, 64
  %v1968 = vpop.permute.xlu0 %1967
  %1969 = vrot.lane.b32.xlu0 %v1961, 64
  %v1970 = vpop.permute.xlu0 %1969
  %v1971 = vsel %vm639, %v1966, %v1968
  %v1972 = vsel %vm639, %v1968, %v1970
  %v1976 = vadd.f32 %v1940, %v1971
  %v1977 = vadd.f32 %v1941, %v1972
  %v1978 = vadd.f32 %v1942, %v1970
  %v1979 = vmax.f32 %v1976, 0.0
  %v1980 = vmax.f32 %v1977, 0.0
  %v1981 = vmax.f32 %v1978, 0.0
  %v1982 = vmul.f32 %v1801, %v1717
  %v1983 = vmul.f32 %v1802, %v1718
  %v1984 = vmul.f32 %v1803, %v1719
  %v1985 = vadd.f32 %v789, %v1982
  %v1986 = vadd.f32 %v790, %v1983
  %v1987 = vadd.f32 %v791, %v1984
  %v1988 = vmul.f32 %v1801, %v1735
  %v1989 = vmul.f32 %v1802, %v1740
  %v1990 = vmul.f32 %v1803, %v1741
  %1994 = vrot.lane.b32.xlu0 %v1988, 96
  %v1995 = vpop.permute.xlu0 %1994
  %1996 = vrot.lane.b32.xlu0 %v1989, 96
  %v1997 = vpop.permute.xlu0 %1996
  %1998 = vrot.lane.b32.xlu0 %v1990, 96
  %v1999 = vpop.permute.xlu0 %1998
  %v2000 = vsel %vm652, %v1995, %v1997
  %v2001 = vsel %vm652, %v1997, %v1999
  %v2005 = vadd.f32 %v1985, %v2000
  %v2006 = vadd.f32 %v1986, %v2001
  %v2007 = vadd.f32 %v1987, %v1999
  %v2008 = vmul.f32 %v1801, %v1771
  %v2009 = vmul.f32 %v1802, %v1776
  %v2010 = vmul.f32 %v1803, %v1777
  %2014 = vrot.lane.b32.xlu0 %v2008, 64
  %v2015 = vpop.permute.xlu0 %2014
  %2016 = vrot.lane.b32.xlu0 %v2009, 64
  %v2017 = vpop.permute.xlu0 %2016
  %2018 = vrot.lane.b32.xlu0 %v2010, 64
  %v2019 = vpop.permute.xlu0 %2018
  %v2020 = vsel %vm639, %v2015, %v2017
  %v2021 = vsel %vm639, %v2017, %v2019
  %v2025 = vadd.f32 %v2005, %v2020
  %v2026 = vadd.f32 %v2006, %v2021
  %v2027 = vadd.f32 %v2007, %v2019
  %v2028 = vmul.f32 %v1890, %v1806
  %v2029 = vmul.f32 %v1891, %v1807
  %v2030 = vmul.f32 %v1892, %v1808
  %v2031 = vadd.f32 %v2025, %v2028
  %v2032 = vadd.f32 %v2026, %v2029
  %v2033 = vadd.f32 %v2027, %v2030
  %v2034 = vmul.f32 %v1890, %v1824
  %v2035 = vmul.f32 %v1891, %v1829
  %v2036 = vmul.f32 %v1892, %v1830
  %2040 = vrot.lane.b32.xlu0 %v2034, 96
  %v2041 = vpop.permute.xlu0 %2040
  %2042 = vrot.lane.b32.xlu0 %v2035, 96
  %v2043 = vpop.permute.xlu0 %2042
  %2044 = vrot.lane.b32.xlu0 %v2036, 96
  %v2045 = vpop.permute.xlu0 %2044
  %v2046 = vsel %vm652, %v2041, %v2043
  %v2047 = vsel %vm652, %v2043, %v2045
  %v2051 = vadd.f32 %v2031, %v2046
  %v2052 = vadd.f32 %v2032, %v2047
  %v2053 = vadd.f32 %v2033, %v2045
  %v2054 = vmul.f32 %v1890, %v1860
  %v2055 = vmul.f32 %v1891, %v1865
  %v2056 = vmul.f32 %v1892, %v1866
  %2060 = vrot.lane.b32.xlu0 %v2054, 64
  %v2061 = vpop.permute.xlu0 %2060
  %2062 = vrot.lane.b32.xlu0 %v2055, 64
  %v2063 = vpop.permute.xlu0 %2062
  %2064 = vrot.lane.b32.xlu0 %v2056, 64
  %v2065 = vpop.permute.xlu0 %2064
  %v2066 = vsel %vm639, %v2061, %v2063
  %v2067 = vsel %vm639, %v2063, %v2065
  %v2071 = vadd.f32 %v2051, %v2066
  %v2072 = vadd.f32 %v2052, %v2067
  %v2073 = vadd.f32 %v2053, %v2065
  %v2074 = vld [vmem:[#allocation2 + $0xa8] sm:$0xff]
  %v2075 = vld [vmem:[#allocation2 + $0xb0] sm:$0xff]
  %v2076 = vld [vmem:[#allocation2 + $0xb8] sm:$0xff]
  %v2077 = vmul.f32 %v2074, %v1895
  %v2078 = vmul.f32 %v2075, %v1896
  %v2079 = vmul.f32 %v2076, %v1897
  %v2080 = vadd.f32 %v2071, %v2077
  %v2081 = vadd.f32 %v2072, %v2078
  %v2082 = vadd.f32 %v2073, %v2079
  %v2083 = vmul.f32 %v2074, %v1913
  %v2084 = vmul.f32 %v2075, %v1918
  %v2085 = vmul.f32 %v2076, %v1919
  %2089 = vrot.lane.b32.xlu0 %v2083, 96
  %v2090 = vpop.permute.xlu0 %2089
  %2091 = vrot.lane.b32.xlu0 %v2084, 96
  %v2092 = vpop.permute.xlu0 %2091
  %2093 = vrot.lane.b32.xlu0 %v2085, 96
  %v2094 = vpop.permute.xlu0 %2093
  %v2095 = vsel %vm652, %v2090, %v2092
  %v2096 = vsel %vm652, %v2092, %v2094
  %v2100 = vadd.f32 %v2080, %v2095
  %v2101 = vadd.f32 %v2081, %v2096
  %v2102 = vadd.f32 %v2082, %v2094
  %v2103 = vmul.f32 %v2074, %v1949
  %v2104 = vmul.f32 %v2075, %v1954
  %v2105 = vmul.f32 %v2076, %v1955
  %2109 = vrot.lane.b32.xlu0 %v2103, 64
  %v2110 = vpop.permute.xlu0 %2109
  %2111 = vrot.lane.b32.xlu0 %v2104, 64
  %v2112 = vpop.permute.xlu0 %2111
  %2113 = vrot.lane.b32.xlu0 %v2105, 64
  %v2114 = vpop.permute.xlu0 %2113
  %v2115 = vsel %vm639, %v2110, %v2112
  %v2116 = vsel %vm639, %v2112, %v2114
  %v2120 = vadd.f32 %v2100, %v2115
  %v2121 = vadd.f32 %v2101, %v2116
  %v2122 = vadd.f32 %v2102, %v2114
  %v2123 = vmax.f32 %v2120, 0.0
  %v2124 = vmax.f32 %v2121, 0.0
  %v2125 = vmax.f32 %v2122, 0.0
  %v2126 = vmax.f32 %v1979, %v2123
  %v2127 = vmax.f32 %v1980, %v2124
  %v2128 = vmax.f32 %v1981, %v2125
  %2130 = vrot.lane.b32.xlu0 %v2126, 96
  %v2131 = vpop.permute.xlu0 %2130
  %2134 = vrot.lane.b32.xlu0 %v2127, 64
  %v2135 = vpop.permute.xlu0 %2134
  %2137 = vrot.lane.b32.xlu0 %v2127, 32
  %v2138 = vpop.permute.xlu0 %2137
  %v2140 = vsel %vm626, %v2126, %v2131
  %v2141 = vsel %vm639, %v2140, %v2135
  %v2142 = vsel %vm652, %v2141, %v2138
  %2143 = vrot.lane.b32.xlu0 %v2126, 64
  %v2144 = vpop.permute.xlu0 %2143
  %2147 = vrot.lane.b32.xlu0 %v2128, 96
  %v2148 = vpop.permute.xlu0 %2147
  %v2150 = vsel %vm626, %v2131, %v2144
  %v2151 = vsel %vm639, %v2150, %v2138
  %v2152 = vsel %vm652, %v2151, %v2127
  %v2153 = vmax.f32 %v2142, %v2152
  %v2154 = vmax.f32 %v2128, %v2148
  %2157 = vrot.lane.b32.xlu0 %v2153, 32
  %v2158 = vpop.permute.xlu0 %2157
  %2159 = vrot.lane.b32.xlu0 %v2154, 32
  %v2160 = vpop.permute.xlu0 %2159
  %v2161 = vsel %vm626, %v2158, %v2160
  %2164 = vst.msk [vmem:[#allocation3 + $0x30] sm:$0xff] %vm1255, %v2158
  %2165 = vst.msk [vmem:[#allocation3 + $0x38] sm:$0xff] %vm639, %v2161
  %v2166 = vld [vmem:[#allocation2 + $0x90] sm:$0xff]
  %v2167 = vld [vmem:[#allocation2 + $0x98] sm:$0xff]
  %v2168 = vld [vmem:[#allocation2 + $0xa0] sm:$0xff]
  %v2169 = vld [vmem:[%s1] ss:$8 sm:$0x7]
  %v2171 = vperm.slane %v2169, 0
  %v2172 = vperm.slane %v2169, 1
  %v2173 = vperm.slane %v2169, 2
  %v2177 = vmul.f32 %v2166, %v2171
  %v2178 = vmul.f32 %v2167, %v2172
  %v2179 = vmul.f32 %v2168, %v2173
  %v2180 = vadd.f32 %v789, %v2177
  %v2181 = vadd.f32 %v790, %v2178
  %v2182 = vadd.f32 %v791, %v2179
  %v2183 = vld [vmem:[%s812] ss:$8 sm:$0x7]
  %v2185 = vperm.slane %v2183, 0
  %v2186 = vperm.slane %v2183, 1
  %v2187 = vperm.slane %v2183, 2
  %2188 = vrot.lane.b32.xlu0 %v2185, 32
  %v2189 = vpop.permute.xlu0 %2188
  %2190 = vrot.lane.b32.xlu0 %v2186, 32
  %v2191 = vpop.permute.xlu0 %2190
  %2192 = vrot.lane.b32.xlu0 %v2187, 32
  %v2193 = vpop.permute.xlu0 %2192
  %v2194 = vsel %vm626, %v2189, %v2191
  %v2195 = vsel %vm626, %v2191, %v2193
  %v2199 = vmul.f32 %v2166, %v2189
  %v2200 = vmul.f32 %v2167, %v2194
  %v2201 = vmul.f32 %v2168, %v2195
  %2205 = vrot.lane.b32.xlu0 %v2199, 96
  %v2206 = vpop.permute.xlu0 %2205
  %2207 = vrot.lane.b32.xlu0 %v2200, 96
  %v2208 = vpop.permute.xlu0 %2207
  %2209 = vrot.lane.b32.xlu0 %v2201, 96
  %v2210 = vpop.permute.xlu0 %2209
  %v2211 = vsel %vm652, %v2206, %v2208
  %v2212 = vsel %vm652, %v2208, %v2210
  %v2216 = vadd.f32 %v2180, %v2211
  %v2217 = vadd.f32 %v2181, %v2212
  %v2218 = vadd.f32 %v2182, %v2210
  %v2219 = vld [vmem:[%s849] ss:$8 sm:$0x7]
  %v2221 = vperm.slane %v2219, 0
  %v2222 = vperm.slane %v2219, 1
  %v2223 = vperm.slane %v2219, 2
  %2224 = vrot.lane.b32.xlu0 %v2221, 64
  %v2225 = vpop.permute.xlu0 %2224
  %2226 = vrot.lane.b32.xlu0 %v2222, 64
  %v2227 = vpop.permute.xlu0 %2226
  %2228 = vrot.lane.b32.xlu0 %v2223, 64
  %v2229 = vpop.permute.xlu0 %2228
  %v2230 = vsel %vm639, %v2225, %v2227
  %v2231 = vsel %vm639, %v2227, %v2229
  %v2235 = vmul.f32 %v2166, %v2225
  %v2236 = vmul.f32 %v2167, %v2230
  %v2237 = vmul.f32 %v2168, %v2231
  %2241 = vrot.lane.b32.xlu0 %v2235, 64
  %v2242 = vpop.permute.xlu0 %2241
  %2243 = vrot.lane.b32.xlu0 %v2236, 64
  %v2244 = vpop.permute.xlu0 %2243
  %2245 = vrot.lane.b32.xlu0 %v2237, 64
  %v2246 = vpop.permute.xlu0 %2245
  %v2247 = vsel %vm639, %v2242, %v2244
  %v2248 = vsel %vm639, %v2244, %v2246
  %v2252 = vadd.f32 %v2216, %v2247
  %v2253 = vadd.f32 %v2217, %v2248
  %v2254 = vadd.f32 %v2218, %v2246
  %v2255 = vld [vmem:[#allocation2 + $0xa8] sm:$0xff]
  %v2256 = vld [vmem:[#allocation2 + $0xb0] sm:$0xff]
  %v2257 = vld [vmem:[#allocation2 + $0xb8] sm:$0xff]
  %v2258 = vld [vmem:[%s889] ss:$8 sm:$0x7]
  %v2260 = vperm.slane %v2258, 0
  %v2261 = vperm.slane %v2258, 1
  %v2262 = vperm.slane %v2258, 2
  %v2266 = vmul.f32 %v2255, %v2260
  %v2267 = vmul.f32 %v2256, %v2261
  %v2268 = vmul.f32 %v2257, %v2262
  %v2269 = vadd.f32 %v2252, %v2266
  %v2270 = vadd.f32 %v2253, %v2267
  %v2271 = vadd.f32 %v2254, %v2268
  %v2272 = vld [vmem:[%s904] ss:$8 sm:$0x7]
  %v2274 = vperm.slane %v2272, 0
  %v2275 = vperm.slane %v2272, 1
  %v2276 = vperm.slane %v2272, 2
  %2277 = vrot.lane.b32.xlu0 %v2274, 32
  %v2278 = vpop.permute.xlu0 %2277
  %2279 = vrot.lane.b32.xlu0 %v2275, 32
  %v2280 = vpop.permute.xlu0 %2279
  %2281 = vrot.lane.b32.xlu0 %v2276, 32
  %v2282 = vpop.permute.xlu0 %2281
  %v2283 = vsel %vm626, %v2278, %v2280
  %v2284 = vsel %vm626, %v2280, %v2282
  %v2288 = vmul.f32 %v2255, %v2278
  %v2289 = vmul.f32 %v2256, %v2283
  %v2290 = vmul.f32 %v2257, %v2284
  %2294 = vrot.lane.b32.xlu0 %v2288, 96
  %v2295 = vpop.permute.xlu0 %2294
  %2296 = vrot.lane.b32.xlu0 %v2289, 96
  %v2297 = vpop.permute.xlu0 %2296
  %2298 = vrot.lane.b32.xlu0 %v2290, 96
  %v2299 = vpop.permute.xlu0 %2298
  %v2300 = vsel %vm652, %v2295, %v2297
  %v2301 = vsel %vm652, %v2297, %v2299
  %v2305 = vadd.f32 %v2269, %v2300
  %v2306 = vadd.f32 %v2270, %v2301
  %v2307 = vadd.f32 %v2271, %v2299
  %v2308 = vld [vmem:[%s941] ss:$8 sm:$0x7]
  %v2310 = vperm.slane %v2308, 0
  %v2311 = vperm.slane %v2308, 1
  %v2312 = vperm.slane %v2308, 2
  %2313 = vrot.lane.b32.xlu0 %v2310, 64
  %v2314 = vpop.permute.xlu0 %2313
  %2315 = vrot.lane.b32.xlu0 %v2311, 64
  %v2316 = vpop.permute.xlu0 %2315
  %2317 = vrot.lane.b32.xlu0 %v2312, 64
  %v2318 = vpop.permute.xlu0 %2317
  %v2319 = vsel %vm639, %v2314, %v2316
  %v2320 = vsel %vm639, %v2316, %v2318
  %v2324 = vmul.f32 %v2255, %v2314
  %v2325 = vmul.f32 %v2256, %v2319
  %v2326 = vmul.f32 %v2257, %v2320
  %2330 = vrot.lane.b32.xlu0 %v2324, 64
  %v2331 = vpop.permute.xlu0 %2330
  %2332 = vrot.lane.b32.xlu0 %v2325, 64
  %v2333 = vpop.permute.xlu0 %2332
  %2334 = vrot.lane.b32.xlu0 %v2326, 64
  %v2335 = vpop.permute.xlu0 %2334
  %v2336 = vsel %vm639, %v2331, %v2333
  %v2337 = vsel %vm639, %v2333, %v2335
  %v2341 = vadd.f32 %v2305, %v2336
  %v2342 = vadd.f32 %v2306, %v2337
  %v2343 = vadd.f32 %v2307, %v2335
  %v2344 = vld [vmem:[#allocation2 + $0xc0] sm:$0xff]
  %v2345 = vld [vmem:[#allocation2 + $0xc8] sm:$0xff]
  %v2346 = vld [vmem:[#allocation2 + $0xd0] sm:$0xff]
  %v2347 = vld [vmem:[%s981] ss:$8 sm:$0x7]
  %v2349 = vperm.slane %v2347, 0
  %v2350 = vperm.slane %v2347, 1
  %v2351 = vperm.slane %v2347, 2
  %v2355 = vmul.f32 %v2344, %v2349
  %v2356 = vmul.f32 %v2345, %v2350
  %v2357 = vmul.f32 %v2346, %v2351
  %v2358 = vadd.f32 %v2341, %v2355
  %v2359 = vadd.f32 %v2342, %v2356
  %v2360 = vadd.f32 %v2343, %v2357
  %v2361 = vld [vmem:[%s996] ss:$8 sm:$0x7]
  %v2363 = vperm.slane %v2361, 0
  %v2364 = vperm.slane %v2361, 1
  %v2365 = vperm.slane %v2361, 2
  %2366 = vrot.lane.b32.xlu0 %v2363, 32
  %v2367 = vpop.permute.xlu0 %2366
  %2368 = vrot.lane.b32.xlu0 %v2364, 32
  %v2369 = vpop.permute.xlu0 %2368
  %2370 = vrot.lane.b32.xlu0 %v2365, 32
  %v2371 = vpop.permute.xlu0 %2370
  %v2372 = vsel %vm626, %v2367, %v2369
  %v2373 = vsel %vm626, %v2369, %v2371
  %v2377 = vmul.f32 %v2344, %v2367
  %v2378 = vmul.f32 %v2345, %v2372
  %v2379 = vmul.f32 %v2346, %v2373
  %2383 = vrot.lane.b32.xlu0 %v2377, 96
  %v2384 = vpop.permute.xlu0 %2383
  %2385 = vrot.lane.b32.xlu0 %v2378, 96
  %v2386 = vpop.permute.xlu0 %2385
  %2387 = vrot.lane.b32.xlu0 %v2379, 96
  %v2388 = vpop.permute.xlu0 %2387
  %v2389 = vsel %vm652, %v2384, %v2386
  %v2390 = vsel %vm652, %v2386, %v2388
  %v2394 = vadd.f32 %v2358, %v2389
  %v2395 = vadd.f32 %v2359, %v2390
  %v2396 = vadd.f32 %v2360, %v2388
  %v2397 = vld [vmem:[%s1033] ss:$8 sm:$0x7]
  %v2399 = vperm.slane %v2397, 0
  %v2400 = vperm.slane %v2397, 1
  %v2401 = vperm.slane %v2397, 2
  %2402 = vrot.lane.b32.xlu0 %v2399, 64
  %v2403 = vpop.permute.xlu0 %2402
  %2404 = vrot.lane.b32.xlu0 %v2400, 64
  %v2405 = vpop.permute.xlu0 %2404
  %2406 = vrot.lane.b32.xlu0 %v2401, 64
  %v2407 = vpop.permute.xlu0 %2406
  %v2408 = vsel %vm639, %v2403, %v2405
  %v2409 = vsel %vm639, %v2405, %v2407
  %v2413 = vmul.f32 %v2344, %v2403
  %v2414 = vmul.f32 %v2345, %v2408
  %v2415 = vmul.f32 %v2346, %v2409
  %2419 = vrot.lane.b32.xlu0 %v2413, 64
  %v2420 = vpop.permute.xlu0 %2419
  %2421 = vrot.lane.b32.xlu0 %v2414, 64
  %v2422 = vpop.permute.xlu0 %2421
  %2423 = vrot.lane.b32.xlu0 %v2415, 64
  %v2424 = vpop.permute.xlu0 %2423
  %v2425 = vsel %vm639, %v2420, %v2422
  %v2426 = vsel %vm639, %v2422, %v2424
  %v2430 = vadd.f32 %v2394, %v2425
  %v2431 = vadd.f32 %v2395, %v2426
  %v2432 = vadd.f32 %v2396, %v2424
  %v2433 = vmax.f32 %v2430, 0.0
  %v2434 = vmax.f32 %v2431, 0.0
  %v2435 = vmax.f32 %v2432, 0.0
  %v2436 = vmul.f32 %v2255, %v2171
  %v2437 = vmul.f32 %v2256, %v2172
  %v2438 = vmul.f32 %v2257, %v2173
  %v2439 = vadd.f32 %v789, %v2436
  %v2440 = vadd.f32 %v790, %v2437
  %v2441 = vadd.f32 %v791, %v2438
  %v2442 = vmul.f32 %v2255, %v2189
  %v2443 = vmul.f32 %v2256, %v2194
  %v2444 = vmul.f32 %v2257, %v2195
  %2448 = vrot.lane.b32.xlu0 %v2442, 96
  %v2449 = vpop.permute.xlu0 %2448
  %2450 = vrot.lane.b32.xlu0 %v2443, 96
  %v2451 = vpop.permute.xlu0 %2450
  %2452 = vrot.lane.b32.xlu0 %v2444, 96
  %v2453 = vpop.permute.xlu0 %2452
  %v2454 = vsel %vm652, %v2449, %v2451
  %v2455 = vsel %vm652, %v2451, %v2453
  %v2459 = vadd.f32 %v2439, %v2454
  %v2460 = vadd.f32 %v2440, %v2455
  %v2461 = vadd.f32 %v2441, %v2453
  %v2462 = vmul.f32 %v2255, %v2225
  %v2463 = vmul.f32 %v2256, %v2230
  %v2464 = vmul.f32 %v2257, %v2231
  %2468 = vrot.lane.b32.xlu0 %v2462, 64
  %v2469 = vpop.permute.xlu0 %2468
  %2470 = vrot.lane.b32.xlu0 %v2463, 64
  %v2471 = vpop.permute.xlu0 %2470
  %2472 = vrot.lane.b32.xlu0 %v2464, 64
  %v2473 = vpop.permute.xlu0 %2472
  %v2474 = vsel %vm639, %v2469, %v2471
  %v2475 = vsel %vm639, %v2471, %v2473
  %v2479 = vadd.f32 %v2459, %v2474
  %v2480 = vadd.f32 %v2460, %v2475
  %v2481 = vadd.f32 %v2461, %v2473
  %v2482 = vmul.f32 %v2344, %v2260
  %v2483 = vmul.f32 %v2345, %v2261
  %v2484 = vmul.f32 %v2346, %v2262
  %v2485 = vadd.f32 %v2479, %v2482
  %v2486 = vadd.f32 %v2480, %v2483
  %v2487 = vadd.f32 %v2481, %v2484
  %v2488 = vmul.f32 %v2344, %v2278
  %v2489 = vmul.f32 %v2345, %v2283
  %v2490 = vmul.f32 %v2346, %v2284
  %2494 = vrot.lane.b32.xlu0 %v2488, 96
  %v2495 = vpop.permute.xlu0 %2494
  %2496 = vrot.lane.b32.xlu0 %v2489, 96
  %v2497 = vpop.permute.xlu0 %2496
  %2498 = vrot.lane.b32.xlu0 %v2490, 96
  %v2499 = vpop.permute.xlu0 %2498
  %v2500 = vsel %vm652, %v2495, %v2497
  %v2501 = vsel %vm652, %v2497, %v2499
  %v2505 = vadd.f32 %v2485, %v2500
  %v2506 = vadd.f32 %v2486, %v2501
  %v2507 = vadd.f32 %v2487, %v2499
  %v2508 = vmul.f32 %v2344, %v2314
  %v2509 = vmul.f32 %v2345, %v2319
  %v2510 = vmul.f32 %v2346, %v2320
  %2514 = vrot.lane.b32.xlu0 %v2508, 64
  %v2515 = vpop.permute.xlu0 %2514
  %2516 = vrot.lane.b32.xlu0 %v2509, 64
  %v2517 = vpop.permute.xlu0 %2516
  %2518 = vrot.lane.b32.xlu0 %v2510, 64
  %v2519 = vpop.permute.xlu0 %2518
  %v2520 = vsel %vm639, %v2515, %v2517
  %v2521 = vsel %vm639, %v2517, %v2519
  %v2525 = vadd.f32 %v2505, %v2520
  %v2526 = vadd.f32 %v2506, %v2521
  %v2527 = vadd.f32 %v2507, %v2519
  %v2528 = vld [vmem:[#allocation2 + $0xd8] sm:$0xff]
  %v2529 = vld [vmem:[#allocation2 + $0xe0] sm:$0xff]
  %v2530 = vld [vmem:[#allocation2 + $0xe8] sm:$0xff]
  %v2531 = vmul.f32 %v2528, %v2349
  %v2532 = vmul.f32 %v2529, %v2350
  %v2533 = vmul.f32 %v2530, %v2351
  %v2534 = vadd.f32 %v2525, %v2531
  %v2535 = vadd.f32 %v2526, %v2532
  %v2536 = vadd.f32 %v2527, %v2533
  %v2537 = vmul.f32 %v2528, %v2367
  %v2538 = vmul.f32 %v2529, %v2372
  %v2539 = vmul.f32 %v2530, %v2373
  %2543 = vrot.lane.b32.xlu0 %v2537, 96
  %v2544 = vpop.permute.xlu0 %2543
  %2545 = vrot.lane.b32.xlu0 %v2538, 96
  %v2546 = vpop.permute.xlu0 %2545
  %2547 = vrot.lane.b32.xlu0 %v2539, 96
  %v2548 = vpop.permute.xlu0 %2547
  %v2549 = vsel %vm652, %v2544, %v2546
  %v2550 = vsel %vm652, %v2546, %v2548
  %v2554 = vadd.f32 %v2534, %v2549
  %v2555 = vadd.f32 %v2535, %v2550
  %v2556 = vadd.f32 %v2536, %v2548
  %v2557 = vmul.f32 %v2528, %v2403
  %v2558 = vmul.f32 %v2529, %v2408
  %v2559 = vmul.f32 %v2530, %v2409
  %2563 = vrot.lane.b32.xlu0 %v2557, 64
  %v2564 = vpop.permute.xlu0 %2563
  %2565 = vrot.lane.b32.xlu0 %v2558, 64
  %v2566 = vpop.permute.xlu0 %2565
  %2567 = vrot.lane.b32.xlu0 %v2559, 64
  %v2568 = vpop.permute.xlu0 %2567
  %v2569 = vsel %vm639, %v2564, %v2566
  %v2570 = vsel %vm639, %v2566, %v2568
  %v2574 = vadd.f32 %v2554, %v2569
  %v2575 = vadd.f32 %v2555, %v2570
  %v2576 = vadd.f32 %v2556, %v2568
  %v2577 = vmax.f32 %v2574, 0.0
  %v2578 = vmax.f32 %v2575, 0.0
  %v2579 = vmax.f32 %v2576, 0.0
  %v2580 = vmax.f32 %v2433, %v2577
  %v2581 = vmax.f32 %v2434, %v2578
  %v2582 = vmax.f32 %v2435, %v2579
  %2584 = vrot.lane.b32.xlu0 %v2580, 96
  %v2585 = vpop.permute.xlu0 %2584
  %2588 = vrot.lane.b32.xlu0 %v2581, 64
  %v2589 = vpop.permute.xlu0 %2588
  %2591 = vrot.lane.b32.xlu0 %v2581, 32
  %v2592 = vpop.permute.xlu0 %2591
  %v2594 = vsel %vm626, %v2580, %v2585
  %v2595 = vsel %vm639, %v2594, %v2589
  %v2596 = vsel %vm652, %v2595, %v2592
  %2597 = vrot.lane.b32.xlu0 %v2580, 64
  %v2598 = vpop.permute.xlu0 %2597
  %2601 = vrot.lane.b32.xlu0 %v2582, 96
  %v2602 = vpop.permute.xlu0 %2601
  %v2604 = vsel %vm626, %v2585, %v2598
  %v2605 = vsel %vm639, %v2604, %v2592
  %v2606 = vsel %vm652, %v2605, %v2581
  %v2607 = vmax.f32 %v2596, %v2606
  %v2608 = vmax.f32 %v2582, %v2602
  %2611 = vrot.lane.b32.xlu0 %v2607, 32
  %v2612 = vpop.permute.xlu0 %2611
  %2613 = vrot.lane.b32.xlu0 %v2608, 32
  %v2614 = vpop.permute.xlu0 %2613
  %v2615 = vsel %vm626, %v2612, %v2614
  %2618 = vst.msk [vmem:[#allocation3 + $0x40] sm:$0xff] %vm1255, %v2612
  %2619 = vst.msk [vmem:[#allocation3 + $0x48] sm:$0xff] %vm639, %v2615
  %v2620 = vld [vmem:[#allocation2 + $0xc0] sm:$0xff]
  %v2621 = vld [vmem:[#allocation2 + $0xc8] sm:$0xff]
  %v2622 = vld [vmem:[#allocation2 + $0xd0] sm:$0xff]
  %v2623 = vld [vmem:[%s1] ss:$8 sm:$0x7]
  %v2625 = vperm.slane %v2623, 0
  %v2626 = vperm.slane %v2623, 1
  %v2627 = vperm.slane %v2623, 2
  %v2631 = vmul.f32 %v2620, %v2625
  %v2632 = vmul.f32 %v2621, %v2626
  %v2633 = vmul.f32 %v2622, %v2627
  %v2634 = vadd.f32 %v789, %v2631
  %v2635 = vadd.f32 %v790, %v2632
  %v2636 = vadd.f32 %v791, %v2633
  %v2637 = vld [vmem:[%s812] ss:$8 sm:$0x7]
  %v2639 = vperm.slane %v2637, 0
  %v2640 = vperm.slane %v2637, 1
  %v2641 = vperm.slane %v2637, 2
  %2642 = vrot.lane.b32.xlu0 %v2639, 32
  %v2643 = vpop.permute.xlu0 %2642
  %2644 = vrot.lane.b32.xlu0 %v2640, 32
  %v2645 = vpop.permute.xlu0 %2644
  %2646 = vrot.lane.b32.xlu0 %v2641, 32
  %v2647 = vpop.permute.xlu0 %2646
  %v2648 = vsel %vm626, %v2643, %v2645
  %v2649 = vsel %vm626, %v2645, %v2647
  %v2653 = vmul.f32 %v2620, %v2643
  %v2654 = vmul.f32 %v2621, %v2648
  %v2655 = vmul.f32 %v2622, %v2649
  %2659 = vrot.lane.b32.xlu0 %v2653, 96
  %v2660 = vpop.permute.xlu0 %2659
  %2661 = vrot.lane.b32.xlu0 %v2654, 96
  %v2662 = vpop.permute.xlu0 %2661
  %2663 = vrot.lane.b32.xlu0 %v2655, 96
  %v2664 = vpop.permute.xlu0 %2663
  %v2665 = vsel %vm652, %v2660, %v2662
  %v2666 = vsel %vm652, %v2662, %v2664
  %v2670 = vadd.f32 %v2634, %v2665
  %v2671 = vadd.f32 %v2635, %v2666
  %v2672 = vadd.f32 %v2636, %v2664
  %v2673 = vld [vmem:[%s849] ss:$8 sm:$0x7]
  %v2675 = vperm.slane %v2673, 0
  %v2676 = vperm.slane %v2673, 1
  %v2677 = vperm.slane %v2673, 2
  %2678 = vrot.lane.b32.xlu0 %v2675, 64
  %v2679 = vpop.permute.xlu0 %2678
  %2680 = vrot.lane.b32.xlu0 %v2676, 64
  %v2681 = vpop.permute.xlu0 %2680
  %2682 = vrot.lane.b32.xlu0 %v2677, 64
  %v2683 = vpop.permute.xlu0 %2682
  %v2684 = vsel %vm639, %v2679, %v2681
  %v2685 = vsel %vm639, %v2681, %v2683
  %v2689 = vmul.f32 %v2620, %v2679
  %v2690 = vmul.f32 %v2621, %v2684
  %v2691 = vmul.f32 %v2622, %v2685
  %2695 = vrot.lane.b32.xlu0 %v2689, 64
  %v2696 = vpop.permute.xlu0 %2695
  %2697 = vrot.lane.b32.xlu0 %v2690, 64
  %v2698 = vpop.permute.xlu0 %2697
  %2699 = vrot.lane.b32.xlu0 %v2691, 64
  %v2700 = vpop.permute.xlu0 %2699
  %v2701 = vsel %vm639, %v2696, %v2698
  %v2702 = vsel %vm639, %v2698, %v2700
  %v2706 = vadd.f32 %v2670, %v2701
  %v2707 = vadd.f32 %v2671, %v2702
  %v2708 = vadd.f32 %v2672, %v2700
  %v2709 = vld [vmem:[#allocation2 + $0xd8] sm:$0xff]
  %v2710 = vld [vmem:[#allocation2 + $0xe0] sm:$0xff]
  %v2711 = vld [vmem:[#allocation2 + $0xe8] sm:$0xff]
  %v2712 = vld [vmem:[%s889] ss:$8 sm:$0x7]
  %v2714 = vperm.slane %v2712, 0
  %v2715 = vperm.slane %v2712, 1
  %v2716 = vperm.slane %v2712, 2
  %v2720 = vmul.f32 %v2709, %v2714
  %v2721 = vmul.f32 %v2710, %v2715
  %v2722 = vmul.f32 %v2711, %v2716
  %v2723 = vadd.f32 %v2706, %v2720
  %v2724 = vadd.f32 %v2707, %v2721
  %v2725 = vadd.f32 %v2708, %v2722
  %v2726 = vld [vmem:[%s904] ss:$8 sm:$0x7]
  %v2728 = vperm.slane %v2726, 0
  %v2729 = vperm.slane %v2726, 1
  %v2730 = vperm.slane %v2726, 2
  %2731 = vrot.lane.b32.xlu0 %v2728, 32
  %v2732 = vpop.permute.xlu0 %2731
  %2733 = vrot.lane.b32.xlu0 %v2729, 32
  %v2734 = vpop.permute.xlu0 %2733
  %2735 = vrot.lane.b32.xlu0 %v2730, 32
  %v2736 = vpop.permute.xlu0 %2735
  %v2737 = vsel %vm626, %v2732, %v2734
  %v2738 = vsel %vm626, %v2734, %v2736
  %v2742 = vmul.f32 %v2709, %v2732
  %v2743 = vmul.f32 %v2710, %v2737
  %v2744 = vmul.f32 %v2711, %v2738
  %2748 = vrot.lane.b32.xlu0 %v2742, 96
  %v2749 = vpop.permute.xlu0 %2748
  %2750 = vrot.lane.b32.xlu0 %v2743, 96
  %v2751 = vpop.permute.xlu0 %2750
  %2752 = vrot.lane.b32.xlu0 %v2744, 96
  %v2753 = vpop.permute.xlu0 %2752
  %v2754 = vsel %vm652, %v2749, %v2751
  %v2755 = vsel %vm652, %v2751, %v2753
  %v2759 = vadd.f32 %v2723, %v2754
  %v2760 = vadd.f32 %v2724, %v2755
  %v2761 = vadd.f32 %v2725, %v2753
  %v2762 = vld [vmem:[%s941] ss:$8 sm:$0x7]
  %v2764 = vperm.slane %v2762, 0
  %v2765 = vperm.slane %v2762, 1
  %v2766 = vperm.slane %v2762, 2
  %2767 = vrot.lane.b32.xlu0 %v2764, 64
  %v2768 = vpop.permute.xlu0 %2767
  %2769 = vrot.lane.b32.xlu0 %v2765, 64
  %v2770 = vpop.permute.xlu0 %2769
  %2771 = vrot.lane.b32.xlu0 %v2766, 64
  %v2772 = vpop.permute.xlu0 %2771
  %v2773 = vsel %vm639, %v2768, %v2770
  %v2774 = vsel %vm639, %v2770, %v2772
  %v2778 = vmul.f32 %v2709, %v2768
  %v2779 = vmul.f32 %v2710, %v2773
  %v2780 = vmul.f32 %v2711, %v2774
  %2784 = vrot.lane.b32.xlu0 %v2778, 64
  %v2785 = vpop.permute.xlu0 %2784
  %2786 = vrot.lane.b32.xlu0 %v2779, 64
  %v2787 = vpop.permute.xlu0 %2786
  %2788 = vrot.lane.b32.xlu0 %v2780, 64
  %v2789 = vpop.permute.xlu0 %2788
  %v2790 = vsel %vm639, %v2785, %v2787
  %v2791 = vsel %vm639, %v2787, %v2789
  %v2795 = vadd.f32 %v2759, %v2790
  %v2796 = vadd.f32 %v2760, %v2791
  %v2797 = vadd.f32 %v2761, %v2789
  %v2798 = vld [vmem:[#allocation2 + $0xf0] sm:$0xff]
  %v2799 = vld [vmem:[#allocation2 + $0xf8] sm:$0xff]
  %v2800 = vld [vmem:[#allocation2 + $0x100] sm:$0xff]
  %v2801 = vld [vmem:[%s981] ss:$8 sm:$0x7]
  %v2803 = vperm.slane %v2801, 0
  %v2804 = vperm.slane %v2801, 1
  %v2805 = vperm.slane %v2801, 2
  %v2809 = vmul.f32 %v2798, %v2803
  %v2810 = vmul.f32 %v2799, %v2804
  %v2811 = vmul.f32 %v2800, %v2805
  %v2812 = vadd.f32 %v2795, %v2809
  %v2813 = vadd.f32 %v2796, %v2810
  %v2814 = vadd.f32 %v2797, %v2811
  %v2815 = vld [vmem:[%s996] ss:$8 sm:$0x7]
  %v2817 = vperm.slane %v2815, 0
  %v2818 = vperm.slane %v2815, 1
  %v2819 = vperm.slane %v2815, 2
  %2820 = vrot.lane.b32.xlu0 %v2817, 32
  %v2821 = vpop.permute.xlu0 %2820
  %2822 = vrot.lane.b32.xlu0 %v2818, 32
  %v2823 = vpop.permute.xlu0 %2822
  %2824 = vrot.lane.b32.xlu0 %v2819, 32
  %v2825 = vpop.permute.xlu0 %2824
  %v2826 = vsel %vm626, %v2821, %v2823
  %v2827 = vsel %vm626, %v2823, %v2825
  %v2831 = vmul.f32 %v2798, %v2821
  %v2832 = vmul.f32 %v2799, %v2826
  %v2833 = vmul.f32 %v2800, %v2827
  %2837 = vrot.lane.b32.xlu0 %v2831, 96
  %v2838 = vpop.permute.xlu0 %2837
  %2839 = vrot.lane.b32.xlu0 %v2832, 96
  %v2840 = vpop.permute.xlu0 %2839
  %2841 = vrot.lane.b32.xlu0 %v2833, 96
  %v2842 = vpop.permute.xlu0 %2841
  %v2843 = vsel %vm652, %v2838, %v2840
  %v2844 = vsel %vm652, %v2840, %v2842
  %v2848 = vadd.f32 %v2812, %v2843
  %v2849 = vadd.f32 %v2813, %v2844
  %v2850 = vadd.f32 %v2814, %v2842
  %v2851 = vld [vmem:[%s1033] ss:$8 sm:$0x7]
  %v2853 = vperm.slane %v2851, 0
  %v2854 = vperm.slane %v2851, 1
  %v2855 = vperm.slane %v2851, 2
  %2856 = vrot.lane.b32.xlu0 %v2853, 64
  %v2857 = vpop.permute.xlu0 %2856
  %2858 = vrot.lane.b32.xlu0 %v2854, 64
  %v2859 = vpop.permute.xlu0 %2858
  %2860 = vrot.lane.b32.xlu0 %v2855, 64
  %v2861 = vpop.permute.xlu0 %2860
  %v2862 = vsel %vm639, %v2857, %v2859
  %v2863 = vsel %vm639, %v2859, %v2861
  %v2867 = vmul.f32 %v2798, %v2857
  %v2868 = vmul.f32 %v2799, %v2862
  %v2869 = vmul.f32 %v2800, %v2863
  %2873 = vrot.lane.b32.xlu0 %v2867, 64
  %v2874 = vpop.permute.xlu0 %2873
  %2875 = vrot.lane.b32.xlu0 %v2868, 64
  %v2876 = vpop.permute.xlu0 %2875
  %2877 = vrot.lane.b32.xlu0 %v2869, 64
  %v2878 = vpop.permute.xlu0 %2877
  %v2879 = vsel %vm639, %v2874, %v2876
  %v2880 = vsel %vm639, %v2876, %v2878
  %v2884 = vadd.f32 %v2848, %v2879
  %v2885 = vadd.f32 %v2849, %v2880
  %v2886 = vadd.f32 %v2850, %v2878
  %v2887 = vmax.f32 %v2884, 0.0
  %v2888 = vmax.f32 %v2885, 0.0
  %v2889 = vmax.f32 %v2886, 0.0
  %v2890 = vmul.f32 %v2709, %v2625
  %v2891 = vmul.f32 %v2710, %v2626
  %v2892 = vmul.f32 %v2711, %v2627
  %v2893 = vadd.f32 %v789, %v2890
  %v2894 = vadd.f32 %v790, %v2891
  %v2895 = vadd.f32 %v791, %v2892
  %v2896 = vmul.f32 %v2709, %v2643
  %v2897 = vmul.f32 %v2710, %v2648
  %v2898 = vmul.f32 %v2711, %v2649
  %2902 = vrot.lane.b32.xlu0 %v2896, 96
  %v2903 = vpop.permute.xlu0 %2902
  %2904 = vrot.lane.b32.xlu0 %v2897, 96
  %v2905 = vpop.permute.xlu0 %2904
  %2906 = vrot.lane.b32.xlu0 %v2898, 96
  %v2907 = vpop.permute.xlu0 %2906
  %v2908 = vsel %vm652, %v2903, %v2905
  %v2909 = vsel %vm652, %v2905, %v2907
  %v2913 = vadd.f32 %v2893, %v2908
  %v2914 = vadd.f32 %v2894, %v2909
  %v2915 = vadd.f32 %v2895, %v2907
  %v2916 = vmul.f32 %v2709, %v2679
  %v2917 = vmul.f32 %v2710, %v2684
  %v2918 = vmul.f32 %v2711, %v2685
  %2922 = vrot.lane.b32.xlu0 %v2916, 64
  %v2923 = vpop.permute.xlu0 %2922
  %2924 = vrot.lane.b32.xlu0 %v2917, 64
  %v2925 = vpop.permute.xlu0 %2924
  %2926 = vrot.lane.b32.xlu0 %v2918, 64
  %v2927 = vpop.permute.xlu0 %2926
  %v2928 = vsel %vm639, %v2923, %v2925
  %v2929 = vsel %vm639, %v2925, %v2927
  %v2933 = vadd.f32 %v2913, %v2928
  %v2934 = vadd.f32 %v2914, %v2929
  %v2935 = vadd.f32 %v2915, %v2927
  %v2936 = vmul.f32 %v2798, %v2714
  %v2937 = vmul.f32 %v2799, %v2715
  %v2938 = vmul.f32 %v2800, %v2716
  %v2939 = vadd.f32 %v2933, %v2936
  %v2940 = vadd.f32 %v2934, %v2937
  %v2941 = vadd.f32 %v2935, %v2938
  %v2942 = vmul.f32 %v2798, %v2732
  %v2943 = vmul.f32 %v2799, %v2737
  %v2944 = vmul.f32 %v2800, %v2738
  %2948 = vrot.lane.b32.xlu0 %v2942, 96
  %v2949 = vpop.permute.xlu0 %2948
  %2950 = vrot.lane.b32.xlu0 %v2943, 96
  %v2951 = vpop.permute.xlu0 %2950
  %2952 = vrot.lane.b32.xlu0 %v2944, 96
  %v2953 = vpop.permute.xlu0 %2952
  %v2954 = vsel %vm652, %v2949, %v2951
  %v2955 = vsel %vm652, %v2951, %v2953
  %v2959 = vadd.f32 %v2939, %v2954
  %v2960 = vadd.f32 %v2940, %v2955
  %v2961 = vadd.f32 %v2941, %v2953
  %v2962 = vmul.f32 %v2798, %v2768
  %v2963 = vmul.f32 %v2799, %v2773
  %v2964 = vmul.f32 %v2800, %v2774
  %2968 = vrot.lane.b32.xlu0 %v2962, 64
  %v2969 = vpop.permute.xlu0 %2968
  %2970 = vrot.lane.b32.xlu0 %v2963, 64
  %v2971 = vpop.permute.xlu0 %2970
  %2972 = vrot.lane.b32.xlu0 %v2964, 64
  %v2973 = vpop.permute.xlu0 %2972
  %v2974 = vsel %vm639, %v2969, %v2971
  %v2975 = vsel %vm639, %v2971, %v2973
  %v2979 = vadd.f32 %v2959, %v2974
  %v2980 = vadd.f32 %v2960, %v2975
  %v2981 = vadd.f32 %v2961, %v2973
  %v2982 = vld [vmem:[#allocation2 + $0x108] sm:$0xff]
  %v2983 = vld [vmem:[#allocation2 + $0x110] sm:$0xff]
  %v2984 = vld [vmem:[#allocation2 + $0x118] sm:$0xff]
  %v2985 = vmul.f32 %v2982, %v2803
  %v2986 = vmul.f32 %v2983, %v2804
  %v2987 = vmul.f32 %v2984, %v2805
  %v2988 = vadd.f32 %v2979, %v2985
  %v2989 = vadd.f32 %v2980, %v2986
  %v2990 = vadd.f32 %v2981, %v2987
  %v2991 = vmul.f32 %v2982, %v2821
  %v2992 = vmul.f32 %v2983, %v2826
  %v2993 = vmul.f32 %v2984, %v2827
  %2997 = vrot.lane.b32.xlu0 %v2991, 96
  %v2998 = vpop.permute.xlu0 %2997
  %2999 = vrot.lane.b32.xlu0 %v2992, 96
  %v3000 = vpop.permute.xlu0 %2999
  %3001 = vrot.lane.b32.xlu0 %v2993, 96
  %v3002 = vpop.permute.xlu0 %3001
  %v3003 = vsel %vm652, %v2998, %v3000
  %v3004 = vsel %vm652, %v3000, %v3002
  %v3008 = vadd.f32 %v2988, %v3003
  %v3009 = vadd.f32 %v2989, %v3004
  %v3010 = vadd.f32 %v2990, %v3002
  %v3011 = vmul.f32 %v2982, %v2857
  %v3012 = vmul.f32 %v2983, %v2862
  %v3013 = vmul.f32 %v2984, %v2863
  %3017 = vrot.lane.b32.xlu0 %v3011, 64
  %v3018 = vpop.permute.xlu0 %3017
  %3019 = vrot.lane.b32.xlu0 %v3012, 64
  %v3020 = vpop.permute.xlu0 %3019
  %3021 = vrot.lane.b32.xlu0 %v3013, 64
  %v3022 = vpop.permute.xlu0 %3021
  %v3023 = vsel %vm639, %v3018, %v3020
  %v3024 = vsel %vm639, %v3020, %v3022
  %v3028 = vadd.f32 %v3008, %v3023
  %v3029 = vadd.f32 %v3009, %v3024
  %v3030 = vadd.f32 %v3010, %v3022
  %v3031 = vmax.f32 %v3028, 0.0
  %v3032 = vmax.f32 %v3029, 0.0
  %v3033 = vmax.f32 %v3030, 0.0
  %v3034 = vmax.f32 %v2887, %v3031
  %v3035 = vmax.f32 %v2888, %v3032
  %v3036 = vmax.f32 %v2889, %v3033
  %3038 = vrot.lane.b32.xlu0 %v3034, 96
  %v3039 = vpop.permute.xlu0 %3038
  %3042 = vrot.lane.b32.xlu0 %v3035, 64
  %v3043 = vpop.permute.xlu0 %3042
  %3045 = vrot.lane.b32.xlu0 %v3035, 32
  %v3046 = vpop.permute.xlu0 %3045
  %v3048 = vsel %vm626, %v3034, %v3039
  %v3049 = vsel %vm639, %v3048, %v3043
  %v3050 = vsel %vm652, %v3049, %v3046
  %3051 = vrot.lane.b32.xlu0 %v3034, 64
  %v3052 = vpop.permute.xlu0 %3051
  %3055 = vrot.lane.b32.xlu0 %v3036, 96
  %v3056 = vpop.permute.xlu0 %3055
  %v3058 = vsel %vm626, %v3039, %v3052
  %v3059 = vsel %vm639, %v3058, %v3046
  %v3060 = vsel %vm652, %v3059, %v3035
  %v3061 = vmax.f32 %v3050, %v3060
  %v3062 = vmax.f32 %v3036, %v3056
  %3065 = vrot.lane.b32.xlu0 %v3061, 32
  %v3066 = vpop.permute.xlu0 %3065
  %3067 = vrot.lane.b32.xlu0 %v3062, 32
  %v3068 = vpop.permute.xlu0 %3067
  %v3069 = vsel %vm626, %v3066, %v3068
  %3072 = vst.msk [vmem:[#allocation3 + $0x50] sm:$0xff] %vm1255, %v3066
  %3073 = vst.msk [vmem:[#allocation3 + $0x58] sm:$0xff] %vm639, %v3069
  %v3074 = vld [vmem:[#allocation3] sm:$0xff]
  %3075 = vst.msk [vmem:[#allocation4] sm:$0xff] %vm626, %v3074
  %v3076 = vld [vmem:[#allocation3] sm:$0xff]
  %3078 = vrot.lane.b32.xlu0 %v3076, 96
  %v3079 = vpop.permute.xlu0 %3078
  %3081 = vst.msk [vmem:[#allocation4 + $0x18] sm:$0xff] %vm626, %v3079
  %v3082 = vld [vmem:[#allocation3] sm:$0xff]
  %3084 = vrot.lane.b32.xlu0 %v3082, 64
  %v3085 = vpop.permute.xlu0 %3084
  %3087 = vst.msk [vmem:[#allocation4 + $0x30] sm:$0xff] %vm626, %v3085
  %v3088 = vld [vmem:[#allocation3] sm:$0xff]
  %3090 = vrot.lane.b32.xlu0 %v3088, 32
  %v3091 = vpop.permute.xlu0 %3090
  %3093 = vst.msk [vmem:[#allocation4 + $0x48] sm:$0xff] %vm626, %v3091
  %v3094 = vld [vmem:[#allocation3 + $0x8] sm:$0xff]
  %3095 = vst.msk [vmem:[#allocation4 + $0x60] sm:$0xff] %vm626, %v3094
  %v3096 = vld [vmem:[#allocation3 + $0x10] sm:$0xff]
  %3097 = vst.msk [vmem:[#allocation4 + $0x78] sm:$0xff] %vm626, %v3096
  %v3098 = vld [vmem:[#allocation3 + $0x10] sm:$0xff]
  %3100 = vrot.lane.b32.xlu0 %v3098, 96
  %v3101 = vpop.permute.xlu0 %3100
  %3103 = vst.msk [vmem:[#allocation4 + $0x90] sm:$0xff] %vm626, %v3101
  %v3104 = vld [vmem:[#allocation3 + $0x10] sm:$0xff]
  %3106 = vrot.lane.b32.xlu0 %v3104, 64
  %v3107 = vpop.permute.xlu0 %3106
  %3109 = vst.msk [vmem:[#allocation4 + $0xa8] sm:$0xff] %vm626, %v3107
  %v3110 = vld [vmem:[#allocation3 + $0x10] sm:$0xff]
  %3112 = vrot.lane.b32.xlu0 %v3110, 32
  %v3113 = vpop.permute.xlu0 %3112
  %3115 = vst.msk [vmem:[#allocation4 + $0xc0] sm:$0xff] %vm626, %v3113
  %v3116 = vld [vmem:[#allocation3 + $0x18] sm:$0xff]
  %3117 = vst.msk [vmem:[#allocation4 + $0xd8] sm:$0xff] %vm626, %v3116
  %v3118 = vld [vmem:[#allocation3 + $0x20] sm:$0xff]
  %3119 = vst.msk [vmem:[#allocation4 + $0xf0] sm:$0xff] %vm626, %v3118
  %v3120 = vld [vmem:[#allocation3 + $0x20] sm:$0xff]
  %3122 = vrot.lane.b32.xlu0 %v3120, 96
  %v3123 = vpop.permute.xlu0 %3122
  %3125 = vst.msk [vmem:[#allocation4 + $0x108] sm:$0xff] %vm626, %v3123
  %v3126 = vld [vmem:[#allocation3 + $0x20] sm:$0xff]
  %3128 = vrot.lane.b32.xlu0 %v3126, 64
  %v3129 = vpop.permute.xlu0 %3128
  %3131 = vst.msk [vmem:[#allocation4 + $0x120] sm:$0xff] %vm626, %v3129
  %v3132 = vld [vmem:[#allocation3 + $0x20] sm:$0xff]
  %3134 = vrot.lane.b32.xlu0 %v3132, 32
  %v3135 = vpop.permute.xlu0 %3134
  %3137 = vst.msk [vmem:[#allocation4 + $0x138] sm:$0xff] %vm626, %v3135
  %v3138 = vld [vmem:[#allocation3 + $0x28] sm:$0xff]
  %3139 = vst.msk [vmem:[#allocation4 + $0x150] sm:$0xff] %vm626, %v3138
  %v3140 = vld [vmem:[#allocation3 + $0x30] sm:$0xff]
  %3141 = vst.msk [vmem:[#allocation4 + $0x168] sm:$0xff] %vm626, %v3140
  %v3142 = vld [vmem:[#allocation3 + $0x30] sm:$0xff]
  %3144 = vrot.lane.b32.xlu0 %v3142, 96
  %v3145 = vpop.permute.xlu0 %3144
  %3147 = vst.msk [vmem:[#allocation4 + $0x180] sm:$0xff] %vm626, %v3145
  %v3148 = vld [vmem:[#allocation3 + $0x30] sm:$0xff]
  %3150 = vrot.lane.b32.xlu0 %v3148, 64
  %v3151 = vpop.permute.xlu0 %3150
  %3153 = vst.msk [vmem:[#allocation4 + $0x198] sm:$0xff] %vm626, %v3151
  %v3154 = vld [vmem:[#allocation3 + $0x30] sm:$0xff]
  %3156 = vrot.lane.b32.xlu0 %v3154, 32
  %v3157 = vpop.permute.xlu0 %3156
  %3159 = vst.msk [vmem:[#allocation4 + $0x1b0] sm:$0xff] %vm626, %v3157
  %v3160 = vld [vmem:[#allocation3 + $0x38] sm:$0xff]
  %3161 = vst.msk [vmem:[#allocation4 + $0x1c8] sm:$0xff] %vm626, %v3160
  %v3162 = vld [vmem:[#allocation3 + $0x40] sm:$0xff]
  %3163 = vst.msk [vmem:[#allocation4 + $0x1e0] sm:$0xff] %vm626, %v3162
  %v3164 = vld [vmem:[#allocation3 + $0x40] sm:$0xff]
  %3166 = vrot.lane.b32.xlu0 %v3164, 96
  %v3167 = vpop.permute.xlu0 %3166
  %3169 = vst.msk [vmem:[#allocation4 + $0x1f8] sm:$0xff] %vm626, %v3167
  %v3170 = vld [vmem:[#allocation3 + $0x40] sm:$0xff]
  %3172 = vrot.lane.b32.xlu0 %v3170, 64
  %v3173 = vpop.permute.xlu0 %3172
  %3175 = vst.msk [vmem:[#allocation4 + $0x210] sm:$0xff] %vm626, %v3173
  %v3176 = vld [vmem:[#allocation3 + $0x40] sm:$0xff]
  %3178 = vrot.lane.b32.xlu0 %v3176, 32
  %v3179 = vpop.permute.xlu0 %3178
  %3181 = vst.msk [vmem:[#allocation4 + $0x228] sm:$0xff] %vm626, %v3179
  %v3182 = vld [vmem:[#allocation3 + $0x48] sm:$0xff]
  %3183 = vst.msk [vmem:[#allocation4 + $0x240] sm:$0xff] %vm626, %v3182
  %v3184 = vld [vmem:[#allocation3] sm:$0xff]
  %vm3185 = vcmask 523520
  %3186 = vst.msk [vmem:[#allocation4] sm:$0xff] %vm3185, %v3184
  %v3187 = vld [vmem:[#allocation3] sm:$0xff]
  %3189 = vrot.lane.b32.xlu0 %v3187, 96
  %v3190 = vpop.permute.xlu0 %3189
  %3192 = vst.msk [vmem:[#allocation4 + $0x18] sm:$0xff] %vm3185, %v3190
  %v3193 = vld [vmem:[#allocation3] sm:$0xff]
  %3195 = vrot.lane.b32.xlu0 %v3193, 64
  %v3196 = vpop.permute.xlu0 %3195
  %3198 = vst.msk [vmem:[#allocation4 + $0x30] sm:$0xff] %vm3185, %v3196
  %v3199 = vld [vmem:[#allocation3 + $0x8] sm:$0xff]
  %3201 = vrot.lane.b32.xlu0 %v3199, 32
  %v3202 = vpop.permute.xlu0 %3201
  %3204 = vst.msk [vmem:[#allocation4 + $0x48] sm:$0xff] %vm3185, %v3202
  %v3205 = vld [vmem:[#allocation3 + $0x8] sm:$0xff]
  %3206 = vst.msk [vmem:[#allocation4 + $0x60] sm:$0xff] %vm3185, %v3205
  %v3207 = vld [vmem:[#allocation3 + $0x10] sm:$0xff]
  %3208 = vst.msk [vmem:[#allocation4 + $0x78] sm:$0xff] %vm3185, %v3207
  %v3209 = vld [vmem:[#allocation3 + $0x10] sm:$0xff]
  %3211 = vrot.lane.b32.xlu0 %v3209, 96
  %v3212 = vpop.permute.xlu0 %3211
  %3214 = vst.msk [vmem:[#allocation4 + $0x90] sm:$0xff] %vm3185, %v3212
  %v3215 = vld [vmem:[#allocation3 + $0x10] sm:$0xff]
  %3217 = vrot.lane.b32.xlu0 %v3215, 64
  %v3218 = vpop.permute.xlu0 %3217
  %3220 = vst.msk [vmem:[#allocation4 + $0xa8] sm:$0xff] %vm3185, %v3218
  %v3221 = vld [vmem:[#allocation3 + $0x18] sm:$0xff]
  %3223 = vrot.lane.b32.xlu0 %v3221, 32
  %v3224 = vpop.permute.xlu0 %3223
  %3226 = vst.msk [vmem:[#allocation4 + $0xc0] sm:$0xff] %vm3185, %v3224
  %v3227 = vld [vmem:[#allocation3 + $0x18] sm:$0xff]
  %3228 = vst.msk [vmem:[#allocation4 + $0xd8] sm:$0xff] %vm3185, %v3227
  %v3229 = vld [vmem:[#allocation3 + $0x20] sm:$0xff]
  %3230 = vst.msk [vmem:[#allocation4 + $0xf0] sm:$0xff] %vm3185, %v3229
  %v3231 = vld [vmem:[#allocation3 + $0x20] sm:$0xff]
  %3233 = vrot.lane.b32.xlu0 %v3231, 96
  %v3234 = vpop.permute.xlu0 %3233
  %3236 = vst.msk [vmem:[#allocation4 + $0x108] sm:$0xff] %vm3185, %v3234
  %v3237 = vld [vmem:[#allocation3 + $0x20] sm:$0xff]
  %3239 = vrot.lane.b32.xlu0 %v3237, 64
  %v3240 = vpop.permute.xlu0 %3239
  %3242 = vst.msk [vmem:[#allocation4 + $0x120] sm:$0xff] %vm3185, %v3240
  %v3243 = vld [vmem:[#allocation3 + $0x28] sm:$0xff]
  %3245 = vrot.lane.b32.xlu0 %v3243, 32
  %v3246 = vpop.permute.xlu0 %3245
  %3248 = vst.msk [vmem:[#allocation4 + $0x138] sm:$0xff] %vm3185, %v3246
  %v3249 = vld [vmem:[#allocation3 + $0x28] sm:$0xff]
  %3250 = vst.msk [vmem:[#allocation4 + $0x150] sm:$0xff] %vm3185, %v3249
  %v3251 = vld [vmem:[#allocation3 + $0x30] sm:$0xff]
  %3252 = vst.msk [vmem:[#allocation4 + $0x168] sm:$0xff] %vm3185, %v3251
  %v3253 = vld [vmem:[#allocation3 + $0x30] sm:$0xff]
  %3255 = vrot.lane.b32.xlu0 %v3253, 96
  %v3256 = vpop.permute.xlu0 %3255
  %3258 = vst.msk [vmem:[#allocation4 + $0x180] sm:$0xff] %vm3185, %v3256
  %v3259 = vld [vmem:[#allocation3 + $0x30] sm:$0xff]
  %3261 = vrot.lane.b32.xlu0 %v3259, 64
  %v3262 = vpop.permute.xlu0 %3261
  %3264 = vst.msk [vmem:[#allocation4 + $0x198] sm:$0xff] %vm3185, %v3262
  %v3265 = vld [vmem:[#allocation3 + $0x38] sm:$0xff]
  %3267 = vrot.lane.b32.xlu0 %v3265, 32
  %v3268 = vpop.permute.xlu0 %3267
  %3270 = vst.msk [vmem:[#allocation4 + $0x1b0] sm:$0xff] %vm3185, %v3268
  %v3271 = vld [vmem:[#allocation3 + $0x38] sm:$0xff]
  %3272 = vst.msk [vmem:[#allocation4 + $0x1c8] sm:$0xff] %vm3185, %v3271
  %v3273 = vld [vmem:[#allocation3 + $0x40] sm:$0xff]
  %3274 = vst.msk [vmem:[#allocation4 + $0x1e0] sm:$0xff] %vm3185, %v3273
  %v3275 = vld [vmem:[#allocation3 + $0x40] sm:$0xff]
  %3277 = vrot.lane.b32.xlu0 %v3275, 96
  %v3278 = vpop.permute.xlu0 %3277
  %3280 = vst.msk [vmem:[#allocation4 + $0x1f8] sm:$0xff] %vm3185, %v3278
  %v3281 = vld [vmem:[#allocation3 + $0x40] sm:$0xff]
  %3283 = vrot.lane.b32.xlu0 %v3281, 64
  %v3284 = vpop.permute.xlu0 %3283
  %3286 = vst.msk [vmem:[#allocation4 + $0x210] sm:$0xff] %vm3185, %v3284
  %v3287 = vld [vmem:[#allocation3 + $0x48] sm:$0xff]
  %3289 = vrot.lane.b32.xlu0 %v3287, 32
  %v3290 = vpop.permute.xlu0 %3289
  %3292 = vst.msk [vmem:[#allocation4 + $0x228] sm:$0xff] %vm3185, %v3290
  %v3293 = vld [vmem:[#allocation3 + $0x48] sm:$0xff]
  %3294 = vst.msk [vmem:[#allocation4 + $0x240] sm:$0xff] %vm3185, %v3293
  %v3295 = vld [vmem:[#allocation3] sm:$0xff]
  %vm3296 = vcmask 785920
  %3297 = vst.msk [vmem:[#allocation4] sm:$0xff] %vm3296, %v3295
  %v3298 = vld [vmem:[#allocation3] sm:$0xff]
  %3300 = vrot.lane.b32.xlu0 %v3298, 96
  %v3301 = vpop.permute.xlu0 %3300
  %3303 = vst.msk [vmem:[#allocation4 + $0x18] sm:$0xff] %vm3296, %v3301
  %v3304 = vld [vmem:[#allocation3 + $0x8] sm:$0xff]
  %3306 = vrot.lane.b32.xlu0 %v3304, 64
  %v3307 = vpop.permute.xlu0 %3306
  %3309 = vst.msk [vmem:[#allocation4 + $0x30] sm:$0xff] %vm3296, %v3307
  %v3310 = vld [vmem:[#allocation3 + $0x8] sm:$0xff]
  %3312 = vrot.lane.b32.xlu0 %v3310, 32
  %v3313 = vpop.permute.xlu0 %3312
  %3315 = vst.msk [vmem:[#allocation4 + $0x48] sm:$0xff] %vm3296, %v3313
  %v3316 = vld [vmem:[#allocation3 + $0x8] sm:$0xff]
  %3317 = vst.msk [vmem:[#allocation4 + $0x60] sm:$0xff] %vm3296, %v3316
  %v3318 = vld [vmem:[#allocation3 + $0x10] sm:$0xff]
  %3319 = vst.msk [vmem:[#allocation4 + $0x78] sm:$0xff] %vm3296, %v3318
  %v3320 = vld [vmem:[#allocation3 + $0x10] sm:$0xff]
  %3322 = vrot.lane.b32.xlu0 %v3320, 96
  %v3323 = vpop.permute.xlu0 %3322
  %3325 = vst.msk [vmem:[#allocation4 + $0x90] sm:$0xff] %vm3296, %v3323
  %v3326 = vld [vmem:[#allocation3 + $0x18] sm:$0xff]
  %3328 = vrot.lane.b32.xlu0 %v3326, 64
  %v3329 = vpop.permute.xlu0 %3328
  %3331 = vst.msk [vmem:[#allocation4 + $0xa8] sm:$0xff] %vm3296, %v3329
  %v3332 = vld [vmem:[#allocation3 + $0x18] sm:$0xff]
  %3334 = vrot.lane.b32.xlu0 %v3332, 32
  %v3335 = vpop.permute.xlu0 %3334
  %3337 = vst.msk [vmem:[#allocation4 + $0xc0] sm:$0xff] %vm3296, %v3335
  %v3338 = vld [vmem:[#allocation3 + $0x18] sm:$0xff]
  %3339 = vst.msk [vmem:[#allocation4 + $0xd8] sm:$0xff] %vm3296, %v3338
  %v3340 = vld [vmem:[#allocation3 + $0x20] sm:$0xff]
  %3341 = vst.msk [vmem:[#allocation4 + $0xf0] sm:$0xff] %vm3296, %v3340
  %v3342 = vld [vmem:[#allocation3 + $0x20] sm:$0xff]
  %3344 = vrot.lane.b32.xlu0 %v3342, 96
  %v3345 = vpop.permute.xlu0 %3344
  %3347 = vst.msk [vmem:[#allocation4 + $0x108] sm:$0xff] %vm3296, %v3345
  %v3348 = vld [vmem:[#allocation3 + $0x28] sm:$0xff]
  %3350 = vrot.lane.b32.xlu0 %v3348, 64
  %v3351 = vpop.permute.xlu0 %3350
  %3353 = vst.msk [vmem:[#allocation4 + $0x120] sm:$0xff] %vm3296, %v3351
  %v3354 = vld [vmem:[#allocation3 + $0x28] sm:$0xff]
  %3356 = vrot.lane.b32.xlu0 %v3354, 32
  %v3357 = vpop.permute.xlu0 %3356
  %3359 = vst.msk [vmem:[#allocation4 + $0x138] sm:$0xff] %vm3296, %v3357
  %v3360 = vld [vmem:[#allocation3 + $0x28] sm:$0xff]
  %3361 = vst.msk [vmem:[#allocation4 + $0x150] sm:$0xff] %vm3296, %v3360
  %v3362 = vld [vmem:[#allocation3 + $0x30] sm:$0xff]
  %3363 = vst.msk [vmem:[#allocation4 + $0x168] sm:$0xff] %vm3296, %v3362
  %v3364 = vld [vmem:[#allocation3 + $0x30] sm:$0xff]
  %3366 = vrot.lane.b32.xlu0 %v3364, 96
  %v3367 = vpop.permute.xlu0 %3366
  %3369 = vst.msk [vmem:[#allocation4 + $0x180] sm:$0xff] %vm3296, %v3367
  %v3370 = vld [vmem:[#allocation3 + $0x38] sm:$0xff]
  %3372 = vrot.lane.b32.xlu0 %v3370, 64
  %v3373 = vpop.permute.xlu0 %3372
  %3375 = vst.msk [vmem:[#allocation4 + $0x198] sm:$0xff] %vm3296, %v3373
  %v3376 = vld [vmem:[#allocation3 + $0x38] sm:$0xff]
  %3378 = vrot.lane.b32.xlu0 %v3376, 32
  %v3379 = vpop.permute.xlu0 %3378
  %3381 = vst.msk [vmem:[#allocation4 + $0x1b0] sm:$0xff] %vm3296, %v3379
  %v3382 = vld [vmem:[#allocation3 + $0x38] sm:$0xff]
  %3383 = vst.msk [vmem:[#allocation4 + $0x1c8] sm:$0xff] %vm3296, %v3382
  %v3384 = vld [vmem:[#allocation3 + $0x40] sm:$0xff]
  %3385 = vst.msk [vmem:[#allocation4 + $0x1e0] sm:$0xff] %vm3296, %v3384
  %v3386 = vld [vmem:[#allocation3 + $0x40] sm:$0xff]
  %3388 = vrot.lane.b32.xlu0 %v3386, 96
  %v3389 = vpop.permute.xlu0 %3388
  %3391 = vst.msk [vmem:[#allocation4 + $0x1f8] sm:$0xff] %vm3296, %v3389
  %v3392 = vld [vmem:[#allocation3 + $0x48] sm:$0xff]
  %3394 = vrot.lane.b32.xlu0 %v3392, 64
  %v3395 = vpop.permute.xlu0 %3394
  %3397 = vst.msk [vmem:[#allocation4 + $0x210] sm:$0xff] %vm3296, %v3395
  %v3398 = vld [vmem:[#allocation3 + $0x48] sm:$0xff]
  %3400 = vrot.lane.b32.xlu0 %v3398, 32
  %v3401 = vpop.permute.xlu0 %3400
  %3403 = vst.msk [vmem:[#allocation4 + $0x228] sm:$0xff] %vm3296, %v3401
  %v3404 = vld [vmem:[#allocation3 + $0x48] sm:$0xff]
  %3405 = vst.msk [vmem:[#allocation4 + $0x240] sm:$0xff] %vm3296, %v3404
  %v3406 = vld [vmem:[#allocation3 + $0x10] sm:$0xff]
  %3408 = vrot.lane.b32.xlu0 %v3406, 96
  %v3409 = vpop.permute.xlu0 %3408
  %vm3411 = vcmask 1048320
  %3412 = vst.msk [vmem:[#allocation4] sm:$0xff] %vm3411, %v3409
  %v3413 = vld [vmem:[#allocation3 + $0x10] sm:$0xff]
  %3415 = vrot.lane.b32.xlu0 %v3413, 64
  %v3416 = vpop.permute.xlu0 %3415
  %3418 = vst.msk [vmem:[#allocation4 + $0x18] sm:$0xff] %vm3411, %v3416
  %v3419 = vld [vmem:[#allocation3 + $0x10] sm:$0xff]
  %3421 = vrot.lane.b32.xlu0 %v3419, 32
  %v3422 = vpop.permute.xlu0 %3421
  %3424 = vst.msk [vmem:[#allocation4 + $0x30] sm:$0xff] %vm3411, %v3422
  %v3425 = vld [vmem:[#allocation3 + $0x10] sm:$0xff]
  %3426 = vst.msk [vmem:[#allocation4 + $0x48] sm:$0xff] %vm3411, %v3425
  %v3427 = vld [vmem:[#allocation3 + $0x18] sm:$0xff]
  %3429 = vrot.lane.b32.xlu0 %v3427, 96
  %v3430 = vpop.permute.xlu0 %3429
  %3432 = vst.msk [vmem:[#allocation4 + $0x60] sm:$0xff] %vm3411, %v3430
  %v3433 = vld [vmem:[#allocation3 + $0x20] sm:$0xff]
  %3435 = vrot.lane.b32.xlu0 %v3433, 96
  %v3436 = vpop.permute.xlu0 %3435
  %3438 = vst.msk [vmem:[#allocation4 + $0x78] sm:$0xff] %vm3411, %v3436
  %v3439 = vld [vmem:[#allocation3 + $0x20] sm:$0xff]
  %3441 = vrot.lane.b32.xlu0 %v3439, 64
  %v3442 = vpop.permute.xlu0 %3441
  %3444 = vst.msk [vmem:[#allocation4 + $0x90] sm:$0xff] %vm3411, %v3442
  %v3445 = vld [vmem:[#allocation3 + $0x20] sm:$0xff]
  %3447 = vrot.lane.b32.xlu0 %v3445, 32
  %v3448 = vpop.permute.xlu0 %3447
  %3450 = vst.msk [vmem:[#allocation4 + $0xa8] sm:$0xff] %vm3411, %v3448
  %v3451 = vld [vmem:[#allocation3 + $0x20] sm:$0xff]
  %3452 = vst.msk [vmem:[#allocation4 + $0xc0] sm:$0xff] %vm3411, %v3451
  %v3453 = vld [vmem:[#allocation3 + $0x28] sm:$0xff]
  %3455 = vrot.lane.b32.xlu0 %v3453, 96
  %v3456 = vpop.permute.xlu0 %3455
  %3458 = vst.msk [vmem:[#allocation4 + $0xd8] sm:$0xff] %vm3411, %v3456
  %v3459 = vld [vmem:[#allocation3 + $0x30] sm:$0xff]
  %3461 = vrot.lane.b32.xlu0 %v3459, 96
  %v3462 = vpop.permute.xlu0 %3461
  %3464 = vst.msk [vmem:[#allocation4 + $0xf0] sm:$0xff] %vm3411, %v3462
  %v3465 = vld [vmem:[#allocation3 + $0x30] sm:$0xff]
  %3467 = vrot.lane.b32.xlu0 %v3465, 64
  %v3468 = vpop.permute.xlu0 %3467
  %3470 = vst.msk [vmem:[#allocation4 + $0x108] sm:$0xff] %vm3411, %v3468
  %v3471 = vld [vmem:[#allocation3 + $0x30] sm:$0xff]
  %3473 = vrot.lane.b32.xlu0 %v3471, 32
  %v3474 = vpop.permute.xlu0 %3473
  %3476 = vst.msk [vmem:[#allocation4 + $0x120] sm:$0xff] %vm3411, %v3474
  %v3477 = vld [vmem:[#allocation3 + $0x30] sm:$0xff]
  %3478 = vst.msk [vmem:[#allocation4 + $0x138] sm:$0xff] %vm3411, %v3477
  %v3479 = vld [vmem:[#allocation3 + $0x38] sm:$0xff]
  %3481 = vrot.lane.b32.xlu0 %v3479, 96
  %v3482 = vpop.permute.xlu0 %3481
  %3484 = vst.msk [vmem:[#allocation4 + $0x150] sm:$0xff] %vm3411, %v3482
  %v3485 = vld [vmem:[#allocation3 + $0x40] sm:$0xff]
  %3487 = vrot.lane.b32.xlu0 %v3485, 96
  %v3488 = vpop.permute.xlu0 %3487
  %3490 = vst.msk [vmem:[#allocation4 + $0x168] sm:$0xff] %vm3411, %v3488
  %v3491 = vld [vmem:[#allocation3 + $0x40] sm:$0xff]
  %3493 = vrot.lane.b32.xlu0 %v3491, 64
  %v3494 = vpop.permute.xlu0 %3493
  %3496 = vst.msk [vmem:[#allocation4 + $0x180] sm:$0xff] %vm3411, %v3494
  %v3497 = vld [vmem:[#allocation3 + $0x40] sm:$0xff]
  %3499 = vrot.lane.b32.xlu0 %v3497, 32
  %v3500 = vpop.permute.xlu0 %3499
  %3502 = vst.msk [vmem:[#allocation4 + $0x198] sm:$0xff] %vm3411, %v3500
  %v3503 = vld [vmem:[#allocation3 + $0x40] sm:$0xff]
  %3504 = vst.msk [vmem:[#allocation4 + $0x1b0] sm:$0xff] %vm3411, %v3503
  %v3505 = vld [vmem:[#allocation3 + $0x48] sm:$0xff]
  %3507 = vrot.lane.b32.xlu0 %v3505, 96
  %v3508 = vpop.permute.xlu0 %3507
  %3510 = vst.msk [vmem:[#allocation4 + $0x1c8] sm:$0xff] %vm3411, %v3508
  %v3511 = vld [vmem:[#allocation3 + $0x50] sm:$0xff]
  %3513 = vrot.lane.b32.xlu0 %v3511, 96
  %v3514 = vpop.permute.xlu0 %3513
  %3516 = vst.msk [vmem:[#allocation4 + $0x1e0] sm:$0xff] %vm3411, %v3514
  %v3517 = vld [vmem:[#allocation3 + $0x50] sm:$0xff]
  %3519 = vrot.lane.b32.xlu0 %v3517, 64
  %v3520 = vpop.permute.xlu0 %3519
  %3522 = vst.msk [vmem:[#allocation4 + $0x1f8] sm:$0xff] %vm3411, %v3520
  %v3523 = vld [vmem:[#allocation3 + $0x50] sm:$0xff]
  %3525 = vrot.lane.b32.xlu0 %v3523, 32
  %v3526 = vpop.permute.xlu0 %3525
  %3528 = vst.msk [vmem:[#allocation4 + $0x210] sm:$0xff] %vm3411, %v3526
  %v3529 = vld [vmem:[#allocation3 + $0x50] sm:$0xff]
  %3530 = vst.msk [vmem:[#allocation4 + $0x228] sm:$0xff] %vm3411, %v3529
  %v3531 = vld [vmem:[#allocation3 + $0x58] sm:$0xff]
  %3533 = vrot.lane.b32.xlu0 %v3531, 96
  %v3534 = vpop.permute.xlu0 %3533
  %3536 = vst.msk [vmem:[#allocation4 + $0x240] sm:$0xff] %vm3411, %v3534
  %v3537 = vld [vmem:[#allocation3 + $0x10] sm:$0xff]
  %3539 = vrot.lane.b32.xlu0 %v3537, 96
  %v3540 = vpop.permute.xlu0 %3539
  %3542 = vst.msk [vmem:[#allocation4 + $0x8] sm:$0xff] %vm626, %v3540
  %v3543 = vld [vmem:[#allocation3 + $0x10] sm:$0xff]
  %3545 = vrot.lane.b32.xlu0 %v3543, 64
  %v3546 = vpop.permute.xlu0 %3545
  %3548 = vst.msk [vmem:[#allocation4 + $0x20] sm:$0xff] %vm626, %v3546
  %v3549 = vld [vmem:[#allocation3 + $0x10] sm:$0xff]
  %3551 = vrot.lane.b32.xlu0 %v3549, 32
  %v3552 = vpop.permute.xlu0 %3551
  %3554 = vst.msk [vmem:[#allocation4 + $0x38] sm:$0xff] %vm626, %v3552
  %v3555 = vld [vmem:[#allocation3 + $0x18] sm:$0xff]
  %3556 = vst.msk [vmem:[#allocation4 + $0x50] sm:$0xff] %vm626, %v3555
  %v3557 = vld [vmem:[#allocation3 + $0x18] sm:$0xff]
  %3559 = vrot.lane.b32.xlu0 %v3557, 96
  %v3560 = vpop.permute.xlu0 %3559
  %3562 = vst.msk [vmem:[#allocation4 + $0x68] sm:$0xff] %vm626, %v3560
  %v3563 = vld [vmem:[#allocation3 + $0x20] sm:$0xff]
  %3565 = vrot.lane.b32.xlu0 %v3563, 96
  %v3566 = vpop.permute.xlu0 %3565
  %3568 = vst.msk [vmem:[#allocation4 + $0x80] sm:$0xff] %vm626, %v3566
  %v3569 = vld [vmem:[#allocation3 + $0x20] sm:$0xff]
  %3571 = vrot.lane.b32.xlu0 %v3569, 64
  %v3572 = vpop.permute.xlu0 %3571
  %3574 = vst.msk [vmem:[#allocation4 + $0x98] sm:$0xff] %vm626, %v3572
  %v3575 = vld [vmem:[#allocation3 + $0x20] sm:$0xff]
  %3577 = vrot.lane.b32.xlu0 %v3575, 32
  %v3578 = vpop.permute.xlu0 %3577
  %3580 = vst.msk [vmem:[#allocation4 + $0xb0] sm:$0xff] %vm626, %v3578
  %v3581 = vld [vmem:[#allocation3 + $0x28] sm:$0xff]
  %3582 = vst.msk [vmem:[#allocation4 + $0xc8] sm:$0xff] %vm626, %v3581
  %v3583 = vld [vmem:[#allocation3 + $0x28] sm:$0xff]
  %3585 = vrot.lane.b32.xlu0 %v3583, 96
  %v3586 = vpop.permute.xlu0 %3585
  %3588 = vst.msk [vmem:[#allocation4 + $0xe0] sm:$0xff] %vm626, %v3586
  %v3589 = vld [vmem:[#allocation3 + $0x30] sm:$0xff]
  %3591 = vrot.lane.b32.xlu0 %v3589, 96
  %v3592 = vpop.permute.xlu0 %3591
  %3594 = vst.msk [vmem:[#allocation4 + $0xf8] sm:$0xff] %vm626, %v3592
  %v3595 = vld [vmem:[#allocation3 + $0x30] sm:$0xff]
  %3597 = vrot.lane.b32.xlu0 %v3595, 64
  %v3598 = vpop.permute.xlu0 %3597
  %3600 = vst.msk [vmem:[#allocation4 + $0x110] sm:$0xff] %vm626, %v3598
  %v3601 = vld [vmem:[#allocation3 + $0x30] sm:$0xff]
  %3603 = vrot.lane.b32.xlu0 %v3601, 32
  %v3604 = vpop.permute.xlu0 %3603
  %3606 = vst.msk [vmem:[#allocation4 + $0x128] sm:$0xff] %vm626, %v3604
  %v3607 = vld [vmem:[#allocation3 + $0x38] sm:$0xff]
  %3608 = vst.msk [vmem:[#allocation4 + $0x140] sm:$0xff] %vm626, %v3607
  %v3609 = vld [vmem:[#allocation3 + $0x38] sm:$0xff]
  %3611 = vrot.lane.b32.xlu0 %v3609, 96
  %v3612 = vpop.permute.xlu0 %3611
  %3614 = vst.msk [vmem:[#allocation4 + $0x158] sm:$0xff] %vm626, %v3612
  %v3615 = vld [vmem:[#allocation3 + $0x40] sm:$0xff]
  %3617 = vrot.lane.b32.xlu0 %v3615, 96
  %v3618 = vpop.permute.xlu0 %3617
  %3620 = vst.msk [vmem:[#allocation4 + $0x170] sm:$0xff] %vm626, %v3618
  %v3621 = vld [vmem:[#allocation3 + $0x40] sm:$0xff]
  %3623 = vrot.lane.b32.xlu0 %v3621, 64
  %v3624 = vpop.permute.xlu0 %3623
  %3626 = vst.msk [vmem:[#allocation4 + $0x188] sm:$0xff] %vm626, %v3624
  %v3627 = vld [vmem:[#allocation3 + $0x40] sm:$0xff]
  %3629 = vrot.lane.b32.xlu0 %v3627, 32
  %v3630 = vpop.permute.xlu0 %3629
  %3632 = vst.msk [vmem:[#allocation4 + $0x1a0] sm:$0xff] %vm626, %v3630
  %v3633 = vld [vmem:[#allocation3 + $0x48] sm:$0xff]
  %3634 = vst.msk [vmem:[#allocation4 + $0x1b8] sm:$0xff] %vm626, %v3633
  %v3635 = vld [vmem:[#allocation3 + $0x48] sm:$0xff]
  %3637 = vrot.lane.b32.xlu0 %v3635, 96
  %v3638 = vpop.permute.xlu0 %3637
  %3640 = vst.msk [vmem:[#allocation4 + $0x1d0] sm:$0xff] %vm626, %v3638
  %v3641 = vld [vmem:[#allocation3 + $0x50] sm:$0xff]
  %3643 = vrot.lane.b32.xlu0 %v3641, 96
  %v3644 = vpop.permute.xlu0 %3643
  %3646 = vst.msk [vmem:[#allocation4 + $0x1e8] sm:$0xff] %vm626, %v3644
  %v3647 = vld [vmem:[#allocation3 + $0x50] sm:$0xff]
  %3649 = vrot.lane.b32.xlu0 %v3647, 64
  %v3650 = vpop.permute.xlu0 %3649
  %3652 = vst.msk [vmem:[#allocation4 + $0x200] sm:$0xff] %vm626, %v3650
  %v3653 = vld [vmem:[#allocation3 + $0x50] sm:$0xff]
  %3655 = vrot.lane.b32.xlu0 %v3653, 32
  %v3656 = vpop.permute.xlu0 %3655
  %3658 = vst.msk [vmem:[#allocation4 + $0x218] sm:$0xff] %vm626, %v3656
  %v3659 = vld [vmem:[#allocation3 + $0x58] sm:$0xff]
  %3660 = vst.msk [vmem:[#allocation4 + $0x230] sm:$0xff] %vm626, %v3659
  %v3661 = vld [vmem:[#allocation3 + $0x58] sm:$0xff]
  %3663 = vrot.lane.b32.xlu0 %v3661, 96
  %v3664 = vpop.permute.xlu0 %3663
  %3666 = vst.msk [vmem:[#allocation4 + $0x248] sm:$0xff] %vm626, %v3664
  %v3667 = vld [vmem:[#allocation3 + $0x10] sm:$0xff]
  %3669 = vrot.lane.b32.xlu0 %v3667, 96
  %v3670 = vpop.permute.xlu0 %3669
  %3672 = vst.msk [vmem:[#allocation4 + $0x8] sm:$0xff] %vm3185, %v3670
  %v3673 = vld [vmem:[#allocation3 + $0x10] sm:$0xff]
  %3675 = vrot.lane.b32.xlu0 %v3673, 64
  %v3676 = vpop.permute.xlu0 %3675
  %3678 = vst.msk [vmem:[#allocation4 + $0x20] sm:$0xff] %vm3185, %v3676
  %v3679 = vld [vmem:[#allocation3 + $0x18] sm:$0xff]
  %3681 = vrot.lane.b32.xlu0 %v3679, 32
  %v3682 = vpop.permute.xlu0 %3681
  %3684 = vst.msk [vmem:[#allocation4 + $0x38] sm:$0xff] %vm3185, %v3682
  %v3685 = vld [vmem:[#allocation3 + $0x18] sm:$0xff]
  %3686 = vst.msk [vmem:[#allocation4 + $0x50] sm:$0xff] %vm3185, %v3685
  %v3687 = vld [vmem:[#allocation3 + $0x18] sm:$0xff]
  %3689 = vrot.lane.b32.xlu0 %v3687, 96
  %v3690 = vpop.permute.xlu0 %3689
  %3692 = vst.msk [vmem:[#allocation4 + $0x68] sm:$0xff] %vm3185, %v3690
  %v3693 = vld [vmem:[#allocation3 + $0x20] sm:$0xff]
  %3695 = vrot.lane.b32.xlu0 %v3693, 96
  %v3696 = vpop.permute.xlu0 %3695
  %3698 = vst.msk [vmem:[#allocation4 + $0x80] sm:$0xff] %vm3185, %v3696
  %v3699 = vld [vmem:[#allocation3 + $0x20] sm:$0xff]
  %3701 = vrot.lane.b32.xlu0 %v3699, 64
  %v3702 = vpop.permute.xlu0 %3701
  %3704 = vst.msk [vmem:[#allocation4 + $0x98] sm:$0xff] %vm3185, %v3702
  %v3705 = vld [vmem:[#allocation3 + $0x28] sm:$0xff]
  %3707 = vrot.lane.b32.xlu0 %v3705, 32
  %v3708 = vpop.permute.xlu0 %3707
  %3710 = vst.msk [vmem:[#allocation4 + $0xb0] sm:$0xff] %vm3185, %v3708
  %v3711 = vld [vmem:[#allocation3 + $0x28] sm:$0xff]
  %3712 = vst.msk [vmem:[#allocation4 + $0xc8] sm:$0xff] %vm3185, %v3711
  %v3713 = vld [vmem:[#allocation3 + $0x28] sm:$0xff]
  %3715 = vrot.lane.b32.xlu0 %v3713, 96
  %v3716 = vpop.permute.xlu0 %3715
  %3718 = vst.msk [vmem:[#allocation4 + $0xe0] sm:$0xff] %vm3185, %v3716
  %v3719 = vld [vmem:[#allocation3 + $0x30] sm:$0xff]
  %3721 = vrot.lane.b32.xlu0 %v3719, 96
  %v3722 = vpop.permute.xlu0 %3721
  %3724 = vst.msk [vmem:[#allocation4 + $0xf8] sm:$0xff] %vm3185, %v3722
  %v3725 = vld [vmem:[#allocation3 + $0x30] sm:$0xff]
  %3727 = vrot.lane.b32.xlu0 %v3725, 64
  %v3728 = vpop.permute.xlu0 %3727
  %3730 = vst.msk [vmem:[#allocation4 + $0x110] sm:$0xff] %vm3185, %v3728
  %v3731 = vld [vmem:[#allocation3 + $0x38] sm:$0xff]
  %3733 = vrot.lane.b32.xlu0 %v3731, 32
  %v3734 = vpop.permute.xlu0 %3733
  %3736 = vst.msk [vmem:[#allocation4 + $0x128] sm:$0xff] %vm3185, %v3734
  %v3737 = vld [vmem:[#allocation3 + $0x38] sm:$0xff]
  %3738 = vst.msk [vmem:[#allocation4 + $0x140] sm:$0xff] %vm3185, %v3737
  %v3739 = vld [vmem:[#allocation3 + $0x38] sm:$0xff]
  %3741 = vrot.lane.b32.xlu0 %v3739, 96
  %v3742 = vpop.permute.xlu0 %3741
  %3744 = vst.msk [vmem:[#allocation4 + $0x158] sm:$0xff] %vm3185, %v3742
  %v3745 = vld [vmem:[#allocation3 + $0x40] sm:$0xff]
  %3747 = vrot.lane.b32.xlu0 %v3745, 96
  %v3748 = vpop.permute.xlu0 %3747
  %3750 = vst.msk [vmem:[#allocation4 + $0x170] sm:$0xff] %vm3185, %v3748
  %v3751 = vld [vmem:[#allocation3 + $0x40] sm:$0xff]
  %3753 = vrot.lane.b32.xlu0 %v3751, 64
  %v3754 = vpop.permute.xlu0 %3753
  %3756 = vst.msk [vmem:[#allocation4 + $0x188] sm:$0xff] %vm3185, %v3754
  %v3757 = vld [vmem:[#allocation3 + $0x48] sm:$0xff]
  %3759 = vrot.lane.b32.xlu0 %v3757, 32
  %v3760 = vpop.permute.xlu0 %3759
  %3762 = vst.msk [vmem:[#allocation4 + $0x1a0] sm:$0xff] %vm3185, %v3760
  %v3763 = vld [vmem:[#allocation3 + $0x48] sm:$0xff]
  %3764 = vst.msk [vmem:[#allocation4 + $0x1b8] sm:$0xff] %vm3185, %v3763
  %v3765 = vld [vmem:[#allocation3 + $0x48] sm:$0xff]
  %3767 = vrot.lane.b32.xlu0 %v3765, 96
  %v3768 = vpop.permute.xlu0 %3767
  %3770 = vst.msk [vmem:[#allocation4 + $0x1d0] sm:$0xff] %vm3185, %v3768
  %v3771 = vld [vmem:[#allocation3 + $0x50] sm:$0xff]
  %3773 = vrot.lane.b32.xlu0 %v3771, 96
  %v3774 = vpop.permute.xlu0 %3773
  %3776 = vst.msk [vmem:[#allocation4 + $0x1e8] sm:$0xff] %vm3185, %v3774
  %v3777 = vld [vmem:[#allocation3 + $0x50] sm:$0xff]
  %3779 = vrot.lane.b32.xlu0 %v3777, 64
  %v3780 = vpop.permute.xlu0 %3779
  %3782 = vst.msk [vmem:[#allocation4 + $0x200] sm:$0xff] %vm3185, %v3780
  %v3783 = vld [vmem:[#allocation3 + $0x58] sm:$0xff]
  %3785 = vrot.lane.b32.xlu0 %v3783, 32
  %v3786 = vpop.permute.xlu0 %3785
  %3788 = vst.msk [vmem:[#allocation4 + $0x218] sm:$0xff] %vm3185, %v3786
  %v3789 = vld [vmem:[#allocation3 + $0x58] sm:$0xff]
  %3790 = vst.msk [vmem:[#allocation4 + $0x230] sm:$0xff] %vm3185, %v3789
  %v3791 = vld [vmem:[#allocation3 + $0x58] sm:$0xff]
  %3793 = vrot.lane.b32.xlu0 %v3791, 96
  %v3794 = vpop.permute.xlu0 %3793
  %3796 = vst.msk [vmem:[#allocation4 + $0x248] sm:$0xff] %vm3185, %v3794
  %v3797 = vld [vmem:[#allocation3 + $0x20] sm:$0xff]
  %3799 = vrot.lane.b32.xlu0 %v3797, 64
  %v3800 = vpop.permute.xlu0 %3799
  %3802 = vst.msk [vmem:[#allocation4 + $0x8] sm:$0xff] %vm3296, %v3800
  %v3803 = vld [vmem:[#allocation3 + $0x20] sm:$0xff]
  %3805 = vrot.lane.b32.xlu0 %v3803, 32
  %v3806 = vpop.permute.xlu0 %3805
  %3808 = vst.msk [vmem:[#allocation4 + $0x20] sm:$0xff] %vm3296, %v3806
  %v3809 = vld [vmem:[#allocation3 + $0x20] sm:$0xff]
  %3810 = vst.msk [vmem:[#allocation4 + $0x38] sm:$0xff] %vm3296, %v3809
  %v3811 = vld [vmem:[#allocation3 + $0x20] sm:$0xff]
  %3813 = vrot.lane.b32.xlu0 %v3811, 96
  %v3814 = vpop.permute.xlu0 %3813
  %3816 = vst.msk [vmem:[#allocation4 + $0x50] sm:$0xff] %vm3296, %v3814
  %v3817 = vld [vmem:[#allocation3 + $0x28] sm:$0xff]
  %3819 = vrot.lane.b32.xlu0 %v3817, 64
  %v3820 = vpop.permute.xlu0 %3819
  %3822 = vst.msk [vmem:[#allocation4 + $0x68] sm:$0xff] %vm3296, %v3820
  %v3823 = vld [vmem:[#allocation3 + $0x30] sm:$0xff]
  %3825 = vrot.lane.b32.xlu0 %v3823, 64
  %v3826 = vpop.permute.xlu0 %3825
  %3828 = vst.msk [vmem:[#allocation4 + $0x80] sm:$0xff] %vm3296, %v3826
  %v3829 = vld [vmem:[#allocation3 + $0x30] sm:$0xff]
  %3831 = vrot.lane.b32.xlu0 %v3829, 32
  %v3832 = vpop.permute.xlu0 %3831
  %3834 = vst.msk [vmem:[#allocation4 + $0x98] sm:$0xff] %vm3296, %v3832
  %v3835 = vld [vmem:[#allocation3 + $0x30] sm:$0xff]
  %3836 = vst.msk [vmem:[#allocation4 + $0xb0] sm:$0xff] %vm3296, %v3835
  %v3837 = vld [vmem:[#allocation3 + $0x30] sm:$0xff]
  %3839 = vrot.lane.b32.xlu0 %v3837, 96
  %v3840 = vpop.permute.xlu0 %3839
  %3842 = vst.msk [vmem:[#allocation4 + $0xc8] sm:$0xff] %vm3296, %v3840
  %v3843 = vld [vmem:[#allocation3 + $0x38] sm:$0xff]
  %3845 = vrot.lane.b32.xlu0 %v3843, 64
  %v3846 = vpop.permute.xlu0 %3845
  %3848 = vst.msk [vmem:[#allocation4 + $0xe0] sm:$0xff] %vm3296, %v3846
  %v3849 = vld [vmem:[#allocation3 + $0x40] sm:$0xff]
  %3851 = vrot.lane.b32.xlu0 %v3849, 64
  %v3852 = vpop.permute.xlu0 %3851
  %3854 = vst.msk [vmem:[#allocation4 + $0xf8] sm:$0xff] %vm3296, %v3852
  %v3855 = vld [vmem:[#allocation3 + $0x40] sm:$0xff]
  %3857 = vrot.lane.b32.xlu0 %v3855, 32
  %v3858 = vpop.permute.xlu0 %3857
  %3860 = vst.msk [vmem:[#allocation4 + $0x110] sm:$0xff] %vm3296, %v3858
  %v3861 = vld [vmem:[#allocation3 + $0x40] sm:$0xff]
  %3862 = vst.msk [vmem:[#allocation4 + $0x128] sm:$0xff] %vm3296, %v3861
  %v3863 = vld [vmem:[#allocation3 + $0x40] sm:$0xff]
  %3865 = vrot.lane.b32.xlu0 %v3863, 96
  %v3866 = vpop.permute.xlu0 %3865
  %3868 = vst.msk [vmem:[#allocation4 + $0x140] sm:$0xff] %vm3296, %v3866
  %v3869 = vld [vmem:[#allocation3 + $0x48] sm:$0xff]
  %3871 = vrot.lane.b32.xlu0 %v3869, 64
  %v3872 = vpop.permute.xlu0 %3871
  %3874 = vst.msk [vmem:[#allocation4 + $0x158] sm:$0xff] %vm3296, %v3872
  %v3875 = vld [vmem:[#allocation3 + $0x50] sm:$0xff]
  %3877 = vrot.lane.b32.xlu0 %v3875, 64
  %v3878 = vpop.permute.xlu0 %3877
  %3880 = vst.msk [vmem:[#allocation4 + $0x170] sm:$0xff] %vm3296, %v3878
  %v3881 = vld [vmem:[#allocation3 + $0x50] sm:$0xff]
  %3883 = vrot.lane.b32.xlu0 %v3881, 32
  %v3884 = vpop.permute.xlu0 %3883
  %3886 = vst.msk [vmem:[#allocation4 + $0x188] sm:$0xff] %vm3296, %v3884
  %v3887 = vld [vmem:[#allocation3 + $0x50] sm:$0xff]
  %3888 = vst.msk [vmem:[#allocation4 + $0x1a0] sm:$0xff] %vm3296, %v3887
  %v3889 = vld [vmem:[#allocation3 + $0x50] sm:$0xff]
  %3891 = vrot.lane.b32.xlu0 %v3889, 96
  %v3892 = vpop.permute.xlu0 %3891
  %3894 = vst.msk [vmem:[#allocation4 + $0x1b8] sm:$0xff] %vm3296, %v3892
  %v3895 = vld [vmem:[#allocation3 + $0x58] sm:$0xff]
  %3897 = vrot.lane.b32.xlu0 %v3895, 64
  %v3898 = vpop.permute.xlu0 %3897
  %3900 = vst.msk [vmem:[#allocation4 + $0x1d0] sm:$0xff] %vm3296, %v3898
  %v3901 = vld [vmem:[#allocation3 + $0x60] sm:$0xff]
  %3903 = vrot.lane.b32.xlu0 %v3901, 64
  %v3904 = vpop.permute.xlu0 %3903
  %3906 = vst.msk [vmem:[#allocation4 + $0x1e8] sm:$0xff] %vm3296, %v3904
  %v3907 = vld [vmem:[#allocation3 + $0x60] sm:$0xff]
  %3909 = vrot.lane.b32.xlu0 %v3907, 32
  %v3910 = vpop.permute.xlu0 %3909
  %3912 = vst.msk [vmem:[#allocation4 + $0x200] sm:$0xff] %vm3296, %v3910
  %v3913 = vld [vmem:[#allocation3 + $0x60] sm:$0xff]
  %3914 = vst.msk [vmem:[#allocation4 + $0x218] sm:$0xff] %vm3296, %v3913
  %v3915 = vld [vmem:[#allocation3 + $0x60] sm:$0xff]
  %3917 = vrot.lane.b32.xlu0 %v3915, 96
  %v3918 = vpop.permute.xlu0 %3917
  %3920 = vst.msk [vmem:[#allocation4 + $0x230] sm:$0xff] %vm3296, %v3918
  %v3921 = vld [vmem:[#allocation3 + $0x68] sm:$0xff]
  %3923 = vrot.lane.b32.xlu0 %v3921, 64
  %v3924 = vpop.permute.xlu0 %3923
  %3926 = vst.msk [vmem:[#allocation4 + $0x248] sm:$0xff] %vm3296, %v3924
  %v3927 = vld [vmem:[#allocation3 + $0x20] sm:$0xff]
  %3929 = vrot.lane.b32.xlu0 %v3927, 64
  %v3930 = vpop.permute.xlu0 %3929
  %3932 = vst.msk [vmem:[#allocation4 + $0x8] sm:$0xff] %vm3411, %v3930
  %v3933 = vld [vmem:[#allocation3 + $0x20] sm:$0xff]
  %3935 = vrot.lane.b32.xlu0 %v3933, 32
  %v3936 = vpop.permute.xlu0 %3935
  %3938 = vst.msk [vmem:[#allocation4 + $0x20] sm:$0xff] %vm3411, %v3936
  %v3939 = vld [vmem:[#allocation3 + $0x20] sm:$0xff]
  %3940 = vst.msk [vmem:[#allocation4 + $0x38] sm:$0xff] %vm3411, %v3939
  %v3941 = vld [vmem:[#allocation3 + $0x28] sm:$0xff]
  %3943 = vrot.lane.b32.xlu0 %v3941, 96
  %v3944 = vpop.permute.xlu0 %3943
  %3946 = vst.msk [vmem:[#allocation4 + $0x50] sm:$0xff] %vm3411, %v3944
  %v3947 = vld [vmem:[#allocation3 + $0x28] sm:$0xff]
  %3949 = vrot.lane.b32.xlu0 %v3947, 64
  %v3950 = vpop.permute.xlu0 %3949
  %3952 = vst.msk [vmem:[#allocation4 + $0x68] sm:$0xff] %vm3411, %v3950
  %v3953 = vld [vmem:[#allocation3 + $0x30] sm:$0xff]
  %3955 = vrot.lane.b32.xlu0 %v3953, 64
  %v3956 = vpop.permute.xlu0 %3955
  %3958 = vst.msk [vmem:[#allocation4 + $0x80] sm:$0xff] %vm3411, %v3956
  %v3959 = vld [vmem:[#allocation3 + $0x30] sm:$0xff]
  %3961 = vrot.lane.b32.xlu0 %v3959, 32
  %v3962 = vpop.permute.xlu0 %3961
  %3964 = vst.msk [vmem:[#allocation4 + $0x98] sm:$0xff] %vm3411, %v3962
  %v3965 = vld [vmem:[#allocation3 + $0x30] sm:$0xff]
  %3966 = vst.msk [vmem:[#allocation4 + $0xb0] sm:$0xff] %vm3411, %v3965
  %v3967 = vld [vmem:[#allocation3 + $0x38] sm:$0xff]
  %3969 = vrot.lane.b32.xlu0 %v3967, 96
  %v3970 = vpop.permute.xlu0 %3969
  %3972 = vst.msk [vmem:[#allocation4 + $0xc8] sm:$0xff] %vm3411, %v3970
  %v3973 = vld [vmem:[#allocation3 + $0x38] sm:$0xff]
  %3975 = vrot.lane.b32.xlu0 %v3973, 64
  %v3976 = vpop.permute.xlu0 %3975
  %3978 = vst.msk [vmem:[#allocation4 + $0xe0] sm:$0xff] %vm3411, %v3976
  %v3979 = vld [vmem:[#allocation3 + $0x40] sm:$0xff]
  %3981 = vrot.lane.b32.xlu0 %v3979, 64
  %v3982 = vpop.permute.xlu0 %3981
  %3984 = vst.msk [vmem:[#allocation4 + $0xf8] sm:$0xff] %vm3411, %v3982
  %v3985 = vld [vmem:[#allocation3 + $0x40] sm:$0xff]
  %3987 = vrot.lane.b32.xlu0 %v3985, 32
  %v3988 = vpop.permute.xlu0 %3987
  %3990 = vst.msk [vmem:[#allocation4 + $0x110] sm:$0xff] %vm3411, %v3988
  %v3991 = vld [vmem:[#allocation3 + $0x40] sm:$0xff]
  %3992 = vst.msk [vmem:[#allocation4 + $0x128] sm:$0xff] %vm3411, %v3991
  %v3993 = vld [vmem:[#allocation3 + $0x48] sm:$0xff]
  %3995 = vrot.lane.b32.xlu0 %v3993, 96
  %v3996 = vpop.permute.xlu0 %3995
  %3998 = vst.msk [vmem:[#allocation4 + $0x140] sm:$0xff] %vm3411, %v3996
  %v3999 = vld [vmem:[#allocation3 + $0x48] sm:$0xff]
  %4001 = vrot.lane.b32.xlu0 %v3999, 64
  %v4002 = vpop.permute.xlu0 %4001
  %4004 = vst.msk [vmem:[#allocation4 + $0x158] sm:$0xff] %vm3411, %v4002
  %v4005 = vld [vmem:[#allocation3 + $0x50] sm:$0xff]
  %4007 = vrot.lane.b32.xlu0 %v4005, 64
  %v4008 = vpop.permute.xlu0 %4007
  %4010 = vst.msk [vmem:[#allocation4 + $0x170] sm:$0xff] %vm3411, %v4008
  %v4011 = vld [vmem:[#allocation3 + $0x50] sm:$0xff]
  %4013 = vrot.lane.b32.xlu0 %v4011, 32
  %v4014 = vpop.permute.xlu0 %4013
  %4016 = vst.msk [vmem:[#allocation4 + $0x188] sm:$0xff] %vm3411, %v4014
  %v4017 = vld [vmem:[#allocation3 + $0x50] sm:$0xff]
  %4018 = vst.msk [vmem:[#allocation4 + $0x1a0] sm:$0xff] %vm3411, %v4017
  %v4019 = vld [vmem:[#allocation3 + $0x58] sm:$0xff]
  %4021 = vrot.lane.b32.xlu0 %v4019, 96
  %v4022 = vpop.permute.xlu0 %4021
  %4024 = vst.msk [vmem:[#allocation4 + $0x1b8] sm:$0xff] %vm3411, %v4022
  %v4025 = vld [vmem:[#allocation3 + $0x58] sm:$0xff]
  %4027 = vrot.lane.b32.xlu0 %v4025, 64
  %v4028 = vpop.permute.xlu0 %4027
  %4030 = vst.msk [vmem:[#allocation4 + $0x1d0] sm:$0xff] %vm3411, %v4028
  %v4031 = vld [vmem:[#allocation3 + $0x60] sm:$0xff]
  %4033 = vrot.lane.b32.xlu0 %v4031, 64
  %v4034 = vpop.permute.xlu0 %4033
  %4036 = vst.msk [vmem:[#allocation4 + $0x1e8] sm:$0xff] %vm3411, %v4034
  %v4037 = vld [vmem:[#allocation3 + $0x60] sm:$0xff]
  %4039 = vrot.lane.b32.xlu0 %v4037, 32
  %v4040 = vpop.permute.xlu0 %4039
  %4042 = vst.msk [vmem:[#allocation4 + $0x200] sm:$0xff] %vm3411, %v4040
  %v4043 = vld [vmem:[#allocation3 + $0x60] sm:$0xff]
  %4044 = vst.msk [vmem:[#allocation4 + $0x218] sm:$0xff] %vm3411, %v4043
  %v4045 = vld [vmem:[#allocation3 + $0x68] sm:$0xff]
  %4047 = vrot.lane.b32.xlu0 %v4045, 96
  %v4048 = vpop.permute.xlu0 %4047
  %4050 = vst.msk [vmem:[#allocation4 + $0x230] sm:$0xff] %vm3411, %v4048
  %v4051 = vld [vmem:[#allocation3 + $0x68] sm:$0xff]
  %4053 = vrot.lane.b32.xlu0 %v4051, 64
  %v4054 = vpop.permute.xlu0 %4053
  %4056 = vst.msk [vmem:[#allocation4 + $0x248] sm:$0xff] %vm3411, %v4054
  %v4057 = vld [vmem:[#allocation3 + $0x20] sm:$0xff]
  %4059 = vrot.lane.b32.xlu0 %v4057, 64
  %v4060 = vpop.permute.xlu0 %4059
  %4062 = vst.msk [vmem:[#allocation4 + $0x10] sm:$0xff] %vm626, %v4060
  %v4063 = vld [vmem:[#allocation3 + $0x20] sm:$0xff]
  %4065 = vrot.lane.b32.xlu0 %v4063, 32
  %v4066 = vpop.permute.xlu0 %4065
  %4068 = vst.msk [vmem:[#allocation4 + $0x28] sm:$0xff] %vm626, %v4066
  %v4069 = vld [vmem:[#allocation3 + $0x28] sm:$0xff]
  %4070 = vst.msk [vmem:[#allocation4 + $0x40] sm:$0xff] %vm626, %v4069
  %v4071 = vld [vmem:[#allocation3 + $0x28] sm:$0xff]
  %4073 = vrot.lane.b32.xlu0 %v4071, 96
  %v4074 = vpop.permute.xlu0 %4073
  %4076 = vst.msk [vmem:[#allocation4 + $0x58] sm:$0xff] %vm626, %v4074
  %v4077 = vld [vmem:[#allocation3 + $0x28] sm:$0xff]
  %4079 = vrot.lane.b32.xlu0 %v4077, 64
  %v4080 = vpop.permute.xlu0 %4079
  %4082 = vst.msk [vmem:[#allocation4 + $0x70] sm:$0xff] %vm626, %v4080
  %v4083 = vld [vmem:[#allocation3 + $0x30] sm:$0xff]
  %4085 = vrot.lane.b32.xlu0 %v4083, 64
  %v4086 = vpop.permute.xlu0 %4085
  %4088 = vst.msk [vmem:[#allocation4 + $0x88] sm:$0xff] %vm626, %v4086
  %v4089 = vld [vmem:[#allocation3 + $0x30] sm:$0xff]
  %4091 = vrot.lane.b32.xlu0 %v4089, 32
  %v4092 = vpop.permute.xlu0 %4091
  %4094 = vst.msk [vmem:[#allocation4 + $0xa0] sm:$0xff] %vm626, %v4092
  %v4095 = vld [vmem:[#allocation3 + $0x38] sm:$0xff]
  %4096 = vst.msk [vmem:[#allocation4 + $0xb8] sm:$0xff] %vm626, %v4095
  %v4097 = vld [vmem:[#allocation3 + $0x38] sm:$0xff]
  %4099 = vrot.lane.b32.xlu0 %v4097, 96
  %v4100 = vpop.permute.xlu0 %4099
  %4102 = vst.msk [vmem:[#allocation4 + $0xd0] sm:$0xff] %vm626, %v4100
  %v4103 = vld [vmem:[#allocation3 + $0x38] sm:$0xff]
  %4105 = vrot.lane.b32.xlu0 %v4103, 64
  %v4106 = vpop.permute.xlu0 %4105
  %4108 = vst.msk [vmem:[#allocation4 + $0xe8] sm:$0xff] %vm626, %v4106
  %v4109 = vld [vmem:[#allocation3 + $0x40] sm:$0xff]
  %4111 = vrot.lane.b32.xlu0 %v4109, 64
  %v4112 = vpop.permute.xlu0 %4111
  %4114 = vst.msk [vmem:[#allocation4 + $0x100] sm:$0xff] %vm626, %v4112
  %v4115 = vld [vmem:[#allocation3 + $0x40] sm:$0xff]
  %4117 = vrot.lane.b32.xlu0 %v4115, 32
  %v4118 = vpop.permute.xlu0 %4117
  %4120 = vst.msk [vmem:[#allocation4 + $0x118] sm:$0xff] %vm626, %v4118
  %v4121 = vld [vmem:[#allocation3 + $0x48] sm:$0xff]
  %4122 = vst.msk [vmem:[#allocation4 + $0x130] sm:$0xff] %vm626, %v4121
  %v4123 = vld [vmem:[#allocation3 + $0x48] sm:$0xff]
  %4125 = vrot.lane.b32.xlu0 %v4123, 96
  %v4126 = vpop.permute.xlu0 %4125
  %4128 = vst.msk [vmem:[#allocation4 + $0x148] sm:$0xff] %vm626, %v4126
  %v4129 = vld [vmem:[#allocation3 + $0x48] sm:$0xff]
  %4131 = vrot.lane.b32.xlu0 %v4129, 64
  %v4132 = vpop.permute.xlu0 %4131
  %4134 = vst.msk [vmem:[#allocation4 + $0x160] sm:$0xff] %vm626, %v4132
  %v4135 = vld [vmem:[#allocation3 + $0x50] sm:$0xff]
  %4137 = vrot.lane.b32.xlu0 %v4135, 64
  %v4138 = vpop.permute.xlu0 %4137
  %4140 = vst.msk [vmem:[#allocation4 + $0x178] sm:$0xff] %vm626, %v4138
  %v4141 = vld [vmem:[#allocation3 + $0x50] sm:$0xff]
  %4143 = vrot.lane.b32.xlu0 %v4141, 32
  %v4144 = vpop.permute.xlu0 %4143
  %4146 = vst.msk [vmem:[#allocation4 + $0x190] sm:$0xff] %vm626, %v4144
  %v4147 = vld [vmem:[#allocation3 + $0x58] sm:$0xff]
  %4148 = vst.msk [vmem:[#allocation4 + $0x1a8] sm:$0xff] %vm626, %v4147
  %v4149 = vld [vmem:[#allocation3 + $0x58] sm:$0xff]
  %4151 = vrot.lane.b32.xlu0 %v4149, 96
  %v4152 = vpop.permute.xlu0 %4151
  %4154 = vst.msk [vmem:[#allocation4 + $0x1c0] sm:$0xff] %vm626, %v4152
  %v4155 = vld [vmem:[#allocation3 + $0x58] sm:$0xff]
  %4157 = vrot.lane.b32.xlu0 %v4155, 64
  %v4158 = vpop.permute.xlu0 %4157
  %4160 = vst.msk [vmem:[#allocation4 + $0x1d8] sm:$0xff] %vm626, %v4158
  %v4161 = vld [vmem:[#allocation3 + $0x60] sm:$0xff]
  %4163 = vrot.lane.b32.xlu0 %v4161, 64
  %v4164 = vpop.permute.xlu0 %4163
  %4166 = vst.msk [vmem:[#allocation4 + $0x1f0] sm:$0xff] %vm626, %v4164
  %v4167 = vld [vmem:[#allocation3 + $0x60] sm:$0xff]
  %4169 = vrot.lane.b32.xlu0 %v4167, 32
  %v4170 = vpop.permute.xlu0 %4169
  %4172 = vst.msk [vmem:[#allocation4 + $0x208] sm:$0xff] %vm626, %v4170
  %v4173 = vld [vmem:[#allocation3 + $0x68] sm:$0xff]
  %4174 = vst.msk [vmem:[#allocation4 + $0x220] sm:$0xff] %vm626, %v4173
  %v4175 = vld [vmem:[#allocation3 + $0x68] sm:$0xff]
  %4177 = vrot.lane.b32.xlu0 %v4175, 96
  %v4178 = vpop.permute.xlu0 %4177
  %4180 = vst.msk [vmem:[#allocation4 + $0x238] sm:$0xff] %vm626, %v4178
  %v4181 = vld [vmem:[#allocation3 + $0x68] sm:$0xff]
  %4183 = vrot.lane.b32.xlu0 %v4181, 64
  %v4184 = vpop.permute.xlu0 %4183
  %4186 = vst.msk [vmem:[#allocation4 + $0x250] sm:$0xff] %vm626, %v4184
  %v4187 = vld [vmem:[#allocation4] sm:$0xff]
  %v4188 = vld [vmem:[#allocation4 + $0x8] sm:$0xff]
  %v4189 = vld [vmem:[#allocation4 + $0x10] sm:$0xff]
  %v4190 = vld [vmem:[#allocation4 + $0x18] sm:$0xff]
  %v4191 = vld [vmem:[#allocation4 + $0x20] sm:$0xff]
  %v4192 = vld [vmem:[#allocation4 + $0x28] sm:$0xff]
  %v4193 = vld [vmem:[#allocation4 + $0x30] sm:$0xff]
  %v4194 = vld [vmem:[#allocation4 + $0x38] sm:$0xff]
  %v4195 = vld [vmem:[#allocation4 + $0x40] sm:$0xff]
  %v4196 = vld [vmem:[#allocation4 + $0x48] sm:$0xff]
  %v4197 = vld [vmem:[#allocation4 + $0x50] sm:$0xff]
  %v4198 = vld [vmem:[#allocation4 + $0x58] sm:$0xff]
  %v4199 = vld [vmem:[#allocation4 + $0x60] sm:$0xff]
  %v4200 = vld [vmem:[#allocation4 + $0x68] sm:$0xff]
  %v4201 = vld [vmem:[#allocation4 + $0x70] sm:$0xff]
  %v4202 = vld [vmem:[#allocation4 + $0x78] sm:$0xff]
  %v4203 = vld [vmem:[#allocation4 + $0x80] sm:$0xff]
  %v4204 = vld [vmem:[#allocation4 + $0x88] sm:$0xff]
  %v4205 = vld [vmem:[#allocation4 + $0x90] sm:$0xff]
  %v4206 = vld [vmem:[#allocation4 + $0x98] sm:$0xff]
  %v4207 = vld [vmem:[#allocation4 + $0xa0] sm:$0xff]
  %v4208 = vld [vmem:[#allocation4 + $0xa8] sm:$0xff]
  %v4209 = vld [vmem:[#allocation4 + $0xb0] sm:$0xff]
  %v4210 = vld [vmem:[#allocation4 + $0xb8] sm:$0xff]
  %v4211 = vld [vmem:[#allocation4 + $0xc0] sm:$0xff]
  %v4212 = vld [vmem:[#allocation4 + $0xc8] sm:$0xff]
  %v4213 = vld [vmem:[#allocation4 + $0xd0] sm:$0xff]
  %v4214 = vld [vmem:[#allocation4 + $0xd8] sm:$0xff]
  %v4215 = vld [vmem:[#allocation4 + $0xe0] sm:$0xff]
  %v4216 = vld [vmem:[#allocation4 + $0xe8] sm:$0xff]
  %v4217 = vld [vmem:[#allocation4 + $0xf0] sm:$0xff]
  %v4218 = vld [vmem:[#allocation4 + $0xf8] sm:$0xff]
  %v4219 = vld [vmem:[#allocation4 + $0x100] sm:$0xff]
  %v4220 = vld [vmem:[#allocation4 + $0x108] sm:$0xff]
  %v4221 = vld [vmem:[#allocation4 + $0x110] sm:$0xff]
  %v4222 = vld [vmem:[#allocation4 + $0x118] sm:$0xff]
  %v4223 = vld [vmem:[#allocation4 + $0x120] sm:$0xff]
  %v4224 = vld [vmem:[#allocation4 + $0x128] sm:$0xff]
  %v4225 = vld [vmem:[#allocation4 + $0x130] sm:$0xff]
  %v4226 = vld [vmem:[#allocation4 + $0x138] sm:$0xff]
  %v4227 = vld [vmem:[#allocation4 + $0x140] sm:$0xff]
  %v4228 = vld [vmem:[#allocation4 + $0x148] sm:$0xff]
  %v4229 = vld [vmem:[#allocation4 + $0x150] sm:$0xff]
  %v4230 = vld [vmem:[#allocation4 + $0x158] sm:$0xff]
  %v4231 = vld [vmem:[#allocation4 + $0x160] sm:$0xff]
  %v4232 = vld [vmem:[#allocation4 + $0x168] sm:$0xff]
  %v4233 = vld [vmem:[#allocation4 + $0x170] sm:$0xff]
  %v4234 = vld [vmem:[#allocation4 + $0x178] sm:$0xff]
  %v4235 = vld [vmem:[#allocation4 + $0x180] sm:$0xff]
  %v4236 = vld [vmem:[#allocation4 + $0x188] sm:$0xff]
  %v4237 = vld [vmem:[#allocation4 + $0x190] sm:$0xff]
  %v4238 = vld [vmem:[#allocation4 + $0x198] sm:$0xff]
  %v4239 = vld [vmem:[#allocation4 + $0x1a0] sm:$0xff]
  %v4240 = vld [vmem:[#allocation4 + $0x1a8] sm:$0xff]
  %v4241 = vld [vmem:[#allocation4 + $0x1b0] sm:$0xff]
  %v4242 = vld [vmem:[#allocation4 + $0x1b8] sm:$0xff]
  %v4243 = vld [vmem:[#allocation4 + $0x1c0] sm:$0xff]
  %v4244 = vld [vmem:[#allocation4 + $0x1c8] sm:$0xff]
  %v4245 = vld [vmem:[#allocation4 + $0x1d0] sm:$0xff]
  %v4246 = vld [vmem:[#allocation4 + $0x1d8] sm:$0xff]
  %v4247 = vld [vmem:[#allocation4 + $0x1e0] sm:$0xff]
  %v4248 = vld [vmem:[#allocation4 + $0x1e8] sm:$0xff]
  %v4249 = vld [vmem:[#allocation4 + $0x1f0] sm:$0xff]
  %v4250 = vld [vmem:[#allocation4 + $0x1f8] sm:$0xff]
  %v4251 = vld [vmem:[#allocation4 + $0x200] sm:$0xff]
  %v4252 = vld [vmem:[#allocation4 + $0x208] sm:$0xff]
  %v4253 = vld [vmem:[#allocation4 + $0x210] sm:$0xff]
  %v4254 = vld [vmem:[#allocation4 + $0x218] sm:$0xff]
  %v4255 = vld [vmem:[#allocation4 + $0x220] sm:$0xff]
  %v4256 = vld [vmem:[#allocation4 + $0x228] sm:$0xff]
  %v4257 = vld [vmem:[#allocation4 + $0x230] sm:$0xff]
  %v4258 = vld [vmem:[#allocation4 + $0x238] sm:$0xff]
  %v4259 = vld [vmem:[#allocation4 + $0x240] sm:$0xff]
  %v4260 = vld [vmem:[#allocation4 + $0x248] sm:$0xff]
  %v4261 = vld [vmem:[#allocation4 + $0x250] sm:$0xff]
  %v4262 = vld [vmem:[%s3] sm:$0xff]
  %v4263 = vld [vmem:[%s3 + $0x8] sm:$0xff]
  %v4264 = vld [vmem:[%s3 + $0x10] sm:$0xff]
  %v4265 = vld [vmem:[%s3 + $0x18] sm:$0xff]
  %v4266 = vld [vmem:[%s3 + $0x20] sm:$0xff]
  %v4267 = vld [vmem:[%s3 + $0x28] sm:$0xff]
  %v4268 = vld [vmem:[%s3 + $0x30] sm:$0xff]
  %v4269 = vld [vmem:[%s3 + $0x38] sm:$0xff]
  %v4270 = vld [vmem:[%s3 + $0x40] sm:$0xff]
  %v4271 = vld [vmem:[%s3 + $0x48] sm:$0xff]
  %v4272 = vld [vmem:[%s3 + $0x50] sm:$0xff]
  %v4273 = vld [vmem:[%s3 + $0x58] sm:$0xff]
  %v4274 = vld [vmem:[%s3 + $0x60] sm:$0xff]
  %v4275 = vld [vmem:[%s3 + $0x68] sm:$0xff]
  %v4276 = vld [vmem:[%s3 + $0x70] sm:$0xff]
  %v4277 = vld [vmem:[%s3 + $0x78] sm:$0xff]
  %v4278 = vld [vmem:[%s3 + $0x80] sm:$0xff]
  %v4279 = vld [vmem:[%s3 + $0x88] sm:$0xff]
  %v4280 = vld [vmem:[%s3 + $0x90] sm:$0xff]
  %v4281 = vld [vmem:[%s3 + $0x98] sm:$0xff]
  %v4282 = vld [vmem:[%s3 + $0xa0] sm:$0xff]
  %v4283 = vld [vmem:[%s3 + $0xa8] sm:$0xff]
  %v4284 = vld [vmem:[%s3 + $0xb0] sm:$0xff]
  %v4285 = vld [vmem:[%s3 + $0xb8] sm:$0xff]
  %v4286 = vld [vmem:[%s3 + $0xc0] sm:$0xff]
  %v4287 = vld [vmem:[%s3 + $0xc8] sm:$0xff]
  %v4288 = vld [vmem:[%s3 + $0xd0] sm:$0xff]
  %v4289 = vld [vmem:[%s3 + $0xd8] sm:$0xff]
  %v4290 = vld [vmem:[%s3 + $0xe0] sm:$0xff]
  %v4291 = vld [vmem:[%s3 + $0xe8] sm:$0xff]
  %v4292 = vld [vmem:[%s3 + $0xf0] sm:$0xff]
  %v4293 = vld [vmem:[%s3 + $0xf8] sm:$0xff]
  %v4294 = vld [vmem:[%s3 + $0x100] sm:$0xff]
  %v4295 = vld [vmem:[%s3 + $0x108] sm:$0xff]
  %v4296 = vld [vmem:[%s3 + $0x110] sm:$0xff]
  %v4297 = vld [vmem:[%s3 + $0x118] sm:$0xff]
  %v4298 = vld [vmem:[%s4] sm:$0x1]
  %v4300 = vperm.slane %v4298, 0
  %v4303 = vsel %vm626, %v4189, 0
  %v4306 = vsel %vm626, %v4192, 0
  %v4309 = vsel %vm626, %v4195, 0
  %v4312 = vsel %vm626, %v4198, 0
  %v4315 = vsel %vm626, %v4201, 0
  %v4318 = vsel %vm626, %v4204, 0
  %v4321 = vsel %vm626, %v4207, 0
  %v4324 = vsel %vm626, %v4210, 0
  %v4327 = vsel %vm626, %v4213, 0
  %v4330 = vsel %vm626, %v4216, 0
  %v4333 = vsel %vm626, %v4219, 0
  %v4336 = vsel %vm626, %v4222, 0
  %v4339 = vsel %vm626, %v4225, 0
  %v4342 = vsel %vm626, %v4228, 0
  %v4345 = vsel %vm626, %v4231, 0
  %v4348 = vsel %vm626, %v4234, 0
  %v4351 = vsel %vm626, %v4237, 0
  %v4354 = vsel %vm626, %v4240, 0
  %v4357 = vsel %vm626, %v4243, 0
  %v4360 = vsel %vm626, %v4246, 0
  %v4363 = vsel %vm626, %v4249, 0
  %v4366 = vsel %vm626, %v4252, 0
  %v4369 = vsel %vm626, %v4255, 0
  %v4372 = vsel %vm626, %v4258, 0
  %v4375 = vsel %vm626, %v4261, 0
  %4377 = vmatpush.msra.mxu0 %v4277
  %4378 = vmatpush.msra.mxu0 %v4276
  %4379 = vmatpush.msra.mxu0 %v4275
  %4380 = vmatpush.msra.mxu0 %v4274
  %4381 = vmatpush.msra.mxu0 %v4273
  %4382 = vmatpush.msra.mxu0 %v4272
  %4383 = vmatpush.msra.mxu0 %v4271
  %4384 = vmatpush.msra.mxu0 %v4270
  %4385 = vmatpush.msra.mxu0 %v4269
  %4386 = vmatpush.msra.mxu0 %v4268
  %4387 = vmatpush.msra.mxu0 %v4267
  %4388 = vmatpush.msra.mxu0 %v4266
  %4389 = vmatpush.msra.mxu0 %v4265
  %4390 = vmatpush.msra.mxu0 %v4264
  %4391 = vmatpush.msra.mxu0 %v4263
  %4392 = vmatpush.msra.mxu0 %v4262
  %4393 = vmatmul.f32.gmra.mxu0 %v4187
  %v4394 = vpop.f32.mrf.mxu0
  %v4395 = vadd.f32 %v4300, %v4394
  %4396 = vmatmul.f32.gmra.mxu0 %v4190
  %v4397 = vpop.f32.mrf.mxu0
  %v4398 = vadd.f32 %v4300, %v4397
  %4399 = vmatmul.f32.gmra.mxu0 %v4193
  %v4400 = vpop.f32.mrf.mxu0
  %v4401 = vadd.f32 %v4300, %v4400
  %4402 = vmatmul.f32.gmra.mxu0 %v4196
  %v4403 = vpop.f32.mrf.mxu0
  %v4404 = vadd.f32 %v4300, %v4403
  %4405 = vmatmul.f32.gmra.mxu0 %v4199
  %v4406 = vpop.f32.mrf.mxu0
  %v4407 = vadd.f32 %v4300, %v4406
  %4408 = vmatmul.f32.gmra.mxu0 %v4202
  %v4409 = vpop.f32.mrf.mxu0
  %v4410 = vadd.f32 %v4300, %v4409
  %4411 = vmatmul.f32.gmra.mxu0 %v4205
  %v4412 = vpop.f32.mrf.mxu0
  %v4413 = vadd.f32 %v4300, %v4412
  %4414 = vmatmul.f32.gmra.mxu0 %v4208
  %v4415 = vpop.f32.mrf.mxu0
  %v4416 = vadd.f32 %v4300, %v4415
  %4417 = vmatmul.f32.gmra.mxu0 %v4211
  %v4418 = vpop.f32.mrf.mxu0
  %v4419 = vadd.f32 %v4300, %v4418
  %4420 = vmatmul.f32.gmra.mxu0 %v4214
  %v4421 = vpop.f32.mrf.mxu0
  %v4422 = vadd.f32 %v4300, %v4421
  %4423 = vmatmul.f32.gmra.mxu0 %v4217
  %v4424 = vpop.f32.mrf.mxu0
  %v4425 = vadd.f32 %v4300, %v4424
  %4426 = vmatmul.f32.gmra.mxu0 %v4220
  %v4427 = vpop.f32.mrf.mxu0
  %v4428 = vadd.f32 %v4300, %v4427
  %4429 = vmatmul.f32.gmra.mxu0 %v4223
  %v4430 = vpop.f32.mrf.mxu0
  %v4431 = vadd.f32 %v4300, %v4430
  %4432 = vmatmul.f32.gmra.mxu0 %v4226
  %v4433 = vpop.f32.mrf.mxu0
  %v4434 = vadd.f32 %v4300, %v4433
  %4435 = vmatmul.f32.gmra.mxu0 %v4229
  %v4436 = vpop.f32.mrf.mxu0
  %v4437 = vadd.f32 %v4300, %v4436
  %4438 = vmatmul.f32.gmra.mxu0 %v4232
  %v4439 = vpop.f32.mrf.mxu0
  %v4440 = vadd.f32 %v4300, %v4439
  %4441 = vmatmul.f32.gmra.mxu0 %v4235
  %v4442 = vpop.f32.mrf.mxu0
  %v4443 = vadd.f32 %v4300, %v4442
  %4444 = vmatmul.f32.gmra.mxu0 %v4238
  %v4445 = vpop.f32.mrf.mxu0
  %v4446 = vadd.f32 %v4300, %v4445
  %4447 = vmatmul.f32.gmra.mxu0 %v4241
  %v4448 = vpop.f32.mrf.mxu0
  %v4449 = vadd.f32 %v4300, %v4448
  %4450 = vmatmul.f32.gmra.mxu0 %v4244
  %v4451 = vpop.f32.mrf.mxu0
  %v4452 = vadd.f32 %v4300, %v4451
  %4453 = vmatmul.f32.gmra.mxu0 %v4247
  %v4454 = vpop.f32.mrf.mxu0
  %v4455 = vadd.f32 %v4300, %v4454
  %4456 = vmatmul.f32.gmra.mxu0 %v4250
  %v4457 = vpop.f32.mrf.mxu0
  %v4458 = vadd.f32 %v4300, %v4457
  %4459 = vmatmul.f32.gmra.mxu0 %v4253
  %v4460 = vpop.f32.mrf.mxu0
  %v4461 = vadd.f32 %v4300, %v4460
  %4462 = vmatmul.f32.gmra.mxu0 %v4256
  %v4463 = vpop.f32.mrf.mxu0
  %v4464 = vadd.f32 %v4300, %v4463
  %4465 = vmatmul.f32.gmra.mxu0 %v4259
  %v4466 = vpop.f32.mrf.mxu0
  %v4467 = vadd.f32 %v4300, %v4466
  %4468 = vdwg.mxu0
  %4469 = vmatpush.msra.mxu0 %v4293
  %4470 = vmatpush.msra.mxu0 %v4292
  %4471 = vmatpush.msra.mxu0 %v4291
  %4472 = vmatpush.msra.mxu0 %v4290
  %4473 = vmatpush.msra.mxu0 %v4289
  %4474 = vmatpush.msra.mxu0 %v4288
  %4475 = vmatpush.msra.mxu0 %v4287
  %4476 = vmatpush.msra.mxu0 %v4286
  %4477 = vmatpush.msra.mxu0 %v4285
  %4478 = vmatpush.msra.mxu0 %v4284
  %4479 = vmatpush.msra.mxu0 %v4283
  %4480 = vmatpush.msra.mxu0 %v4282
  %4481 = vmatpush.msra.mxu0 %v4281
  %4482 = vmatpush.msra.mxu0 %v4280
  %4483 = vmatpush.msra.mxu0 %v4279
  %4484 = vmatpush.msra.mxu0 %v4278
  %4485 = vmatmul.f32.gmra.mxu0 %v4188
  %v4486 = vpop.f32.mrf.mxu0
  %v4487 = vadd.f32 %v4395, %v4486
  %4488 = vmatmul.f32.gmra.mxu0 %v4191
  %v4489 = vpop.f32.mrf.mxu0
  %v4490 = vadd.f32 %v4398, %v4489
  %4491 = vmatmul.f32.gmra.mxu0 %v4194
  %v4492 = vpop.f32.mrf.mxu0
  %v4493 = vadd.f32 %v4401, %v4492
  %4494 = vmatmul.f32.gmra.mxu0 %v4197
  %v4495 = vpop.f32.mrf.mxu0
  %v4496 = vadd.f32 %v4404, %v4495
  %4497 = vmatmul.f32.gmra.mxu0 %v4200
  %v4498 = vpop.f32.mrf.mxu0
  %v4499 = vadd.f32 %v4407, %v4498
  %4500 = vmatmul.f32.gmra.mxu0 %v4203
  %v4501 = vpop.f32.mrf.mxu0
  %v4502 = vadd.f32 %v4410, %v4501
  %4503 = vmatmul.f32.gmra.mxu0 %v4206
  %v4504 = vpop.f32.mrf.mxu0
  %v4505 = vadd.f32 %v4413, %v4504
  %4506 = vmatmul.f32.gmra.mxu0 %v4209
  %v4507 = vpop.f32.mrf.mxu0
  %v4508 = vadd.f32 %v4416, %v4507
  %4509 = vmatmul.f32.gmra.mxu0 %v4212
  %v4510 = vpop.f32.mrf.mxu0
  %v4511 = vadd.f32 %v4419, %v4510
  %4512 = vmatmul.f32.gmra.mxu0 %v4215
  %v4513 = vpop.f32.mrf.mxu0
  %v4514 = vadd.f32 %v4422, %v4513
  %4515 = vmatmul.f32.gmra.mxu0 %v4218
  %v4516 = vpop.f32.mrf.mxu0
  %v4517 = vadd.f32 %v4425, %v4516
  %4518 = vmatmul.f32.gmra.mxu0 %v4221
  %v4519 = vpop.f32.mrf.mxu0
  %v4520 = vadd.f32 %v4428, %v4519
  %4521 = vmatmul.f32.gmra.mxu0 %v4224
  %v4522 = vpop.f32.mrf.mxu0
  %v4523 = vadd.f32 %v4431, %v4522
  %4524 = vmatmul.f32.gmra.mxu0 %v4227
  %v4525 = vpop.f32.mrf.mxu0
  %v4526 = vadd.f32 %v4434, %v4525
  %4527 = vmatmul.f32.gmra.mxu0 %v4230
  %v4528 = vpop.f32.mrf.mxu0
  %v4529 = vadd.f32 %v4437, %v4528
  %4530 = vmatmul.f32.gmra.mxu0 %v4233
  %v4531 = vpop.f32.mrf.mxu0
  %v4532 = vadd.f32 %v4440, %v4531
  %4533 = vmatmul.f32.gmra.mxu0 %v4236
  %v4534 = vpop.f32.mrf.mxu0
  %v4535 = vadd.f32 %v4443, %v4534
  %4536 = vmatmul.f32.gmra.mxu0 %v4239
  %v4537 = vpop.f32.mrf.mxu0
  %v4538 = vadd.f32 %v4446, %v4537
  %4539 = vmatmul.f32.gmra.mxu0 %v4242
  %v4540 = vpop.f32.mrf.mxu0
  %v4541 = vadd.f32 %v4449, %v4540
  %4542 = vmatmul.f32.gmra.mxu0 %v4245
  %v4543 = vpop.f32.mrf.mxu0
  %v4544 = vadd.f32 %v4452, %v4543
  %4545 = vmatmul.f32.gmra.mxu0 %v4248
  %v4546 = vpop.f32.mrf.mxu0
  %v4547 = vadd.f32 %v4455, %v4546
  %4548 = vmatmul.f32.gmra.mxu0 %v4251
  %v4549 = vpop.f32.mrf.mxu0
  %v4550 = vadd.f32 %v4458, %v4549
  %4551 = vmatmul.f32.gmra.mxu0 %v4254
  %v4552 = vpop.f32.mrf.mxu0
  %v4553 = vadd.f32 %v4461, %v4552
  %4554 = vmatmul.f32.gmra.mxu0 %v4257
  %v4555 = vpop.f32.mrf.mxu0
  %v4556 = vadd.f32 %v4464, %v4555
  %4557 = vmatmul.f32.gmra.mxu0 %v4260
  %v4558 = vpop.f32.mrf.mxu0
  %v4559 = vadd.f32 %v4467, %v4558
  %4560 = vdwg.mxu0
  %4561 = vmatpush.msra.mxu0 0.0
  %4562 = vmatpush.msra.mxu0 0.0
  %4563 = vmatpush.msra.mxu0 0.0
  %4564 = vmatpush.msra.mxu0 0.0
  %4565 = vmatpush.msra.mxu0 0.0
  %4566 = vmatpush.msra.mxu0 0.0
  %4567 = vmatpush.msra.mxu0 0.0
  %4568 = vmatpush.msra.mxu0 0.0
  %4569 = vmatpush.msra.mxu0 0.0
  %4570 = vmatpush.msra.mxu0 0.0
  %4571 = vmatpush.msra.mxu0 0.0
  %4572 = vmatpush.msra.mxu0 0.0
  %4573 = vmatpush.msra.mxu0 %v4297
  %4574 = vmatpush.msra.mxu0 %v4296
  %4575 = vmatpush.msra.mxu0 %v4295
  %4576 = vmatpush.msra.mxu0 %v4294
  %4577 = vmatmul.f32.gmra.mxu0 %v4303
  %v4578 = vpop.f32.mrf.mxu0
  %v4579 = vadd.f32 %v4487, %v4578
  %4580 = vmatmul.f32.gmra.mxu0 %v4306
  %v4581 = vpop.f32.mrf.mxu0
  %v4582 = vadd.f32 %v4490, %v4581
  %4583 = vmatmul.f32.gmra.mxu0 %v4309
  %v4584 = vpop.f32.mrf.mxu0
  %v4585 = vadd.f32 %v4493, %v4584
  %4586 = vmatmul.f32.gmra.mxu0 %v4312
  %v4587 = vpop.f32.mrf.mxu0
  %v4588 = vadd.f32 %v4496, %v4587
  %4589 = vmatmul.f32.gmra.mxu0 %v4315
  %v4590 = vpop.f32.mrf.mxu0
  %v4591 = vadd.f32 %v4499, %v4590
  %4592 = vmatmul.f32.gmra.mxu0 %v4318
  %v4593 = vpop.f32.mrf.mxu0
  %v4594 = vadd.f32 %v4502, %v4593
  %4595 = vmatmul.f32.gmra.mxu0 %v4321
  %v4596 = vpop.f32.mrf.mxu0
  %v4597 = vadd.f32 %v4505, %v4596
  %4598 = vmatmul.f32.gmra.mxu0 %v4324
  %v4599 = vpop.f32.mrf.mxu0
  %v4600 = vadd.f32 %v4508, %v4599
  %4601 = vmatmul.f32.gmra.mxu0 %v4327
  %v4602 = vpop.f32.mrf.mxu0
  %v4603 = vadd.f32 %v4511, %v4602
  %4604 = vmatmul.f32.gmra.mxu0 %v4330
  %v4605 = vpop.f32.mrf.mxu0
  %v4606 = vadd.f32 %v4514, %v4605
  %4607 = vmatmul.f32.gmra.mxu0 %v4333
  %v4608 = vpop.f32.mrf.mxu0
  %v4609 = vadd.f32 %v4517, %v4608
  %4610 = vmatmul.f32.gmra.mxu0 %v4336
  %v4611 = vpop.f32.mrf.mxu0
  %v4612 = vadd.f32 %v4520, %v4611
  %4613 = vmatmul.f32.gmra.mxu0 %v4339
  %v4614 = vpop.f32.mrf.mxu0
  %v4615 = vadd.f32 %v4523, %v4614
  %4616 = vmatmul.f32.gmra.mxu0 %v4342
  %v4617 = vpop.f32.mrf.mxu0
  %v4618 = vadd.f32 %v4526, %v4617
  %4619 = vmatmul.f32.gmra.mxu0 %v4345
  %v4620 = vpop.f32.mrf.mxu0
  %v4621 = vadd.f32 %v4529, %v4620
  %4622 = vmatmul.f32.gmra.mxu0 %v4348
  %v4623 = vpop.f32.mrf.mxu0
  %v4624 = vadd.f32 %v4532, %v4623
  %4625 = vmatmul.f32.gmra.mxu0 %v4351
  %v4626 = vpop.f32.mrf.mxu0
  %v4627 = vadd.f32 %v4535, %v4626
  %4628 = vmatmul.f32.gmra.mxu0 %v4354
  %v4629 = vpop.f32.mrf.mxu0
  %v4630 = vadd.f32 %v4538, %v4629
  %4631 = vmatmul.f32.gmra.mxu0 %v4357
  %v4632 = vpop.f32.mrf.mxu0
  %v4633 = vadd.f32 %v4541, %v4632
  %4634 = vmatmul.f32.gmra.mxu0 %v4360
  %v4635 = vpop.f32.mrf.mxu0
  %v4636 = vadd.f32 %v4544, %v4635
  %4637 = vmatmul.f32.gmra.mxu0 %v4363
  %v4638 = vpop.f32.mrf.mxu0
  %v4639 = vadd.f32 %v4547, %v4638
  %4640 = vmatmul.f32.gmra.mxu0 %v4366
  %v4641 = vpop.f32.mrf.mxu0
  %v4642 = vadd.f32 %v4550, %v4641
  %4643 = vmatmul.f32.gmra.mxu0 %v4369
  %v4644 = vpop.f32.mrf.mxu0
  %v4645 = vadd.f32 %v4553, %v4644
  %4646 = vmatmul.f32.gmra.mxu0 %v4372
  %v4647 = vpop.f32.mrf.mxu0
  %v4648 = vadd.f32 %v4556, %v4647
  %4649 = vmatmul.f32.gmra.mxu0 %v4375
  %v4650 = vpop.f32.mrf.mxu0
  %v4651 = vadd.f32 %v4559, %v4650
  %4652 = vdwg.mxu0
  %v4653 = vmax.f32 %v4579, 0.0
  %v4654 = vmax.f32 %v4582, 0.0
  %v4655 = vmax.f32 %v4585, 0.0
  %v4656 = vmax.f32 %v4588, 0.0
  %v4657 = vmax.f32 %v4591, 0.0
  %v4658 = vmax.f32 %v4594, 0.0
  %v4659 = vmax.f32 %v4597, 0.0
  %v4660 = vmax.f32 %v4600, 0.0
  %v4661 = vmax.f32 %v4603, 0.0
  %v4662 = vmax.f32 %v4606, 0.0
  %v4663 = vmax.f32 %v4609, 0.0
  %v4664 = vmax.f32 %v4612, 0.0
  %v4665 = vmax.f32 %v4615, 0.0
  %v4666 = vmax.f32 %v4618, 0.0
  %v4667 = vmax.f32 %v4621, 0.0
  %v4668 = vmax.f32 %v4624, 0.0
  %v4669 = vmax.f32 %v4627, 0.0
  %v4670 = vmax.f32 %v4630, 0.0
  %v4671 = vmax.f32 %v4633, 0.0
  %v4672 = vmax.f32 %v4636, 0.0
  %v4673 = vmax.f32 %v4639, 0.0
  %v4674 = vmax.f32 %v4642, 0.0
  %v4675 = vmax.f32 %v4645, 0.0
  %v4676 = vmax.f32 %v4648, 0.0
  %v4677 = vmax.f32 %v4651, 0.0
  %4678 = vst [vmem:[#allocation5] sm:$0xff] %v4653
  %4679 = vst [vmem:[#allocation5 + $0x8] sm:$0xff] %v4654
  %4680 = vst [vmem:[#allocation5 + $0x10] sm:$0xff] %v4655
  %4681 = vst [vmem:[#allocation5 + $0x18] sm:$0xff] %v4656
  %4682 = vst [vmem:[#allocation5 + $0x20] sm:$0xff] %v4657
  %4683 = vst [vmem:[#allocation5 + $0x28] sm:$0xff] %v4658
  %4684 = vst [vmem:[#allocation5 + $0x30] sm:$0xff] %v4659
  %4685 = vst [vmem:[#allocation5 + $0x38] sm:$0xff] %v4660
  %4686 = vst [vmem:[#allocation5 + $0x40] sm:$0xff] %v4661
  %4687 = vst [vmem:[#allocation5 + $0x48] sm:$0xff] %v4662
  %4688 = vst [vmem:[#allocation5 + $0x50] sm:$0xff] %v4663
  %4689 = vst [vmem:[#allocation5 + $0x58] sm:$0xff] %v4664
  %4690 = vst [vmem:[#allocation5 + $0x60] sm:$0xff] %v4665
  %4691 = vst [vmem:[#allocation5 + $0x68] sm:$0xff] %v4666
  %4692 = vst [vmem:[#allocation5 + $0x70] sm:$0xff] %v4667
  %4693 = vst [vmem:[#allocation5 + $0x78] sm:$0xff] %v4668
  %4694 = vst [vmem:[#allocation5 + $0x80] sm:$0xff] %v4669
  %4695 = vst [vmem:[#allocation5 + $0x88] sm:$0xff] %v4670
  %4696 = vst [vmem:[#allocation5 + $0x90] sm:$0xff] %v4671
  %4697 = vst [vmem:[#allocation5 + $0x98] sm:$0xff] %v4672
  %4698 = vst [vmem:[#allocation5 + $0xa0] sm:$0xff] %v4673
  %4699 = vst [vmem:[#allocation5 + $0xa8] sm:$0xff] %v4674
  %4700 = vst [vmem:[#allocation5 + $0xb0] sm:$0xff] %v4675
  %4701 = vst [vmem:[#allocation5 + $0xb8] sm:$0xff] %v4676
  %4702 = vst [vmem:[#allocation5 + $0xc0] sm:$0xff] %v4677
  %v4703 = vld [vmem:[#allocation5] sm:$0xff]
  %v4704 = vld [vmem:[#allocation5 + $0x8] sm:$0xff]
  %v4705 = vmax.f32 %v4703, %v4704
  %v4706 = vld [vmem:[#allocation5 + $0x28] sm:$0xff]
  %v4707 = vld [vmem:[#allocation5 + $0x30] sm:$0xff]
  %v4708 = vmax.f32 %v4706, %v4707
  %v4709 = vmax.f32 %v4705, %v4708
  %v4710 = vld [vmem:[#allocation5 + $0x10] sm:$0xff]
  %v4711 = vld [vmem:[#allocation5 + $0x18] sm:$0xff]
  %v4712 = vmax.f32 %v4710, %v4711
  %v4713 = vld [vmem:[#allocation5 + $0x38] sm:$0xff]
  %v4714 = vld [vmem:[#allocation5 + $0x40] sm:$0xff]
  %v4715 = vmax.f32 %v4713, %v4714
  %v4716 = vmax.f32 %v4712, %v4715
  %v4717 = vld [vmem:[#allocation5 + $0x50] sm:$0xff]
  %v4718 = vld [vmem:[#allocation5 + $0x58] sm:$0xff]
  %v4719 = vmax.f32 %v4717, %v4718
  %v4720 = vld [vmem:[#allocation5 + $0x78] sm:$0xff]
  %v4721 = vld [vmem:[#allocation5 + $0x80] sm:$0xff]
  %v4722 = vmax.f32 %v4720, %v4721
  %v4723 = vmax.f32 %v4719, %v4722
  %v4724 = vld [vmem:[#allocation5 + $0x60] sm:$0xff]
  %v4725 = vld [vmem:[#allocation5 + $0x68] sm:$0xff]
  %v4726 = vmax.f32 %v4724, %v4725
  %v4727 = vld [vmem:[#allocation5 + $0x88] sm:$0xff]
  %v4728 = vld [vmem:[#allocation5 + $0x90] sm:$0xff]
  %v4729 = vmax.f32 %v4727, %v4728
  %v4730 = vmax.f32 %v4726, %v4729
  %v4731 = vld [vmem:[%s5] sm:$0xff]
  %v4732 = vld [vmem:[%s5 + $0x8] sm:$0xff]
  %v4733 = vld [vmem:[%s5 + $0x10] sm:$0xff]
  %v4734 = vld [vmem:[%s5 + $0x18] sm:$0xff]
  %v4735 = vld [vmem:[%s5 + $0x20] sm:$0xff]
  %v4736 = vld [vmem:[%s5 + $0x28] sm:$0xff]
  %v4737 = vld [vmem:[%s5 + $0x30] sm:$0xff]
  %v4738 = vld [vmem:[%s5 + $0x38] sm:$0xff]
  %v4739 = vld [vmem:[%s5 + $0x40] sm:$0xff]
  %v4740 = vld [vmem:[%s5 + $0x48] sm:$0xff]
  %v4741 = vld [vmem:[%s5 + $0x50] sm:$0xff]
  %v4742 = vld [vmem:[%s5 + $0x58] sm:$0xff]
  %v4743 = vld [vmem:[%s5 + $0x60] sm:$0xff]
  %v4744 = vld [vmem:[%s5 + $0x68] sm:$0xff]
  %v4745 = vld [vmem:[%s5 + $0x70] sm:$0xff]
  %v4746 = vld [vmem:[%s5 + $0x78] sm:$0xff]
  %v4747 = vld [vmem:[%s5 + $0x80] sm:$0xff]
  %v4748 = vld [vmem:[%s5 + $0x88] sm:$0xff]
  %v4749 = vld [vmem:[%s5 + $0x90] sm:$0xff]
  %v4750 = vld [vmem:[%s5 + $0x98] sm:$0xff]
  %v4751 = vld [vmem:[%s5 + $0xa0] sm:$0xff]
  %v4752 = vld [vmem:[%s5 + $0xa8] sm:$0xff]
  %v4753 = vld [vmem:[%s5 + $0xb0] sm:$0xff]
  %v4754 = vld [vmem:[%s5 + $0xb8] sm:$0xff]
  %v4755 = vld [vmem:[%s5 + $0xc0] sm:$0xff]
  %v4756 = vld [vmem:[%s5 + $0xc8] sm:$0xff]
  %v4757 = vld [vmem:[%s5 + $0xd0] sm:$0xff]
  %v4758 = vld [vmem:[%s5 + $0xd8] sm:$0xff]
  %v4759 = vld [vmem:[%s5 + $0xe0] sm:$0xff]
  %v4760 = vld [vmem:[%s5 + $0xe8] sm:$0xff]
  %v4761 = vld [vmem:[%s5 + $0xf0] sm:$0xff]
  %v4762 = vld [vmem:[%s5 + $0xf8] sm:$0xff]
  %v4763 = vld [vmem:[%s5 + $0x100] sm:$0xff]
  %v4764 = vld [vmem:[%s5 + $0x108] sm:$0xff]
  %v4765 = vld [vmem:[%s5 + $0x110] sm:$0xff]
  %v4766 = vld [vmem:[%s5 + $0x118] sm:$0xff]
  %v4767 = vld [vmem:[%s5 + $0x120] sm:$0xff]
  %v4768 = vld [vmem:[%s5 + $0x128] sm:$0xff]
  %v4769 = vld [vmem:[%s5 + $0x130] sm:$0xff]
  %v4770 = vld [vmem:[%s5 + $0x138] sm:$0xff]
  %v4771 = vld [vmem:[%s5 + $0x140] sm:$0xff]
  %v4772 = vld [vmem:[%s5 + $0x148] sm:$0xff]
  %v4773 = vld [vmem:[%s5 + $0x150] sm:$0xff]
  %v4774 = vld [vmem:[%s5 + $0x158] sm:$0xff]
  %v4775 = vld [vmem:[%s5 + $0x160] sm:$0xff]
  %v4776 = vld [vmem:[%s5 + $0x168] sm:$0xff]
  %v4777 = vld [vmem:[%s5 + $0x170] sm:$0xff]
  %v4778 = vld [vmem:[%s5 + $0x178] sm:$0xff]
  %v4779 = vld [vmem:[%s5 + $0x180] sm:$0xff]
  %v4780 = vld [vmem:[%s5 + $0x188] sm:$0xff]
  %v4781 = vld [vmem:[%s5 + $0x190] sm:$0xff]
  %v4782 = vld [vmem:[%s5 + $0x198] sm:$0xff]
  %v4783 = vld [vmem:[%s5 + $0x1a0] sm:$0xff]
  %v4784 = vld [vmem:[%s5 + $0x1a8] sm:$0xff]
  %v4785 = vld [vmem:[%s5 + $0x1b0] sm:$0xff]
  %v4786 = vld [vmem:[%s5 + $0x1b8] sm:$0xff]
  %v4787 = vld [vmem:[%s5 + $0x1c0] sm:$0xff]
  %v4788 = vld [vmem:[%s5 + $0x1c8] sm:$0xff]
  %v4789 = vld [vmem:[%s5 + $0x1d0] sm:$0xff]
  %v4790 = vld [vmem:[%s5 + $0x1d8] sm:$0xff]
  %v4791 = vld [vmem:[%s5 + $0x1e0] sm:$0xff]
  %v4792 = vld [vmem:[%s5 + $0x1e8] sm:$0xff]
  %v4793 = vld [vmem:[%s5 + $0x1f0] sm:$0xff]
  %v4794 = vld [vmem:[%s5 + $0x1f8] sm:$0xff]
  %v4795 = vld [vmem:[%s6] sm:$0x1]
  %v4797 = vperm.slane %v4795, 0
  %4799 = vmatpush.msra.mxu0 %v4746
  %4800 = vmatpush.msra.mxu0 %v4745
  %4801 = vmatpush.msra.mxu0 %v4744
  %4802 = vmatpush.msra.mxu0 %v4743
  %4803 = vmatpush.msra.mxu0 %v4742
  %4804 = vmatpush.msra.mxu0 %v4741
  %4805 = vmatpush.msra.mxu0 %v4740
  %4806 = vmatpush.msra.mxu0 %v4739
  %4807 = vmatpush.msra.mxu0 %v4738
  %4808 = vmatpush.msra.mxu0 %v4737
  %4809 = vmatpush.msra.mxu0 %v4736
  %4810 = vmatpush.msra.mxu0 %v4735
  %4811 = vmatpush.msra.mxu0 %v4734
  %4812 = vmatpush.msra.mxu0 %v4733
  %4813 = vmatpush.msra.mxu0 %v4732
  %4814 = vmatpush.msra.mxu0 %v4731
  %4815 = vmatmul.f32.gmra.mxu0 %v4709
  %v4816 = vpop.f32.mrf.mxu0
  %v4817 = vadd.f32 %v4797, %v4816
  %4818 = vdwg.mxu0
  %4819 = vmatpush.msra.mxu0 %v4762
  %4820 = vmatpush.msra.mxu0 %v4761
  %4821 = vmatpush.msra.mxu0 %v4760
  %4822 = vmatpush.msra.mxu0 %v4759
  %4823 = vmatpush.msra.mxu0 %v4758
  %4824 = vmatpush.msra.mxu0 %v4757
  %4825 = vmatpush.msra.mxu0 %v4756
  %4826 = vmatpush.msra.mxu0 %v4755
  %4827 = vmatpush.msra.mxu0 %v4754
  %4828 = vmatpush.msra.mxu0 %v4753
  %4829 = vmatpush.msra.mxu0 %v4752
  %4830 = vmatpush.msra.mxu0 %v4751
  %4831 = vmatpush.msra.mxu0 %v4750
  %4832 = vmatpush.msra.mxu0 %v4749
  %4833 = vmatpush.msra.mxu0 %v4748
  %4834 = vmatpush.msra.mxu0 %v4747
  %4835 = vmatmul.f32.gmra.mxu0 %v4716
  %v4836 = vpop.f32.mrf.mxu0
  %v4837 = vadd.f32 %v4817, %v4836
  %4838 = vdwg.mxu0
  %4839 = vmatpush.msra.mxu0 %v4778
  %4840 = vmatpush.msra.mxu0 %v4777
  %4841 = vmatpush.msra.mxu0 %v4776
  %4842 = vmatpush.msra.mxu0 %v4775
  %4843 = vmatpush.msra.mxu0 %v4774
  %4844 = vmatpush.msra.mxu0 %v4773
  %4845 = vmatpush.msra.mxu0 %v4772
  %4846 = vmatpush.msra.mxu0 %v4771
  %4847 = vmatpush.msra.mxu0 %v4770
  %4848 = vmatpush.msra.mxu0 %v4769
  %4849 = vmatpush.msra.mxu0 %v4768
  %4850 = vmatpush.msra.mxu0 %v4767
  %4851 = vmatpush.msra.mxu0 %v4766
  %4852 = vmatpush.msra.mxu0 %v4765
  %4853 = vmatpush.msra.mxu0 %v4764
  %4854 = vmatpush.msra.mxu0 %v4763
  %4855 = vmatmul.f32.gmra.mxu0 %v4723
  %v4856 = vpop.f32.mrf.mxu0
  %v4857 = vadd.f32 %v4837, %v4856
  %4858 = vdwg.mxu0
  %4859 = vmatpush.msra.mxu0 %v4794
  %4860 = vmatpush.msra.mxu0 %v4793
  %4861 = vmatpush.msra.mxu0 %v4792
  %4862 = vmatpush.msra.mxu0 %v4791
  %4863 = vmatpush.msra.mxu0 %v4790
  %4864 = vmatpush.msra.mxu0 %v4789
  %4865 = vmatpush.msra.mxu0 %v4788
  %4866 = vmatpush.msra.mxu0 %v4787
  %4867 = vmatpush.msra.mxu0 %v4786
  %4868 = vmatpush.msra.mxu0 %v4785
  %4869 = vmatpush.msra.mxu0 %v4784
  %4870 = vmatpush.msra.mxu0 %v4783
  %4871 = vmatpush.msra.mxu0 %v4782
  %4872 = vmatpush.msra.mxu0 %v4781
  %4873 = vmatpush.msra.mxu0 %v4780
  %4874 = vmatpush.msra.mxu0 %v4779
  %4875 = vmatmul.f32.gmra.mxu0 %v4730
  %v4876 = vpop.f32.mrf.mxu0
  %v4877 = vadd.f32 %v4857, %v4876
  %4878 = vdwg.mxu0
  %4879 = vst [vmem:[%s7] sm:$0xff] %v4877
  // Predicated region
  $region30: #{nn_model_forward.1} parent=0 // pred_check
    _
  $region31: #{nn_model_forward.1} parent=0 // pred_check_branch
    %4881 = sbr.rel (0) target = $region33
  $region32: #{nn_model_forward.1} parent=0 // pred_region
    _
  $region33: #{nn_model_forward.1} parent=0 // pred_fallthru
    _
  // Predicated region
  $region34: #{nn_model_forward.1} parent=0 // pred_check
    _
  $region35: #{nn_model_forward.1} parent=0 // pred_check_branch
    %4883 = sbr.rel (0) target = $region37
  $region36: #{nn_model_forward.1} parent=0 // pred_region
    _
  $region37: #{nn_model_forward.1} parent=0 // pred_fallthru
    _

</llo_original>
